<compile_context>
chip_gen: v7x
topology: tpu7x:2x2x1
jax: 0.10.0
libtpu: 0.0.40
codegen_flags: <defaults>
</compile_context>

<pallas_src>
import numpy as np
import jax
import jax.numpy as jnp
from jax import lax
from jax.experimental import pallas as pl
from jax.experimental.pallas import tpu as pltpu


# ----------------------------- config (small, synthetic) -----------------------------
class Cfg:
    vocab = 256
    d_model = 32
    num_heads = 4
    d_kv = 8
    d_ff = 64
    num_layers = 2
    rel_buckets = 32
    rel_max_distance = 128
    decoder_start_token_id = 0
    REL = 10      # stands in for tokenizer.encode('true')[0]
    NREL = 20     # stands in for tokenizer.encode('false')[0]
    eps = 1e-6


NEG = -1e9


# ----------------------------- in-kernel helper math ---------------------------------
def _rms(x, w, eps=Cfg.eps):
    """T5 LayerNorm (RMS, no mean subtraction, no bias). x: (M,D) f32, w: (1,D) f32."""
    var = jnp.mean(x * x, axis=-1, keepdims=True)
    return x * lax.rsqrt(var + eps) * w


def _mm(a, b):
    """bf16 MXU matmul with f32 accumulation."""
    return jnp.dot(a.astype(jnp.bfloat16), b.astype(jnp.bfloat16),
                   preferred_element_type=jnp.float32)


def _mm_nt(a, b):
    """(M,K) x (N,K) -> (M,N): contract last dims (q @ k^T without explicit transpose)."""
    return lax.dot_general(a.astype(jnp.bfloat16), b.astype(jnp.bfloat16),
                           (((1,), (1,)), ((), ())),
                           preferred_element_type=jnp.float32)


def _softmax_lastdim(s):
    m = jnp.max(s, axis=-1, keepdims=True)
    p = jnp.exp(s - m)
    return p * pl.reciprocal(jnp.sum(p, axis=-1, keepdims=True), approx=True)


def _mha(q_all, k_all, v_all, o_w, bias_fn):
    """Multi-head attention with per-head static slicing (no in-kernel reshape/transpose).

    q_all: (Sq, H*Dk) f32, k_all/v_all: (Sk, H*Dk) f32, o_w: (H*Dk, D) bf16.
    bias_fn(h) -> additive bias broadcastable to (Sq, Sk).
    Returns (Sq, D) f32 (already projected through o_w, summed over heads).
    T5 attention has no 1/sqrt(d_kv) scaling.
    """
    H, Dk = Cfg.num_heads, Cfg.d_kv
    out = None
    for h in range(H):
        sl = slice(h * Dk, (h + 1) * Dk)
        s = _mm_nt(q_all[:, sl], k_all[:, sl]) + bias_fn(h)          # (Sq, Sk)
        p = _softmax_lastdim(s)
        o_h = _mm(p, v_all[:, sl])                                   # (Sq, Dk)
        c = _mm(o_h, o_w[sl, :])                                     # (Sq, D)
        out = c if out is None else out + c
    return out


# --------------------------------- fused kernels --------------------------------------
def _encoder_kernel(x_ref, mask_ref, bias_ref, ln1_ref, ln2_ref,
                    qkv_ref, ow_ref, wi_ref, wo_ref, fln_ref, out_ref):
    """Full T5 encoder stack for one batch element (grid step): all layers + final LN."""
    HDk = Cfg.num_heads * Cfg.d_kv
    x = x_ref[0]                                   # (S, D) f32 residual stream
    madd = (1.0 - mask_ref[0]) * NEG               # (1, S) additive key-padding mask

    for l in range(Cfg.num_layers):
        # --- self-attention block (pre-norm, fused QKV, bias added in-kernel) ---
        h = _rms(x, ln1_ref[l])
        qkv = _mm(h, qkv_ref[l])                   # (S, 3*H*Dk) single wide matmul
        attn = _mha(qkv[:, :HDk], qkv[:, HDk:2 * HDk], qkv[:, 2 * HDk:],
                    ow_ref[l], lambda hh: bias_ref[hh] + madd)
        x = x + attn                               # residual add fused in-kernel
        # --- FFN block (T5 v1.0 ReLU) ---
        h = _rms(x, ln2_ref[l])
        x = x + _mm(jnp.maximum(_mm(h, wi_ref[l]), 0.0), wo_ref[l])

    out_ref[0] = _rms(x, fln_ref[...])             # encoder final RMSNorm fused


def _decoder_kernel(x_ref, enc_ref, mask_ref, sbias_ref,
                    ln1_ref, ln2_ref, ln3_ref,
                    sqkv_ref, so_ref, cq_ref, ckv_ref, co_ref,
                    wi_ref, wo_ref, fln_ref, head_ref, out_ref):
    """Full T5 decoder stack + relevance head for one batch element (Sq == 1)."""
    HDk = Cfg.num_heads * Cfg.d_kv
    x = x_ref[0]                                   # (1, D)
    enc = enc_ref[0]                               # (S, D)
    madd = (1.0 - mask_ref[0]) * NEG               # (1, S)

    for l in range(Cfg.num_layers):
        # --- self-attention (Sq == Sk == 1, so no causal mask is needed) ---
        h = _rms(x, ln1_ref[l])
        qkv = _mm(h, sqkv_ref[l])                  # (1, 3*H*Dk)
        attn = _mha(qkv[:, :HDk], qkv[:, HDk:2 * HDk], qkv[:, 2 * HDk:],
                    so_ref[l], lambda hh: sbias_ref[hh])
        x = x + attn
        # --- cross-attention over encoder output (no position bias, padding mask only) ---
        h = _rms(x, ln2_ref[l])
        q_all = _mm(h, cq_ref[l])                  # (1, H*Dk)
        kv = _mm(enc, ckv_ref[l])                  # (S, 2*H*Dk) fused K/V projection
        attn = _mha(q_all, kv[:, :HDk], kv[:, HDk:], co_ref[l], lambda hh: madd)
        x = x + attn
        # --- FFN ---
        h = _rms(x, ln3_ref[l])
        x = x + _mm(jnp.maximum(_mm(h, wi_ref[l]), 0.0), wo_ref[l])

    # --- relevance head: final LN, tied-embedding projection restricted to the
    #     ('true','false') rows (d_model**-0.5 pre-folded), 2-way log-softmax[:, 0] ---
    seq = _rms(x, fln_ref[...])                    # (1, D)
    logits = _mm(seq, head_ref[...])               # (1, 2)
    r = logits[:, 0:1]
    n = logits[:, 1:2]
    m = jnp.maximum(r, n)
    lse = m + jnp.log(jnp.exp(r - m) + jnp.exp(n - m))
    out_ref[0] = r - lse                           # (1, 1)


# --------------------------- position-bias glue (plain JAX) ---------------------------
def _relative_position_bucket(relative_position, bidirectional, num_buckets, max_distance):
    relative_buckets = jnp.zeros_like(relative_position)
    if bidirectional:
        num_buckets //= 2
        relative_buckets += (relative_position > 0).astype(jnp.int32) * num_buckets
        relative_position = jnp.abs(relative_position)
    else:
        relative_position = -jnp.minimum(relative_position, 0)
    max_exact = num_buckets // 2
    is_small = relative_position < max_exact
    rp = jnp.maximum(relative_position, 1).astype(jnp.float32)
    rel_if_large = max_exact + (
        jnp.log(rp / max_exact) / np.log(max_distance / max_exact) * (num_buckets - max_exact)
    ).astype(jnp.int32)
    rel_if_large = jnp.minimum(rel_if_large, num_buckets - 1)
    relative_buckets += jnp.where(is_small, relative_position, rel_if_large)
    return relative_buckets


def compute_position_bias(rel_emb, qlen, klen, bidirectional):
    ctx = jnp.arange(qlen, dtype=jnp.int32)[:, None]
    mem = jnp.arange(klen, dtype=jnp.int32)[None, :]
    bucket = _relative_position_bucket(mem - ctx, bidirectional,
                                       Cfg.rel_buckets, Cfg.rel_max_distance)
    vals = rel_emb[bucket]                        # (qlen, klen, H)
    return jnp.transpose(vals, (2, 0, 1)).astype(jnp.float32)   # (H, qlen, klen)


# ------------------------------- pallas_call wrappers ----------------------------------
def _full_spec(shp):
    return pl.BlockSpec(shp, lambda b, _n=len(shp): (0,) * _n)


def encode(params, x_emb, mask_f):
    B, S, D = x_emb.shape
    H, L, F = Cfg.num_heads, Cfg.num_layers, Cfg.d_ff
    HDk = H * Cfg.d_kv
    pos_bias = compute_position_bias(params['enc_rel_bias'], S, S, bidirectional=True)

    return pl.pallas_call(
        _encoder_kernel,
        out_shape=jax.ShapeDtypeStruct((B, S, D), jnp.float32),
        grid=(B,),
        in_specs=[
            pl.BlockSpec((1, S, D), lambda b: (b, 0, 0)),    # embedded tokens
            pl.BlockSpec((1, 1, S), lambda b: (b, 0, 0)),    # attention mask (float)
            _full_spec((H, S, S)),                           # relative-position bias
            _full_spec((L, 1, D)), _full_spec((L, 1, D)),    # ln1, ln2 (stacked)
            _full_spec((L, D, 3 * HDk)),                     # fused QKV weights
            _full_spec((L, HDk, D)),                         # o-proj
            _full_spec((L, D, F)), _full_spec((L, F, D)),    # FFN wi, wo
            _full_spec((1, D)),                              # final LN
        ],
        out_specs=pl.BlockSpec((1, S, D), lambda b: (b, 0, 0)),
        compiler_params=pltpu.CompilerParams(dimension_semantics=("parallel",)),
    )(x_emb, mask_f, pos_bias,
      params['enc_ln1'], params['enc_ln2'], params['enc_qkv'], params['enc_o'],
      params['enc_wi'], params['enc_wo'], params['enc_final_ln'])


def decode_and_score(params, dec_emb, enc_out, mask_f):
    B, S, D = enc_out.shape
    H, L, F = Cfg.num_heads, Cfg.num_layers, Cfg.d_ff
    HDk = H * Cfg.d_kv
    self_bias = compute_position_bias(params['dec_rel_bias'], 1, 1, bidirectional=False)

    out = pl.pallas_call(
        _decoder_kernel,
        out_shape=jax.ShapeDtypeStruct((B, 1, 1), jnp.float32),
        grid=(B,),
        in_specs=[
            pl.BlockSpec((1, 1, D), lambda b: (b, 0, 0)),    # decoder-start embedding
            pl.BlockSpec((1, S, D), lambda b: (b, 0, 0)),    # encoder output
            pl.BlockSpec((1, 1, S), lambda b: (b, 0, 0)),    # encoder padding mask
            _full_spec((H, 1, 1)),                           # decoder self pos bias
            _full_spec((L, 1, D)), _full_spec((L, 1, D)), _full_spec((L, 1, D)),
            _full_spec((L, D, 3 * HDk)), _full_spec((L, HDk, D)),    # self QKV, o
            _full_spec((L, D, HDk)), _full_spec((L, D, 2 * HDk)),    # cross q, fused KV
            _full_spec((L, HDk, D)),                                 # cross o
            _full_spec((L, D, F)), _full_spec((L, F, D)),            # FFN wi, wo
            _full_spec((1, D)),                                      # final LN
            _full_spec((D, 2)),                                      # (true,false) head
        ],
        out_specs=pl.BlockSpec((1, 1, 1), lambda b: (b, 0, 0)),
        compiler_params=pltpu.CompilerParams(dimension_semantics=("parallel",)),
    )(dec_emb, enc_out, mask_f, self_bias,
      params['dec_ln1'], params['dec_ln2'], params['dec_ln3'],
      params['dec_self_qkv'], params['dec_self_o'],
      params['dec_cross_q'], params['dec_cross_kv'], params['dec_cross_o'],
      params['dec_wi'], params['dec_wo'], params['dec_final_ln'], params['head_w'])
    return out[:, 0, 0]


def seq2seq_t5_score(params, input_ids, attention_mask):
    """log_softmax(logits[:, 0, (REL, NREL)], dim=1)[:, 0]  -> shape (B,)."""
    B, S = input_ids.shape
    x_emb = params['embed'][input_ids]                                     # (B, S, D)
    dec_emb = jnp.tile(params['embed'][Cfg.decoder_start_token_id].reshape(1, 1, -1),
                       (B, 1, 1))                                          # (B, 1, D)
    mask_f = attention_mask.astype(jnp.float32).reshape(B, 1, S)
    enc_out = encode(params, x_emb, mask_f)
    return decode_and_score(params, dec_emb, enc_out, mask_f)


# ------------------------------- parameter init ----------------------------------------
def init_params(key):
    """Synthetic T5 weights, stored in kernel-ready (stacked / pre-concatenated / bf16) layout."""
    D, H, Dk, F, L = Cfg.d_model, Cfg.num_heads, Cfg.d_kv, Cfg.d_ff, Cfg.num_layers
    HDk = H * Dk
    ks = iter(jax.random.split(key, 64))

    def dense(shape, scale=0.02, dtype=jnp.bfloat16):
        return (jax.random.normal(next(ks), shape, jnp.float32) * scale).astype(dtype)

    embed = jax.random.normal(next(ks), (Cfg.vocab, D), jnp.float32)
    # Tied-embedding relevance head: only the ('true','false') rows, with the
    # d_model**-0.5 tied-embedding scale folded in (the kernel never sees the full vocab).
    head_w = (embed[jnp.array([Cfg.REL, Cfg.NREL])].T * (D ** -0.5)).astype(jnp.bfloat16)

    return {
        'embed': embed,
        'head_w': head_w,
        'enc_rel_bias': dense((Cfg.rel_buckets, H), dtype=jnp.float32),
        'dec_rel_bias': dense((Cfg.rel_buckets, H), dtype=jnp.float32),
        # encoder (stacked over layers)
        'enc_ln1': jnp.ones((L, 1, D), jnp.float32),
        'enc_ln2': jnp.ones((L, 1, D), jnp.float32),
        'enc_qkv': dense((L, D, 3 * HDk)),
        'enc_o': dense((L, HDk, D)),
        'enc_wi': dense((L, D, F)),
        'enc_wo': dense((L, F, D)),
        'enc_final_ln': jnp.ones((1, D), jnp.float32),
        # decoder (stacked over layers)
        'dec_ln1': jnp.ones((L, 1, D), jnp.float32),
        'dec_ln2': jnp.ones((L, 1, D), jnp.float32),
        'dec_ln3': jnp.ones((L, 1, D), jnp.float32),
        'dec_self_qkv': dense((L, D, 3 * HDk)),
        'dec_self_o': dense((L, HDk, D)),
        'dec_cross_q': dense((L, D, HDk)),
        'dec_cross_kv': dense((L, D, 2 * HDk)),
        'dec_cross_o': dense((L, HDk, D)),
        'dec_wi': dense((L, D, F)),
        'dec_wo': dense((L, F, D)),
        'dec_final_ln': jnp.ones((1, D), jnp.float32),
    }


# ------------------------------------- main ---------------------------------------------
if __name__ == "__main__":
    # TODO(synk): HF T5Tokenizer (string -> token ids) and pretrained checkpoint loading
    # have no Pallas equivalent; synthetic token ids / deterministic weights are used.
    key = jax.random.PRNGKey(0)
    pkey, ikey = jax.random.split(key)
    params = init_params(pkey)

    B, S = 2, 8   # batch of 2 "Query ... Document ... Relevant:" sequences, length 8
    input_ids = jax.random.randint(ikey, (B, S), 2, Cfg.vocab, dtype=jnp.int32)
    attention_mask = jnp.ones((B, S), dtype=jnp.int32)

    score_fn = jax.jit(seq2seq_t5_score)
    scores = jax.block_until_ready(score_fn(params, input_ids, attention_mask))

    assert scores.shape == (B,)
    assert bool(jnp.all(jnp.isfinite(scores)))
    assert bool(jnp.all(scores <= 0.0))     # log-probabilities
    print("KERNEL_OK")
</pallas_src>

<mosaic_0001>
module attributes {stable_mosaic.version = 11 : i64} {
  func.func @_encoder_kernel(%arg0: i32, %arg1: memref<1x8x32xf32, #tpu.memory_space<vmem>>, %arg2: memref<1x1x8xf32, #tpu.memory_space<vmem>>, %arg3: memref<4x8x8xf32, #tpu.memory_space<vmem>>, %arg4: memref<2x1x32xf32, #tpu.memory_space<vmem>>, %arg5: memref<2x1x32xf32, #tpu.memory_space<vmem>>, %arg6: memref<2x32x96xbf16, #tpu.memory_space<vmem>>, %arg7: memref<2x32x32xbf16, #tpu.memory_space<vmem>>, %arg8: memref<2x32x64xbf16, #tpu.memory_space<vmem>>, %arg9: memref<2x64x32xbf16, #tpu.memory_space<vmem>>, %arg10: memref<1x32xf32, #tpu.memory_space<vmem>>, %arg11: memref<1x8x32xf32, #tpu.memory_space<vmem>>) attributes {dimension_semantics = [#tpu.dimension_semantics<parallel>], iteration_bounds = array<i64: 2>, scalar_prefetch = 0 : i64, scratch_operands = 0 : i64, tpu.core_type = #tpu.core_type<tc>, window_params = [{transform_indices = @transform_0, window_bounds = array<i64: 1, 8, 32>}, {transform_indices = @transform_1, window_bounds = array<i64: 1, 1, 8>}, {pipeline_mode = #tpu.pipeline_mode<synchronous>, transform_indices = @transform_2, window_bounds = array<i64: 4, 8, 8>}, {pipeline_mode = #tpu.pipeline_mode<synchronous>, transform_indices = @transform_3, window_bounds = array<i64: 2, 1, 32>}, {pipeline_mode = #tpu.pipeline_mode<synchronous>, transform_indices = @transform_4, window_bounds = array<i64: 2, 1, 32>}, {pipeline_mode = #tpu.pipeline_mode<synchronous>, transform_indices = @transform_5, window_bounds = array<i64: 2, 32, 96>}, {pipeline_mode = #tpu.pipeline_mode<synchronous>, transform_indices = @transform_6, window_bounds = array<i64: 2, 32, 32>}, {pipeline_mode = #tpu.pipeline_mode<synchronous>, transform_indices = @transform_7, window_bounds = array<i64: 2, 32, 64>}, {pipeline_mode = #tpu.pipeline_mode<synchronous>, transform_indices = @transform_8, window_bounds = array<i64: 2, 64, 32>}, {pipeline_mode = #tpu.pipeline_mode<synchronous>, transform_indices = @transform_9, window_bounds = array<i64: 1, 32>}, {transform_indices = @transform_10, window_bounds = array<i64: 1, 8, 32>}]} {
    %c0 = arith.constant 0 : index
    %c0_0 = arith.constant 0 : index
    %c0_1 = arith.constant 0 : index
    %0 = vector.load %arg1[%c0, %c0_0, %c0_1] : memref<1x8x32xf32, #tpu.memory_space<vmem>>, vector<1x8x32xf32>
    %1 = vector.shape_cast %0 : vector<1x8x32xf32> to vector<8x32xf32>
    %c0_2 = arith.constant 0 : index
    %c0_3 = arith.constant 0 : index
    %c0_4 = arith.constant 0 : index
    %2 = vector.load %arg2[%c0_2, %c0_3, %c0_4] : memref<1x1x8xf32, #tpu.memory_space<vmem>>, vector<1x1x8xf32>
    %3 = vector.shape_cast %2 : vector<1x1x8xf32> to vector<1x8xf32>
    %cst = arith.constant 1.000000e+00 : f32
    %4 = vector.broadcast %cst : f32 to vector<1x8xf32>
    %5 = arith.subf %4, %3 : vector<1x8xf32>
    %cst_5 = arith.constant -1.000000e+09 : f32
    %6 = vector.broadcast %cst_5 : f32 to vector<1x8xf32>
    %7 = arith.mulf %5, %6 : vector<1x8xf32>
    %c0_6 = arith.constant 0 : index
    %c0_7 = arith.constant 0 : index
    %c0_8 = arith.constant 0 : index
    %8 = vector.load %arg4[%c0_6, %c0_7, %c0_8] : memref<2x1x32xf32, #tpu.memory_space<vmem>>, vector<1x1x32xf32>
    %9 = vector.shape_cast %8 : vector<1x1x32xf32> to vector<1x32xf32>
    %10 = arith.mulf %1, %1 : vector<8x32xf32>
    %cst_9 = arith.constant dense<0.000000e+00> : vector<8xf32>
    %11 = vector.multi_reduction <add>, %10, %cst_9 [1] : vector<8x32xf32> to vector<8xf32>
    %12 = vector.shape_cast %11 : vector<8xf32> to vector<8x1xf32>
    %cst_10 = arith.constant 3.200000e+01 : f32
    %13 = vector.broadcast %cst_10 : f32 to vector<8x1xf32>
    %14 = arith.divf %12, %13 : vector<8x1xf32>
    %cst_11 = arith.constant 9.99999997E-7 : f32
    %15 = vector.broadcast %cst_11 : f32 to vector<8x1xf32>
    %16 = arith.addf %14, %15 : vector<8x1xf32>
    %17 = math.rsqrt %16 : vector<8x1xf32>
    %18 = vector.broadcast %17 : vector<8x1xf32> to vector<8x32xf32>
    %19 = arith.mulf %1, %18 : vector<8x32xf32>
    %20 = vector.broadcast %9 : vector<1x32xf32> to vector<8x32xf32>
    %21 = arith.mulf %19, %20 : vector<8x32xf32>
    %c0_12 = arith.constant 0 : index
    %c0_13 = arith.constant 0 : index
    %c0_14 = arith.constant 0 : index
    %22 = vector.load %arg6[%c0_12, %c0_13, %c0_14] : memref<2x32x96xbf16, #tpu.memory_space<vmem>>, vector<1x32x96xbf16>
    %23 = vector.shape_cast %22 : vector<1x32x96xbf16> to vector<32x96xbf16>
    %24 = arith.truncf %21 : vector<8x32xf32> to vector<8x32xbf16>
    %cst_15 = arith.constant dense<0.000000e+00> : vector<8x96xf32>
    %25 = tpu.matmul %24, %23, %cst_15 {dimension_numbers = #tpu.dot_dimension_numbers<[1], [0], [0], [1], [0, 0, 1, 1], [], []>} : vector<8x32xbf16>, vector<32x96xbf16>, vector<8x96xf32> -> vector<8x96xf32>
    %26 = vector.extract_strided_slice %25 {offsets = [0, 0], sizes = [8, 32], strides = [1, 1]} : vector<8x96xf32> to vector<8x32xf32>
    %27 = vector.extract_strided_slice %25 {offsets = [0, 32], sizes = [8, 32], strides = [1, 1]} : vector<8x96xf32> to vector<8x32xf32>
    %28 = vector.extract_strided_slice %25 {offsets = [0, 64], sizes = [8, 32], strides = [1, 1]} : vector<8x96xf32> to vector<8x32xf32>
    %c0_16 = arith.constant 0 : index
    %c0_17 = arith.constant 0 : index
    %c0_18 = arith.constant 0 : index
    %29 = vector.load %arg7[%c0_16, %c0_17, %c0_18] : memref<2x32x32xbf16, #tpu.memory_space<vmem>>, vector<1x32x32xbf16>
    %30 = vector.shape_cast %29 : vector<1x32x32xbf16> to vector<32x32xbf16>
    %31 = vector.extract_strided_slice %26 {offsets = [0, 0], sizes = [8, 8], strides = [1, 1]} : vector<8x32xf32> to vector<8x8xf32>
    %32 = vector.extract_strided_slice %27 {offsets = [0, 0], sizes = [8, 8], strides = [1, 1]} : vector<8x32xf32> to vector<8x8xf32>
    %33 = arith.truncf %31 : vector<8x8xf32> to vector<8x8xbf16>
    %34 = arith.truncf %32 : vector<8x8xf32> to vector<8x8xbf16>
    %cst_19 = arith.constant dense<0.000000e+00> : vector<8x8xf32>
    %35 = tpu.matmul %33, %34, %cst_19 {dimension_numbers = #tpu.dot_dimension_numbers<[1], [1], [0], [0], [0, 0, 1, 0], [], []>} : vector<8x8xbf16>, vector<8x8xbf16>, vector<8x8xf32> -> vector<8x8xf32>
    %c0_20 = arith.constant 0 : index
    %c0_21 = arith.constant 0 : index
    %c0_22 = arith.constant 0 : index
    %36 = vector.load %arg3[%c0_20, %c0_21, %c0_22] : memref<4x8x8xf32, #tpu.memory_space<vmem>>, vector<1x8x8xf32>
    %37 = vector.shape_cast %36 : vector<1x8x8xf32> to vector<8x8xf32>
    %38 = vector.broadcast %7 : vector<1x8xf32> to vector<8x8xf32>
    %39 = arith.addf %37, %38 : vector<8x8xf32>
    %40 = arith.addf %35, %39 : vector<8x8xf32>
    %cst_23 = arith.constant dense<0xFF800000> : vector<8xf32>
    %41 = vector.multi_reduction <maximumf>, %40, %cst_23 [1] : vector<8x8xf32> to vector<8xf32>
    %42 = vector.shape_cast %41 : vector<8xf32> to vector<8x1xf32>
    %43 = vector.broadcast %42 : vector<8x1xf32> to vector<8x8xf32>
    %44 = arith.subf %40, %43 : vector<8x8xf32>
    %45 = math.exp %44 : vector<8x8xf32>
    %cst_24 = arith.constant dense<0.000000e+00> : vector<8xf32>
    %46 = vector.multi_reduction <add>, %45, %cst_24 [1] : vector<8x8xf32> to vector<8xf32>
    %47 = vector.shape_cast %46 : vector<8xf32> to vector<8x1xf32>
    %48 = tpu.reciprocal %47 {approx = true} : vector<8x1xf32> -> vector<8x1xf32>
    %49 = vector.broadcast %48 : vector<8x1xf32> to vector<8x8xf32>
    %50 = arith.mulf %45, %49 : vector<8x8xf32>
    %51 = vector.extract_strided_slice %28 {offsets = [0, 0], sizes = [8, 8], strides = [1, 1]} : vector<8x32xf32> to vector<8x8xf32>
    %52 = arith.truncf %50 : vector<8x8xf32> to vector<8x8xbf16>
    %53 = arith.truncf %51 : vector<8x8xf32> to vector<8x8xbf16>
    %cst_25 = arith.constant dense<0.000000e+00> : vector<8x8xf32>
    %54 = tpu.matmul %52, %53, %cst_25 {dimension_numbers = #tpu.dot_dimension_numbers<[1], [0], [0], [1], [0, 0, 1, 1], [], []>} : vector<8x8xbf16>, vector<8x8xbf16>, vector<8x8xf32> -> vector<8x8xf32>
    %55 = vector.extract_strided_slice %30 {offsets = [0, 0], sizes = [8, 32], strides = [1, 1]} : vector<32x32xbf16> to vector<8x32xbf16>
    %56 = arith.truncf %54 : vector<8x8xf32> to vector<8x8xbf16>
    %cst_26 = arith.constant dense<0.000000e+00> : vector<8x32xf32>
    %57 = tpu.matmul %56, %55, %cst_26 {dimension_numbers = #tpu.dot_dimension_numbers<[1], [0], [0], [1], [0, 0, 1, 1], [], []>} : vector<8x8xbf16>, vector<8x32xbf16>, vector<8x32xf32> -> vector<8x32xf32>
    %58 = vector.extract_strided_slice %26 {offsets = [0, 8], sizes = [8, 8], strides = [1, 1]} : vector<8x32xf32> to vector<8x8xf32>
    %59 = vector.extract_strided_slice %27 {offsets = [0, 8], sizes = [8, 8], strides = [1, 1]} : vector<8x32xf32> to vector<8x8xf32>
    %60 = arith.truncf %58 : vector<8x8xf32> to vector<8x8xbf16>
    %61 = arith.truncf %59 : vector<8x8xf32> to vector<8x8xbf16>
    %cst_27 = arith.constant dense<0.000000e+00> : vector<8x8xf32>
    %62 = tpu.matmul %60, %61, %cst_27 {dimension_numbers = #tpu.dot_dimension_numbers<[1], [1], [0], [0], [0, 0, 1, 0], [], []>} : vector<8x8xbf16>, vector<8x8xbf16>, vector<8x8xf32> -> vector<8x8xf32>
    %c1 = arith.constant 1 : index
    %c0_28 = arith.constant 0 : index
    %c0_29 = arith.constant 0 : index
    %63 = vector.load %arg3[%c1, %c0_28, %c0_29] : memref<4x8x8xf32, #tpu.memory_space<vmem>>, vector<1x8x8xf32>
    %64 = vector.shape_cast %63 : vector<1x8x8xf32> to vector<8x8xf32>
    %65 = vector.broadcast %7 : vector<1x8xf32> to vector<8x8xf32>
    %66 = arith.addf %64, %65 : vector<8x8xf32>
    %67 = arith.addf %62, %66 : vector<8x8xf32>
    %cst_30 = arith.constant dense<0xFF800000> : vector<8xf32>
    %68 = vector.multi_reduction <maximumf>, %67, %cst_30 [1] : vector<8x8xf32> to vector<8xf32>
    %69 = vector.shape_cast %68 : vector<8xf32> to vector<8x1xf32>
    %70 = vector.broadcast %69 : vector<8x1xf32> to vector<8x8xf32>
    %71 = arith.subf %67, %70 : vector<8x8xf32>
    %72 = math.exp %71 : vector<8x8xf32>
    %cst_31 = arith.constant dense<0.000000e+00> : vector<8xf32>
    %73 = vector.multi_reduction <add>, %72, %cst_31 [1] : vector<8x8xf32> to vector<8xf32>
    %74 = vector.shape_cast %73 : vector<8xf32> to vector<8x1xf32>
    %75 = tpu.reciprocal %74 {approx = true} : vector<8x1xf32> -> vector<8x1xf32>
    %76 = vector.broadcast %75 : vector<8x1xf32> to vector<8x8xf32>
    %77 = arith.mulf %72, %76 : vector<8x8xf32>
    %78 = vector.extract_strided_slice %28 {offsets = [0, 8], sizes = [8, 8], strides = [1, 1]} : vector<8x32xf32> to vector<8x8xf32>
    %79 = arith.truncf %77 : vector<8x8xf32> to vector<8x8xbf16>
    %80 = arith.truncf %78 : vector<8x8xf32> to vector<8x8xbf16>
    %cst_32 = arith.constant dense<0.000000e+00> : vector<8x8xf32>
    %81 = tpu.matmul %79, %80, %cst_32 {dimension_numbers = #tpu.dot_dimension_numbers<[1], [0], [0], [1], [0, 0, 1, 1], [], []>} : vector<8x8xbf16>, vector<8x8xbf16>, vector<8x8xf32> -> vector<8x8xf32>
    %82 = vector.extract_strided_slice %30 {offsets = [8, 0], sizes = [8, 32], strides = [1, 1]} : vector<32x32xbf16> to vector<8x32xbf16>
    %83 = arith.truncf %81 : vector<8x8xf32> to vector<8x8xbf16>
    %cst_33 = arith.constant dense<0.000000e+00> : vector<8x32xf32>
    %84 = tpu.matmul %83, %82, %cst_33 {dimension_numbers = #tpu.dot_dimension_numbers<[1], [0], [0], [1], [0, 0, 1, 1], [], []>} : vector<8x8xbf16>, vector<8x32xbf16>, vector<8x32xf32> -> vector<8x32xf32>
    %85 = arith.addf %57, %84 : vector<8x32xf32>
    %86 = vector.extract_strided_slice %26 {offsets = [0, 16], sizes = [8, 8], strides = [1, 1]} : vector<8x32xf32> to vector<8x8xf32>
    %87 = vector.extract_strided_slice %27 {offsets = [0, 16], sizes = [8, 8], strides = [1, 1]} : vector<8x32xf32> to vector<8x8xf32>
    %88 = arith.truncf %86 : vector<8x8xf32> to vector<8x8xbf16>
    %89 = arith.truncf %87 : vector<8x8xf32> to vector<8x8xbf16>
    %cst_34 = arith.constant dense<0.000000e+00> : vector<8x8xf32>
    %90 = tpu.matmul %88, %89, %cst_34 {dimension_numbers = #tpu.dot_dimension_numbers<[1], [1], [0], [0], [0, 0, 1, 0], [], []>} : vector<8x8xbf16>, vector<8x8xbf16>, vector<8x8xf32> -> vector<8x8xf32>
    %c2 = arith.constant 2 : index
    %c0_35 = arith.constant 0 : index
    %c0_36 = arith.constant 0 : index
    %91 = vector.load %arg3[%c2, %c0_35, %c0_36] : memref<4x8x8xf32, #tpu.memory_space<vmem>>, vector<1x8x8xf32>
    %92 = vector.shape_cast %91 : vector<1x8x8xf32> to vector<8x8xf32>
    %93 = vector.broadcast %7 : vector<1x8xf32> to vector<8x8xf32>
    %94 = arith.addf %92, %93 : vector<8x8xf32>
    %95 = arith.addf %90, %94 : vector<8x8xf32>
    %cst_37 = arith.constant dense<0xFF800000> : vector<8xf32>
    %96 = vector.multi_reduction <maximumf>, %95, %cst_37 [1] : vector<8x8xf32> to vector<8xf32>
    %97 = vector.shape_cast %96 : vector<8xf32> to vector<8x1xf32>
    %98 = vector.broadcast %97 : vector<8x1xf32> to vector<8x8xf32>
    %99 = arith.subf %95, %98 : vector<8x8xf32>
    %100 = math.exp %99 : vector<8x8xf32>
    %cst_38 = arith.constant dense<0.000000e+00> : vector<8xf32>
    %101 = vector.multi_reduction <add>, %100, %cst_38 [1] : vector<8x8xf32> to vector<8xf32>
    %102 = vector.shape_cast %101 : vector<8xf32> to vector<8x1xf32>
    %103 = tpu.reciprocal %102 {approx = true} : vector<8x1xf32> -> vector<8x1xf32>
    %104 = vector.broadcast %103 : vector<8x1xf32> to vector<8x8xf32>
    %105 = arith.mulf %100, %104 : vector<8x8xf32>
    %106 = vector.extract_strided_slice %28 {offsets = [0, 16], sizes = [8, 8], strides = [1, 1]} : vector<8x32xf32> to vector<8x8xf32>
    %107 = arith.truncf %105 : vector<8x8xf32> to vector<8x8xbf16>
    %108 = arith.truncf %106 : vector<8x8xf32> to vector<8x8xbf16>
    %cst_39 = arith.constant dense<0.000000e+00> : vector<8x8xf32>
    %109 = tpu.matmul %107, %108, %cst_39 {dimension_numbers = #tpu.dot_dimension_numbers<[1], [0], [0], [1], [0, 0, 1, 1], [], []>} : vector<8x8xbf16>, vector<8x8xbf16>, vector<8x8xf32> -> vector<8x8xf32>
    %110 = vector.extract_strided_slice %30 {offsets = [16, 0], sizes = [8, 32], strides = [1, 1]} : vector<32x32xbf16> to vector<8x32xbf16>
    %111 = arith.truncf %109 : vector<8x8xf32> to vector<8x8xbf16>
    %cst_40 = arith.constant dense<0.000000e+00> : vector<8x32xf32>
    %112 = tpu.matmul %111, %110, %cst_40 {dimension_numbers = #tpu.dot_dimension_numbers<[1], [0], [0], [1], [0, 0, 1, 1], [], []>} : vector<8x8xbf16>, vector<8x32xbf16>, vector<8x32xf32> -> vector<8x32xf32>
    %113 = arith.addf %85, %112 : vector<8x32xf32>
    %114 = vector.extract_strided_slice %26 {offsets = [0, 24], sizes = [8, 8], strides = [1, 1]} : vector<8x32xf32> to vector<8x8xf32>
    %115 = vector.extract_strided_slice %27 {offsets = [0, 24], sizes = [8, 8], strides = [1, 1]} : vector<8x32xf32> to vector<8x8xf32>
    %116 = arith.truncf %114 : vector<8x8xf32> to vector<8x8xbf16>
    %117 = arith.truncf %115 : vector<8x8xf32> to vector<8x8xbf16>
    %cst_41 = arith.constant dense<0.000000e+00> : vector<8x8xf32>
    %118 = tpu.matmul %116, %117, %cst_41 {dimension_numbers = #tpu.dot_dimension_numbers<[1], [1], [0], [0], [0, 0, 1, 0], [], []>} : vector<8x8xbf16>, vector<8x8xbf16>, vector<8x8xf32> -> vector<8x8xf32>
    %c3 = arith.constant 3 : index
    %c0_42 = arith.constant 0 : index
    %c0_43 = arith.constant 0 : index
    %119 = vector.load %arg3[%c3, %c0_42, %c0_43] : memref<4x8x8xf32, #tpu.memory_space<vmem>>, vector<1x8x8xf32>
    %120 = vector.shape_cast %119 : vector<1x8x8xf32> to vector<8x8xf32>
    %121 = vector.broadcast %7 : vector<1x8xf32> to vector<8x8xf32>
    %122 = arith.addf %120, %121 : vector<8x8xf32>
    %123 = arith.addf %118, %122 : vector<8x8xf32>
    %cst_44 = arith.constant dense<0xFF800000> : vector<8xf32>
    %124 = vector.multi_reduction <maximumf>, %123, %cst_44 [1] : vector<8x8xf32> to vector<8xf32>
    %125 = vector.shape_cast %124 : vector<8xf32> to vector<8x1xf32>
    %126 = vector.broadcast %125 : vector<8x1xf32> to vector<8x8xf32>
    %127 = arith.subf %123, %126 : vector<8x8xf32>
    %128 = math.exp %127 : vector<8x8xf32>
    %cst_45 = arith.constant dense<0.000000e+00> : vector<8xf32>
    %129 = vector.multi_reduction <add>, %128, %cst_45 [1] : vector<8x8xf32> to vector<8xf32>
    %130 = vector.shape_cast %129 : vector<8xf32> to vector<8x1xf32>
    %131 = tpu.reciprocal %130 {approx = true} : vector<8x1xf32> -> vector<8x1xf32>
    %132 = vector.broadcast %131 : vector<8x1xf32> to vector<8x8xf32>
    %133 = arith.mulf %128, %132 : vector<8x8xf32>
    %134 = vector.extract_strided_slice %28 {offsets = [0, 24], sizes = [8, 8], strides = [1, 1]} : vector<8x32xf32> to vector<8x8xf32>
    %135 = arith.truncf %133 : vector<8x8xf32> to vector<8x8xbf16>
    %136 = arith.truncf %134 : vector<8x8xf32> to vector<8x8xbf16>
    %cst_46 = arith.constant dense<0.000000e+00> : vector<8x8xf32>
    %137 = tpu.matmul %135, %136, %cst_46 {dimension_numbers = #tpu.dot_dimension_numbers<[1], [0], [0], [1], [0, 0, 1, 1], [], []>} : vector<8x8xbf16>, vector<8x8xbf16>, vector<8x8xf32> -> vector<8x8xf32>
    %138 = vector.extract_strided_slice %30 {offsets = [24, 0], sizes = [8, 32], strides = [1, 1]} : vector<32x32xbf16> to vector<8x32xbf16>
    %139 = arith.truncf %137 : vector<8x8xf32> to vector<8x8xbf16>
    %cst_47 = arith.constant dense<0.000000e+00> : vector<8x32xf32>
    %140 = tpu.matmul %139, %138, %cst_47 {dimension_numbers = #tpu.dot_dimension_numbers<[1], [0], [0], [1], [0, 0, 1, 1], [], []>} : vector<8x8xbf16>, vector<8x32xbf16>, vector<8x32xf32> -> vector<8x32xf32>
    %141 = arith.addf %113, %140 : vector<8x32xf32>
    %142 = arith.addf %1, %141 : vector<8x32xf32>
    %c0_48 = arith.constant 0 : index
    %c0_49 = arith.constant 0 : index
    %c0_50 = arith.constant 0 : index
    %143 = vector.load %arg5[%c0_48, %c0_49, %c0_50] : memref<2x1x32xf32, #tpu.memory_space<vmem>>, vector<1x1x32xf32>
    %144 = vector.shape_cast %143 : vector<1x1x32xf32> to vector<1x32xf32>
    %145 = arith.mulf %142, %142 : vector<8x32xf32>
    %cst_51 = arith.constant dense<0.000000e+00> : vector<8xf32>
    %146 = vector.multi_reduction <add>, %145, %cst_51 [1] : vector<8x32xf32> to vector<8xf32>
    %147 = vector.shape_cast %146 : vector<8xf32> to vector<8x1xf32>
    %cst_52 = arith.constant 3.200000e+01 : f32
    %148 = vector.broadcast %cst_52 : f32 to vector<8x1xf32>
    %149 = arith.divf %147, %148 : vector<8x1xf32>
    %cst_53 = arith.constant 9.99999997E-7 : f32
    %150 = vector.broadcast %cst_53 : f32 to vector<8x1xf32>
    %151 = arith.addf %149, %150 : vector<8x1xf32>
    %152 = math.rsqrt %151 : vector<8x1xf32>
    %153 = vector.broadcast %152 : vector<8x1xf32> to vector<8x32xf32>
    %154 = arith.mulf %142, %153 : vector<8x32xf32>
    %155 = vector.broadcast %144 : vector<1x32xf32> to vector<8x32xf32>
    %156 = arith.mulf %154, %155 : vector<8x32xf32>
    %c0_54 = arith.constant 0 : index
    %c0_55 = arith.constant 0 : index
    %c0_56 = arith.constant 0 : index
    %157 = vector.load %arg8[%c0_54, %c0_55, %c0_56] : memref<2x32x64xbf16, #tpu.memory_space<vmem>>, vector<1x32x64xbf16>
    %158 = vector.shape_cast %157 : vector<1x32x64xbf16> to vector<32x64xbf16>
    %159 = arith.truncf %156 : vector<8x32xf32> to vector<8x32xbf16>
    %cst_57 = arith.constant dense<0.000000e+00> : vector<8x64xf32>
    %160 = tpu.matmul %159, %158, %cst_57 {dimension_numbers = #tpu.dot_dimension_numbers<[1], [0], [0], [1], [0, 0, 1, 1], [], []>} : vector<8x32xbf16>, vector<32x64xbf16>, vector<8x64xf32> -> vector<8x64xf32>
    %cst_58 = arith.constant 0.000000e+00 : f32
    %161 = vector.broadcast %cst_58 : f32 to vector<8x64xf32>
    %162 = arith.maximumf %160, %161 : vector<8x64xf32>
    %c0_59 = arith.constant 0 : index
    %c0_60 = arith.constant 0 : index
    %c0_61 = arith.constant 0 : index
    %163 = vector.load %arg9[%c0_59, %c0_60, %c0_61] : memref<2x64x32xbf16, #tpu.memory_space<vmem>>, vector<1x64x32xbf16>
    %164 = vector.shape_cast %163 : vector<1x64x32xbf16> to vector<64x32xbf16>
    %165 = arith.truncf %162 : vector<8x64xf32> to vector<8x64xbf16>
    %cst_62 = arith.constant dense<0.000000e+00> : vector<8x32xf32>
    %166 = tpu.matmul %165, %164, %cst_62 {dimension_numbers = #tpu.dot_dimension_numbers<[1], [0], [0], [1], [0, 0, 1, 1], [], []>} : vector<8x64xbf16>, vector<64x32xbf16>, vector<8x32xf32> -> vector<8x32xf32>
    %167 = arith.addf %142, %166 : vector<8x32xf32>
    %c1_63 = arith.constant 1 : index
    %c0_64 = arith.constant 0 : index
    %c0_65 = arith.constant 0 : index
    %168 = vector.load %arg4[%c1_63, %c0_64, %c0_65] : memref<2x1x32xf32, #tpu.memory_space<vmem>>, vector<1x1x32xf32>
    %169 = vector.shape_cast %168 : vector<1x1x32xf32> to vector<1x32xf32>
    %170 = arith.mulf %167, %167 : vector<8x32xf32>
    %cst_66 = arith.constant dense<0.000000e+00> : vector<8xf32>
    %171 = vector.multi_reduction <add>, %170, %cst_66 [1] : vector<8x32xf32> to vector<8xf32>
    %172 = vector.shape_cast %171 : vector<8xf32> to vector<8x1xf32>
    %cst_67 = arith.constant 3.200000e+01 : f32
    %173 = vector.broadcast %cst_67 : f32 to vector<8x1xf32>
    %174 = arith.divf %172, %173 : vector<8x1xf32>
    %cst_68 = arith.constant 9.99999997E-7 : f32
    %175 = vector.broadcast %cst_68 : f32 to vector<8x1xf32>
    %176 = arith.addf %174, %175 : vector<8x1xf32>
    %177 = math.rsqrt %176 : vector<8x1xf32>
    %178 = vector.broadcast %177 : vector<8x1xf32> to vector<8x32xf32>
    %179 = arith.mulf %167, %178 : vector<8x32xf32>
    %180 = vector.broadcast %169 : vector<1x32xf32> to vector<8x32xf32>
    %181 = arith.mulf %179, %180 : vector<8x32xf32>
    %c1_69 = arith.constant 1 : index
    %c0_70 = arith.constant 0 : index
    %c0_71 = arith.constant 0 : index
    %182 = vector.load %arg6[%c1_69, %c0_70, %c0_71] : memref<2x32x96xbf16, #tpu.memory_space<vmem>>, vector<1x32x96xbf16>
    %183 = vector.shape_cast %182 : vector<1x32x96xbf16> to vector<32x96xbf16>
    %184 = arith.truncf %181 : vector<8x32xf32> to vector<8x32xbf16>
    %cst_72 = arith.constant dense<0.000000e+00> : vector<8x96xf32>
    %185 = tpu.matmul %184, %183, %cst_72 {dimension_numbers = #tpu.dot_dimension_numbers<[1], [0], [0], [1], [0, 0, 1, 1], [], []>} : vector<8x32xbf16>, vector<32x96xbf16>, vector<8x96xf32> -> vector<8x96xf32>
    %186 = vector.extract_strided_slice %185 {offsets = [0, 0], sizes = [8, 32], strides = [1, 1]} : vector<8x96xf32> to vector<8x32xf32>
    %187 = vector.extract_strided_slice %185 {offsets = [0, 32], sizes = [8, 32], strides = [1, 1]} : vector<8x96xf32> to vector<8x32xf32>
    %188 = vector.extract_strided_slice %185 {offsets = [0, 64], sizes = [8, 32], strides = [1, 1]} : vector<8x96xf32> to vector<8x32xf32>
    %c1_73 = arith.constant 1 : index
    %c0_74 = arith.constant 0 : index
    %c0_75 = arith.constant 0 : index
    %189 = vector.load %arg7[%c1_73, %c0_74, %c0_75] : memref<2x32x32xbf16, #tpu.memory_space<vmem>>, vector<1x32x32xbf16>
    %190 = vector.shape_cast %189 : vector<1x32x32xbf16> to vector<32x32xbf16>
    %191 = vector.extract_strided_slice %186 {offsets = [0, 0], sizes = [8, 8], strides = [1, 1]} : vector<8x32xf32> to vector<8x8xf32>
    %192 = vector.extract_strided_slice %187 {offsets = [0, 0], sizes = [8, 8], strides = [1, 1]} : vector<8x32xf32> to vector<8x8xf32>
    %193 = arith.truncf %191 : vector<8x8xf32> to vector<8x8xbf16>
    %194 = arith.truncf %192 : vector<8x8xf32> to vector<8x8xbf16>
    %cst_76 = arith.constant dense<0.000000e+00> : vector<8x8xf32>
    %195 = tpu.matmul %193, %194, %cst_76 {dimension_numbers = #tpu.dot_dimension_numbers<[1], [1], [0], [0], [0, 0, 1, 0], [], []>} : vector<8x8xbf16>, vector<8x8xbf16>, vector<8x8xf32> -> vector<8x8xf32>
    %c0_77 = arith.constant 0 : index
    %c0_78 = arith.constant 0 : index
    %c0_79 = arith.constant 0 : index
    %196 = vector.load %arg3[%c0_77, %c0_78, %c0_79] : memref<4x8x8xf32, #tpu.memory_space<vmem>>, vector<1x8x8xf32>
    %197 = vector.shape_cast %196 : vector<1x8x8xf32> to vector<8x8xf32>
    %198 = vector.broadcast %7 : vector<1x8xf32> to vector<8x8xf32>
    %199 = arith.addf %197, %198 : vector<8x8xf32>
    %200 = arith.addf %195, %199 : vector<8x8xf32>
    %cst_80 = arith.constant dense<0xFF800000> : vector<8xf32>
    %201 = vector.multi_reduction <maximumf>, %200, %cst_80 [1] : vector<8x8xf32> to vector<8xf32>
    %202 = vector.shape_cast %201 : vector<8xf32> to vector<8x1xf32>
    %203 = vector.broadcast %202 : vector<8x1xf32> to vector<8x8xf32>
    %204 = arith.subf %200, %203 : vector<8x8xf32>
    %205 = math.exp %204 : vector<8x8xf32>
    %cst_81 = arith.constant dense<0.000000e+00> : vector<8xf32>
    %206 = vector.multi_reduction <add>, %205, %cst_81 [1] : vector<8x8xf32> to vector<8xf32>
    %207 = vector.shape_cast %206 : vector<8xf32> to vector<8x1xf32>
    %208 = tpu.reciprocal %207 {approx = true} : vector<8x1xf32> -> vector<8x1xf32>
    %209 = vector.broadcast %208 : vector<8x1xf32> to vector<8x8xf32>
    %210 = arith.mulf %205, %209 : vector<8x8xf32>
    %211 = vector.extract_strided_slice %188 {offsets = [0, 0], sizes = [8, 8], strides = [1, 1]} : vector<8x32xf32> to vector<8x8xf32>
    %212 = arith.truncf %210 : vector<8x8xf32> to vector<8x8xbf16>
    %213 = arith.truncf %211 : vector<8x8xf32> to vector<8x8xbf16>
    %cst_82 = arith.constant dense<0.000000e+00> : vector<8x8xf32>
    %214 = tpu.matmul %212, %213, %cst_82 {dimension_numbers = #tpu.dot_dimension_numbers<[1], [0], [0], [1], [0, 0, 1, 1], [], []>} : vector<8x8xbf16>, vector<8x8xbf16>, vector<8x8xf32> -> vector<8x8xf32>
    %215 = vector.extract_strided_slice %190 {offsets = [0, 0], sizes = [8, 32], strides = [1, 1]} : vector<32x32xbf16> to vector<8x32xbf16>
    %216 = arith.truncf %214 : vector<8x8xf32> to vector<8x8xbf16>
    %cst_83 = arith.constant dense<0.000000e+00> : vector<8x32xf32>
    %217 = tpu.matmul %216, %215, %cst_83 {dimension_numbers = #tpu.dot_dimension_numbers<[1], [0], [0], [1], [0, 0, 1, 1], [], []>} : vector<8x8xbf16>, vector<8x32xbf16>, vector<8x32xf32> -> vector<8x32xf32>
    %218 = vector.extract_strided_slice %186 {offsets = [0, 8], sizes = [8, 8], strides = [1, 1]} : vector<8x32xf32> to vector<8x8xf32>
    %219 = vector.extract_strided_slice %187 {offsets = [0, 8], sizes = [8, 8], strides = [1, 1]} : vector<8x32xf32> to vector<8x8xf32>
    %220 = arith.truncf %218 : vector<8x8xf32> to vector<8x8xbf16>
    %221 = arith.truncf %219 : vector<8x8xf32> to vector<8x8xbf16>
    %cst_84 = arith.constant dense<0.000000e+00> : vector<8x8xf32>
    %222 = tpu.matmul %220, %221, %cst_84 {dimension_numbers = #tpu.dot_dimension_numbers<[1], [1], [0], [0], [0, 0, 1, 0], [], []>} : vector<8x8xbf16>, vector<8x8xbf16>, vector<8x8xf32> -> vector<8x8xf32>
    %c1_85 = arith.constant 1 : index
    %c0_86 = arith.constant 0 : index
    %c0_87 = arith.constant 0 : index
    %223 = vector.load %arg3[%c1_85, %c0_86, %c0_87] : memref<4x8x8xf32, #tpu.memory_space<vmem>>, vector<1x8x8xf32>
    %224 = vector.shape_cast %223 : vector<1x8x8xf32> to vector<8x8xf32>
    %225 = vector.broadcast %7 : vector<1x8xf32> to vector<8x8xf32>
    %226 = arith.addf %224, %225 : vector<8x8xf32>
    %227 = arith.addf %222, %226 : vector<8x8xf32>
    %cst_88 = arith.constant dense<0xFF800000> : vector<8xf32>
    %228 = vector.multi_reduction <maximumf>, %227, %cst_88 [1] : vector<8x8xf32> to vector<8xf32>
    %229 = vector.shape_cast %228 : vector<8xf32> to vector<8x1xf32>
    %230 = vector.broadcast %229 : vector<8x1xf32> to vector<8x8xf32>
    %231 = arith.subf %227, %230 : vector<8x8xf32>
    %232 = math.exp %231 : vector<8x8xf32>
    %cst_89 = arith.constant dense<0.000000e+00> : vector<8xf32>
    %233 = vector.multi_reduction <add>, %232, %cst_89 [1] : vector<8x8xf32> to vector<8xf32>
    %234 = vector.shape_cast %233 : vector<8xf32> to vector<8x1xf32>
    %235 = tpu.reciprocal %234 {approx = true} : vector<8x1xf32> -> vector<8x1xf32>
    %236 = vector.broadcast %235 : vector<8x1xf32> to vector<8x8xf32>
    %237 = arith.mulf %232, %236 : vector<8x8xf32>
    %238 = vector.extract_strided_slice %188 {offsets = [0, 8], sizes = [8, 8], strides = [1, 1]} : vector<8x32xf32> to vector<8x8xf32>
    %239 = arith.truncf %237 : vector<8x8xf32> to vector<8x8xbf16>
    %240 = arith.truncf %238 : vector<8x8xf32> to vector<8x8xbf16>
    %cst_90 = arith.constant dense<0.000000e+00> : vector<8x8xf32>
    %241 = tpu.matmul %239, %240, %cst_90 {dimension_numbers = #tpu.dot_dimension_numbers<[1], [0], [0], [1], [0, 0, 1, 1], [], []>} : vector<8x8xbf16>, vector<8x8xbf16>, vector<8x8xf32> -> vector<8x8xf32>
    %242 = vector.extract_strided_slice %190 {offsets = [8, 0], sizes = [8, 32], strides = [1, 1]} : vector<32x32xbf16> to vector<8x32xbf16>
    %243 = arith.truncf %241 : vector<8x8xf32> to vector<8x8xbf16>
    %cst_91 = arith.constant dense<0.000000e+00> : vector<8x32xf32>
    %244 = tpu.matmul %243, %242, %cst_91 {dimension_numbers = #tpu.dot_dimension_numbers<[1], [0], [0], [1], [0, 0, 1, 1], [], []>} : vector<8x8xbf16>, vector<8x32xbf16>, vector<8x32xf32> -> vector<8x32xf32>
    %245 = arith.addf %217, %244 : vector<8x32xf32>
    %246 = vector.extract_strided_slice %186 {offsets = [0, 16], sizes = [8, 8], strides = [1, 1]} : vector<8x32xf32> to vector<8x8xf32>
    %247 = vector.extract_strided_slice %187 {offsets = [0, 16], sizes = [8, 8], strides = [1, 1]} : vector<8x32xf32> to vector<8x8xf32>
    %248 = arith.truncf %246 : vector<8x8xf32> to vector<8x8xbf16>
    %249 = arith.truncf %247 : vector<8x8xf32> to vector<8x8xbf16>
    %cst_92 = arith.constant dense<0.000000e+00> : vector<8x8xf32>
    %250 = tpu.matmul %248, %249, %cst_92 {dimension_numbers = #tpu.dot_dimension_numbers<[1], [1], [0], [0], [0, 0, 1, 0], [], []>} : vector<8x8xbf16>, vector<8x8xbf16>, vector<8x8xf32> -> vector<8x8xf32>
    %c2_93 = arith.constant 2 : index
    %c0_94 = arith.constant 0 : index
    %c0_95 = arith.constant 0 : index
    %251 = vector.load %arg3[%c2_93, %c0_94, %c0_95] : memref<4x8x8xf32, #tpu.memory_space<vmem>>, vector<1x8x8xf32>
    %252 = vector.shape_cast %251 : vector<1x8x8xf32> to vector<8x8xf32>
    %253 = vector.broadcast %7 : vector<1x8xf32> to vector<8x8xf32>
    %254 = arith.addf %252, %253 : vector<8x8xf32>
    %255 = arith.addf %250, %254 : vector<8x8xf32>
    %cst_96 = arith.constant dense<0xFF800000> : vector<8xf32>
    %256 = vector.multi_reduction <maximumf>, %255, %cst_96 [1] : vector<8x8xf32> to vector<8xf32>
    %257 = vector.shape_cast %256 : vector<8xf32> to vector<8x1xf32>
    %258 = vector.broadcast %257 : vector<8x1xf32> to vector<8x8xf32>
    %259 = arith.subf %255, %258 : vector<8x8xf32>
    %260 = math.exp %259 : vector<8x8xf32>
    %cst_97 = arith.constant dense<0.000000e+00> : vector<8xf32>
    %261 = vector.multi_reduction <add>, %260, %cst_97 [1] : vector<8x8xf32> to vector<8xf32>
    %262 = vector.shape_cast %261 : vector<8xf32> to vector<8x1xf32>
    %263 = tpu.reciprocal %262 {approx = true} : vector<8x1xf32> -> vector<8x1xf32>
    %264 = vector.broadcast %263 : vector<8x1xf32> to vector<8x8xf32>
    %265 = arith.mulf %260, %264 : vector<8x8xf32>
    %266 = vector.extract_strided_slice %188 {offsets = [0, 16], sizes = [8, 8], strides = [1, 1]} : vector<8x32xf32> to vector<8x8xf32>
    %267 = arith.truncf %265 : vector<8x8xf32> to vector<8x8xbf16>
    %268 = arith.truncf %266 : vector<8x8xf32> to vector<8x8xbf16>
    %cst_98 = arith.constant dense<0.000000e+00> : vector<8x8xf32>
    %269 = tpu.matmul %267, %268, %cst_98 {dimension_numbers = #tpu.dot_dimension_numbers<[1], [0], [0], [1], [0, 0, 1, 1], [], []>} : vector<8x8xbf16>, vector<8x8xbf16>, vector<8x8xf32> -> vector<8x8xf32>
    %270 = vector.extract_strided_slice %190 {offsets = [16, 0], sizes = [8, 32], strides = [1, 1]} : vector<32x32xbf16> to vector<8x32xbf16>
    %271 = arith.truncf %269 : vector<8x8xf32> to vector<8x8xbf16>
    %cst_99 = arith.constant dense<0.000000e+00> : vector<8x32xf32>
    %272 = tpu.matmul %271, %270, %cst_99 {dimension_numbers = #tpu.dot_dimension_numbers<[1], [0], [0], [1], [0, 0, 1, 1], [], []>} : vector<8x8xbf16>, vector<8x32xbf16>, vector<8x32xf32> -> vector<8x32xf32>
    %273 = arith.addf %245, %272 : vector<8x32xf32>
    %274 = vector.extract_strided_slice %186 {offsets = [0, 24], sizes = [8, 8], strides = [1, 1]} : vector<8x32xf32> to vector<8x8xf32>
    %275 = vector.extract_strided_slice %187 {offsets = [0, 24], sizes = [8, 8], strides = [1, 1]} : vector<8x32xf32> to vector<8x8xf32>
    %276 = arith.truncf %274 : vector<8x8xf32> to vector<8x8xbf16>
    %277 = arith.truncf %275 : vector<8x8xf32> to vector<8x8xbf16>
    %cst_100 = arith.constant dense<0.000000e+00> : vector<8x8xf32>
    %278 = tpu.matmul %276, %277, %cst_100 {dimension_numbers = #tpu.dot_dimension_numbers<[1], [1], [0], [0], [0, 0, 1, 0], [], []>} : vector<8x8xbf16>, vector<8x8xbf16>, vector<8x8xf32> -> vector<8x8xf32>
    %c3_101 = arith.constant 3 : index
    %c0_102 = arith.constant 0 : index
    %c0_103 = arith.constant 0 : index
    %279 = vector.load %arg3[%c3_101, %c0_102, %c0_103] : memref<4x8x8xf32, #tpu.memory_space<vmem>>, vector<1x8x8xf32>
    %280 = vector.shape_cast %279 : vector<1x8x8xf32> to vector<8x8xf32>
    %281 = vector.broadcast %7 : vector<1x8xf32> to vector<8x8xf32>
    %282 = arith.addf %280, %281 : vector<8x8xf32>
    %283 = arith.addf %278, %282 : vector<8x8xf32>
    %cst_104 = arith.constant dense<0xFF800000> : vector<8xf32>
    %284 = vector.multi_reduction <maximumf>, %283, %cst_104 [1] : vector<8x8xf32> to vector<8xf32>
    %285 = vector.shape_cast %284 : vector<8xf32> to vector<8x1xf32>
    %286 = vector.broadcast %285 : vector<8x1xf32> to vector<8x8xf32>
    %287 = arith.subf %283, %286 : vector<8x8xf32>
    %288 = math.exp %287 : vector<8x8xf32>
    %cst_105 = arith.constant dense<0.000000e+00> : vector<8xf32>
    %289 = vector.multi_reduction <add>, %288, %cst_105 [1] : vector<8x8xf32> to vector<8xf32>
    %290 = vector.shape_cast %289 : vector<8xf32> to vector<8x1xf32>
    %291 = tpu.reciprocal %290 {approx = true} : vector<8x1xf32> -> vector<8x1xf32>
    %292 = vector.broadcast %291 : vector<8x1xf32> to vector<8x8xf32>
    %293 = arith.mulf %288, %292 : vector<8x8xf32>
    %294 = vector.extract_strided_slice %188 {offsets = [0, 24], sizes = [8, 8], strides = [1, 1]} : vector<8x32xf32> to vector<8x8xf32>
    %295 = arith.truncf %293 : vector<8x8xf32> to vector<8x8xbf16>
    %296 = arith.truncf %294 : vector<8x8xf32> to vector<8x8xbf16>
    %cst_106 = arith.constant dense<0.000000e+00> : vector<8x8xf32>
    %297 = tpu.matmul %295, %296, %cst_106 {dimension_numbers = #tpu.dot_dimension_numbers<[1], [0], [0], [1], [0, 0, 1, 1], [], []>} : vector<8x8xbf16>, vector<8x8xbf16>, vector<8x8xf32> -> vector<8x8xf32>
    %298 = vector.extract_strided_slice %190 {offsets = [24, 0], sizes = [8, 32], strides = [1, 1]} : vector<32x32xbf16> to vector<8x32xbf16>
    %299 = arith.truncf %297 : vector<8x8xf32> to vector<8x8xbf16>
    %cst_107 = arith.constant dense<0.000000e+00> : vector<8x32xf32>
    %300 = tpu.matmul %299, %298, %cst_107 {dimension_numbers = #tpu.dot_dimension_numbers<[1], [0], [0], [1], [0, 0, 1, 1], [], []>} : vector<8x8xbf16>, vector<8x32xbf16>, vector<8x32xf32> -> vector<8x32xf32>
    %301 = arith.addf %273, %300 : vector<8x32xf32>
    %302 = arith.addf %167, %301 : vector<8x32xf32>
    %c1_108 = arith.constant 1 : index
    %c0_109 = arith.constant 0 : index
    %c0_110 = arith.constant 0 : index
    %303 = vector.load %arg5[%c1_108, %c0_109, %c0_110] : memref<2x1x32xf32, #tpu.memory_space<vmem>>, vector<1x1x32xf32>
    %304 = vector.shape_cast %303 : vector<1x1x32xf32> to vector<1x32xf32>
    %305 = arith.mulf %302, %302 : vector<8x32xf32>
    %cst_111 = arith.constant dense<0.000000e+00> : vector<8xf32>
    %306 = vector.multi_reduction <add>, %305, %cst_111 [1] : vector<8x32xf32> to vector<8xf32>
    %307 = vector.shape_cast %306 : vector<8xf32> to vector<8x1xf32>
    %cst_112 = arith.constant 3.200000e+01 : f32
    %308 = vector.broadcast %cst_112 : f32 to vector<8x1xf32>
    %309 = arith.divf %307, %308 : vector<8x1xf32>
    %cst_113 = arith.constant 9.99999997E-7 : f32
    %310 = vector.broadcast %cst_113 : f32 to vector<8x1xf32>
    %311 = arith.addf %309, %310 : vector<8x1xf32>
    %312 = math.rsqrt %311 : vector<8x1xf32>
    %313 = vector.broadcast %312 : vector<8x1xf32> to vector<8x32xf32>
    %314 = arith.mulf %302, %313 : vector<8x32xf32>
    %315 = vector.broadcast %304 : vector<1x32xf32> to vector<8x32xf32>
    %316 = arith.mulf %314, %315 : vector<8x32xf32>
    %c1_114 = arith.constant 1 : index
    %c0_115 = arith.constant 0 : index
    %c0_116 = arith.constant 0 : index
    %317 = vector.load %arg8[%c1_114, %c0_115, %c0_116] : memref<2x32x64xbf16, #tpu.memory_space<vmem>>, vector<1x32x64xbf16>
    %318 = vector.shape_cast %317 : vector<1x32x64xbf16> to vector<32x64xbf16>
    %319 = arith.truncf %316 : vector<8x32xf32> to vector<8x32xbf16>
    %cst_117 = arith.constant dense<0.000000e+00> : vector<8x64xf32>
    %320 = tpu.matmul %319, %318, %cst_117 {dimension_numbers = #tpu.dot_dimension_numbers<[1], [0], [0], [1], [0, 0, 1, 1], [], []>} : vector<8x32xbf16>, vector<32x64xbf16>, vector<8x64xf32> -> vector<8x64xf32>
    %cst_118 = arith.constant 0.000000e+00 : f32
    %321 = vector.broadcast %cst_118 : f32 to vector<8x64xf32>
    %322 = arith.maximumf %320, %321 : vector<8x64xf32>
    %c1_119 = arith.constant 1 : index
    %c0_120 = arith.constant 0 : index
    %c0_121 = arith.constant 0 : index
    %323 = vector.load %arg9[%c1_119, %c0_120, %c0_121] : memref<2x64x32xbf16, #tpu.memory_space<vmem>>, vector<1x64x32xbf16>
    %324 = vector.shape_cast %323 : vector<1x64x32xbf16> to vector<64x32xbf16>
    %325 = arith.truncf %322 : vector<8x64xf32> to vector<8x64xbf16>
    %cst_122 = arith.constant dense<0.000000e+00> : vector<8x32xf32>
    %326 = tpu.matmul %325, %324, %cst_122 {dimension_numbers = #tpu.dot_dimension_numbers<[1], [0], [0], [1], [0, 0, 1, 1], [], []>} : vector<8x64xbf16>, vector<64x32xbf16>, vector<8x32xf32> -> vector<8x32xf32>
    %327 = arith.addf %302, %326 : vector<8x32xf32>
    %c0_123 = arith.constant 0 : index
    %c0_124 = arith.constant 0 : index
    %328 = vector.load %arg10[%c0_123, %c0_124] : memref<1x32xf32, #tpu.memory_space<vmem>>, vector<1x32xf32>
    %329 = arith.mulf %327, %327 : vector<8x32xf32>
    %cst_125 = arith.constant dense<0.000000e+00> : vector<8xf32>
    %330 = vector.multi_reduction <add>, %329, %cst_125 [1] : vector<8x32xf32> to vector<8xf32>
    %331 = vector.shape_cast %330 : vector<8xf32> to vector<8x1xf32>
    %cst_126 = arith.constant 3.200000e+01 : f32
    %332 = vector.broadcast %cst_126 : f32 to vector<8x1xf32>
    %333 = arith.divf %331, %332 : vector<8x1xf32>
    %cst_127 = arith.constant 9.99999997E-7 : f32
    %334 = vector.broadcast %cst_127 : f32 to vector<8x1xf32>
    %335 = arith.addf %333, %334 : vector<8x1xf32>
    %336 = math.rsqrt %335 : vector<8x1xf32>
    %337 = vector.broadcast %336 : vector<8x1xf32> to vector<8x32xf32>
    %338 = arith.mulf %327, %337 : vector<8x32xf32>
    %339 = vector.broadcast %328 : vector<1x32xf32> to vector<8x32xf32>
    %340 = arith.mulf %338, %339 : vector<8x32xf32>
    %c0_128 = arith.constant 0 : index
    %c0_129 = arith.constant 0 : index
    %c0_130 = arith.constant 0 : index
    %341 = vector.load %arg11[%c0_128, %c0_129, %c0_130] : memref<1x8x32xf32, #tpu.memory_space<vmem>>, vector<1x8x32xf32>
    %342 = vector.shape_cast %341 : vector<1x8x32xf32> to vector<8x32xf32>
    %343 = vector.shape_cast %340 : vector<8x32xf32> to vector<1x8x32xf32>
    tpu.vector_store %arg11[%c0_128, %c0_129, %c0_130], %343 {strides = array<i32>} : memref<1x8x32xf32, #tpu.memory_space<vmem>>, vector<1x8x32xf32>,
    return
  }
  func.func @transform_0(%arg0: i32) -> (i32, i32, i32) {
    %c0_i32 = arith.constant 0 : i32
    %c0_i32_0 = arith.constant 0 : i32
    %c0_i32_1 = arith.constant 0 : i32
    return %arg0, %c0_i32, %c0_i32_0 : i32, i32, i32
  }
  func.func @transform_1(%arg0: i32) -> (i32, i32, i32) {
    %c0_i32 = arith.constant 0 : i32
    %c0_i32_0 = arith.constant 0 : i32
    %c0_i32_1 = arith.constant 0 : i32
    return %arg0, %c0_i32, %c0_i32_0 : i32, i32, i32
  }
  func.func @transform_2(%arg0: i32) -> (i32, i32, i32) {
    %c0_i32 = arith.constant 0 : i32
    %c0_i32_0 = arith.constant 0 : i32
    %c0_i32_1 = arith.constant 0 : i32
    %c0_i32_2 = arith.constant 0 : i32
    return %c0_i32, %c0_i32_0, %c0_i32_1 : i32, i32, i32
  }
  func.func @transform_3(%arg0: i32) -> (i32, i32, i32) {
    %c0_i32 = arith.constant 0 : i32
    %c0_i32_0 = arith.constant 0 : i32
    %c0_i32_1 = arith.constant 0 : i32
    %c0_i32_2 = arith.constant 0 : i32
    return %c0_i32, %c0_i32_0, %c0_i32_1 : i32, i32, i32
  }
  func.func @transform_4(%arg0: i32) -> (i32, i32, i32) {
    %c0_i32 = arith.constant 0 : i32
    %c0_i32_0 = arith.constant 0 : i32
    %c0_i32_1 = arith.constant 0 : i32
    %c0_i32_2 = arith.constant 0 : i32
    return %c0_i32, %c0_i32_0, %c0_i32_1 : i32, i32, i32
  }
  func.func @transform_5(%arg0: i32) -> (i32, i32, i32) {
    %c0_i32 = arith.constant 0 : i32
    %c0_i32_0 = arith.constant 0 : i32
    %c0_i32_1 = arith.constant 0 : i32
    %c0_i32_2 = arith.constant 0 : i32
    return %c0_i32, %c0_i32_0, %c0_i32_1 : i32, i32, i32
  }
  func.func @transform_6(%arg0: i32) -> (i32, i32, i32) {
    %c0_i32 = arith.constant 0 : i32
    %c0_i32_0 = arith.constant 0 : i32
    %c0_i32_1 = arith.constant 0 : i32
    %c0_i32_2 = arith.constant 0 : i32
    return %c0_i32, %c0_i32_0, %c0_i32_1 : i32, i32, i32
  }
  func.func @transform_7(%arg0: i32) -> (i32, i32, i32) {
    %c0_i32 = arith.constant 0 : i32
    %c0_i32_0 = arith.constant 0 : i32
    %c0_i32_1 = arith.constant 0 : i32
    %c0_i32_2 = arith.constant 0 : i32
    return %c0_i32, %c0_i32_0, %c0_i32_1 : i32, i32, i32
  }
  func.func @transform_8(%arg0: i32) -> (i32, i32, i32) {
    %c0_i32 = arith.constant 0 : i32
    %c0_i32_0 = arith.constant 0 : i32
    %c0_i32_1 = arith.constant 0 : i32
    %c0_i32_2 = arith.constant 0 : i32
    return %c0_i32, %c0_i32_0, %c0_i32_1 : i32, i32, i32
  }
  func.func @transform_9(%arg0: i32) -> (i32, i32) {
    %c0_i32 = arith.constant 0 : i32
    %c0_i32_0 = arith.constant 0 : i32
    %c0_i32_1 = arith.constant 0 : i32
    return %c0_i32, %c0_i32_0 : i32, i32
  }
  func.func @transform_10(%arg0: i32) -> (i32, i32, i32) {
    %c0_i32 = arith.constant 0 : i32
    %c0_i32_0 = arith.constant 0 : i32
    %c0_i32_1 = arith.constant 0 : i32
    return %arg0, %c0_i32, %c0_i32_0 : i32, i32, i32
  }
}

module attributes {stable_mosaic.version = 11 : i64} {
  func.func @_decoder_kernel(%arg0: i32, %arg1: memref<1x1x32xf32, #tpu.memory_space<vmem>>, %arg2: memref<1x8x32xf32, #tpu.memory_space<vmem>>, %arg3: memref<1x1x8xf32, #tpu.memory_space<vmem>>, %arg4: memref<4x1x1xf32, #tpu.memory_space<vmem>>, %arg5: memref<2x1x32xf32, #tpu.memory_space<vmem>>, %arg6: memref<2x1x32xf32, #tpu.memory_space<vmem>>, %arg7: memref<2x1x32xf32, #tpu.memory_space<vmem>>, %arg8: memref<2x32x96xbf16, #tpu.memory_space<vmem>>, %arg9: memref<2x32x32xbf16, #tpu.memory_space<vmem>>, %arg10: memref<2x32x32xbf16, #tpu.memory_space<vmem>>, %arg11: memref<2x32x64xbf16, #tpu.memory_space<vmem>>, %arg12: memref<2x32x32xbf16, #tpu.memory_space<vmem>>, %arg13: memref<2x32x64xbf16, #tpu.memory_space<vmem>>, %arg14: memref<2x64x32xbf16, #tpu.memory_space<vmem>>, %arg15: memref<1x32xf32, #tpu.memory_space<vmem>>, %arg16: memref<32x2xbf16, #tpu.memory_space<vmem>>, %arg17: memref<1x1x1xf32, #tpu.memory_space<vmem>>) attributes {dimension_semantics = [#tpu.dimension_semantics<parallel>], iteration_bounds = array<i64: 2>, scalar_prefetch = 0 : i64, scratch_operands = 0 : i64, tpu.core_type = #tpu.core_type<tc>, window_params = [{transform_indices = @transform_0, window_bounds = array<i64: 1, 1, 32>}, {transform_indices = @transform_1, window_bounds = array<i64: 1, 8, 32>}, {transform_indices = @transform_2, window_bounds = array<i64: 1, 1, 8>}, {pipeline_mode = #tpu.pipeline_mode<synchronous>, transform_indices = @transform_3, window_bounds = array<i64: 4, 1, 1>}, {pipeline_mode = #tpu.pipeline_mode<synchronous>, transform_indices = @transform_4, window_bounds = array<i64: 2, 1, 32>}, {pipeline_mode = #tpu.pipeline_mode<synchronous>, transform_indices = @transform_5, window_bounds = array<i64: 2, 1, 32>}, {pipeline_mode = #tpu.pipeline_mode<synchronous>, transform_indices = @transform_6, window_bounds = array<i64: 2, 1, 32>}, {pipeline_mode = #tpu.pipeline_mode<synchronous>, transform_indices = @transform_7, window_bounds = array<i64: 2, 32, 96>}, {pipeline_mode = #tpu.pipeline_mode<synchronous>, transform_indices = @transform_8, window_bounds = array<i64: 2, 32, 32>}, {pipeline_mode = #tpu.pipeline_mode<synchronous>, transform_indices = @transform_9, window_bounds = array<i64: 2, 32, 32>}, {pipeline_mode = #tpu.pipeline_mode<synchronous>, transform_indices = @transform_10, window_bounds = array<i64: 2, 32, 64>}, {pipeline_mode = #tpu.pipeline_mode<synchronous>, transform_indices = @transform_11, window_bounds = array<i64: 2, 32, 32>}, {pipeline_mode = #tpu.pipeline_mode<synchronous>, transform_indices = @transform_12, window_bounds = array<i64: 2, 32, 64>}, {pipeline_mode = #tpu.pipeline_mode<synchronous>, transform_indices = @transform_13, window_bounds = array<i64: 2, 64, 32>}, {pipeline_mode = #tpu.pipeline_mode<synchronous>, transform_indices = @transform_14, window_bounds = array<i64: 1, 32>}, {pipeline_mode = #tpu.pipeline_mode<synchronous>, transform_indices = @transform_15, window_bounds = array<i64: 32, 2>}, {transform_indices = @transform_16, window_bounds = array<i64: 1, 1, 1>}]} {
    %c0 = arith.constant 0 : index
    %c0_0 = arith.constant 0 : index
    %c0_1 = arith.constant 0 : index
    %0 = vector.load %arg1[%c0, %c0_0, %c0_1] : memref<1x1x32xf32, #tpu.memory_space<vmem>>, vector<1x1x32xf32>
    %1 = vector.shape_cast %0 : vector<1x1x32xf32> to vector<1x32xf32>
    %c0_2 = arith.constant 0 : index
    %c0_3 = arith.constant 0 : index
    %c0_4 = arith.constant 0 : index
    %2 = vector.load %arg2[%c0_2, %c0_3, %c0_4] : memref<1x8x32xf32, #tpu.memory_space<vmem>>, vector<1x8x32xf32>
    %3 = vector.shape_cast %2 : vector<1x8x32xf32> to vector<8x32xf32>
    %c0_5 = arith.constant 0 : index
    %c0_6 = arith.constant 0 : index
    %c0_7 = arith.constant 0 : index
    %4 = vector.load %arg3[%c0_5, %c0_6, %c0_7] : memref<1x1x8xf32, #tpu.memory_space<vmem>>, vector<1x1x8xf32>
    %5 = vector.shape_cast %4 : vector<1x1x8xf32> to vector<1x8xf32>
    %cst = arith.constant 1.000000e+00 : f32
    %6 = vector.broadcast %cst : f32 to vector<1x8xf32>
    %7 = arith.subf %6, %5 : vector<1x8xf32>
    %cst_8 = arith.constant -1.000000e+09 : f32
    %8 = vector.broadcast %cst_8 : f32 to vector<1x8xf32>
    %9 = arith.mulf %7, %8 : vector<1x8xf32>
    %c0_9 = arith.constant 0 : index
    %c0_10 = arith.constant 0 : index
    %c0_11 = arith.constant 0 : index
    %10 = vector.load %arg5[%c0_9, %c0_10, %c0_11] : memref<2x1x32xf32, #tpu.memory_space<vmem>>, vector<1x1x32xf32>
    %11 = vector.shape_cast %10 : vector<1x1x32xf32> to vector<1x32xf32>
    %12 = arith.mulf %1, %1 : vector<1x32xf32>
    %cst_12 = arith.constant dense<0.000000e+00> : vector<1xf32>
    %13 = vector.multi_reduction <add>, %12, %cst_12 [1] : vector<1x32xf32> to vector<1xf32>
    %14 = vector.shape_cast %13 : vector<1xf32> to vector<1x1xf32>
    %cst_13 = arith.constant 3.200000e+01 : f32
    %15 = vector.broadcast %cst_13 : f32 to vector<1x1xf32>
    %16 = arith.divf %14, %15 : vector<1x1xf32>
    %cst_14 = arith.constant 9.99999997E-7 : f32
    %17 = vector.broadcast %cst_14 : f32 to vector<1x1xf32>
    %18 = arith.addf %16, %17 : vector<1x1xf32>
    %19 = math.rsqrt %18 : vector<1x1xf32>
    %20 = vector.broadcast %19 : vector<1x1xf32> to vector<1x32xf32>
    %21 = arith.mulf %1, %20 : vector<1x32xf32>
    %22 = arith.mulf %21, %11 : vector<1x32xf32>
    %c0_15 = arith.constant 0 : index
    %c0_16 = arith.constant 0 : index
    %c0_17 = arith.constant 0 : index
    %23 = vector.load %arg8[%c0_15, %c0_16, %c0_17] : memref<2x32x96xbf16, #tpu.memory_space<vmem>>, vector<1x32x96xbf16>
    %24 = vector.shape_cast %23 : vector<1x32x96xbf16> to vector<32x96xbf16>
    %25 = arith.truncf %22 : vector<1x32xf32> to vector<1x32xbf16>
    %cst_18 = arith.constant dense<0.000000e+00> : vector<1x96xf32>
    %26 = tpu.matmul %25, %24, %cst_18 {dimension_numbers = #tpu.dot_dimension_numbers<[1], [0], [0], [1], [0, 0, 1, 1], [], []>} : vector<1x32xbf16>, vector<32x96xbf16>, vector<1x96xf32> -> vector<1x96xf32>
    %27 = vector.extract_strided_slice %26 {offsets = [0, 0], sizes = [1, 32], strides = [1, 1]} : vector<1x96xf32> to vector<1x32xf32>
    %28 = vector.extract_strided_slice %26 {offsets = [0, 32], sizes = [1, 32], strides = [1, 1]} : vector<1x96xf32> to vector<1x32xf32>
    %29 = vector.extract_strided_slice %26 {offsets = [0, 64], sizes = [1, 32], strides = [1, 1]} : vector<1x96xf32> to vector<1x32xf32>
    %c0_19 = arith.constant 0 : index
    %c0_20 = arith.constant 0 : index
    %c0_21 = arith.constant 0 : index
    %30 = vector.load %arg9[%c0_19, %c0_20, %c0_21] : memref<2x32x32xbf16, #tpu.memory_space<vmem>>, vector<1x32x32xbf16>
    %31 = vector.shape_cast %30 : vector<1x32x32xbf16> to vector<32x32xbf16>
    %32 = vector.extract_strided_slice %27 {offsets = [0, 0], sizes = [1, 8], strides = [1, 1]} : vector<1x32xf32> to vector<1x8xf32>
    %33 = vector.extract_strided_slice %28 {offsets = [0, 0], sizes = [1, 8], strides = [1, 1]} : vector<1x32xf32> to vector<1x8xf32>
    %34 = arith.truncf %32 : vector<1x8xf32> to vector<1x8xbf16>
    %35 = arith.truncf %33 : vector<1x8xf32> to vector<1x8xbf16>
    %36 = arith.extf %34 : vector<1x8xbf16> to vector<1x8xf32>
    %37 = arith.extf %35 : vector<1x8xbf16> to vector<1x8xf32>
    %cst_22 = arith.constant dense<0.000000e+00> : vector<1xf32>
    %38 = arith.mulf %36, %37 : vector<1x8xf32>
    %39 = vector.multi_reduction <add>, %38, %cst_22 [1] : vector<1x8xf32> to vector<1xf32>
    %40 = vector.shape_cast %39 : vector<1xf32> to vector<1x1xf32>
    %c0_23 = arith.constant 0 : index
    %c0_24 = arith.constant 0 : index
    %c0_25 = arith.constant 0 : index
    %41 = vector.load %arg4[%c0_23, %c0_24, %c0_25] : memref<4x1x1xf32, #tpu.memory_space<vmem>>, vector<1x1x1xf32>
    %42 = vector.shape_cast %41 : vector<1x1x1xf32> to vector<1x1xf32>
    %43 = arith.addf %40, %42 : vector<1x1xf32>
    %cst_26 = arith.constant dense<0xFF800000> : vector<1xf32>
    %44 = vector.multi_reduction <maximumf>, %43, %cst_26 [1] : vector<1x1xf32> to vector<1xf32>
    %45 = vector.shape_cast %44 : vector<1xf32> to vector<1x1xf32>
    %46 = arith.subf %43, %45 : vector<1x1xf32>
    %47 = math.exp %46 : vector<1x1xf32>
    %cst_27 = arith.constant dense<0.000000e+00> : vector<1xf32>
    %48 = vector.multi_reduction <add>, %47, %cst_27 [1] : vector<1x1xf32> to vector<1xf32>
    %49 = vector.shape_cast %48 : vector<1xf32> to vector<1x1xf32>
    %50 = tpu.reciprocal %49 {approx = true} : vector<1x1xf32> -> vector<1x1xf32>
    %51 = arith.mulf %47, %50 : vector<1x1xf32>
    %52 = vector.extract_strided_slice %29 {offsets = [0, 0], sizes = [1, 8], strides = [1, 1]} : vector<1x32xf32> to vector<1x8xf32>
    %53 = arith.truncf %51 : vector<1x1xf32> to vector<1x1xbf16>
    %54 = arith.truncf %52 : vector<1x8xf32> to vector<1x8xbf16>
    %cst_28 = arith.constant dense<0.000000e+00> : vector<1x8xf32>
    %55 = tpu.matmul %53, %54, %cst_28 {dimension_numbers = #tpu.dot_dimension_numbers<[1], [0], [0], [1], [0, 0, 1, 1], [], []>} : vector<1x1xbf16>, vector<1x8xbf16>, vector<1x8xf32> -> vector<1x8xf32>
    %56 = vector.extract_strided_slice %31 {offsets = [0, 0], sizes = [8, 32], strides = [1, 1]} : vector<32x32xbf16> to vector<8x32xbf16>
    %57 = arith.truncf %55 : vector<1x8xf32> to vector<1x8xbf16>
    %cst_29 = arith.constant dense<0.000000e+00> : vector<1x32xf32>
    %58 = tpu.matmul %57, %56, %cst_29 {dimension_numbers = #tpu.dot_dimension_numbers<[1], [0], [0], [1], [0, 0, 1, 1], [], []>} : vector<1x8xbf16>, vector<8x32xbf16>, vector<1x32xf32> -> vector<1x32xf32>
    %59 = vector.extract_strided_slice %27 {offsets = [0, 8], sizes = [1, 8], strides = [1, 1]} : vector<1x32xf32> to vector<1x8xf32>
    %60 = vector.extract_strided_slice %28 {offsets = [0, 8], sizes = [1, 8], strides = [1, 1]} : vector<1x32xf32> to vector<1x8xf32>
    %61 = arith.truncf %59 : vector<1x8xf32> to vector<1x8xbf16>
    %62 = arith.truncf %60 : vector<1x8xf32> to vector<1x8xbf16>
    %63 = arith.extf %61 : vector<1x8xbf16> to vector<1x8xf32>
    %64 = arith.extf %62 : vector<1x8xbf16> to vector<1x8xf32>
    %cst_30 = arith.constant dense<0.000000e+00> : vector<1xf32>
    %65 = arith.mulf %63, %64 : vector<1x8xf32>
    %66 = vector.multi_reduction <add>, %65, %cst_30 [1] : vector<1x8xf32> to vector<1xf32>
    %67 = vector.shape_cast %66 : vector<1xf32> to vector<1x1xf32>
    %c1 = arith.constant 1 : index
    %c0_31 = arith.constant 0 : index
    %c0_32 = arith.constant 0 : index
    %68 = vector.load %arg4[%c1, %c0_31, %c0_32] : memref<4x1x1xf32, #tpu.memory_space<vmem>>, vector<1x1x1xf32>
    %69 = vector.shape_cast %68 : vector<1x1x1xf32> to vector<1x1xf32>
    %70 = arith.addf %67, %69 : vector<1x1xf32>
    %cst_33 = arith.constant dense<0xFF800000> : vector<1xf32>
    %71 = vector.multi_reduction <maximumf>, %70, %cst_33 [1] : vector<1x1xf32> to vector<1xf32>
    %72 = vector.shape_cast %71 : vector<1xf32> to vector<1x1xf32>
    %73 = arith.subf %70, %72 : vector<1x1xf32>
    %74 = math.exp %73 : vector<1x1xf32>
    %cst_34 = arith.constant dense<0.000000e+00> : vector<1xf32>
    %75 = vector.multi_reduction <add>, %74, %cst_34 [1] : vector<1x1xf32> to vector<1xf32>
    %76 = vector.shape_cast %75 : vector<1xf32> to vector<1x1xf32>
    %77 = tpu.reciprocal %76 {approx = true} : vector<1x1xf32> -> vector<1x1xf32>
    %78 = arith.mulf %74, %77 : vector<1x1xf32>
    %79 = vector.extract_strided_slice %29 {offsets = [0, 8], sizes = [1, 8], strides = [1, 1]} : vector<1x32xf32> to vector<1x8xf32>
    %80 = arith.truncf %78 : vector<1x1xf32> to vector<1x1xbf16>
    %81 = arith.truncf %79 : vector<1x8xf32> to vector<1x8xbf16>
    %cst_35 = arith.constant dense<0.000000e+00> : vector<1x8xf32>
    %82 = tpu.matmul %80, %81, %cst_35 {dimension_numbers = #tpu.dot_dimension_numbers<[1], [0], [0], [1], [0, 0, 1, 1], [], []>} : vector<1x1xbf16>, vector<1x8xbf16>, vector<1x8xf32> -> vector<1x8xf32>
    %83 = vector.extract_strided_slice %31 {offsets = [8, 0], sizes = [8, 32], strides = [1, 1]} : vector<32x32xbf16> to vector<8x32xbf16>
    %84 = arith.truncf %82 : vector<1x8xf32> to vector<1x8xbf16>
    %cst_36 = arith.constant dense<0.000000e+00> : vector<1x32xf32>
    %85 = tpu.matmul %84, %83, %cst_36 {dimension_numbers = #tpu.dot_dimension_numbers<[1], [0], [0], [1], [0, 0, 1, 1], [], []>} : vector<1x8xbf16>, vector<8x32xbf16>, vector<1x32xf32> -> vector<1x32xf32>
    %86 = arith.addf %58, %85 : vector<1x32xf32>
    %87 = vector.extract_strided_slice %27 {offsets = [0, 16], sizes = [1, 8], strides = [1, 1]} : vector<1x32xf32> to vector<1x8xf32>
    %88 = vector.extract_strided_slice %28 {offsets = [0, 16], sizes = [1, 8], strides = [1, 1]} : vector<1x32xf32> to vector<1x8xf32>
    %89 = arith.truncf %87 : vector<1x8xf32> to vector<1x8xbf16>
    %90 = arith.truncf %88 : vector<1x8xf32> to vector<1x8xbf16>
    %91 = arith.extf %89 : vector<1x8xbf16> to vector<1x8xf32>
    %92 = arith.extf %90 : vector<1x8xbf16> to vector<1x8xf32>
    %cst_37 = arith.constant dense<0.000000e+00> : vector<1xf32>
    %93 = arith.mulf %91, %92 : vector<1x8xf32>
    %94 = vector.multi_reduction <add>, %93, %cst_37 [1] : vector<1x8xf32> to vector<1xf32>
    %95 = vector.shape_cast %94 : vector<1xf32> to vector<1x1xf32>
    %c2 = arith.constant 2 : index
    %c0_38 = arith.constant 0 : index
    %c0_39 = arith.constant 0 : index
    %96 = vector.load %arg4[%c2, %c0_38, %c0_39] : memref<4x1x1xf32, #tpu.memory_space<vmem>>, vector<1x1x1xf32>
    %97 = vector.shape_cast %96 : vector<1x1x1xf32> to vector<1x1xf32>
    %98 = arith.addf %95, %97 : vector<1x1xf32>
    %cst_40 = arith.constant dense<0xFF800000> : vector<1xf32>
    %99 = vector.multi_reduction <maximumf>, %98, %cst_40 [1] : vector<1x1xf32> to vector<1xf32>
    %100 = vector.shape_cast %99 : vector<1xf32> to vector<1x1xf32>
    %101 = arith.subf %98, %100 : vector<1x1xf32>
    %102 = math.exp %101 : vector<1x1xf32>
    %cst_41 = arith.constant dense<0.000000e+00> : vector<1xf32>
    %103 = vector.multi_reduction <add>, %102, %cst_41 [1] : vector<1x1xf32> to vector<1xf32>
    %104 = vector.shape_cast %103 : vector<1xf32> to vector<1x1xf32>
    %105 = tpu.reciprocal %104 {approx = true} : vector<1x1xf32> -> vector<1x1xf32>
    %106 = arith.mulf %102, %105 : vector<1x1xf32>
    %107 = vector.extract_strided_slice %29 {offsets = [0, 16], sizes = [1, 8], strides = [1, 1]} : vector<1x32xf32> to vector<1x8xf32>
    %108 = arith.truncf %106 : vector<1x1xf32> to vector<1x1xbf16>
    %109 = arith.truncf %107 : vector<1x8xf32> to vector<1x8xbf16>
    %cst_42 = arith.constant dense<0.000000e+00> : vector<1x8xf32>
    %110 = tpu.matmul %108, %109, %cst_42 {dimension_numbers = #tpu.dot_dimension_numbers<[1], [0], [0], [1], [0, 0, 1, 1], [], []>} : vector<1x1xbf16>, vector<1x8xbf16>, vector<1x8xf32> -> vector<1x8xf32>
    %111 = vector.extract_strided_slice %31 {offsets = [16, 0], sizes = [8, 32], strides = [1, 1]} : vector<32x32xbf16> to vector<8x32xbf16>
    %112 = arith.truncf %110 : vector<1x8xf32> to vector<1x8xbf16>
    %cst_43 = arith.constant dense<0.000000e+00> : vector<1x32xf32>
    %113 = tpu.matmul %112, %111, %cst_43 {dimension_numbers = #tpu.dot_dimension_numbers<[1], [0], [0], [1], [0, 0, 1, 1], [], []>} : vector<1x8xbf16>, vector<8x32xbf16>, vector<1x32xf32> -> vector<1x32xf32>
    %114 = arith.addf %86, %113 : vector<1x32xf32>
    %115 = vector.extract_strided_slice %27 {offsets = [0, 24], sizes = [1, 8], strides = [1, 1]} : vector<1x32xf32> to vector<1x8xf32>
    %116 = vector.extract_strided_slice %28 {offsets = [0, 24], sizes = [1, 8], strides = [1, 1]} : vector<1x32xf32> to vector<1x8xf32>
    %117 = arith.truncf %115 : vector<1x8xf32> to vector<1x8xbf16>
    %118 = arith.truncf %116 : vector<1x8xf32> to vector<1x8xbf16>
    %119 = arith.extf %117 : vector<1x8xbf16> to vector<1x8xf32>
    %120 = arith.extf %118 : vector<1x8xbf16> to vector<1x8xf32>
    %cst_44 = arith.constant dense<0.000000e+00> : vector<1xf32>
    %121 = arith.mulf %119, %120 : vector<1x8xf32>
    %122 = vector.multi_reduction <add>, %121, %cst_44 [1] : vector<1x8xf32> to vector<1xf32>
    %123 = vector.shape_cast %122 : vector<1xf32> to vector<1x1xf32>
    %c3 = arith.constant 3 : index
    %c0_45 = arith.constant 0 : index
    %c0_46 = arith.constant 0 : index
    %124 = vector.load %arg4[%c3, %c0_45, %c0_46] : memref<4x1x1xf32, #tpu.memory_space<vmem>>, vector<1x1x1xf32>
    %125 = vector.shape_cast %124 : vector<1x1x1xf32> to vector<1x1xf32>
    %126 = arith.addf %123, %125 : vector<1x1xf32>
    %cst_47 = arith.constant dense<0xFF800000> : vector<1xf32>
    %127 = vector.multi_reduction <maximumf>, %126, %cst_47 [1] : vector<1x1xf32> to vector<1xf32>
    %128 = vector.shape_cast %127 : vector<1xf32> to vector<1x1xf32>
    %129 = arith.subf %126, %128 : vector<1x1xf32>
    %130 = math.exp %129 : vector<1x1xf32>
    %cst_48 = arith.constant dense<0.000000e+00> : vector<1xf32>
    %131 = vector.multi_reduction <add>, %130, %cst_48 [1] : vector<1x1xf32> to vector<1xf32>
    %132 = vector.shape_cast %131 : vector<1xf32> to vector<1x1xf32>
    %133 = tpu.reciprocal %132 {approx = true} : vector<1x1xf32> -> vector<1x1xf32>
    %134 = arith.mulf %130, %133 : vector<1x1xf32>
    %135 = vector.extract_strided_slice %29 {offsets = [0, 24], sizes = [1, 8], strides = [1, 1]} : vector<1x32xf32> to vector<1x8xf32>
    %136 = arith.truncf %134 : vector<1x1xf32> to vector<1x1xbf16>
    %137 = arith.truncf %135 : vector<1x8xf32> to vector<1x8xbf16>
    %cst_49 = arith.constant dense<0.000000e+00> : vector<1x8xf32>
    %138 = tpu.matmul %136, %137, %cst_49 {dimension_numbers = #tpu.dot_dimension_numbers<[1], [0], [0], [1], [0, 0, 1, 1], [], []>} : vector<1x1xbf16>, vector<1x8xbf16>, vector<1x8xf32> -> vector<1x8xf32>
    %139 = vector.extract_strided_slice %31 {offsets = [24, 0], sizes = [8, 32], strides = [1, 1]} : vector<32x32xbf16> to vector<8x32xbf16>
    %140 = arith.truncf %138 : vector<1x8xf32> to vector<1x8xbf16>
    %cst_50 = arith.constant dense<0.000000e+00> : vector<1x32xf32>
    %141 = tpu.matmul %140, %139, %cst_50 {dimension_numbers = #tpu.dot_dimension_numbers<[1], [0], [0], [1], [0, 0, 1, 1], [], []>} : vector<1x8xbf16>, vector<8x32xbf16>, vector<1x32xf32> -> vector<1x32xf32>
    %142 = arith.addf %114, %141 : vector<1x32xf32>
    %143 = arith.addf %1, %142 : vector<1x32xf32>
    %c0_51 = arith.constant 0 : index
    %c0_52 = arith.constant 0 : index
    %c0_53 = arith.constant 0 : index
    %144 = vector.load %arg6[%c0_51, %c0_52, %c0_53] : memref<2x1x32xf32, #tpu.memory_space<vmem>>, vector<1x1x32xf32>
    %145 = vector.shape_cast %144 : vector<1x1x32xf32> to vector<1x32xf32>
    %146 = arith.mulf %143, %143 : vector<1x32xf32>
    %cst_54 = arith.constant dense<0.000000e+00> : vector<1xf32>
    %147 = vector.multi_reduction <add>, %146, %cst_54 [1] : vector<1x32xf32> to vector<1xf32>
    %148 = vector.shape_cast %147 : vector<1xf32> to vector<1x1xf32>
    %cst_55 = arith.constant 3.200000e+01 : f32
    %149 = vector.broadcast %cst_55 : f32 to vector<1x1xf32>
    %150 = arith.divf %148, %149 : vector<1x1xf32>
    %cst_56 = arith.constant 9.99999997E-7 : f32
    %151 = vector.broadcast %cst_56 : f32 to vector<1x1xf32>
    %152 = arith.addf %150, %151 : vector<1x1xf32>
    %153 = math.rsqrt %152 : vector<1x1xf32>
    %154 = vector.broadcast %153 : vector<1x1xf32> to vector<1x32xf32>
    %155 = arith.mulf %143, %154 : vector<1x32xf32>
    %156 = arith.mulf %155, %145 : vector<1x32xf32>
    %c0_57 = arith.constant 0 : index
    %c0_58 = arith.constant 0 : index
    %c0_59 = arith.constant 0 : index
    %157 = vector.load %arg10[%c0_57, %c0_58, %c0_59] : memref<2x32x32xbf16, #tpu.memory_space<vmem>>, vector<1x32x32xbf16>
    %158 = vector.shape_cast %157 : vector<1x32x32xbf16> to vector<32x32xbf16>
    %159 = arith.truncf %156 : vector<1x32xf32> to vector<1x32xbf16>
    %cst_60 = arith.constant dense<0.000000e+00> : vector<1x32xf32>
    %160 = tpu.matmul %159, %158, %cst_60 {dimension_numbers = #tpu.dot_dimension_numbers<[1], [0], [0], [1], [0, 0, 1, 1], [], []>} : vector<1x32xbf16>, vector<32x32xbf16>, vector<1x32xf32> -> vector<1x32xf32>
    %c0_61 = arith.constant 0 : index
    %c0_62 = arith.constant 0 : index
    %c0_63 = arith.constant 0 : index
    %161 = vector.load %arg11[%c0_61, %c0_62, %c0_63] : memref<2x32x64xbf16, #tpu.memory_space<vmem>>, vector<1x32x64xbf16>
    %162 = vector.shape_cast %161 : vector<1x32x64xbf16> to vector<32x64xbf16>
    %163 = arith.truncf %3 : vector<8x32xf32> to vector<8x32xbf16>
    %cst_64 = arith.constant dense<0.000000e+00> : vector<8x64xf32>
    %164 = tpu.matmul %163, %162, %cst_64 {dimension_numbers = #tpu.dot_dimension_numbers<[1], [0], [0], [1], [0, 0, 1, 1], [], []>} : vector<8x32xbf16>, vector<32x64xbf16>, vector<8x64xf32> -> vector<8x64xf32>
    %165 = vector.extract_strided_slice %164 {offsets = [0, 0], sizes = [8, 32], strides = [1, 1]} : vector<8x64xf32> to vector<8x32xf32>
    %166 = vector.extract_strided_slice %164 {offsets = [0, 32], sizes = [8, 32], strides = [1, 1]} : vector<8x64xf32> to vector<8x32xf32>
    %c0_65 = arith.constant 0 : index
    %c0_66 = arith.constant 0 : index
    %c0_67 = arith.constant 0 : index
    %167 = vector.load %arg12[%c0_65, %c0_66, %c0_67] : memref<2x32x32xbf16, #tpu.memory_space<vmem>>, vector<1x32x32xbf16>
    %168 = vector.shape_cast %167 : vector<1x32x32xbf16> to vector<32x32xbf16>
    %169 = vector.extract_strided_slice %160 {offsets = [0, 0], sizes = [1, 8], strides = [1, 1]} : vector<1x32xf32> to vector<1x8xf32>
    %170 = vector.extract_strided_slice %165 {offsets = [0, 0], sizes = [8, 8], strides = [1, 1]} : vector<8x32xf32> to vector<8x8xf32>
    %171 = arith.truncf %169 : vector<1x8xf32> to vector<1x8xbf16>
    %172 = arith.truncf %170 : vector<8x8xf32> to vector<8x8xbf16>
    %cst_68 = arith.constant dense<0.000000e+00> : vector<1x8xf32>
    %173 = tpu.matmul %171, %172, %cst_68 {dimension_numbers = #tpu.dot_dimension_numbers<[1], [1], [0], [0], [0, 0, 1, 0], [], []>} : vector<1x8xbf16>, vector<8x8xbf16>, vector<1x8xf32> -> vector<1x8xf32>
    %174 = arith.addf %173, %9 : vector<1x8xf32>
    %cst_69 = arith.constant dense<0xFF800000> : vector<1xf32>
    %175 = vector.multi_reduction <maximumf>, %174, %cst_69 [1] : vector<1x8xf32> to vector<1xf32>
    %176 = vector.shape_cast %175 : vector<1xf32> to vector<1x1xf32>
    %177 = vector.broadcast %176 : vector<1x1xf32> to vector<1x8xf32>
    %178 = arith.subf %174, %177 : vector<1x8xf32>
    %179 = math.exp %178 : vector<1x8xf32>
    %cst_70 = arith.constant dense<0.000000e+00> : vector<1xf32>
    %180 = vector.multi_reduction <add>, %179, %cst_70 [1] : vector<1x8xf32> to vector<1xf32>
    %181 = vector.shape_cast %180 : vector<1xf32> to vector<1x1xf32>
    %182 = tpu.reciprocal %181 {approx = true} : vector<1x1xf32> -> vector<1x1xf32>
    %183 = vector.broadcast %182 : vector<1x1xf32> to vector<1x8xf32>
    %184 = arith.mulf %179, %183 : vector<1x8xf32>
    %185 = vector.extract_strided_slice %166 {offsets = [0, 0], sizes = [8, 8], strides = [1, 1]} : vector<8x32xf32> to vector<8x8xf32>
    %186 = arith.truncf %184 : vector<1x8xf32> to vector<1x8xbf16>
    %187 = arith.truncf %185 : vector<8x8xf32> to vector<8x8xbf16>
    %cst_71 = arith.constant dense<0.000000e+00> : vector<1x8xf32>
    %188 = tpu.matmul %186, %187, %cst_71 {dimension_numbers = #tpu.dot_dimension_numbers<[1], [0], [0], [1], [0, 0, 1, 1], [], []>} : vector<1x8xbf16>, vector<8x8xbf16>, vector<1x8xf32> -> vector<1x8xf32>
    %189 = vector.extract_strided_slice %168 {offsets = [0, 0], sizes = [8, 32], strides = [1, 1]} : vector<32x32xbf16> to vector<8x32xbf16>
    %190 = arith.truncf %188 : vector<1x8xf32> to vector<1x8xbf16>
    %cst_72 = arith.constant dense<0.000000e+00> : vector<1x32xf32>
    %191 = tpu.matmul %190, %189, %cst_72 {dimension_numbers = #tpu.dot_dimension_numbers<[1], [0], [0], [1], [0, 0, 1, 1], [], []>} : vector<1x8xbf16>, vector<8x32xbf16>, vector<1x32xf32> -> vector<1x32xf32>
    %192 = vector.extract_strided_slice %160 {offsets = [0, 8], sizes = [1, 8], strides = [1, 1]} : vector<1x32xf32> to vector<1x8xf32>
    %193 = vector.extract_strided_slice %165 {offsets = [0, 8], sizes = [8, 8], strides = [1, 1]} : vector<8x32xf32> to vector<8x8xf32>
    %194 = arith.truncf %192 : vector<1x8xf32> to vector<1x8xbf16>
    %195 = arith.truncf %193 : vector<8x8xf32> to vector<8x8xbf16>
    %cst_73 = arith.constant dense<0.000000e+00> : vector<1x8xf32>
    %196 = tpu.matmul %194, %195, %cst_73 {dimension_numbers = #tpu.dot_dimension_numbers<[1], [1], [0], [0], [0, 0, 1, 0], [], []>} : vector<1x8xbf16>, vector<8x8xbf16>, vector<1x8xf32> -> vector<1x8xf32>
    %197 = arith.addf %196, %9 : vector<1x8xf32>
    %cst_74 = arith.constant dense<0xFF800000> : vector<1xf32>
    %198 = vector.multi_reduction <maximumf>, %197, %cst_74 [1] : vector<1x8xf32> to vector<1xf32>
    %199 = vector.shape_cast %198 : vector<1xf32> to vector<1x1xf32>
    %200 = vector.broadcast %199 : vector<1x1xf32> to vector<1x8xf32>
    %201 = arith.subf %197, %200 : vector<1x8xf32>
    %202 = math.exp %201 : vector<1x8xf32>
    %cst_75 = arith.constant dense<0.000000e+00> : vector<1xf32>
    %203 = vector.multi_reduction <add>, %202, %cst_75 [1] : vector<1x8xf32> to vector<1xf32>
    %204 = vector.shape_cast %203 : vector<1xf32> to vector<1x1xf32>
    %205 = tpu.reciprocal %204 {approx = true} : vector<1x1xf32> -> vector<1x1xf32>
    %206 = vector.broadcast %205 : vector<1x1xf32> to vector<1x8xf32>
    %207 = arith.mulf %202, %206 : vector<1x8xf32>
    %208 = vector.extract_strided_slice %166 {offsets = [0, 8], sizes = [8, 8], strides = [1, 1]} : vector<8x32xf32> to vector<8x8xf32>
    %209 = arith.truncf %207 : vector<1x8xf32> to vector<1x8xbf16>
    %210 = arith.truncf %208 : vector<8x8xf32> to vector<8x8xbf16>
    %cst_76 = arith.constant dense<0.000000e+00> : vector<1x8xf32>
    %211 = tpu.matmul %209, %210, %cst_76 {dimension_numbers = #tpu.dot_dimension_numbers<[1], [0], [0], [1], [0, 0, 1, 1], [], []>} : vector<1x8xbf16>, vector<8x8xbf16>, vector<1x8xf32> -> vector<1x8xf32>
    %212 = vector.extract_strided_slice %168 {offsets = [8, 0], sizes = [8, 32], strides = [1, 1]} : vector<32x32xbf16> to vector<8x32xbf16>
    %213 = arith.truncf %211 : vector<1x8xf32> to vector<1x8xbf16>
    %cst_77 = arith.constant dense<0.000000e+00> : vector<1x32xf32>
    %214 = tpu.matmul %213, %212, %cst_77 {dimension_numbers = #tpu.dot_dimension_numbers<[1], [0], [0], [1], [0, 0, 1, 1], [], []>} : vector<1x8xbf16>, vector<8x32xbf16>, vector<1x32xf32> -> vector<1x32xf32>
    %215 = arith.addf %191, %214 : vector<1x32xf32>
    %216 = vector.extract_strided_slice %160 {offsets = [0, 16], sizes = [1, 8], strides = [1, 1]} : vector<1x32xf32> to vector<1x8xf32>
    %217 = vector.extract_strided_slice %165 {offsets = [0, 16], sizes = [8, 8], strides = [1, 1]} : vector<8x32xf32> to vector<8x8xf32>
    %218 = arith.truncf %216 : vector<1x8xf32> to vector<1x8xbf16>
    %219 = arith.truncf %217 : vector<8x8xf32> to vector<8x8xbf16>
    %cst_78 = arith.constant dense<0.000000e+00> : vector<1x8xf32>
    %220 = tpu.matmul %218, %219, %cst_78 {dimension_numbers = #tpu.dot_dimension_numbers<[1], [1], [0], [0], [0, 0, 1, 0], [], []>} : vector<1x8xbf16>, vector<8x8xbf16>, vector<1x8xf32> -> vector<1x8xf32>
    %221 = arith.addf %220, %9 : vector<1x8xf32>
    %cst_79 = arith.constant dense<0xFF800000> : vector<1xf32>
    %222 = vector.multi_reduction <maximumf>, %221, %cst_79 [1] : vector<1x8xf32> to vector<1xf32>
    %223 = vector.shape_cast %222 : vector<1xf32> to vector<1x1xf32>
    %224 = vector.broadcast %223 : vector<1x1xf32> to vector<1x8xf32>
    %225 = arith.subf %221, %224 : vector<1x8xf32>
    %226 = math.exp %225 : vector<1x8xf32>
    %cst_80 = arith.constant dense<0.000000e+00> : vector<1xf32>
    %227 = vector.multi_reduction <add>, %226, %cst_80 [1] : vector<1x8xf32> to vector<1xf32>
    %228 = vector.shape_cast %227 : vector<1xf32> to vector<1x1xf32>
    %229 = tpu.reciprocal %228 {approx = true} : vector<1x1xf32> -> vector<1x1xf32>
    %230 = vector.broadcast %229 : vector<1x1xf32> to vector<1x8xf32>
    %231 = arith.mulf %226, %230 : vector<1x8xf32>
    %232 = vector.extract_strided_slice %166 {offsets = [0, 16], sizes = [8, 8], strides = [1, 1]} : vector<8x32xf32> to vector<8x8xf32>
    %233 = arith.truncf %231 : vector<1x8xf32> to vector<1x8xbf16>
    %234 = arith.truncf %232 : vector<8x8xf32> to vector<8x8xbf16>
    %cst_81 = arith.constant dense<0.000000e+00> : vector<1x8xf32>
    %235 = tpu.matmul %233, %234, %cst_81 {dimension_numbers = #tpu.dot_dimension_numbers<[1], [0], [0], [1], [0, 0, 1, 1], [], []>} : vector<1x8xbf16>, vector<8x8xbf16>, vector<1x8xf32> -> vector<1x8xf32>
    %236 = vector.extract_strided_slice %168 {offsets = [16, 0], sizes = [8, 32], strides = [1, 1]} : vector<32x32xbf16> to vector<8x32xbf16>
    %237 = arith.truncf %235 : vector<1x8xf32> to vector<1x8xbf16>
    %cst_82 = arith.constant dense<0.000000e+00> : vector<1x32xf32>
    %238 = tpu.matmul %237, %236, %cst_82 {dimension_numbers = #tpu.dot_dimension_numbers<[1], [0], [0], [1], [0, 0, 1, 1], [], []>} : vector<1x8xbf16>, vector<8x32xbf16>, vector<1x32xf32> -> vector<1x32xf32>
    %239 = arith.addf %215, %238 : vector<1x32xf32>
    %240 = vector.extract_strided_slice %160 {offsets = [0, 24], sizes = [1, 8], strides = [1, 1]} : vector<1x32xf32> to vector<1x8xf32>
    %241 = vector.extract_strided_slice %165 {offsets = [0, 24], sizes = [8, 8], strides = [1, 1]} : vector<8x32xf32> to vector<8x8xf32>
    %242 = arith.truncf %240 : vector<1x8xf32> to vector<1x8xbf16>
    %243 = arith.truncf %241 : vector<8x8xf32> to vector<8x8xbf16>
    %cst_83 = arith.constant dense<0.000000e+00> : vector<1x8xf32>
    %244 = tpu.matmul %242, %243, %cst_83 {dimension_numbers = #tpu.dot_dimension_numbers<[1], [1], [0], [0], [0, 0, 1, 0], [], []>} : vector<1x8xbf16>, vector<8x8xbf16>, vector<1x8xf32> -> vector<1x8xf32>
    %245 = arith.addf %244, %9 : vector<1x8xf32>
    %cst_84 = arith.constant dense<0xFF800000> : vector<1xf32>
    %246 = vector.multi_reduction <maximumf>, %245, %cst_84 [1] : vector<1x8xf32> to vector<1xf32>
    %247 = vector.shape_cast %246 : vector<1xf32> to vector<1x1xf32>
    %248 = vector.broadcast %247 : vector<1x1xf32> to vector<1x8xf32>
    %249 = arith.subf %245, %248 : vector<1x8xf32>
    %250 = math.exp %249 : vector<1x8xf32>
    %cst_85 = arith.constant dense<0.000000e+00> : vector<1xf32>
    %251 = vector.multi_reduction <add>, %250, %cst_85 [1] : vector<1x8xf32> to vector<1xf32>
    %252 = vector.shape_cast %251 : vector<1xf32> to vector<1x1xf32>
    %253 = tpu.reciprocal %252 {approx = true} : vector<1x1xf32> -> vector<1x1xf32>
    %254 = vector.broadcast %253 : vector<1x1xf32> to vector<1x8xf32>
    %255 = arith.mulf %250, %254 : vector<1x8xf32>
    %256 = vector.extract_strided_slice %166 {offsets = [0, 24], sizes = [8, 8], strides = [1, 1]} : vector<8x32xf32> to vector<8x8xf32>
    %257 = arith.truncf %255 : vector<1x8xf32> to vector<1x8xbf16>
    %258 = arith.truncf %256 : vector<8x8xf32> to vector<8x8xbf16>
    %cst_86 = arith.constant dense<0.000000e+00> : vector<1x8xf32>
    %259 = tpu.matmul %257, %258, %cst_86 {dimension_numbers = #tpu.dot_dimension_numbers<[1], [0], [0], [1], [0, 0, 1, 1], [], []>} : vector<1x8xbf16>, vector<8x8xbf16>, vector<1x8xf32> -> vector<1x8xf32>
    %260 = vector.extract_strided_slice %168 {offsets = [24, 0], sizes = [8, 32], strides = [1, 1]} : vector<32x32xbf16> to vector<8x32xbf16>
    %261 = arith.truncf %259 : vector<1x8xf32> to vector<1x8xbf16>
    %cst_87 = arith.constant dense<0.000000e+00> : vector<1x32xf32>
    %262 = tpu.matmul %261, %260, %cst_87 {dimension_numbers = #tpu.dot_dimension_numbers<[1], [0], [0], [1], [0, 0, 1, 1], [], []>} : vector<1x8xbf16>, vector<8x32xbf16>, vector<1x32xf32> -> vector<1x32xf32>
    %263 = arith.addf %239, %262 : vector<1x32xf32>
    %264 = arith.addf %143, %263 : vector<1x32xf32>
    %c0_88 = arith.constant 0 : index
    %c0_89 = arith.constant 0 : index
    %c0_90 = arith.constant 0 : index
    %265 = vector.load %arg7[%c0_88, %c0_89, %c0_90] : memref<2x1x32xf32, #tpu.memory_space<vmem>>, vector<1x1x32xf32>
    %266 = vector.shape_cast %265 : vector<1x1x32xf32> to vector<1x32xf32>
    %267 = arith.mulf %264, %264 : vector<1x32xf32>
    %cst_91 = arith.constant dense<0.000000e+00> : vector<1xf32>
    %268 = vector.multi_reduction <add>, %267, %cst_91 [1] : vector<1x32xf32> to vector<1xf32>
    %269 = vector.shape_cast %268 : vector<1xf32> to vector<1x1xf32>
    %cst_92 = arith.constant 3.200000e+01 : f32
    %270 = vector.broadcast %cst_92 : f32 to vector<1x1xf32>
    %271 = arith.divf %269, %270 : vector<1x1xf32>
    %cst_93 = arith.constant 9.99999997E-7 : f32
    %272 = vector.broadcast %cst_93 : f32 to vector<1x1xf32>
    %273 = arith.addf %271, %272 : vector<1x1xf32>
    %274 = math.rsqrt %273 : vector<1x1xf32>
    %275 = vector.broadcast %274 : vector<1x1xf32> to vector<1x32xf32>
    %276 = arith.mulf %264, %275 : vector<1x32xf32>
    %277 = arith.mulf %276, %266 : vector<1x32xf32>
    %c0_94 = arith.constant 0 : index
    %c0_95 = arith.constant 0 : index
    %c0_96 = arith.constant 0 : index
    %278 = vector.load %arg13[%c0_94, %c0_95, %c0_96] : memref<2x32x64xbf16, #tpu.memory_space<vmem>>, vector<1x32x64xbf16>
    %279 = vector.shape_cast %278 : vector<1x32x64xbf16> to vector<32x64xbf16>
    %280 = arith.truncf %277 : vector<1x32xf32> to vector<1x32xbf16>
    %cst_97 = arith.constant dense<0.000000e+00> : vector<1x64xf32>
    %281 = tpu.matmul %280, %279, %cst_97 {dimension_numbers = #tpu.dot_dimension_numbers<[1], [0], [0], [1], [0, 0, 1, 1], [], []>} : vector<1x32xbf16>, vector<32x64xbf16>, vector<1x64xf32> -> vector<1x64xf32>
    %cst_98 = arith.constant 0.000000e+00 : f32
    %282 = vector.broadcast %cst_98 : f32 to vector<1x64xf32>
    %283 = arith.maximumf %281, %282 : vector<1x64xf32>
    %c0_99 = arith.constant 0 : index
    %c0_100 = arith.constant 0 : index
    %c0_101 = arith.constant 0 : index
    %284 = vector.load %arg14[%c0_99, %c0_100, %c0_101] : memref<2x64x32xbf16, #tpu.memory_space<vmem>>, vector<1x64x32xbf16>
    %285 = vector.shape_cast %284 : vector<1x64x32xbf16> to vector<64x32xbf16>
    %286 = arith.truncf %283 : vector<1x64xf32> to vector<1x64xbf16>
    %cst_102 = arith.constant dense<0.000000e+00> : vector<1x32xf32>
    %287 = tpu.matmul %286, %285, %cst_102 {dimension_numbers = #tpu.dot_dimension_numbers<[1], [0], [0], [1], [0, 0, 1, 1], [], []>} : vector<1x64xbf16>, vector<64x32xbf16>, vector<1x32xf32> -> vector<1x32xf32>
    %288 = arith.addf %264, %287 : vector<1x32xf32>
    %c1_103 = arith.constant 1 : index
    %c0_104 = arith.constant 0 : index
    %c0_105 = arith.constant 0 : index
    %289 = vector.load %arg5[%c1_103, %c0_104, %c0_105] : memref<2x1x32xf32, #tpu.memory_space<vmem>>, vector<1x1x32xf32>
    %290 = vector.shape_cast %289 : vector<1x1x32xf32> to vector<1x32xf32>
    %291 = arith.mulf %288, %288 : vector<1x32xf32>
    %cst_106 = arith.constant dense<0.000000e+00> : vector<1xf32>
    %292 = vector.multi_reduction <add>, %291, %cst_106 [1] : vector<1x32xf32> to vector<1xf32>
    %293 = vector.shape_cast %292 : vector<1xf32> to vector<1x1xf32>
    %cst_107 = arith.constant 3.200000e+01 : f32
    %294 = vector.broadcast %cst_107 : f32 to vector<1x1xf32>
    %295 = arith.divf %293, %294 : vector<1x1xf32>
    %cst_108 = arith.constant 9.99999997E-7 : f32
    %296 = vector.broadcast %cst_108 : f32 to vector<1x1xf32>
    %297 = arith.addf %295, %296 : vector<1x1xf32>
    %298 = math.rsqrt %297 : vector<1x1xf32>
    %299 = vector.broadcast %298 : vector<1x1xf32> to vector<1x32xf32>
    %300 = arith.mulf %288, %299 : vector<1x32xf32>
    %301 = arith.mulf %300, %290 : vector<1x32xf32>
    %c1_109 = arith.constant 1 : index
    %c0_110 = arith.constant 0 : index
    %c0_111 = arith.constant 0 : index
    %302 = vector.load %arg8[%c1_109, %c0_110, %c0_111] : memref<2x32x96xbf16, #tpu.memory_space<vmem>>, vector<1x32x96xbf16>
    %303 = vector.shape_cast %302 : vector<1x32x96xbf16> to vector<32x96xbf16>
    %304 = arith.truncf %301 : vector<1x32xf32> to vector<1x32xbf16>
    %cst_112 = arith.constant dense<0.000000e+00> : vector<1x96xf32>
    %305 = tpu.matmul %304, %303, %cst_112 {dimension_numbers = #tpu.dot_dimension_numbers<[1], [0], [0], [1], [0, 0, 1, 1], [], []>} : vector<1x32xbf16>, vector<32x96xbf16>, vector<1x96xf32> -> vector<1x96xf32>
    %306 = vector.extract_strided_slice %305 {offsets = [0, 0], sizes = [1, 32], strides = [1, 1]} : vector<1x96xf32> to vector<1x32xf32>
    %307 = vector.extract_strided_slice %305 {offsets = [0, 32], sizes = [1, 32], strides = [1, 1]} : vector<1x96xf32> to vector<1x32xf32>
    %308 = vector.extract_strided_slice %305 {offsets = [0, 64], sizes = [1, 32], strides = [1, 1]} : vector<1x96xf32> to vector<1x32xf32>
    %c1_113 = arith.constant 1 : index
    %c0_114 = arith.constant 0 : index
    %c0_115 = arith.constant 0 : index
    %309 = vector.load %arg9[%c1_113, %c0_114, %c0_115] : memref<2x32x32xbf16, #tpu.memory_space<vmem>>, vector<1x32x32xbf16>
    %310 = vector.shape_cast %309 : vector<1x32x32xbf16> to vector<32x32xbf16>
    %311 = vector.extract_strided_slice %306 {offsets = [0, 0], sizes = [1, 8], strides = [1, 1]} : vector<1x32xf32> to vector<1x8xf32>
    %312 = vector.extract_strided_slice %307 {offsets = [0, 0], sizes = [1, 8], strides = [1, 1]} : vector<1x32xf32> to vector<1x8xf32>
    %313 = arith.truncf %311 : vector<1x8xf32> to vector<1x8xbf16>
    %314 = arith.truncf %312 : vector<1x8xf32> to vector<1x8xbf16>
    %315 = arith.extf %313 : vector<1x8xbf16> to vector<1x8xf32>
    %316 = arith.extf %314 : vector<1x8xbf16> to vector<1x8xf32>
    %cst_116 = arith.constant dense<0.000000e+00> : vector<1xf32>
    %317 = arith.mulf %315, %316 : vector<1x8xf32>
    %318 = vector.multi_reduction <add>, %317, %cst_116 [1] : vector<1x8xf32> to vector<1xf32>
    %319 = vector.shape_cast %318 : vector<1xf32> to vector<1x1xf32>
    %c0_117 = arith.constant 0 : index
    %c0_118 = arith.constant 0 : index
    %c0_119 = arith.constant 0 : index
    %320 = vector.load %arg4[%c0_117, %c0_118, %c0_119] : memref<4x1x1xf32, #tpu.memory_space<vmem>>, vector<1x1x1xf32>
    %321 = vector.shape_cast %320 : vector<1x1x1xf32> to vector<1x1xf32>
    %322 = arith.addf %319, %321 : vector<1x1xf32>
    %cst_120 = arith.constant dense<0xFF800000> : vector<1xf32>
    %323 = vector.multi_reduction <maximumf>, %322, %cst_120 [1] : vector<1x1xf32> to vector<1xf32>
    %324 = vector.shape_cast %323 : vector<1xf32> to vector<1x1xf32>
    %325 = arith.subf %322, %324 : vector<1x1xf32>
    %326 = math.exp %325 : vector<1x1xf32>
    %cst_121 = arith.constant dense<0.000000e+00> : vector<1xf32>
    %327 = vector.multi_reduction <add>, %326, %cst_121 [1] : vector<1x1xf32> to vector<1xf32>
    %328 = vector.shape_cast %327 : vector<1xf32> to vector<1x1xf32>
    %329 = tpu.reciprocal %328 {approx = true} : vector<1x1xf32> -> vector<1x1xf32>
    %330 = arith.mulf %326, %329 : vector<1x1xf32>
    %331 = vector.extract_strided_slice %308 {offsets = [0, 0], sizes = [1, 8], strides = [1, 1]} : vector<1x32xf32> to vector<1x8xf32>
    %332 = arith.truncf %330 : vector<1x1xf32> to vector<1x1xbf16>
    %333 = arith.truncf %331 : vector<1x8xf32> to vector<1x8xbf16>
    %cst_122 = arith.constant dense<0.000000e+00> : vector<1x8xf32>
    %334 = tpu.matmul %332, %333, %cst_122 {dimension_numbers = #tpu.dot_dimension_numbers<[1], [0], [0], [1], [0, 0, 1, 1], [], []>} : vector<1x1xbf16>, vector<1x8xbf16>, vector<1x8xf32> -> vector<1x8xf32>
    %335 = vector.extract_strided_slice %310 {offsets = [0, 0], sizes = [8, 32], strides = [1, 1]} : vector<32x32xbf16> to vector<8x32xbf16>
    %336 = arith.truncf %334 : vector<1x8xf32> to vector<1x8xbf16>
    %cst_123 = arith.constant dense<0.000000e+00> : vector<1x32xf32>
    %337 = tpu.matmul %336, %335, %cst_123 {dimension_numbers = #tpu.dot_dimension_numbers<[1], [0], [0], [1], [0, 0, 1, 1], [], []>} : vector<1x8xbf16>, vector<8x32xbf16>, vector<1x32xf32> -> vector<1x32xf32>
    %338 = vector.extract_strided_slice %306 {offsets = [0, 8], sizes = [1, 8], strides = [1, 1]} : vector<1x32xf32> to vector<1x8xf32>
    %339 = vector.extract_strided_slice %307 {offsets = [0, 8], sizes = [1, 8], strides = [1, 1]} : vector<1x32xf32> to vector<1x8xf32>
    %340 = arith.truncf %338 : vector<1x8xf32> to vector<1x8xbf16>
    %341 = arith.truncf %339 : vector<1x8xf32> to vector<1x8xbf16>
    %342 = arith.extf %340 : vector<1x8xbf16> to vector<1x8xf32>
    %343 = arith.extf %341 : vector<1x8xbf16> to vector<1x8xf32>
    %cst_124 = arith.constant dense<0.000000e+00> : vector<1xf32>
    %344 = arith.mulf %342, %343 : vector<1x8xf32>
    %345 = vector.multi_reduction <add>, %344, %cst_124 [1] : vector<1x8xf32> to vector<1xf32>
    %346 = vector.shape_cast %345 : vector<1xf32> to vector<1x1xf32>
    %c1_125 = arith.constant 1 : index
    %c0_126 = arith.constant 0 : index
    %c0_127 = arith.constant 0 : index
    %347 = vector.load %arg4[%c1_125, %c0_126, %c0_127] : memref<4x1x1xf32, #tpu.memory_space<vmem>>, vector<1x1x1xf32>
    %348 = vector.shape_cast %347 : vector<1x1x1xf32> to vector<1x1xf32>
    %349 = arith.addf %346, %348 : vector<1x1xf32>
    %cst_128 = arith.constant dense<0xFF800000> : vector<1xf32>
    %350 = vector.multi_reduction <maximumf>, %349, %cst_128 [1] : vector<1x1xf32> to vector<1xf32>
    %351 = vector.shape_cast %350 : vector<1xf32> to vector<1x1xf32>
    %352 = arith.subf %349, %351 : vector<1x1xf32>
    %353 = math.exp %352 : vector<1x1xf32>
    %cst_129 = arith.constant dense<0.000000e+00> : vector<1xf32>
    %354 = vector.multi_reduction <add>, %353, %cst_129 [1] : vector<1x1xf32> to vector<1xf32>
    %355 = vector.shape_cast %354 : vector<1xf32> to vector<1x1xf32>
    %356 = tpu.reciprocal %355 {approx = true} : vector<1x1xf32> -> vector<1x1xf32>
    %357 = arith.mulf %353, %356 : vector<1x1xf32>
    %358 = vector.extract_strided_slice %308 {offsets = [0, 8], sizes = [1, 8], strides = [1, 1]} : vector<1x32xf32> to vector<1x8xf32>
    %359 = arith.truncf %357 : vector<1x1xf32> to vector<1x1xbf16>
    %360 = arith.truncf %358 : vector<1x8xf32> to vector<1x8xbf16>
    %cst_130 = arith.constant dense<0.000000e+00> : vector<1x8xf32>
    %361 = tpu.matmul %359, %360, %cst_130 {dimension_numbers = #tpu.dot_dimension_numbers<[1], [0], [0], [1], [0, 0, 1, 1], [], []>} : vector<1x1xbf16>, vector<1x8xbf16>, vector<1x8xf32> -> vector<1x8xf32>
    %362 = vector.extract_strided_slice %310 {offsets = [8, 0], sizes = [8, 32], strides = [1, 1]} : vector<32x32xbf16> to vector<8x32xbf16>
    %363 = arith.truncf %361 : vector<1x8xf32> to vector<1x8xbf16>
    %cst_131 = arith.constant dense<0.000000e+00> : vector<1x32xf32>
    %364 = tpu.matmul %363, %362, %cst_131 {dimension_numbers = #tpu.dot_dimension_numbers<[1], [0], [0], [1], [0, 0, 1, 1], [], []>} : vector<1x8xbf16>, vector<8x32xbf16>, vector<1x32xf32> -> vector<1x32xf32>
    %365 = arith.addf %337, %364 : vector<1x32xf32>
    %366 = vector.extract_strided_slice %306 {offsets = [0, 16], sizes = [1, 8], strides = [1, 1]} : vector<1x32xf32> to vector<1x8xf32>
    %367 = vector.extract_strided_slice %307 {offsets = [0, 16], sizes = [1, 8], strides = [1, 1]} : vector<1x32xf32> to vector<1x8xf32>
    %368 = arith.truncf %366 : vector<1x8xf32> to vector<1x8xbf16>
    %369 = arith.truncf %367 : vector<1x8xf32> to vector<1x8xbf16>
    %370 = arith.extf %368 : vector<1x8xbf16> to vector<1x8xf32>
    %371 = arith.extf %369 : vector<1x8xbf16> to vector<1x8xf32>
    %cst_132 = arith.constant dense<0.000000e+00> : vector<1xf32>
    %372 = arith.mulf %370, %371 : vector<1x8xf32>
    %373 = vector.multi_reduction <add>, %372, %cst_132 [1] : vector<1x8xf32> to vector<1xf32>
    %374 = vector.shape_cast %373 : vector<1xf32> to vector<1x1xf32>
    %c2_133 = arith.constant 2 : index
    %c0_134 = arith.constant 0 : index
    %c0_135 = arith.constant 0 : index
    %375 = vector.load %arg4[%c2_133, %c0_134, %c0_135] : memref<4x1x1xf32, #tpu.memory_space<vmem>>, vector<1x1x1xf32>
    %376 = vector.shape_cast %375 : vector<1x1x1xf32> to vector<1x1xf32>
    %377 = arith.addf %374, %376 : vector<1x1xf32>
    %cst_136 = arith.constant dense<0xFF800000> : vector<1xf32>
    %378 = vector.multi_reduction <maximumf>, %377, %cst_136 [1] : vector<1x1xf32> to vector<1xf32>
    %379 = vector.shape_cast %378 : vector<1xf32> to vector<1x1xf32>
    %380 = arith.subf %377, %379 : vector<1x1xf32>
    %381 = math.exp %380 : vector<1x1xf32>
    %cst_137 = arith.constant dense<0.000000e+00> : vector<1xf32>
    %382 = vector.multi_reduction <add>, %381, %cst_137 [1] : vector<1x1xf32> to vector<1xf32>
    %383 = vector.shape_cast %382 : vector<1xf32> to vector<1x1xf32>
    %384 = tpu.reciprocal %383 {approx = true} : vector<1x1xf32> -> vector<1x1xf32>
    %385 = arith.mulf %381, %384 : vector<1x1xf32>
    %386 = vector.extract_strided_slice %308 {offsets = [0, 16], sizes = [1, 8], strides = [1, 1]} : vector<1x32xf32> to vector<1x8xf32>
    %387 = arith.truncf %385 : vector<1x1xf32> to vector<1x1xbf16>
    %388 = arith.truncf %386 : vector<1x8xf32> to vector<1x8xbf16>
    %cst_138 = arith.constant dense<0.000000e+00> : vector<1x8xf32>
    %389 = tpu.matmul %387, %388, %cst_138 {dimension_numbers = #tpu.dot_dimension_numbers<[1], [0], [0], [1], [0, 0, 1, 1], [], []>} : vector<1x1xbf16>, vector<1x8xbf16>, vector<1x8xf32> -> vector<1x8xf32>
    %390 = vector.extract_strided_slice %310 {offsets = [16, 0], sizes = [8, 32], strides = [1, 1]} : vector<32x32xbf16> to vector<8x32xbf16>
    %391 = arith.truncf %389 : vector<1x8xf32> to vector<1x8xbf16>
    %cst_139 = arith.constant dense<0.000000e+00> : vector<1x32xf32>
    %392 = tpu.matmul %391, %390, %cst_139 {dimension_numbers = #tpu.dot_dimension_numbers<[1], [0], [0], [1], [0, 0, 1, 1], [], []>} : vector<1x8xbf16>, vector<8x32xbf16>, vector<1x32xf32> -> vector<1x32xf32>
    %393 = arith.addf %365, %392 : vector<1x32xf32>
    %394 = vector.extract_strided_slice %306 {offsets = [0, 24], sizes = [1, 8], strides = [1, 1]} : vector<1x32xf32> to vector<1x8xf32>
    %395 = vector.extract_strided_slice %307 {offsets = [0, 24], sizes = [1, 8], strides = [1, 1]} : vector<1x32xf32> to vector<1x8xf32>
    %396 = arith.truncf %394 : vector<1x8xf32> to vector<1x8xbf16>
    %397 = arith.truncf %395 : vector<1x8xf32> to vector<1x8xbf16>
    %398 = arith.extf %396 : vector<1x8xbf16> to vector<1x8xf32>
    %399 = arith.extf %397 : vector<1x8xbf16> to vector<1x8xf32>
    %cst_140 = arith.constant dense<0.000000e+00> : vector<1xf32>
    %400 = arith.mulf %398, %399 : vector<1x8xf32>
    %401 = vector.multi_reduction <add>, %400, %cst_140 [1] : vector<1x8xf32> to vector<1xf32>
    %402 = vector.shape_cast %401 : vector<1xf32> to vector<1x1xf32>
    %c3_141 = arith.constant 3 : index
    %c0_142 = arith.constant 0 : index
    %c0_143 = arith.constant 0 : index
    %403 = vector.load %arg4[%c3_141, %c0_142, %c0_143] : memref<4x1x1xf32, #tpu.memory_space<vmem>>, vector<1x1x1xf32>
    %404 = vector.shape_cast %403 : vector<1x1x1xf32> to vector<1x1xf32>
    %405 = arith.addf %402, %404 : vector<1x1xf32>
    %cst_144 = arith.constant dense<0xFF800000> : vector<1xf32>
    %406 = vector.multi_reduction <maximumf>, %405, %cst_144 [1] : vector<1x1xf32> to vector<1xf32>
    %407 = vector.shape_cast %406 : vector<1xf32> to vector<1x1xf32>
    %408 = arith.subf %405, %407 : vector<1x1xf32>
    %409 = math.exp %408 : vector<1x1xf32>
    %cst_145 = arith.constant dense<0.000000e+00> : vector<1xf32>
    %410 = vector.multi_reduction <add>, %409, %cst_145 [1] : vector<1x1xf32> to vector<1xf32>
    %411 = vector.shape_cast %410 : vector<1xf32> to vector<1x1xf32>
    %412 = tpu.reciprocal %411 {approx = true} : vector<1x1xf32> -> vector<1x1xf32>
    %413 = arith.mulf %409, %412 : vector<1x1xf32>
    %414 = vector.extract_strided_slice %308 {offsets = [0, 24], sizes = [1, 8], strides = [1, 1]} : vector<1x32xf32> to vector<1x8xf32>
    %415 = arith.truncf %413 : vector<1x1xf32> to vector<1x1xbf16>
    %416 = arith.truncf %414 : vector<1x8xf32> to vector<1x8xbf16>
    %cst_146 = arith.constant dense<0.000000e+00> : vector<1x8xf32>
    %417 = tpu.matmul %415, %416, %cst_146 {dimension_numbers = #tpu.dot_dimension_numbers<[1], [0], [0], [1], [0, 0, 1, 1], [], []>} : vector<1x1xbf16>, vector<1x8xbf16>, vector<1x8xf32> -> vector<1x8xf32>
    %418 = vector.extract_strided_slice %310 {offsets = [24, 0], sizes = [8, 32], strides = [1, 1]} : vector<32x32xbf16> to vector<8x32xbf16>
    %419 = arith.truncf %417 : vector<1x8xf32> to vector<1x8xbf16>
    %cst_147 = arith.constant dense<0.000000e+00> : vector<1x32xf32>
    %420 = tpu.matmul %419, %418, %cst_147 {dimension_numbers = #tpu.dot_dimension_numbers<[1], [0], [0], [1], [0, 0, 1, 1], [], []>} : vector<1x8xbf16>, vector<8x32xbf16>, vector<1x32xf32> -> vector<1x32xf32>
    %421 = arith.addf %393, %420 : vector<1x32xf32>
    %422 = arith.addf %288, %421 : vector<1x32xf32>
    %c1_148 = arith.constant 1 : index
    %c0_149 = arith.constant 0 : index
    %c0_150 = arith.constant 0 : index
    %423 = vector.load %arg6[%c1_148, %c0_149, %c0_150] : memref<2x1x32xf32, #tpu.memory_space<vmem>>, vector<1x1x32xf32>
    %424 = vector.shape_cast %423 : vector<1x1x32xf32> to vector<1x32xf32>
    %425 = arith.mulf %422, %422 : vector<1x32xf32>
    %cst_151 = arith.constant dense<0.000000e+00> : vector<1xf32>
    %426 = vector.multi_reduction <add>, %425, %cst_151 [1] : vector<1x32xf32> to vector<1xf32>
    %427 = vector.shape_cast %426 : vector<1xf32> to vector<1x1xf32>
    %cst_152 = arith.constant 3.200000e+01 : f32
    %428 = vector.broadcast %cst_152 : f32 to vector<1x1xf32>
    %429 = arith.divf %427, %428 : vector<1x1xf32>
    %cst_153 = arith.constant 9.99999997E-7 : f32
    %430 = vector.broadcast %cst_153 : f32 to vector<1x1xf32>
    %431 = arith.addf %429, %430 : vector<1x1xf32>
    %432 = math.rsqrt %431 : vector<1x1xf32>
    %433 = vector.broadcast %432 : vector<1x1xf32> to vector<1x32xf32>
    %434 = arith.mulf %422, %433 : vector<1x32xf32>
    %435 = arith.mulf %434, %424 : vector<1x32xf32>
    %c1_154 = arith.constant 1 : index
    %c0_155 = arith.constant 0 : index
    %c0_156 = arith.constant 0 : index
    %436 = vector.load %arg10[%c1_154, %c0_155, %c0_156] : memref<2x32x32xbf16, #tpu.memory_space<vmem>>, vector<1x32x32xbf16>
    %437 = vector.shape_cast %436 : vector<1x32x32xbf16> to vector<32x32xbf16>
    %438 = arith.truncf %435 : vector<1x32xf32> to vector<1x32xbf16>
    %cst_157 = arith.constant dense<0.000000e+00> : vector<1x32xf32>
    %439 = tpu.matmul %438, %437, %cst_157 {dimension_numbers = #tpu.dot_dimension_numbers<[1], [0], [0], [1], [0, 0, 1, 1], [], []>} : vector<1x32xbf16>, vector<32x32xbf16>, vector<1x32xf32> -> vector<1x32xf32>
    %c1_158 = arith.constant 1 : index
    %c0_159 = arith.constant 0 : index
    %c0_160 = arith.constant 0 : index
    %440 = vector.load %arg11[%c1_158, %c0_159, %c0_160] : memref<2x32x64xbf16, #tpu.memory_space<vmem>>, vector<1x32x64xbf16>
    %441 = vector.shape_cast %440 : vector<1x32x64xbf16> to vector<32x64xbf16>
    %442 = arith.truncf %3 : vector<8x32xf32> to vector<8x32xbf16>
    %cst_161 = arith.constant dense<0.000000e+00> : vector<8x64xf32>
    %443 = tpu.matmul %442, %441, %cst_161 {dimension_numbers = #tpu.dot_dimension_numbers<[1], [0], [0], [1], [0, 0, 1, 1], [], []>} : vector<8x32xbf16>, vector<32x64xbf16>, vector<8x64xf32> -> vector<8x64xf32>
    %444 = vector.extract_strided_slice %443 {offsets = [0, 0], sizes = [8, 32], strides = [1, 1]} : vector<8x64xf32> to vector<8x32xf32>
    %445 = vector.extract_strided_slice %443 {offsets = [0, 32], sizes = [8, 32], strides = [1, 1]} : vector<8x64xf32> to vector<8x32xf32>
    %c1_162 = arith.constant 1 : index
    %c0_163 = arith.constant 0 : index
    %c0_164 = arith.constant 0 : index
    %446 = vector.load %arg12[%c1_162, %c0_163, %c0_164] : memref<2x32x32xbf16, #tpu.memory_space<vmem>>, vector<1x32x32xbf16>
    %447 = vector.shape_cast %446 : vector<1x32x32xbf16> to vector<32x32xbf16>
    %448 = vector.extract_strided_slice %439 {offsets = [0, 0], sizes = [1, 8], strides = [1, 1]} : vector<1x32xf32> to vector<1x8xf32>
    %449 = vector.extract_strided_slice %444 {offsets = [0, 0], sizes = [8, 8], strides = [1, 1]} : vector<8x32xf32> to vector<8x8xf32>
    %450 = arith.truncf %448 : vector<1x8xf32> to vector<1x8xbf16>
    %451 = arith.truncf %449 : vector<8x8xf32> to vector<8x8xbf16>
    %cst_165 = arith.constant dense<0.000000e+00> : vector<1x8xf32>
    %452 = tpu.matmul %450, %451, %cst_165 {dimension_numbers = #tpu.dot_dimension_numbers<[1], [1], [0], [0], [0, 0, 1, 0], [], []>} : vector<1x8xbf16>, vector<8x8xbf16>, vector<1x8xf32> -> vector<1x8xf32>
    %453 = arith.addf %452, %9 : vector<1x8xf32>
    %cst_166 = arith.constant dense<0xFF800000> : vector<1xf32>
    %454 = vector.multi_reduction <maximumf>, %453, %cst_166 [1] : vector<1x8xf32> to vector<1xf32>
    %455 = vector.shape_cast %454 : vector<1xf32> to vector<1x1xf32>
    %456 = vector.broadcast %455 : vector<1x1xf32> to vector<1x8xf32>
    %457 = arith.subf %453, %456 : vector<1x8xf32>
    %458 = math.exp %457 : vector<1x8xf32>
    %cst_167 = arith.constant dense<0.000000e+00> : vector<1xf32>
    %459 = vector.multi_reduction <add>, %458, %cst_167 [1] : vector<1x8xf32> to vector<1xf32>
    %460 = vector.shape_cast %459 : vector<1xf32> to vector<1x1xf32>
    %461 = tpu.reciprocal %460 {approx = true} : vector<1x1xf32> -> vector<1x1xf32>
    %462 = vector.broadcast %461 : vector<1x1xf32> to vector<1x8xf32>
    %463 = arith.mulf %458, %462 : vector<1x8xf32>
    %464 = vector.extract_strided_slice %445 {offsets = [0, 0], sizes = [8, 8], strides = [1, 1]} : vector<8x32xf32> to vector<8x8xf32>
    %465 = arith.truncf %463 : vector<1x8xf32> to vector<1x8xbf16>
    %466 = arith.truncf %464 : vector<8x8xf32> to vector<8x8xbf16>
    %cst_168 = arith.constant dense<0.000000e+00> : vector<1x8xf32>
    %467 = tpu.matmul %465, %466, %cst_168 {dimension_numbers = #tpu.dot_dimension_numbers<[1], [0], [0], [1], [0, 0, 1, 1], [], []>} : vector<1x8xbf16>, vector<8x8xbf16>, vector<1x8xf32> -> vector<1x8xf32>
    %468 = vector.extract_strided_slice %447 {offsets = [0, 0], sizes = [8, 32], strides = [1, 1]} : vector<32x32xbf16> to vector<8x32xbf16>
    %469 = arith.truncf %467 : vector<1x8xf32> to vector<1x8xbf16>
    %cst_169 = arith.constant dense<0.000000e+00> : vector<1x32xf32>
    %470 = tpu.matmul %469, %468, %cst_169 {dimension_numbers = #tpu.dot_dimension_numbers<[1], [0], [0], [1], [0, 0, 1, 1], [], []>} : vector<1x8xbf16>, vector<8x32xbf16>, vector<1x32xf32> -> vector<1x32xf32>
    %471 = vector.extract_strided_slice %439 {offsets = [0, 8], sizes = [1, 8], strides = [1, 1]} : vector<1x32xf32> to vector<1x8xf32>
    %472 = vector.extract_strided_slice %444 {offsets = [0, 8], sizes = [8, 8], strides = [1, 1]} : vector<8x32xf32> to vector<8x8xf32>
    %473 = arith.truncf %471 : vector<1x8xf32> to vector<1x8xbf16>
    %474 = arith.truncf %472 : vector<8x8xf32> to vector<8x8xbf16>
    %cst_170 = arith.constant dense<0.000000e+00> : vector<1x8xf32>
    %475 = tpu.matmul %473, %474, %cst_170 {dimension_numbers = #tpu.dot_dimension_numbers<[1], [1], [0], [0], [0, 0, 1, 0], [], []>} : vector<1x8xbf16>, vector<8x8xbf16>, vector<1x8xf32> -> vector<1x8xf32>
    %476 = arith.addf %475, %9 : vector<1x8xf32>
    %cst_171 = arith.constant dense<0xFF800000> : vector<1xf32>
    %477 = vector.multi_reduction <maximumf>, %476, %cst_171 [1] : vector<1x8xf32> to vector<1xf32>
    %478 = vector.shape_cast %477 : vector<1xf32> to vector<1x1xf32>
    %479 = vector.broadcast %478 : vector<1x1xf32> to vector<1x8xf32>
    %480 = arith.subf %476, %479 : vector<1x8xf32>
    %481 = math.exp %480 : vector<1x8xf32>
    %cst_172 = arith.constant dense<0.000000e+00> : vector<1xf32>
    %482 = vector.multi_reduction <add>, %481, %cst_172 [1] : vector<1x8xf32> to vector<1xf32>
    %483 = vector.shape_cast %482 : vector<1xf32> to vector<1x1xf32>
    %484 = tpu.reciprocal %483 {approx = true} : vector<1x1xf32> -> vector<1x1xf32>
    %485 = vector.broadcast %484 : vector<1x1xf32> to vector<1x8xf32>
    %486 = arith.mulf %481, %485 : vector<1x8xf32>
    %487 = vector.extract_strided_slice %445 {offsets = [0, 8], sizes = [8, 8], strides = [1, 1]} : vector<8x32xf32> to vector<8x8xf32>
    %488 = arith.truncf %486 : vector<1x8xf32> to vector<1x8xbf16>
    %489 = arith.truncf %487 : vector<8x8xf32> to vector<8x8xbf16>
    %cst_173 = arith.constant dense<0.000000e+00> : vector<1x8xf32>
    %490 = tpu.matmul %488, %489, %cst_173 {dimension_numbers = #tpu.dot_dimension_numbers<[1], [0], [0], [1], [0, 0, 1, 1], [], []>} : vector<1x8xbf16>, vector<8x8xbf16>, vector<1x8xf32> -> vector<1x8xf32>
    %491 = vector.extract_strided_slice %447 {offsets = [8, 0], sizes = [8, 32], strides = [1, 1]} : vector<32x32xbf16> to vector<8x32xbf16>
    %492 = arith.truncf %490 : vector<1x8xf32> to vector<1x8xbf16>
    %cst_174 = arith.constant dense<0.000000e+00> : vector<1x32xf32>
    %493 = tpu.matmul %492, %491, %cst_174 {dimension_numbers = #tpu.dot_dimension_numbers<[1], [0], [0], [1], [0, 0, 1, 1], [], []>} : vector<1x8xbf16>, vector<8x32xbf16>, vector<1x32xf32> -> vector<1x32xf32>
    %494 = arith.addf %470, %493 : vector<1x32xf32>
    %495 = vector.extract_strided_slice %439 {offsets = [0, 16], sizes = [1, 8], strides = [1, 1]} : vector<1x32xf32> to vector<1x8xf32>
    %496 = vector.extract_strided_slice %444 {offsets = [0, 16], sizes = [8, 8], strides = [1, 1]} : vector<8x32xf32> to vector<8x8xf32>
    %497 = arith.truncf %495 : vector<1x8xf32> to vector<1x8xbf16>
    %498 = arith.truncf %496 : vector<8x8xf32> to vector<8x8xbf16>
    %cst_175 = arith.constant dense<0.000000e+00> : vector<1x8xf32>
    %499 = tpu.matmul %497, %498, %cst_175 {dimension_numbers = #tpu.dot_dimension_numbers<[1], [1], [0], [0], [0, 0, 1, 0], [], []>} : vector<1x8xbf16>, vector<8x8xbf16>, vector<1x8xf32> -> vector<1x8xf32>
    %500 = arith.addf %499, %9 : vector<1x8xf32>
    %cst_176 = arith.constant dense<0xFF800000> : vector<1xf32>
    %501 = vector.multi_reduction <maximumf>, %500, %cst_176 [1] : vector<1x8xf32> to vector<1xf32>
    %502 = vector.shape_cast %501 : vector<1xf32> to vector<1x1xf32>
    %503 = vector.broadcast %502 : vector<1x1xf32> to vector<1x8xf32>
    %504 = arith.subf %500, %503 : vector<1x8xf32>
    %505 = math.exp %504 : vector<1x8xf32>
    %cst_177 = arith.constant dense<0.000000e+00> : vector<1xf32>
    %506 = vector.multi_reduction <add>, %505, %cst_177 [1] : vector<1x8xf32> to vector<1xf32>
    %507 = vector.shape_cast %506 : vector<1xf32> to vector<1x1xf32>
    %508 = tpu.reciprocal %507 {approx = true} : vector<1x1xf32> -> vector<1x1xf32>
    %509 = vector.broadcast %508 : vector<1x1xf32> to vector<1x8xf32>
    %510 = arith.mulf %505, %509 : vector<1x8xf32>
    %511 = vector.extract_strided_slice %445 {offsets = [0, 16], sizes = [8, 8], strides = [1, 1]} : vector<8x32xf32> to vector<8x8xf32>
    %512 = arith.truncf %510 : vector<1x8xf32> to vector<1x8xbf16>
    %513 = arith.truncf %511 : vector<8x8xf32> to vector<8x8xbf16>
    %cst_178 = arith.constant dense<0.000000e+00> : vector<1x8xf32>
    %514 = tpu.matmul %512, %513, %cst_178 {dimension_numbers = #tpu.dot_dimension_numbers<[1], [0], [0], [1], [0, 0, 1, 1], [], []>} : vector<1x8xbf16>, vector<8x8xbf16>, vector<1x8xf32> -> vector<1x8xf32>
    %515 = vector.extract_strided_slice %447 {offsets = [16, 0], sizes = [8, 32], strides = [1, 1]} : vector<32x32xbf16> to vector<8x32xbf16>
    %516 = arith.truncf %514 : vector<1x8xf32> to vector<1x8xbf16>
    %cst_179 = arith.constant dense<0.000000e+00> : vector<1x32xf32>
    %517 = tpu.matmul %516, %515, %cst_179 {dimension_numbers = #tpu.dot_dimension_numbers<[1], [0], [0], [1], [0, 0, 1, 1], [], []>} : vector<1x8xbf16>, vector<8x32xbf16>, vector<1x32xf32> -> vector<1x32xf32>
    %518 = arith.addf %494, %517 : vector<1x32xf32>
    %519 = vector.extract_strided_slice %439 {offsets = [0, 24], sizes = [1, 8], strides = [1, 1]} : vector<1x32xf32> to vector<1x8xf32>
    %520 = vector.extract_strided_slice %444 {offsets = [0, 24], sizes = [8, 8], strides = [1, 1]} : vector<8x32xf32> to vector<8x8xf32>
    %521 = arith.truncf %519 : vector<1x8xf32> to vector<1x8xbf16>
    %522 = arith.truncf %520 : vector<8x8xf32> to vector<8x8xbf16>
    %cst_180 = arith.constant dense<0.000000e+00> : vector<1x8xf32>
    %523 = tpu.matmul %521, %522, %cst_180 {dimension_numbers = #tpu.dot_dimension_numbers<[1], [1], [0], [0], [0, 0, 1, 0], [], []>} : vector<1x8xbf16>, vector<8x8xbf16>, vector<1x8xf32> -> vector<1x8xf32>
    %524 = arith.addf %523, %9 : vector<1x8xf32>
    %cst_181 = arith.constant dense<0xFF800000> : vector<1xf32>
    %525 = vector.multi_reduction <maximumf>, %524, %cst_181 [1] : vector<1x8xf32> to vector<1xf32>
    %526 = vector.shape_cast %525 : vector<1xf32> to vector<1x1xf32>
    %527 = vector.broadcast %526 : vector<1x1xf32> to vector<1x8xf32>
    %528 = arith.subf %524, %527 : vector<1x8xf32>
    %529 = math.exp %528 : vector<1x8xf32>
    %cst_182 = arith.constant dense<0.000000e+00> : vector<1xf32>
    %530 = vector.multi_reduction <add>, %529, %cst_182 [1] : vector<1x8xf32> to vector<1xf32>
    %531 = vector.shape_cast %530 : vector<1xf32> to vector<1x1xf32>
    %532 = tpu.reciprocal %531 {approx = true} : vector<1x1xf32> -> vector<1x1xf32>
    %533 = vector.broadcast %532 : vector<1x1xf32> to vector<1x8xf32>
    %534 = arith.mulf %529, %533 : vector<1x8xf32>
    %535 = vector.extract_strided_slice %445 {offsets = [0, 24], sizes = [8, 8], strides = [1, 1]} : vector<8x32xf32> to vector<8x8xf32>
    %536 = arith.truncf %534 : vector<1x8xf32> to vector<1x8xbf16>
    %537 = arith.truncf %535 : vector<8x8xf32> to vector<8x8xbf16>
    %cst_183 = arith.constant dense<0.000000e+00> : vector<1x8xf32>
    %538 = tpu.matmul %536, %537, %cst_183 {dimension_numbers = #tpu.dot_dimension_numbers<[1], [0], [0], [1], [0, 0, 1, 1], [], []>} : vector<1x8xbf16>, vector<8x8xbf16>, vector<1x8xf32> -> vector<1x8xf32>
    %539 = vector.extract_strided_slice %447 {offsets = [24, 0], sizes = [8, 32], strides = [1, 1]} : vector<32x32xbf16> to vector<8x32xbf16>
    %540 = arith.truncf %538 : vector<1x8xf32> to vector<1x8xbf16>
    %cst_184 = arith.constant dense<0.000000e+00> : vector<1x32xf32>
    %541 = tpu.matmul %540, %539, %cst_184 {dimension_numbers = #tpu.dot_dimension_numbers<[1], [0], [0], [1], [0, 0, 1, 1], [], []>} : vector<1x8xbf16>, vector<8x32xbf16>, vector<1x32xf32> -> vector<1x32xf32>
    %542 = arith.addf %518, %541 : vector<1x32xf32>
    %543 = arith.addf %422, %542 : vector<1x32xf32>
    %c1_185 = arith.constant 1 : index
    %c0_186 = arith.constant 0 : index
    %c0_187 = arith.constant 0 : index
    %544 = vector.load %arg7[%c1_185, %c0_186, %c0_187] : memref<2x1x32xf32, #tpu.memory_space<vmem>>, vector<1x1x32xf32>
    %545 = vector.shape_cast %544 : vector<1x1x32xf32> to vector<1x32xf32>
    %546 = arith.mulf %543, %543 : vector<1x32xf32>
    %cst_188 = arith.constant dense<0.000000e+00> : vector<1xf32>
    %547 = vector.multi_reduction <add>, %546, %cst_188 [1] : vector<1x32xf32> to vector<1xf32>
    %548 = vector.shape_cast %547 : vector<1xf32> to vector<1x1xf32>
    %cst_189 = arith.constant 3.200000e+01 : f32
    %549 = vector.broadcast %cst_189 : f32 to vector<1x1xf32>
    %550 = arith.divf %548, %549 : vector<1x1xf32>
    %cst_190 = arith.constant 9.99999997E-7 : f32
    %551 = vector.broadcast %cst_190 : f32 to vector<1x1xf32>
    %552 = arith.addf %550, %551 : vector<1x1xf32>
    %553 = math.rsqrt %552 : vector<1x1xf32>
    %554 = vector.broadcast %553 : vector<1x1xf32> to vector<1x32xf32>
    %555 = arith.mulf %543, %554 : vector<1x32xf32>
    %556 = arith.mulf %555, %545 : vector<1x32xf32>
    %c1_191 = arith.constant 1 : index
    %c0_192 = arith.constant 0 : index
    %c0_193 = arith.constant 0 : index
    %557 = vector.load %arg13[%c1_191, %c0_192, %c0_193] : memref<2x32x64xbf16, #tpu.memory_space<vmem>>, vector<1x32x64xbf16>
    %558 = vector.shape_cast %557 : vector<1x32x64xbf16> to vector<32x64xbf16>
    %559 = arith.truncf %556 : vector<1x32xf32> to vector<1x32xbf16>
    %cst_194 = arith.constant dense<0.000000e+00> : vector<1x64xf32>
    %560 = tpu.matmul %559, %558, %cst_194 {dimension_numbers = #tpu.dot_dimension_numbers<[1], [0], [0], [1], [0, 0, 1, 1], [], []>} : vector<1x32xbf16>, vector<32x64xbf16>, vector<1x64xf32> -> vector<1x64xf32>
    %cst_195 = arith.constant 0.000000e+00 : f32
    %561 = vector.broadcast %cst_195 : f32 to vector<1x64xf32>
    %562 = arith.maximumf %560, %561 : vector<1x64xf32>
    %c1_196 = arith.constant 1 : index
    %c0_197 = arith.constant 0 : index
    %c0_198 = arith.constant 0 : index
    %563 = vector.load %arg14[%c1_196, %c0_197, %c0_198] : memref<2x64x32xbf16, #tpu.memory_space<vmem>>, vector<1x64x32xbf16>
    %564 = vector.shape_cast %563 : vector<1x64x32xbf16> to vector<64x32xbf16>
    %565 = arith.truncf %562 : vector<1x64xf32> to vector<1x64xbf16>
    %cst_199 = arith.constant dense<0.000000e+00> : vector<1x32xf32>
    %566 = tpu.matmul %565, %564, %cst_199 {dimension_numbers = #tpu.dot_dimension_numbers<[1], [0], [0], [1], [0, 0, 1, 1], [], []>} : vector<1x64xbf16>, vector<64x32xbf16>, vector<1x32xf32> -> vector<1x32xf32>
    %567 = arith.addf %543, %566 : vector<1x32xf32>
    %c0_200 = arith.constant 0 : index
    %c0_201 = arith.constant 0 : index
    %568 = vector.load %arg15[%c0_200, %c0_201] : memref<1x32xf32, #tpu.memory_space<vmem>>, vector<1x32xf32>
    %569 = arith.mulf %567, %567 : vector<1x32xf32>
    %cst_202 = arith.constant dense<0.000000e+00> : vector<1xf32>
    %570 = vector.multi_reduction <add>, %569, %cst_202 [1] : vector<1x32xf32> to vector<1xf32>
    %571 = vector.shape_cast %570 : vector<1xf32> to vector<1x1xf32>
    %cst_203 = arith.constant 3.200000e+01 : f32
    %572 = vector.broadcast %cst_203 : f32 to vector<1x1xf32>
    %573 = arith.divf %571, %572 : vector<1x1xf32>
    %cst_204 = arith.constant 9.99999997E-7 : f32
    %574 = vector.broadcast %cst_204 : f32 to vector<1x1xf32>
    %575 = arith.addf %573, %574 : vector<1x1xf32>
    %576 = math.rsqrt %575 : vector<1x1xf32>
    %577 = vector.broadcast %576 : vector<1x1xf32> to vector<1x32xf32>
    %578 = arith.mulf %567, %577 : vector<1x32xf32>
    %579 = arith.mulf %578, %568 : vector<1x32xf32>
    %c0_205 = arith.constant 0 : index
    %c0_206 = arith.constant 0 : index
    %580 = vector.load %arg16[%c0_205, %c0_206] : memref<32x2xbf16, #tpu.memory_space<vmem>>, vector<32x2xbf16>
    %581 = arith.truncf %579 : vector<1x32xf32> to vector<1x32xbf16>
    %cst_207 = arith.constant dense<0.000000e+00> : vector<1x2xf32>
    %582 = tpu.matmul %581, %580, %cst_207 {dimension_numbers = #tpu.dot_dimension_numbers<[1], [0], [0], [1], [0, 0, 1, 1], [], []>} : vector<1x32xbf16>, vector<32x2xbf16>, vector<1x2xf32> -> vector<1x2xf32>
    %583 = vector.extract_strided_slice %582 {offsets = [0, 0], sizes = [1, 1], strides = [1, 1]} : vector<1x2xf32> to vector<1x1xf32>
    %584 = vector.extract_strided_slice %582 {offsets = [0, 1], sizes = [1, 1], strides = [1, 1]} : vector<1x2xf32> to vector<1x1xf32>
    %585 = arith.maximumf %583, %584 : vector<1x1xf32>
    %586 = arith.subf %583, %585 : vector<1x1xf32>
    %587 = math.exp %586 : vector<1x1xf32>
    %588 = arith.subf %584, %585 : vector<1x1xf32>
    %589 = math.exp %588 : vector<1x1xf32>
    %590 = arith.addf %587, %589 : vector<1x1xf32>
    %591 = math.log %590 : vector<1x1xf32>
    %592 = arith.addf %585, %591 : vector<1x1xf32>
    %593 = arith.subf %583, %592 : vector<1x1xf32>
    %c0_208 = arith.constant 0 : index
    %c0_209 = arith.constant 0 : index
    %c0_210 = arith.constant 0 : index
    %594 = vector.load %arg17[%c0_208, %c0_209, %c0_210] : memref<1x1x1xf32, #tpu.memory_space<vmem>>, vector<1x1x1xf32>
    %595 = vector.shape_cast %594 : vector<1x1x1xf32> to vector<1x1xf32>
    %596 = vector.shape_cast %593 : vector<1x1xf32> to vector<1x1x1xf32>
    tpu.vector_store %arg17[%c0_208, %c0_209, %c0_210], %596 {strides = array<i32>} : memref<1x1x1xf32, #tpu.memory_space<vmem>>, vector<1x1x1xf32>,
    return
  }
  func.func @transform_0(%arg0: i32) -> (i32, i32, i32) {
    %c0_i32 = arith.constant 0 : i32
    %c0_i32_0 = arith.constant 0 : i32
    %c0_i32_1 = arith.constant 0 : i32
    return %arg0, %c0_i32, %c0_i32_0 : i32, i32, i32
  }
  func.func @transform_1(%arg0: i32) -> (i32, i32, i32) {
    %c0_i32 = arith.constant 0 : i32
    %c0_i32_0 = arith.constant 0 : i32
    %c0_i32_1 = arith.constant 0 : i32
    return %arg0, %c0_i32, %c0_i32_0 : i32, i32, i32
  }
  func.func @transform_2(%arg0: i32) -> (i32, i32, i32) {
    %c0_i32 = arith.constant 0 : i32
    %c0_i32_0 = arith.constant 0 : i32
    %c0_i32_1 = arith.constant 0 : i32
    return %arg0, %c0_i32, %c0_i32_0 : i32, i32, i32
  }
  func.func @transform_3(%arg0: i32) -> (i32, i32, i32) {
    %c0_i32 = arith.constant 0 : i32
    %c0_i32_0 = arith.constant 0 : i32
    %c0_i32_1 = arith.constant 0 : i32
    %c0_i32_2 = arith.constant 0 : i32
    return %c0_i32, %c0_i32_0, %c0_i32_1 : i32, i32, i32
  }
  func.func @transform_4(%arg0: i32) -> (i32, i32, i32) {
    %c0_i32 = arith.constant 0 : i32
    %c0_i32_0 = arith.constant 0 : i32
    %c0_i32_1 = arith.constant 0 : i32
    %c0_i32_2 = arith.constant 0 : i32
    return %c0_i32, %c0_i32_0, %c0_i32_1 : i32, i32, i32
  }
  func.func @transform_5(%arg0: i32) -> (i32, i32, i32) {
    %c0_i32 = arith.constant 0 : i32
    %c0_i32_0 = arith.constant 0 : i32
    %c0_i32_1 = arith.constant 0 : i32
    %c0_i32_2 = arith.constant 0 : i32
    return %c0_i32, %c0_i32_0, %c0_i32_1 : i32, i32, i32
  }
  func.func @transform_6(%arg0: i32) -> (i32, i32, i32) {
    %c0_i32 = arith.constant 0 : i32
    %c0_i32_0 = arith.constant 0 : i32
    %c0_i32_1 = arith.constant 0 : i32
    %c0_i32_2 = arith.constant 0 : i32
    return %c0_i32, %c0_i32_0, %c0_i32_1 : i32, i32, i32
  }
  func.func @transform_7(%arg0: i32) -> (i32, i32, i32) {
    %c0_i32 = arith.constant 0 : i32
    %c0_i32_0 = arith.constant 0 : i32
    %c0_i32_1 = arith.constant 0 : i32
    %c0_i32_2 = arith.constant 0 : i32
    return %c0_i32, %c0_i32_0, %c0_i32_1 : i32, i32, i32
  }
  func.func @transform_8(%arg0: i32) -> (i32, i32, i32) {
    %c0_i32 = arith.constant 0 : i32
    %c0_i32_0 = arith.constant 0 : i32
    %c0_i32_1 = arith.constant 0 : i32
    %c0_i32_2 = arith.constant 0 : i32
    return %c0_i32, %c0_i32_0, %c0_i32_1 : i32, i32, i32
  }
  func.func @transform_9(%arg0: i32) -> (i32, i32, i32) {
    %c0_i32 = arith.constant 0 : i32
    %c0_i32_0 = arith.constant 0 : i32
    %c0_i32_1 = arith.constant 0 : i32
    %c0_i32_2 = arith.constant 0 : i32
    return %c0_i32, %c0_i32_0, %c0_i32_1 : i32, i32, i32
  }
  func.func @transform_10(%arg0: i32) -> (i32, i32, i32) {
    %c0_i32 = arith.constant 0 : i32
    %c0_i32_0 = arith.constant 0 : i32
    %c0_i32_1 = arith.constant 0 : i32
    %c0_i32_2 = arith.constant 0 : i32
    return %c0_i32, %c0_i32_0, %c0_i32_1 : i32, i32, i32
  }
  func.func @transform_11(%arg0: i32) -> (i32, i32, i32) {
    %c0_i32 = arith.constant 0 : i32
    %c0_i32_0 = arith.constant 0 : i32
    %c0_i32_1 = arith.constant 0 : i32
    %c0_i32_2 = arith.constant 0 : i32
    return %c0_i32, %c0_i32_0, %c0_i32_1 : i32, i32, i32
  }
  func.func @transform_12(%arg0: i32) -> (i32, i32, i32) {
    %c0_i32 = arith.constant 0 : i32
    %c0_i32_0 = arith.constant 0 : i32
    %c0_i32_1 = arith.constant 0 : i32
    %c0_i32_2 = arith.constant 0 : i32
    return %c0_i32, %c0_i32_0, %c0_i32_1 : i32, i32, i32
  }
  func.func @transform_13(%arg0: i32) -> (i32, i32, i32) {
    %c0_i32 = arith.constant 0 : i32
    %c0_i32_0 = arith.constant 0 : i32
    %c0_i32_1 = arith.constant 0 : i32
    %c0_i32_2 = arith.constant 0 : i32
    return %c0_i32, %c0_i32_0, %c0_i32_1 : i32, i32, i32
  }
  func.func @transform_14(%arg0: i32) -> (i32, i32) {
    %c0_i32 = arith.constant 0 : i32
    %c0_i32_0 = arith.constant 0 : i32
    %c0_i32_1 = arith.constant 0 : i32
    return %c0_i32, %c0_i32_0 : i32, i32
  }
  func.func @transform_15(%arg0: i32) -> (i32, i32) {
    %c0_i32 = arith.constant 0 : i32
    %c0_i32_0 = arith.constant 0 : i32
    %c0_i32_1 = arith.constant 0 : i32
    return %c0_i32, %c0_i32_0 : i32, i32
  }
  func.func @transform_16(%arg0: i32) -> (i32, i32, i32) {
    %c0_i32 = arith.constant 0 : i32
    %c0_i32_0 = arith.constant 0 : i32
    %c0_i32_1 = arith.constant 0 : i32
    return %arg0, %c0_i32, %c0_i32_0 : i32, i32, i32
  }
}

</mosaic_0001>

<llo_original>
// kernel: seq2seq_t5_score.2
$region0: #{seq2seq_t5_score.2}
  #allocation0 [shape = 'u32[]', space=smem, size = 0x4, offset = 0x4, fixed_abs, tag = 'smem constant byte address 0x4 - core index']
  #allocation1 [shape = 'u32[144,128]{1,0:T(1,128)}', space=vmem, size = 0x12000, scoped, tag = 'internal scratch']
  %s0 = inlined_call_operand.vmem [shape: f32[2,8,32], index: 0, kind: input, shape index: {}]
  %s1 = inlined_call_operand.vmem [shape: f32[2,1,8], index: 1, kind: input, shape index: {}]
  %s2 = inlined_call_operand.vmem [shape: f32[4,8,8], index: 2, kind: input, shape index: {}]
  %s3 = inlined_call_operand.vmem [shape: f32[2,1,32], index: 3, kind: input, shape index: {}]
  %s4 = inlined_call_operand.vmem [shape: f32[2,1,32], index: 4, kind: input, shape index: {}]
  %s5 = inlined_call_operand.vmem [shape: bf16[2,32,96], index: 5, kind: input, shape index: {}]
  %s6 = inlined_call_operand.vmem [shape: bf16[2,32,32], index: 6, kind: input, shape index: {}]
  %s7 = inlined_call_operand.vmem [shape: bf16[2,32,64], index: 7, kind: input, shape index: {}]
  %s8 = inlined_call_operand.vmem [shape: bf16[2,64,32], index: 8, kind: input, shape index: {}]
  %s9 = inlined_call_operand.vmem [shape: f32[1,32], index: 9, kind: input, shape index: {}]
  %s10 = inlined_call_operand.vmem [shape: f32[2,8,32], index: 10, kind: output, shape index: {}]
  %s11 = sld [smem:[#allocation0]]
  $region73: #{seq2seq_t5_score.2} parent=0
    _
  %s13 = ssub.s32 1, %s11
  %s14 = scalar_select 0, %s13, %s11
  loop: start=0, step=1, limit=4
  $region2: #{seq2seq_t5_score.2} parent=0 // loop_pre_header
    _
  $region3: #{seq2seq_t5_score.2} parent=0 // loop_header
    %s16 = sphi 0, %s20
    %p17 = scmp.ge.s32.totalorder %s16, 4
    %s26 = sphi 0, %s28
    %s29 = sphi 0, %s26
    %s30 = sphi 0, %s29
    %s46 = sphi 0, %s30
    %s52 = sphi 0, %s54
    %s55 = sphi 0, %s52
    %s56 = sphi 0, %s55
    %s72 = sphi 0, %s56
    %s76 = sphi 0, %s76
    %s78 = sphi 0, %s76
    %s79 = sphi 0, %s78
    %s93 = sphi 0, %s79
    %s97 = sphi 0, %s97
    %s99 = sphi 0, %s97
    %s100 = sphi 0, %s99
    %s114 = sphi 0, %s100
    %s118 = sphi 0, %s118
    %s120 = sphi 0, %s118
    %s121 = sphi 0, %s120
    %s135 = sphi 0, %s121
    %s139 = sphi 0, %s139
    %s141 = sphi 0, %s139
    %s142 = sphi 0, %s141
    %s156 = sphi 0, %s142
    %s160 = sphi 0, %s160
    %s162 = sphi 0, %s160
    %s163 = sphi 0, %s162
    %s177 = sphi 0, %s163
    %s181 = sphi 0, %s181
    %s183 = sphi 0, %s181
    %s184 = sphi 0, %s183
    %s198 = sphi 0, %s184
    %s202 = sphi 0, %s202
    %s204 = sphi 0, %s202
    %s205 = sphi 0, %s204
    %s219 = sphi 0, %s205
    %s223 = sphi 0, %s223
    %s225 = sphi 0, %s223
    %s226 = sphi 0, %s225
    %s240 = sphi 0, %s226
    %s246 = sphi 0, %s248
    %s249 = sphi 0, %s246
    %s250 = sphi 0, %s249
    %s266 = sphi 0, %s250
  $region4: #{seq2seq_t5_score.2} parent=0 // loop_header_branch
    %19 = sbr.rel (%p17) target = $region8
  $region5: #{seq2seq_t5_score.2} parent=0 // loop_body
    %s21 = ssub.s32 %s16, 1
    %s22 = ssub.s32 %s16, 2
    %s23 = sadd.s32 %s16, 1
    %s24 = ssub.s32 %s16, %s23
    %p25 = scmp.eq.s32.totalorder %s24, 0
    %s27 = sadd.s32 %s26, 1
    %s28 = scalar_select %p25, %s26, %s27
    %p31 = pneg %p25
    %p32 = scmp.eq.s32.totalorder %s16, 1
    %p33 = por %p31, %p32
    %p34 = scmp.ne.s32.totalorder %s26, %s29
    %p35 = scmp.eq.s32.totalorder %s16, 0
    %p36 = por %p34, %p35
    %p37 = scmp.ne.s32.totalorder %s26, %s29
    %p38 = scmp.eq.s32.totalorder %s21, 1
    %p39 = por %p37, %p38
    %p40 = scmp.ne.s32.totalorder %s29, %s30
    %p41 = scmp.eq.s32.totalorder %s21, 0
    %p42 = por %p40, %p41
    %p43 = scmp.ne.s32.totalorder %s29, %s30
    %p44 = scmp.eq.s32.totalorder %s22, 1
    %p45 = por %p43, %p44
    %p47 = scmp.ne.s32.totalorder %s30, %s46
    %p48 = scmp.eq.s32.totalorder %s22, 0
    %p49 = por %p47, %p48
    %s50 = ssub.s32 %s16, %s23
    %p51 = scmp.eq.s32.totalorder %s50, 0
    %s53 = sadd.s32 %s52, 1
    %s54 = scalar_select %p51, %s52, %s53
    %p57 = pneg %p51
    %p58 = scmp.eq.s32.totalorder %s16, 1
    %p59 = por %p57, %p58
    %p60 = scmp.ne.s32.totalorder %s52, %s55
    %p61 = scmp.eq.s32.totalorder %s16, 0
    %p62 = por %p60, %p61
    %p63 = scmp.ne.s32.totalorder %s52, %s55
    %p64 = scmp.eq.s32.totalorder %s21, 1
    %p65 = por %p63, %p64
    %p66 = scmp.ne.s32.totalorder %s55, %s56
    %p67 = scmp.eq.s32.totalorder %s21, 0
    %p68 = por %p66, %p67
    %p69 = scmp.ne.s32.totalorder %s55, %s56
    %p70 = scmp.eq.s32.totalorder %s22, 1
    %p71 = por %p69, %p70
    %p73 = scmp.ne.s32.totalorder %s56, %s72
    %p74 = scmp.eq.s32.totalorder %s22, 0
    %p75 = por %p73, %p74
    %s77 = sadd.s32 %s76, 1
    %p80 = scmp.eq.s32.totalorder %s16, 1
    %p81 = scmp.ne.s32.totalorder %s76, %s78
    %p82 = scmp.eq.s32.totalorder %s16, 0
    %p83 = por %p81, %p82
    %p84 = scmp.ne.s32.totalorder %s76, %s78
    %p85 = scmp.eq.s32.totalorder %s21, 1
    %p86 = por %p84, %p85
    %p87 = scmp.ne.s32.totalorder %s78, %s79
    %p88 = scmp.eq.s32.totalorder %s21, 0
    %p89 = por %p87, %p88
    %p90 = scmp.ne.s32.totalorder %s78, %s79
    %p91 = scmp.eq.s32.totalorder %s22, 1
    %p92 = por %p90, %p91
    %p94 = scmp.ne.s32.totalorder %s79, %s93
    %p95 = scmp.eq.s32.totalorder %s22, 0
    %p96 = por %p94, %p95
    %s98 = sadd.s32 %s97, 1
    %p101 = scmp.eq.s32.totalorder %s16, 1
    %p102 = scmp.ne.s32.totalorder %s97, %s99
    %p103 = scmp.eq.s32.totalorder %s16, 0
    %p104 = por %p102, %p103
    %p105 = scmp.ne.s32.totalorder %s97, %s99
    %p106 = scmp.eq.s32.totalorder %s21, 1
    %p107 = por %p105, %p106
    %p108 = scmp.ne.s32.totalorder %s99, %s100
    %p109 = scmp.eq.s32.totalorder %s21, 0
    %p110 = por %p108, %p109
    %p111 = scmp.ne.s32.totalorder %s99, %s100
    %p112 = scmp.eq.s32.totalorder %s22, 1
    %p113 = por %p111, %p112
    %p115 = scmp.ne.s32.totalorder %s100, %s114
    %p116 = scmp.eq.s32.totalorder %s22, 0
    %p117 = por %p115, %p116
    %s119 = sadd.s32 %s118, 1
    %p122 = scmp.eq.s32.totalorder %s16, 1
    %p123 = scmp.ne.s32.totalorder %s118, %s120
    %p124 = scmp.eq.s32.totalorder %s16, 0
    %p125 = por %p123, %p124
    %p126 = scmp.ne.s32.totalorder %s118, %s120
    %p127 = scmp.eq.s32.totalorder %s21, 1
    %p128 = por %p126, %p127
    %p129 = scmp.ne.s32.totalorder %s120, %s121
    %p130 = scmp.eq.s32.totalorder %s21, 0
    %p131 = por %p129, %p130
    %p132 = scmp.ne.s32.totalorder %s120, %s121
    %p133 = scmp.eq.s32.totalorder %s22, 1
    %p134 = por %p132, %p133
    %p136 = scmp.ne.s32.totalorder %s121, %s135
    %p137 = scmp.eq.s32.totalorder %s22, 0
    %p138 = por %p136, %p137
    %s140 = sadd.s32 %s139, 1
    %p143 = scmp.eq.s32.totalorder %s16, 1
    %p144 = scmp.ne.s32.totalorder %s139, %s141
    %p145 = scmp.eq.s32.totalorder %s16, 0
    %p146 = por %p144, %p145
    %p147 = scmp.ne.s32.totalorder %s139, %s141
    %p148 = scmp.eq.s32.totalorder %s21, 1
    %p149 = por %p147, %p148
    %p150 = scmp.ne.s32.totalorder %s141, %s142
    %p151 = scmp.eq.s32.totalorder %s21, 0
    %p152 = por %p150, %p151
    %p153 = scmp.ne.s32.totalorder %s141, %s142
    %p154 = scmp.eq.s32.totalorder %s22, 1
    %p155 = por %p153, %p154
    %p157 = scmp.ne.s32.totalorder %s142, %s156
    %p158 = scmp.eq.s32.totalorder %s22, 0
    %p159 = por %p157, %p158
    %s161 = sadd.s32 %s160, 1
    %p164 = scmp.eq.s32.totalorder %s16, 1
    %p165 = scmp.ne.s32.totalorder %s160, %s162
    %p166 = scmp.eq.s32.totalorder %s16, 0
    %p167 = por %p165, %p166
    %p168 = scmp.ne.s32.totalorder %s160, %s162
    %p169 = scmp.eq.s32.totalorder %s21, 1
    %p170 = por %p168, %p169
    %p171 = scmp.ne.s32.totalorder %s162, %s163
    %p172 = scmp.eq.s32.totalorder %s21, 0
    %p173 = por %p171, %p172
    %p174 = scmp.ne.s32.totalorder %s162, %s163
    %p175 = scmp.eq.s32.totalorder %s22, 1
    %p176 = por %p174, %p175
    %p178 = scmp.ne.s32.totalorder %s163, %s177
    %p179 = scmp.eq.s32.totalorder %s22, 0
    %p180 = por %p178, %p179
    %s182 = sadd.s32 %s181, 1
    %p185 = scmp.eq.s32.totalorder %s16, 1
    %p186 = scmp.ne.s32.totalorder %s181, %s183
    %p187 = scmp.eq.s32.totalorder %s16, 0
    %p188 = por %p186, %p187
    %p189 = scmp.ne.s32.totalorder %s181, %s183
    %p190 = scmp.eq.s32.totalorder %s21, 1
    %p191 = por %p189, %p190
    %p192 = scmp.ne.s32.totalorder %s183, %s184
    %p193 = scmp.eq.s32.totalorder %s21, 0
    %p194 = por %p192, %p193
    %p195 = scmp.ne.s32.totalorder %s183, %s184
    %p196 = scmp.eq.s32.totalorder %s22, 1
    %p197 = por %p195, %p196
    %p199 = scmp.ne.s32.totalorder %s184, %s198
    %p200 = scmp.eq.s32.totalorder %s22, 0
    %p201 = por %p199, %p200
    %s203 = sadd.s32 %s202, 1
    %p206 = scmp.eq.s32.totalorder %s16, 1
    %p207 = scmp.ne.s32.totalorder %s202, %s204
    %p208 = scmp.eq.s32.totalorder %s16, 0
    %p209 = por %p207, %p208
    %p210 = scmp.ne.s32.totalorder %s202, %s204
    %p211 = scmp.eq.s32.totalorder %s21, 1
    %p212 = por %p210, %p211
    %p213 = scmp.ne.s32.totalorder %s204, %s205
    %p214 = scmp.eq.s32.totalorder %s21, 0
    %p215 = por %p213, %p214
    %p216 = scmp.ne.s32.totalorder %s204, %s205
    %p217 = scmp.eq.s32.totalorder %s22, 1
    %p218 = por %p216, %p217
    %p220 = scmp.ne.s32.totalorder %s205, %s219
    %p221 = scmp.eq.s32.totalorder %s22, 0
    %p222 = por %p220, %p221
    %s224 = sadd.s32 %s223, 1
    %p227 = scmp.eq.s32.totalorder %s16, 1
    %p228 = scmp.ne.s32.totalorder %s223, %s225
    %p229 = scmp.eq.s32.totalorder %s16, 0
    %p230 = por %p228, %p229
    %p231 = scmp.ne.s32.totalorder %s223, %s225
    %p232 = scmp.eq.s32.totalorder %s21, 1
    %p233 = por %p231, %p232
    %p234 = scmp.ne.s32.totalorder %s225, %s226
    %p235 = scmp.eq.s32.totalorder %s21, 0
    %p236 = por %p234, %p235
    %p237 = scmp.ne.s32.totalorder %s225, %s226
    %p238 = scmp.eq.s32.totalorder %s22, 1
    %p239 = por %p237, %p238
    %p241 = scmp.ne.s32.totalorder %s226, %s240
    %p242 = scmp.eq.s32.totalorder %s22, 0
    %p243 = por %p241, %p242
    %s244 = ssub.s32 %s16, %s23
    %p245 = scmp.eq.s32.totalorder %s244, 0
    %s247 = sadd.s32 %s246, 1
    %s248 = scalar_select %p245, %s246, %s247
    %p251 = pneg %p245
    %p252 = scmp.eq.s32.totalorder %s16, 1
    %p253 = por %p251, %p252
    %p254 = scmp.ne.s32.totalorder %s246, %s249
    %p255 = scmp.eq.s32.totalorder %s16, 0
    %p256 = por %p254, %p255
    %p257 = scmp.ne.s32.totalorder %s246, %s249
    %p258 = scmp.eq.s32.totalorder %s21, 1
    %p259 = por %p257, %p258
    %p260 = scmp.ne.s32.totalorder %s249, %s250
    %p261 = scmp.eq.s32.totalorder %s21, 0
    %p262 = por %p260, %p261
    %p263 = scmp.ne.s32.totalorder %s249, %s250
    %p264 = scmp.eq.s32.totalorder %s22, 1
    %p265 = por %p263, %p264
    %p267 = scmp.ne.s32.totalorder %s250, %s266
    %p268 = scmp.eq.s32.totalorder %s22, 0
    %p269 = por %p267, %p268
    %p270 = scmp.le.s32.totalorder 1, %s16
    %p271 = scmp.lt.s32.totalorder %s16, 3
    %p272 = pnand %p270, %p271
    %p273 = pneg %p272
    // Predicated region
    $region9: #{seq2seq_t5_score.2} parent=5 // pred_check
      _
    $region10: #{seq2seq_t5_score.2} parent=5 // pred_check_branch
      %275 = sbr.rel (%p272) target = $region12
    $region11: #{seq2seq_t5_score.2} parent=5 // pred_region
      %s276 = ssub.s32 %s16, 1
      // Predicated region
      $region13: #{seq2seq_t5_score.2} parent=11 // pred_check
        %p277 = pneg %p89
      $region14: #{seq2seq_t5_score.2} parent=11 // pred_check_branch
        %279 = sbr.rel (%p277) target = $region16
      $region15: #{seq2seq_t5_score.2} parent=11 // pred_region
        _
      $region16: #{seq2seq_t5_score.2} parent=11 // pred_fallthru
        _
      // Predicated region
      $region17: #{seq2seq_t5_score.2} parent=11 // pred_check
        %p280 = pneg %p110
      $region18: #{seq2seq_t5_score.2} parent=11 // pred_check_branch
        %282 = sbr.rel (%p280) target = $region20
      $region19: #{seq2seq_t5_score.2} parent=11 // pred_region
        _
      $region20: #{seq2seq_t5_score.2} parent=11 // pred_fallthru
        _
      // Predicated region
      $region21: #{seq2seq_t5_score.2} parent=11 // pred_check
        %p283 = pneg %p131
      $region22: #{seq2seq_t5_score.2} parent=11 // pred_check_branch
        %285 = sbr.rel (%p283) target = $region24
      $region23: #{seq2seq_t5_score.2} parent=11 // pred_region
        _
      $region24: #{seq2seq_t5_score.2} parent=11 // pred_fallthru
        _
      // Predicated region
      $region25: #{seq2seq_t5_score.2} parent=11 // pred_check
        %p286 = pneg %p152
      $region26: #{seq2seq_t5_score.2} parent=11 // pred_check_branch
        %288 = sbr.rel (%p286) target = $region28
      $region27: #{seq2seq_t5_score.2} parent=11 // pred_region
        _
      $region28: #{seq2seq_t5_score.2} parent=11 // pred_fallthru
        _
      // Predicated region
      $region29: #{seq2seq_t5_score.2} parent=11 // pred_check
        %p289 = pneg %p173
      $region30: #{seq2seq_t5_score.2} parent=11 // pred_check_branch
        %291 = sbr.rel (%p289) target = $region32
      $region31: #{seq2seq_t5_score.2} parent=11 // pred_region
        _
      $region32: #{seq2seq_t5_score.2} parent=11 // pred_fallthru
        _
      // Predicated region
      $region33: #{seq2seq_t5_score.2} parent=11 // pred_check
        %p292 = pneg %p194
      $region34: #{seq2seq_t5_score.2} parent=11 // pred_check_branch
        %294 = sbr.rel (%p292) target = $region36
      $region35: #{seq2seq_t5_score.2} parent=11 // pred_region
        _
      $region36: #{seq2seq_t5_score.2} parent=11 // pred_fallthru
        _
      // Predicated region
      $region37: #{seq2seq_t5_score.2} parent=11 // pred_check
        %p295 = pneg %p215
      $region38: #{seq2seq_t5_score.2} parent=11 // pred_check_branch
        %297 = sbr.rel (%p295) target = $region40
      $region39: #{seq2seq_t5_score.2} parent=11 // pred_region
        _
      $region40: #{seq2seq_t5_score.2} parent=11 // pred_fallthru
        _
      // Predicated region
      $region41: #{seq2seq_t5_score.2} parent=11 // pred_check
        %p298 = pneg %p236
      $region42: #{seq2seq_t5_score.2} parent=11 // pred_check_branch
        %300 = sbr.rel (%p298) target = $region44
      $region43: #{seq2seq_t5_score.2} parent=11 // pred_region
        _
      $region44: #{seq2seq_t5_score.2} parent=11 // pred_fallthru
        _
    $region12: #{seq2seq_t5_score.2} parent=5 // pred_fallthru
      _
    %p301 = scmp.lt.s32.totalorder %s16, 2
    // Predicated region
    $region45: #{seq2seq_t5_score.2} parent=5 // pred_check
      %p302 = pneg %p301
    $region46: #{seq2seq_t5_score.2} parent=5 // pred_check_branch
      %304 = sbr.rel (%p302) target = $region48
    $region47: #{seq2seq_t5_score.2} parent=5 // pred_region
      // Predicated region
      $region49: #{seq2seq_t5_score.2} parent=47 // pred_check
        %p305 = pneg %p36
      $region50: #{seq2seq_t5_score.2} parent=47 // pred_check_branch
        %307 = sbr.rel (%p305) target = $region52
      $region51: #{seq2seq_t5_score.2} parent=47 // pred_region
        %p308 = scmp.lt.s32.totalorder %s16, 1
        %s309 = scalar_select %p308, %s16, 1
        %s310 = smul.addr %s309, 8
        %s311 = scalar_lea.vmem %s0, %s310
      $region52: #{seq2seq_t5_score.2} parent=47 // pred_fallthru
        _
      // Predicated region
      $region53: #{seq2seq_t5_score.2} parent=47 // pred_check
        %p312 = pneg %p62
      $region54: #{seq2seq_t5_score.2} parent=47 // pred_check_branch
        %314 = sbr.rel (%p312) target = $region56
      $region55: #{seq2seq_t5_score.2} parent=47 // pred_region
        %p315 = scmp.lt.s32.totalorder %s16, 1
        %s316 = scalar_select %p315, %s16, 1
        %s317 = scalar_lea.vmem %s1, %s316
      $region56: #{seq2seq_t5_score.2} parent=47 // pred_fallthru
        _
    $region48: #{seq2seq_t5_score.2} parent=5 // pred_fallthru
      _
    %p318 = scmp.le.s32.totalorder 1, %s16
    %p319 = scmp.lt.s32.totalorder %s16, 3
    %p320 = pnand %p318, %p319
    %p321 = pneg %p320
    // Predicated region
    $region57: #{seq2seq_t5_score.2} parent=5 // pred_check
      _
    $region58: #{seq2seq_t5_score.2} parent=5 // pred_check_branch
      %323 = sbr.rel (%p320) target = $region60
    $region59: #{seq2seq_t5_score.2} parent=5 // pred_region
      %s324 = ssub.s32 %s16, 1
      %p325 = scmp.lt.s32.totalorder %s21, 1
      %s326 = scalar_select %p325, %s21, 1
      %s327 = smul.addr %s326, 8
      %s328 = scalar_lea.vmem %s0, %s327
      %p329 = pneg %p42
      %p330 = pneg %p39
      %p331 = scmp.lt.s32.totalorder %s21, 1
      %s332 = scalar_select %p331, %s21, 1
      %s333 = scalar_lea.vmem %s1, %s332
      %p334 = pneg %p68
      %p335 = pneg %p65
      %p336 = pneg %p89
      %p337 = pneg %p86
      %p338 = pneg %p110
      %p339 = pneg %p107
      %p340 = pneg %p131
      %p341 = pneg %p128
      %p342 = pneg %p152
      %p343 = pneg %p149
      %p344 = pneg %p173
      %p345 = pneg %p170
      %p346 = pneg %p194
      %p347 = pneg %p191
      %p348 = pneg %p215
      %p349 = pneg %p212
      %p350 = pneg %p236
      %p351 = pneg %p233
      %p352 = pneg %p262
      %p353 = pneg %p259
      %p354 = scmp.lt.s32.totalorder %s21, 1
      %s355 = scalar_select %p354, %s21, 1
      %s356 = smul.addr %s355, 8
      %s357 = scalar_lea.vmem %s10, %s356
      %p358 = scmp.lt.s32.totalorder %s21, 1
      %s359 = scalar_select %p358, %s21, 1
      %s360 = smul.addr %s359, 8
      %s361 = scalar_lea.vmem %s0, %s360
      %p362 = scmp.lt.s32.totalorder %s21, 1
      %s363 = scalar_select %p362, %s21, 1
      %s364 = scalar_lea.vmem %s1, %s363
      %p365 = scmp.lt.s32.totalorder %s21, 1
      %s366 = scalar_select %p365, %s21, 1
      %s367 = smul.addr %s366, 8
      %s368 = scalar_lea.vmem %s10, %s367
      %v370 = vld [vmem:[%s361] sm:$0xff]
      %v371 = vld [vmem:[%s364] sm:$0x1]
      %v372 = vsub.f32 1.0, %v371
      %v373 = vmul.f32 %v372, -1e+09
      %v374 = vld [vmem:[%s3] sm:$0x1]
      %v375 = vmul.f32 %v370, %v370
      %vm376 = vcmask 261120
      %v377 = vsel %vm376, %v375, 0.0
      %378 = vadd.xlane.f32.xlu0 %v377
      %v379 = vpop.xlane.xlu0 %378
      %v380 = vrcp.pop 32.0
      %v381 = vmul.f32 %v379, %v380
      %v382 = vadd.f32 %v381, 1e-06
      %v383 = vrsqrt.pop %v382
      %v384 = vmul.f32 %v370, %v383
      %v386 = vlaneseq
      %v387 = vshrl.u32 %v386, 7
      %v388 = vsub.s32 0, %v387
      %v389 = vrot.slane %v374, %v388
      %v391 = vmul.f32 %v384, %v389
      %v392 = vld [vmem:[%s5] sm:$0xf]
      %v393 = vld [vmem:[%s5 + $0x4] sm:$0xf]
      %v394 = vld [vmem:[%s5 + $0x8] sm:$0xf]
      %v395 = vld [vmem:[%s5 + $0xc] sm:$0xf]
      %v396 = vpack.c.bf16 %v391, %v391
      %v401 = vunpack.c.l.b16 %v392
      %v402 = vunpack.c.l.b16 %v393
      %v403 = vunpack.c.l.b16 %v394
      %v404 = vunpack.c.l.b16 %v395
      %v405 = vpack.c.b16 %v402, %v401
      %v406 = vpack.c.b16 %v404, %v403
      %v410 = vsel %vm376, %v396, 0
      %412 = vmatprep.subr.bf16.mxu0 0
      %413 = vmatpush1.bf16.msra.mxu0 %v405
      %414 = vmatprep.subr.bf16.mxu0 0
      %415 = vmatpush1.bf16.msra.mxu0 %v406
      %416 = vmatprep.subr.bf16.mxu0 0
      %417 = vmatpush1.bf16.msra.mxu0 0
      %418 = vmatprep.subr.bf16.mxu0 0
      %419 = vmatpush1.bf16.msra.mxu0 0
      %420 = vmatprep.subr.bf16.mxu0 0
      %421 = vmatpush1.bf16.msra.mxu0 0
      %422 = vmatprep.subr.bf16.mxu0 0
      %423 = vmatpush1.bf16.msra.mxu0 0
      %424 = vmatprep.subr.bf16.mxu0 0
      %425 = vmatpush1.bf16.msra.mxu0 0
      %426 = vmatprep.subr.bf16.mxu0 0
      %427 = vmatpush1.bf16.msra.mxu0 0
      %428 = vmatprep.subr.bf16.mxu0 0
      %429 = vmatpush1.bf16.msra.mxu0 0
      %430 = vmatprep.subr.bf16.mxu0 0
      %431 = vmatpush1.bf16.msra.mxu0 0
      %432 = vmatprep.subr.bf16.mxu0 0
      %433 = vmatpush1.bf16.msra.mxu0 0
      %434 = vmatprep.subr.bf16.mxu0 0
      %435 = vmatpush1.bf16.msra.mxu0 0
      %436 = vmatprep.subr.bf16.mxu0 0
      %437 = vmatpush1.bf16.msra.mxu0 0
      %438 = vmatprep.subr.bf16.mxu0 0
      %439 = vmatpush1.bf16.msra.mxu0 0
      %440 = vmatprep.subr.bf16.mxu0 0
      %441 = vmatpush1.bf16.msra.mxu0 0
      %442 = vmatprep.subr.bf16.mxu0 0
      %443 = vmatpush1.bf16.msra.mxu0 0
      %444 = vmatprep.mubr.bf16.mxu0 0
      %445 = vmatmul.mubr.bf16.gmra.mrb[0].mxu0 %v410
      %v446 = vpop.f32.mrb[0].mxu0
      %v447 = vadd.f32 0.0, %v446
      %v448 = vpop.f32.mrb[0].mxu0
      %v449 = vpop.f32.mrb[0].mxu0
      %v450 = vpop.f32.mrb[0].mxu0
      %451 = vdwg.mxu0
      %v452 = vld [vmem:[%s6] sm:$0xf]
      %v453 = vld [vmem:[%s6 + $0x4] sm:$0xf]
      %v454 = vld [vmem:[%s6 + $0x8] sm:$0xf]
      %v455 = vld [vmem:[%s6 + $0xc] sm:$0xf]
      %v456 = vpack.c.bf16 %v447, %v447
      %v457 = vld [vmem:[%s2] sm:$0xff]
      %v459 = vlaneseq
      %v460 = vshrl.u32 %v459, 7
      %v461 = vsub.s32 0, %v460
      %v462 = vrot.slane %v373, %v461
      %v464 = vadd.f32 %v457, %v462
      %466 = vrot.lane.b32.xlu0 %v456, 96
      %v467 = vpop.permute.xlu0 %466
      %vm468 = vcmask 64512
      %v470 = vsel %vm468, %v456, 0
      %v473 = vsel %vm468, %v467, 0
      %475 = vmatprep.subr.bf16.mxu0 0
      %476 = vmatpush1.bf16.xpose.msra.mxu0 %v473
      %477 = vmatprep.subr.bf16.mxu0 0
      %478 = vmatpush1.bf16.xpose.msra.mxu0 0
      %479 = vmatprep.subr.bf16.mxu0 0
      %480 = vmatpush1.bf16.xpose.msra.mxu0 0
      %481 = vmatprep.subr.bf16.mxu0 0
      %482 = vmatpush1.bf16.xpose.msra.mxu0 0
      %483 = vmatprep.subr.bf16.mxu0 0
      %484 = vmatpush1.bf16.xpose.msra.mxu0 0
      %485 = vmatprep.subr.bf16.mxu0 0
      %486 = vmatpush1.bf16.xpose.msra.mxu0 0
      %487 = vmatprep.subr.bf16.mxu0 0
      %488 = vmatpush1.bf16.xpose.msra.mxu0 0
      %489 = vmatprep.subr.bf16.mxu0 0
      %490 = vmatpush1.bf16.xpose.msra.mxu0 0
      %491 = vmatprep.subr.bf16.mxu0 0
      %492 = vmatpush1.bf16.xpose.msra.mxu0 0
      %493 = vmatprep.subr.bf16.mxu0 0
      %494 = vmatpush1.bf16.xpose.msra.mxu0 0
      %495 = vmatprep.subr.bf16.mxu0 0
      %496 = vmatpush1.bf16.xpose.msra.mxu0 0
      %497 = vmatprep.subr.bf16.mxu0 0
      %498 = vmatpush1.bf16.xpose.msra.mxu0 0
      %499 = vmatprep.subr.bf16.mxu0 0
      %500 = vmatpush1.bf16.xpose.msra.mxu0 0
      %501 = vmatprep.subr.bf16.mxu0 0
      %502 = vmatpush1.bf16.xpose.msra.mxu0 0
      %503 = vmatprep.subr.bf16.mxu0 0
      %504 = vmatpush1.bf16.xpose.msra.mxu0 0
      %505 = vmatprep.subr.bf16.mxu0 0
      %506 = vmatpush1.bf16.xpose.msra.mxu0 0
      %507 = vmatprep.mubr.bf16.mxu0 0
      %508 = vmatmul.mubr.bf16.gmra.mrb[0].mxu0 %v470
      %v509 = vpop.f32.mrb[0].mxu0
      %v510 = vadd.f32 %v464, %v509
      %v511 = vpop.f32.mrb[0].mxu0
      %v512 = vpop.f32.mrb[0].mxu0
      %v513 = vpop.f32.mrb[0].mxu0
      %514 = vdwg.mxu0
      %v515 = vsel %vm468, %v510, -inf
      %516 = vmax.xlane.f32.xlu0 %v515
      %v517 = vpop.xlane.xlu0 %516
      %v518 = vsub.f32 %v510, %v517
      %v519 = vmul.f32 %v518, 1.442695
      %v520 = vpow.pop %v519
      %v521 = vsel %vm468, %v520, 0.0
      %522 = vadd.xlane.f32.xlu0 %v521
      %v523 = vpop.xlane.xlu0 %522
      %v524 = vrcp.pop %v523
      %v525 = vmul.f32 %v520, %v524
      %v526 = vpack.c.bf16 %v525, %v525
      %527 = vrot.lane.b32.xlu0 %v456, 64
      %v528 = vpop.permute.xlu0 %527
      %v530 = vsel %vm468, %v526, 0
      %vm532 = vcmask 1043456
      %v534 = vsel %vm532, %v528, 0
      %536 = vmatprep.subr.bf16.mxu0 0
      %537 = vmatpush1.bf16.msra.mxu0 %v534
      %538 = vmatprep.subr.bf16.mxu0 0
      %539 = vmatpush1.bf16.msra.mxu0 0
      %540 = vmatprep.subr.bf16.mxu0 0
      %541 = vmatpush1.bf16.msra.mxu0 0
      %542 = vmatprep.subr.bf16.mxu0 0
      %543 = vmatpush1.bf16.msra.mxu0 0
      %544 = vmatprep.subr.bf16.mxu0 0
      %545 = vmatpush1.bf16.msra.mxu0 0
      %546 = vmatprep.subr.bf16.mxu0 0
      %547 = vmatpush1.bf16.msra.mxu0 0
      %548 = vmatprep.subr.bf16.mxu0 0
      %549 = vmatpush1.bf16.msra.mxu0 0
      %550 = vmatprep.subr.bf16.mxu0 0
      %551 = vmatpush1.bf16.msra.mxu0 0
      %552 = vmatprep.subr.bf16.mxu0 0
      %553 = vmatpush1.bf16.msra.mxu0 0
      %554 = vmatprep.subr.bf16.mxu0 0
      %555 = vmatpush1.bf16.msra.mxu0 0
      %556 = vmatprep.subr.bf16.mxu0 0
      %557 = vmatpush1.bf16.msra.mxu0 0
      %558 = vmatprep.subr.bf16.mxu0 0
      %559 = vmatpush1.bf16.msra.mxu0 0
      %560 = vmatprep.subr.bf16.mxu0 0
      %561 = vmatpush1.bf16.msra.mxu0 0
      %562 = vmatprep.subr.bf16.mxu0 0
      %563 = vmatpush1.bf16.msra.mxu0 0
      %564 = vmatprep.subr.bf16.mxu0 0
      %565 = vmatpush1.bf16.msra.mxu0 0
      %566 = vmatprep.subr.bf16.mxu0 0
      %567 = vmatpush1.bf16.msra.mxu0 0
      %568 = vmatprep.mubr.bf16.mxu0 0
      %569 = vmatmul.mubr.bf16.gmra.mrb[0].mxu0 %v530
      %v570 = vpop.f32.mrb[0].mxu0
      %v571 = vadd.f32 0.0, %v570
      %v572 = vpop.f32.mrb[0].mxu0
      %v573 = vpop.f32.mrb[0].mxu0
      %v574 = vpop.f32.mrb[0].mxu0
      %575 = vdwg.mxu0
      %v576 = vpack.c.bf16 %v571, %v571
      %s577 = scalar_lea.vmem %s2, 8
      %v578 = vld [vmem:[%s577] sm:$0xff]
      %v579 = vadd.f32 %v578, %v462
      %580 = vrot.lane.b32.xlu0 %v456, 120
      %v581 = vpop.permute.xlu0 %580
      %582 = vrot.lane.b32.xlu0 %v456, 88
      %v583 = vpop.permute.xlu0 %582
      %v585 = vsel %vm468, %v581, 0
      %v588 = vsel %vm468, %v583, 0
      %590 = vmatprep.subr.bf16.mxu0 0
      %591 = vmatpush1.bf16.xpose.msra.mxu0 %v588
      %592 = vmatprep.subr.bf16.mxu0 0
      %593 = vmatpush1.bf16.xpose.msra.mxu0 0
      %594 = vmatprep.subr.bf16.mxu0 0
      %595 = vmatpush1.bf16.xpose.msra.mxu0 0
      %596 = vmatprep.subr.bf16.mxu0 0
      %597 = vmatpush1.bf16.xpose.msra.mxu0 0
      %598 = vmatprep.subr.bf16.mxu0 0
      %599 = vmatpush1.bf16.xpose.msra.mxu0 0
      %600 = vmatprep.subr.bf16.mxu0 0
      %601 = vmatpush1.bf16.xpose.msra.mxu0 0
      %602 = vmatprep.subr.bf16.mxu0 0
      %603 = vmatpush1.bf16.xpose.msra.mxu0 0
      %604 = vmatprep.subr.bf16.mxu0 0
      %605 = vmatpush1.bf16.xpose.msra.mxu0 0
      %606 = vmatprep.subr.bf16.mxu0 0
      %607 = vmatpush1.bf16.xpose.msra.mxu0 0
      %608 = vmatprep.subr.bf16.mxu0 0
      %609 = vmatpush1.bf16.xpose.msra.mxu0 0
      %610 = vmatprep.subr.bf16.mxu0 0
      %611 = vmatpush1.bf16.xpose.msra.mxu0 0
      %612 = vmatprep.subr.bf16.mxu0 0
      %613 = vmatpush1.bf16.xpose.msra.mxu0 0
      %614 = vmatprep.subr.bf16.mxu0 0
      %615 = vmatpush1.bf16.xpose.msra.mxu0 0
      %616 = vmatprep.subr.bf16.mxu0 0
      %617 = vmatpush1.bf16.xpose.msra.mxu0 0
      %618 = vmatprep.subr.bf16.mxu0 0
      %619 = vmatpush1.bf16.xpose.msra.mxu0 0
      %620 = vmatprep.subr.bf16.mxu0 0
      %621 = vmatpush1.bf16.xpose.msra.mxu0 0
      %622 = vmatprep.mubr.bf16.mxu0 0
      %623 = vmatmul.mubr.bf16.gmra.mrb[0].mxu0 %v585
      %v624 = vpop.f32.mrb[0].mxu0
      %v625 = vadd.f32 %v579, %v624
      %v626 = vpop.f32.mrb[0].mxu0
      %v627 = vpop.f32.mrb[0].mxu0
      %v628 = vpop.f32.mrb[0].mxu0
      %629 = vdwg.mxu0
      %v630 = vsel %vm468, %v625, -inf
      %631 = vmax.xlane.f32.xlu0 %v630
      %v632 = vpop.xlane.xlu0 %631
      %v633 = vsub.f32 %v625, %v632
      %v634 = vmul.f32 %v633, 1.442695
      %v635 = vpow.pop %v634
      %v636 = vsel %vm468, %v635, 0.0
      %637 = vadd.xlane.f32.xlu0 %v636
      %v638 = vpop.xlane.xlu0 %637
      %v639 = vrcp.pop %v638
      %v640 = vmul.f32 %v635, %v639
      %v641 = vpack.c.bf16 %v640, %v640
      %642 = vrot.lane.b32.xlu0 %v456, 56
      %v643 = vpop.permute.xlu0 %642
      %v645 = vsel %vm468, %v641, 0
      %v648 = vsel %vm532, %v643, 0
      %650 = vmatprep.subr.bf16.mxu0 0
      %651 = vmatpush1.bf16.msra.mxu0 %v648
      %652 = vmatprep.subr.bf16.mxu0 0
      %653 = vmatpush1.bf16.msra.mxu0 0
      %654 = vmatprep.subr.bf16.mxu0 0
      %655 = vmatpush1.bf16.msra.mxu0 0
      %656 = vmatprep.subr.bf16.mxu0 0
      %657 = vmatpush1.bf16.msra.mxu0 0
      %658 = vmatprep.subr.bf16.mxu0 0
      %659 = vmatpush1.bf16.msra.mxu0 0
      %660 = vmatprep.subr.bf16.mxu0 0
      %661 = vmatpush1.bf16.msra.mxu0 0
      %662 = vmatprep.subr.bf16.mxu0 0
      %663 = vmatpush1.bf16.msra.mxu0 0
      %664 = vmatprep.subr.bf16.mxu0 0
      %665 = vmatpush1.bf16.msra.mxu0 0
      %666 = vmatprep.subr.bf16.mxu0 0
      %667 = vmatpush1.bf16.msra.mxu0 0
      %668 = vmatprep.subr.bf16.mxu0 0
      %669 = vmatpush1.bf16.msra.mxu0 0
      %670 = vmatprep.subr.bf16.mxu0 0
      %671 = vmatpush1.bf16.msra.mxu0 0
      %672 = vmatprep.subr.bf16.mxu0 0
      %673 = vmatpush1.bf16.msra.mxu0 0
      %674 = vmatprep.subr.bf16.mxu0 0
      %675 = vmatpush1.bf16.msra.mxu0 0
      %676 = vmatprep.subr.bf16.mxu0 0
      %677 = vmatpush1.bf16.msra.mxu0 0
      %678 = vmatprep.subr.bf16.mxu0 0
      %679 = vmatpush1.bf16.msra.mxu0 0
      %680 = vmatprep.subr.bf16.mxu0 0
      %681 = vmatpush1.bf16.msra.mxu0 0
      %682 = vmatprep.mubr.bf16.mxu0 0
      %683 = vmatmul.mubr.bf16.gmra.mrb[0].mxu0 %v645
      %v684 = vpop.f32.mrb[0].mxu0
      %v685 = vadd.f32 0.0, %v684
      %v686 = vpop.f32.mrb[0].mxu0
      %v687 = vpop.f32.mrb[0].mxu0
      %v688 = vpop.f32.mrb[0].mxu0
      %689 = vdwg.mxu0
      %v690 = vpack.c.bf16 %v685, %v685
      %v692 = vsel %vm468, %v690, 0
      %v695 = vsel %vm532, %v453, 0
      %697 = vmatprep.subr.bf16.mxu0 0
      %698 = vmatpush1.bf16.msra.mxu0 %v695
      %699 = vmatprep.subr.bf16.mxu0 0
      %700 = vmatpush1.bf16.msra.mxu0 0
      %701 = vmatprep.subr.bf16.mxu0 0
      %702 = vmatpush1.bf16.msra.mxu0 0
      %703 = vmatprep.subr.bf16.mxu0 0
      %704 = vmatpush1.bf16.msra.mxu0 0
      %705 = vmatprep.subr.bf16.mxu0 0
      %706 = vmatpush1.bf16.msra.mxu0 0
      %707 = vmatprep.subr.bf16.mxu0 0
      %708 = vmatpush1.bf16.msra.mxu0 0
      %709 = vmatprep.subr.bf16.mxu0 0
      %710 = vmatpush1.bf16.msra.mxu0 0
      %711 = vmatprep.subr.bf16.mxu0 0
      %712 = vmatpush1.bf16.msra.mxu0 0
      %713 = vmatprep.subr.bf16.mxu0 0
      %714 = vmatpush1.bf16.msra.mxu0 0
      %715 = vmatprep.subr.bf16.mxu0 0
      %716 = vmatpush1.bf16.msra.mxu0 0
      %717 = vmatprep.subr.bf16.mxu0 0
      %718 = vmatpush1.bf16.msra.mxu0 0
      %719 = vmatprep.subr.bf16.mxu0 0
      %720 = vmatpush1.bf16.msra.mxu0 0
      %721 = vmatprep.subr.bf16.mxu0 0
      %722 = vmatpush1.bf16.msra.mxu0 0
      %723 = vmatprep.subr.bf16.mxu0 0
      %724 = vmatpush1.bf16.msra.mxu0 0
      %725 = vmatprep.subr.bf16.mxu0 0
      %726 = vmatpush1.bf16.msra.mxu0 0
      %727 = vmatprep.subr.bf16.mxu0 0
      %728 = vmatpush1.bf16.msra.mxu0 0
      %729 = vmatprep.mubr.bf16.mxu0 0
      %730 = vmatmul.mubr.bf16.gmra.mrb[0].mxu0 %v692
      %v731 = vpop.f32.mrb[0].mxu0
      %v732 = vadd.f32 0.0, %v731
      %v733 = vpop.f32.mrb[0].mxu0
      %v734 = vpop.f32.mrb[0].mxu0
      %v735 = vpop.f32.mrb[0].mxu0
      %736 = vdwg.mxu0
      %v738 = vsel %vm468, %v576, 0
      %v741 = vsel %vm532, %v452, 0
      %743 = vmatprep.subr.bf16.mxu0 0
      %744 = vmatpush1.bf16.msra.mxu0 %v741
      %745 = vmatprep.subr.bf16.mxu0 0
      %746 = vmatpush1.bf16.msra.mxu0 0
      %747 = vmatprep.subr.bf16.mxu0 0
      %748 = vmatpush1.bf16.msra.mxu0 0
      %749 = vmatprep.subr.bf16.mxu0 0
      %750 = vmatpush1.bf16.msra.mxu0 0
      %751 = vmatprep.subr.bf16.mxu0 0
      %752 = vmatpush1.bf16.msra.mxu0 0
      %753 = vmatprep.subr.bf16.mxu0 0
      %754 = vmatpush1.bf16.msra.mxu0 0
      %755 = vmatprep.subr.bf16.mxu0 0
      %756 = vmatpush1.bf16.msra.mxu0 0
      %757 = vmatprep.subr.bf16.mxu0 0
      %758 = vmatpush1.bf16.msra.mxu0 0
      %759 = vmatprep.subr.bf16.mxu0 0
      %760 = vmatpush1.bf16.msra.mxu0 0
      %761 = vmatprep.subr.bf16.mxu0 0
      %762 = vmatpush1.bf16.msra.mxu0 0
      %763 = vmatprep.subr.bf16.mxu0 0
      %764 = vmatpush1.bf16.msra.mxu0 0
      %765 = vmatprep.subr.bf16.mxu0 0
      %766 = vmatpush1.bf16.msra.mxu0 0
      %767 = vmatprep.subr.bf16.mxu0 0
      %768 = vmatpush1.bf16.msra.mxu0 0
      %769 = vmatprep.subr.bf16.mxu0 0
      %770 = vmatpush1.bf16.msra.mxu0 0
      %771 = vmatprep.subr.bf16.mxu0 0
      %772 = vmatpush1.bf16.msra.mxu0 0
      %773 = vmatprep.subr.bf16.mxu0 0
      %774 = vmatpush1.bf16.msra.mxu0 0
      %775 = vmatprep.mubr.bf16.mxu0 0
      %776 = vmatmul.mubr.bf16.gmra.mrb[0].mxu0 %v738
      %v777 = vpop.f32.mrb[0].mxu0
      %v778 = vadd.f32 %v732, %v777
      %v779 = vpop.f32.mrb[0].mxu0
      %v780 = vpop.f32.mrb[0].mxu0
      %v781 = vpop.f32.mrb[0].mxu0
      %782 = vdwg.mxu0
      %s783 = scalar_lea.vmem %s2, 16
      %v784 = vld [vmem:[%s783] sm:$0xff]
      %v785 = vadd.f32 %v784, %v462
      %786 = vrot.lane.b32.xlu0 %v456, 112
      %v787 = vpop.permute.xlu0 %786
      %788 = vrot.lane.b32.xlu0 %v456, 80
      %v789 = vpop.permute.xlu0 %788
      %v791 = vsel %vm468, %v787, 0
      %v794 = vsel %vm468, %v789, 0
      %796 = vmatprep.subr.bf16.mxu0 0
      %797 = vmatpush1.bf16.xpose.msra.mxu0 %v794
      %798 = vmatprep.subr.bf16.mxu0 0
      %799 = vmatpush1.bf16.xpose.msra.mxu0 0
      %800 = vmatprep.subr.bf16.mxu0 0
      %801 = vmatpush1.bf16.xpose.msra.mxu0 0
      %802 = vmatprep.subr.bf16.mxu0 0
      %803 = vmatpush1.bf16.xpose.msra.mxu0 0
      %804 = vmatprep.subr.bf16.mxu0 0
      %805 = vmatpush1.bf16.xpose.msra.mxu0 0
      %806 = vmatprep.subr.bf16.mxu0 0
      %807 = vmatpush1.bf16.xpose.msra.mxu0 0
      %808 = vmatprep.subr.bf16.mxu0 0
      %809 = vmatpush1.bf16.xpose.msra.mxu0 0
      %810 = vmatprep.subr.bf16.mxu0 0
      %811 = vmatpush1.bf16.xpose.msra.mxu0 0
      %812 = vmatprep.subr.bf16.mxu0 0
      %813 = vmatpush1.bf16.xpose.msra.mxu0 0
      %814 = vmatprep.subr.bf16.mxu0 0
      %815 = vmatpush1.bf16.xpose.msra.mxu0 0
      %816 = vmatprep.subr.bf16.mxu0 0
      %817 = vmatpush1.bf16.xpose.msra.mxu0 0
      %818 = vmatprep.subr.bf16.mxu0 0
      %819 = vmatpush1.bf16.xpose.msra.mxu0 0
      %820 = vmatprep.subr.bf16.mxu0 0
      %821 = vmatpush1.bf16.xpose.msra.mxu0 0
      %822 = vmatprep.subr.bf16.mxu0 0
      %823 = vmatpush1.bf16.xpose.msra.mxu0 0
      %824 = vmatprep.subr.bf16.mxu0 0
      %825 = vmatpush1.bf16.xpose.msra.mxu0 0
      %826 = vmatprep.subr.bf16.mxu0 0
      %827 = vmatpush1.bf16.xpose.msra.mxu0 0
      %828 = vmatprep.mubr.bf16.mxu0 0
      %829 = vmatmul.mubr.bf16.gmra.mrb[0].mxu0 %v791
      %v830 = vpop.f32.mrb[0].mxu0
      %v831 = vadd.f32 %v785, %v830
      %v832 = vpop.f32.mrb[0].mxu0
      %v833 = vpop.f32.mrb[0].mxu0
      %v834 = vpop.f32.mrb[0].mxu0
      %835 = vdwg.mxu0
      %v836 = vsel %vm468, %v831, -inf
      %837 = vmax.xlane.f32.xlu0 %v836
      %v838 = vpop.xlane.xlu0 %837
      %v839 = vsub.f32 %v831, %v838
      %v840 = vmul.f32 %v839, 1.442695
      %v841 = vpow.pop %v840
      %v842 = vsel %vm468, %v841, 0.0
      %843 = vadd.xlane.f32.xlu0 %v842
      %v844 = vpop.xlane.xlu0 %843
      %v845 = vrcp.pop %v844
      %v846 = vmul.f32 %v841, %v845
      %v847 = vpack.c.bf16 %v846, %v846
      %848 = vrot.lane.b32.xlu0 %v456, 48
      %v849 = vpop.permute.xlu0 %848
      %v851 = vsel %vm468, %v847, 0
      %v854 = vsel %vm532, %v849, 0
      %856 = vmatprep.subr.bf16.mxu0 0
      %857 = vmatpush1.bf16.msra.mxu0 %v854
      %858 = vmatprep.subr.bf16.mxu0 0
      %859 = vmatpush1.bf16.msra.mxu0 0
      %860 = vmatprep.subr.bf16.mxu0 0
      %861 = vmatpush1.bf16.msra.mxu0 0
      %862 = vmatprep.subr.bf16.mxu0 0
      %863 = vmatpush1.bf16.msra.mxu0 0
      %864 = vmatprep.subr.bf16.mxu0 0
      %865 = vmatpush1.bf16.msra.mxu0 0
      %866 = vmatprep.subr.bf16.mxu0 0
      %867 = vmatpush1.bf16.msra.mxu0 0
      %868 = vmatprep.subr.bf16.mxu0 0
      %869 = vmatpush1.bf16.msra.mxu0 0
      %870 = vmatprep.subr.bf16.mxu0 0
      %871 = vmatpush1.bf16.msra.mxu0 0
      %872 = vmatprep.subr.bf16.mxu0 0
      %873 = vmatpush1.bf16.msra.mxu0 0
      %874 = vmatprep.subr.bf16.mxu0 0
      %875 = vmatpush1.bf16.msra.mxu0 0
      %876 = vmatprep.subr.bf16.mxu0 0
      %877 = vmatpush1.bf16.msra.mxu0 0
      %878 = vmatprep.subr.bf16.mxu0 0
      %879 = vmatpush1.bf16.msra.mxu0 0
      %880 = vmatprep.subr.bf16.mxu0 0
      %881 = vmatpush1.bf16.msra.mxu0 0
      %882 = vmatprep.subr.bf16.mxu0 0
      %883 = vmatpush1.bf16.msra.mxu0 0
      %884 = vmatprep.subr.bf16.mxu0 0
      %885 = vmatpush1.bf16.msra.mxu0 0
      %886 = vmatprep.subr.bf16.mxu0 0
      %887 = vmatpush1.bf16.msra.mxu0 0
      %888 = vmatprep.mubr.bf16.mxu0 0
      %889 = vmatmul.mubr.bf16.gmra.mrb[0].mxu0 %v851
      %v890 = vpop.f32.mrb[0].mxu0
      %v891 = vadd.f32 0.0, %v890
      %v892 = vpop.f32.mrb[0].mxu0
      %v893 = vpop.f32.mrb[0].mxu0
      %v894 = vpop.f32.mrb[0].mxu0
      %895 = vdwg.mxu0
      %v896 = vpack.c.bf16 %v891, %v891
      %v898 = vsel %vm468, %v896, 0
      %v901 = vsel %vm532, %v454, 0
      %903 = vmatprep.subr.bf16.mxu0 0
      %904 = vmatpush1.bf16.msra.mxu0 %v901
      %905 = vmatprep.subr.bf16.mxu0 0
      %906 = vmatpush1.bf16.msra.mxu0 0
      %907 = vmatprep.subr.bf16.mxu0 0
      %908 = vmatpush1.bf16.msra.mxu0 0
      %909 = vmatprep.subr.bf16.mxu0 0
      %910 = vmatpush1.bf16.msra.mxu0 0
      %911 = vmatprep.subr.bf16.mxu0 0
      %912 = vmatpush1.bf16.msra.mxu0 0
      %913 = vmatprep.subr.bf16.mxu0 0
      %914 = vmatpush1.bf16.msra.mxu0 0
      %915 = vmatprep.subr.bf16.mxu0 0
      %916 = vmatpush1.bf16.msra.mxu0 0
      %917 = vmatprep.subr.bf16.mxu0 0
      %918 = vmatpush1.bf16.msra.mxu0 0
      %919 = vmatprep.subr.bf16.mxu0 0
      %920 = vmatpush1.bf16.msra.mxu0 0
      %921 = vmatprep.subr.bf16.mxu0 0
      %922 = vmatpush1.bf16.msra.mxu0 0
      %923 = vmatprep.subr.bf16.mxu0 0
      %924 = vmatpush1.bf16.msra.mxu0 0
      %925 = vmatprep.subr.bf16.mxu0 0
      %926 = vmatpush1.bf16.msra.mxu0 0
      %927 = vmatprep.subr.bf16.mxu0 0
      %928 = vmatpush1.bf16.msra.mxu0 0
      %929 = vmatprep.subr.bf16.mxu0 0
      %930 = vmatpush1.bf16.msra.mxu0 0
      %931 = vmatprep.subr.bf16.mxu0 0
      %932 = vmatpush1.bf16.msra.mxu0 0
      %933 = vmatprep.subr.bf16.mxu0 0
      %934 = vmatpush1.bf16.msra.mxu0 0
      %935 = vmatprep.mubr.bf16.mxu0 0
      %936 = vmatmul.mubr.bf16.gmra.mrb[0].mxu0 %v898
      %v937 = vpop.f32.mrb[0].mxu0
      %v938 = vadd.f32 0.0, %v937
      %v939 = vpop.f32.mrb[0].mxu0
      %v940 = vpop.f32.mrb[0].mxu0
      %v941 = vpop.f32.mrb[0].mxu0
      %942 = vdwg.mxu0
      %v943 = vadd.f32 %v778, %v938
      %s944 = scalar_lea.vmem %s2, 24
      %v945 = vld [vmem:[%s944] sm:$0xff]
      %v946 = vadd.f32 %v945, %v462
      %947 = vrot.lane.b32.xlu0 %v456, 104
      %v948 = vpop.permute.xlu0 %947
      %949 = vrot.lane.b32.xlu0 %v456, 72
      %v950 = vpop.permute.xlu0 %949
      %v952 = vsel %vm468, %v948, 0
      %v955 = vsel %vm468, %v950, 0
      %957 = vmatprep.subr.bf16.mxu0 0
      %958 = vmatpush1.bf16.xpose.msra.mxu0 %v955
      %959 = vmatprep.subr.bf16.mxu0 0
      %960 = vmatpush1.bf16.xpose.msra.mxu0 0
      %961 = vmatprep.subr.bf16.mxu0 0
      %962 = vmatpush1.bf16.xpose.msra.mxu0 0
      %963 = vmatprep.subr.bf16.mxu0 0
      %964 = vmatpush1.bf16.xpose.msra.mxu0 0
      %965 = vmatprep.subr.bf16.mxu0 0
      %966 = vmatpush1.bf16.xpose.msra.mxu0 0
      %967 = vmatprep.subr.bf16.mxu0 0
      %968 = vmatpush1.bf16.xpose.msra.mxu0 0
      %969 = vmatprep.subr.bf16.mxu0 0
      %970 = vmatpush1.bf16.xpose.msra.mxu0 0
      %971 = vmatprep.subr.bf16.mxu0 0
      %972 = vmatpush1.bf16.xpose.msra.mxu0 0
      %973 = vmatprep.subr.bf16.mxu0 0
      %974 = vmatpush1.bf16.xpose.msra.mxu0 0
      %975 = vmatprep.subr.bf16.mxu0 0
      %976 = vmatpush1.bf16.xpose.msra.mxu0 0
      %977 = vmatprep.subr.bf16.mxu0 0
      %978 = vmatpush1.bf16.xpose.msra.mxu0 0
      %979 = vmatprep.subr.bf16.mxu0 0
      %980 = vmatpush1.bf16.xpose.msra.mxu0 0
      %981 = vmatprep.subr.bf16.mxu0 0
      %982 = vmatpush1.bf16.xpose.msra.mxu0 0
      %983 = vmatprep.subr.bf16.mxu0 0
      %984 = vmatpush1.bf16.xpose.msra.mxu0 0
      %985 = vmatprep.subr.bf16.mxu0 0
      %986 = vmatpush1.bf16.xpose.msra.mxu0 0
      %987 = vmatprep.subr.bf16.mxu0 0
      %988 = vmatpush1.bf16.xpose.msra.mxu0 0
      %989 = vmatprep.mubr.bf16.mxu0 0
      %990 = vmatmul.mubr.bf16.gmra.mrb[0].mxu0 %v952
      %v991 = vpop.f32.mrb[0].mxu0
      %v992 = vadd.f32 %v946, %v991
      %v993 = vpop.f32.mrb[0].mxu0
      %v994 = vpop.f32.mrb[0].mxu0
      %v995 = vpop.f32.mrb[0].mxu0
      %996 = vdwg.mxu0
      %v997 = vsel %vm468, %v992, -inf
      %998 = vmax.xlane.f32.xlu0 %v997
      %v999 = vpop.xlane.xlu0 %998
      %v1000 = vsub.f32 %v992, %v999
      %v1001 = vmul.f32 %v1000, 1.442695
      %v1002 = vpow.pop %v1001
      %v1003 = vsel %vm468, %v1002, 0.0
      %1004 = vadd.xlane.f32.xlu0 %v1003
      %v1005 = vpop.xlane.xlu0 %1004
      %v1006 = vrcp.pop %v1005
      %v1007 = vmul.f32 %v1002, %v1006
      %v1008 = vpack.c.bf16 %v1007, %v1007
      %1009 = vrot.lane.b32.xlu0 %v456, 40
      %v1010 = vpop.permute.xlu0 %1009
      %v1012 = vsel %vm468, %v1008, 0
      %v1015 = vsel %vm532, %v1010, 0
      %1017 = vmatprep.subr.bf16.mxu0 0
      %1018 = vmatpush1.bf16.msra.mxu0 %v1015
      %1019 = vmatprep.subr.bf16.mxu0 0
      %1020 = vmatpush1.bf16.msra.mxu0 0
      %1021 = vmatprep.subr.bf16.mxu0 0
      %1022 = vmatpush1.bf16.msra.mxu0 0
      %1023 = vmatprep.subr.bf16.mxu0 0
      %1024 = vmatpush1.bf16.msra.mxu0 0
      %1025 = vmatprep.subr.bf16.mxu0 0
      %1026 = vmatpush1.bf16.msra.mxu0 0
      %1027 = vmatprep.subr.bf16.mxu0 0
      %1028 = vmatpush1.bf16.msra.mxu0 0
      %1029 = vmatprep.subr.bf16.mxu0 0
      %1030 = vmatpush1.bf16.msra.mxu0 0
      %1031 = vmatprep.subr.bf16.mxu0 0
      %1032 = vmatpush1.bf16.msra.mxu0 0
      %1033 = vmatprep.subr.bf16.mxu0 0
      %1034 = vmatpush1.bf16.msra.mxu0 0
      %1035 = vmatprep.subr.bf16.mxu0 0
      %1036 = vmatpush1.bf16.msra.mxu0 0
      %1037 = vmatprep.subr.bf16.mxu0 0
      %1038 = vmatpush1.bf16.msra.mxu0 0
      %1039 = vmatprep.subr.bf16.mxu0 0
      %1040 = vmatpush1.bf16.msra.mxu0 0
      %1041 = vmatprep.subr.bf16.mxu0 0
      %1042 = vmatpush1.bf16.msra.mxu0 0
      %1043 = vmatprep.subr.bf16.mxu0 0
      %1044 = vmatpush1.bf16.msra.mxu0 0
      %1045 = vmatprep.subr.bf16.mxu0 0
      %1046 = vmatpush1.bf16.msra.mxu0 0
      %1047 = vmatprep.subr.bf16.mxu0 0
      %1048 = vmatpush1.bf16.msra.mxu0 0
      %1049 = vmatprep.mubr.bf16.mxu0 0
      %1050 = vmatmul.mubr.bf16.gmra.mrb[0].mxu0 %v1012
      %v1051 = vpop.f32.mrb[0].mxu0
      %v1052 = vadd.f32 0.0, %v1051
      %v1053 = vpop.f32.mrb[0].mxu0
      %v1054 = vpop.f32.mrb[0].mxu0
      %v1055 = vpop.f32.mrb[0].mxu0
      %1056 = vdwg.mxu0
      %v1057 = vpack.c.bf16 %v1052, %v1052
      %v1059 = vsel %vm468, %v1057, 0
      %v1062 = vsel %vm532, %v455, 0
      %1064 = vmatprep.subr.bf16.mxu0 0
      %1065 = vmatpush1.bf16.msra.mxu0 %v1062
      %1066 = vmatprep.subr.bf16.mxu0 0
      %1067 = vmatpush1.bf16.msra.mxu0 0
      %1068 = vmatprep.subr.bf16.mxu0 0
      %1069 = vmatpush1.bf16.msra.mxu0 0
      %1070 = vmatprep.subr.bf16.mxu0 0
      %1071 = vmatpush1.bf16.msra.mxu0 0
      %1072 = vmatprep.subr.bf16.mxu0 0
      %1073 = vmatpush1.bf16.msra.mxu0 0
      %1074 = vmatprep.subr.bf16.mxu0 0
      %1075 = vmatpush1.bf16.msra.mxu0 0
      %1076 = vmatprep.subr.bf16.mxu0 0
      %1077 = vmatpush1.bf16.msra.mxu0 0
      %1078 = vmatprep.subr.bf16.mxu0 0
      %1079 = vmatpush1.bf16.msra.mxu0 0
      %1080 = vmatprep.subr.bf16.mxu0 0
      %1081 = vmatpush1.bf16.msra.mxu0 0
      %1082 = vmatprep.subr.bf16.mxu0 0
      %1083 = vmatpush1.bf16.msra.mxu0 0
      %1084 = vmatprep.subr.bf16.mxu0 0
      %1085 = vmatpush1.bf16.msra.mxu0 0
      %1086 = vmatprep.subr.bf16.mxu0 0
      %1087 = vmatpush1.bf16.msra.mxu0 0
      %1088 = vmatprep.subr.bf16.mxu0 0
      %1089 = vmatpush1.bf16.msra.mxu0 0
      %1090 = vmatprep.subr.bf16.mxu0 0
      %1091 = vmatpush1.bf16.msra.mxu0 0
      %1092 = vmatprep.subr.bf16.mxu0 0
      %1093 = vmatpush1.bf16.msra.mxu0 0
      %1094 = vmatprep.subr.bf16.mxu0 0
      %1095 = vmatpush1.bf16.msra.mxu0 0
      %1096 = vmatprep.mubr.bf16.mxu0 0
      %1097 = vmatmul.mubr.bf16.gmra.mrb[0].mxu0 %v1059
      %v1098 = vpop.f32.mrb[0].mxu0
      %v1099 = vadd.f32 0.0, %v1098
      %v1100 = vpop.f32.mrb[0].mxu0
      %v1101 = vpop.f32.mrb[0].mxu0
      %v1102 = vpop.f32.mrb[0].mxu0
      %1103 = vdwg.mxu0
      %v1104 = vadd.f32 %v943, %v1099
      %v1105 = vadd.f32 %v370, %v1104
      %v1106 = vld [vmem:[%s4] sm:$0x1]
      %v1107 = vmul.f32 %v1105, %v1105
      %v1108 = vsel %vm376, %v1107, 0.0
      %1109 = vadd.xlane.f32.xlu0 %v1108
      %v1110 = vpop.xlane.xlu0 %1109
      %v1111 = vmul.f32 %v1110, %v380
      %v1112 = vadd.f32 %v1111, 1e-06
      %v1113 = vrsqrt.pop %v1112
      %v1114 = vmul.f32 %v1105, %v1113
      %v1116 = vlaneseq
      %v1117 = vshrl.u32 %v1116, 7
      %v1118 = vsub.s32 0, %v1117
      %v1119 = vrot.slane %v1106, %v1118
      %v1121 = vmul.f32 %v1114, %v1119
      %v1122 = vld [vmem:[%s7] sm:$0xf]
      %v1123 = vld [vmem:[%s7 + $0x4] sm:$0xf]
      %v1124 = vld [vmem:[%s7 + $0x8] sm:$0xf]
      %v1125 = vld [vmem:[%s7 + $0xc] sm:$0xf]
      %v1126 = vpack.c.bf16 %v1121, %v1121
      %v1131 = vunpack.c.l.b16 %v1122
      %v1132 = vunpack.c.l.b16 %v1123
      %v1133 = vunpack.c.l.b16 %v1124
      %v1134 = vunpack.c.l.b16 %v1125
      %v1135 = vpack.c.b16 %v1132, %v1131
      %v1136 = vpack.c.b16 %v1134, %v1133
      %v1140 = vsel %vm376, %v1126, 0
      %1142 = vmatprep.subr.bf16.mxu0 0
      %1143 = vmatpush1.bf16.msra.mxu0 %v1135
      %1144 = vmatprep.subr.bf16.mxu0 0
      %1145 = vmatpush1.bf16.msra.mxu0 %v1136
      %1146 = vmatprep.subr.bf16.mxu0 0
      %1147 = vmatpush1.bf16.msra.mxu0 0
      %1148 = vmatprep.subr.bf16.mxu0 0
      %1149 = vmatpush1.bf16.msra.mxu0 0
      %1150 = vmatprep.subr.bf16.mxu0 0
      %1151 = vmatpush1.bf16.msra.mxu0 0
      %1152 = vmatprep.subr.bf16.mxu0 0
      %1153 = vmatpush1.bf16.msra.mxu0 0
      %1154 = vmatprep.subr.bf16.mxu0 0
      %1155 = vmatpush1.bf16.msra.mxu0 0
      %1156 = vmatprep.subr.bf16.mxu0 0
      %1157 = vmatpush1.bf16.msra.mxu0 0
      %1158 = vmatprep.subr.bf16.mxu0 0
      %1159 = vmatpush1.bf16.msra.mxu0 0
      %1160 = vmatprep.subr.bf16.mxu0 0
      %1161 = vmatpush1.bf16.msra.mxu0 0
      %1162 = vmatprep.subr.bf16.mxu0 0
      %1163 = vmatpush1.bf16.msra.mxu0 0
      %1164 = vmatprep.subr.bf16.mxu0 0
      %1165 = vmatpush1.bf16.msra.mxu0 0
      %1166 = vmatprep.subr.bf16.mxu0 0
      %1167 = vmatpush1.bf16.msra.mxu0 0
      %1168 = vmatprep.subr.bf16.mxu0 0
      %1169 = vmatpush1.bf16.msra.mxu0 0
      %1170 = vmatprep.subr.bf16.mxu0 0
      %1171 = vmatpush1.bf16.msra.mxu0 0
      %1172 = vmatprep.subr.bf16.mxu0 0
      %1173 = vmatpush1.bf16.msra.mxu0 0
      %1174 = vmatprep.mubr.bf16.mxu0 0
      %1175 = vmatmul.mubr.bf16.gmra.mrb[0].mxu0 %v1140
      %v1176 = vpop.f32.mrb[0].mxu0
      %v1177 = vadd.f32 0.0, %v1176
      %v1178 = vpop.f32.mrb[0].mxu0
      %v1179 = vpop.f32.mrb[0].mxu0
      %v1180 = vpop.f32.mrb[0].mxu0
      %1181 = vdwg.mxu0
      %v1182 = vmax.f32 %v1177, 0.0
      %v1183 = vld [vmem:[%s8] sm:$0xf]
      %v1184 = vld [vmem:[%s8 + $0x4] sm:$0xf]
      %v1185 = vld [vmem:[%s8 + $0x8] sm:$0xf]
      %v1186 = vld [vmem:[%s8 + $0xc] sm:$0xf]
      %v1187 = vld [vmem:[%s8 + $0x10] sm:$0xf]
      %v1188 = vld [vmem:[%s8 + $0x14] sm:$0xf]
      %v1189 = vld [vmem:[%s8 + $0x18] sm:$0xf]
      %v1190 = vld [vmem:[%s8 + $0x1c] sm:$0xf]
      %v1191 = vpack.c.bf16 %v1182, %v1182
      %v1200 = vunpack.c.l.b16 %v1183
      %v1201 = vunpack.c.l.b16 %v1184
      %v1202 = vunpack.c.l.b16 %v1185
      %v1203 = vunpack.c.l.b16 %v1186
      %v1204 = vunpack.c.l.b16 %v1187
      %v1205 = vunpack.c.l.b16 %v1188
      %v1206 = vunpack.c.l.b16 %v1189
      %v1207 = vunpack.c.l.b16 %v1190
      %v1208 = vpack.c.b16 %v1201, %v1200
      %v1209 = vpack.c.b16 %v1203, %v1202
      %v1210 = vpack.c.b16 %v1205, %v1204
      %v1211 = vpack.c.b16 %v1207, %v1206
      %vm1216 = vcmask 523264
      %v1218 = vsel %vm1216, %v1191, 0
      %1220 = vmatprep.subr.bf16.mxu0 0
      %1221 = vmatpush1.bf16.msra.mxu0 %v1208
      %1222 = vmatprep.subr.bf16.mxu0 0
      %1223 = vmatpush1.bf16.msra.mxu0 %v1209
      %1224 = vmatprep.subr.bf16.mxu0 0
      %1225 = vmatpush1.bf16.msra.mxu0 %v1210
      %1226 = vmatprep.subr.bf16.mxu0 0
      %1227 = vmatpush1.bf16.msra.mxu0 %v1211
      %1228 = vmatprep.subr.bf16.mxu0 0
      %1229 = vmatpush1.bf16.msra.mxu0 0
      %1230 = vmatprep.subr.bf16.mxu0 0
      %1231 = vmatpush1.bf16.msra.mxu0 0
      %1232 = vmatprep.subr.bf16.mxu0 0
      %1233 = vmatpush1.bf16.msra.mxu0 0
      %1234 = vmatprep.subr.bf16.mxu0 0
      %1235 = vmatpush1.bf16.msra.mxu0 0
      %1236 = vmatprep.subr.bf16.mxu0 0
      %1237 = vmatpush1.bf16.msra.mxu0 0
      %1238 = vmatprep.subr.bf16.mxu0 0
      %1239 = vmatpush1.bf16.msra.mxu0 0
      %1240 = vmatprep.subr.bf16.mxu0 0
      %1241 = vmatpush1.bf16.msra.mxu0 0
      %1242 = vmatprep.subr.bf16.mxu0 0
      %1243 = vmatpush1.bf16.msra.mxu0 0
      %1244 = vmatprep.subr.bf16.mxu0 0
      %1245 = vmatpush1.bf16.msra.mxu0 0
      %1246 = vmatprep.subr.bf16.mxu0 0
      %1247 = vmatpush1.bf16.msra.mxu0 0
      %1248 = vmatprep.subr.bf16.mxu0 0
      %1249 = vmatpush1.bf16.msra.mxu0 0
      %1250 = vmatprep.subr.bf16.mxu0 0
      %1251 = vmatpush1.bf16.msra.mxu0 0
      %1252 = vmatprep.mubr.bf16.mxu0 0
      %1253 = vmatmul.mubr.bf16.gmra.mrb[0].mxu0 %v1218
      %v1254 = vpop.f32.mrb[0].mxu0
      %v1255 = vadd.f32 0.0, %v1254
      %v1256 = vpop.f32.mrb[0].mxu0
      %v1257 = vpop.f32.mrb[0].mxu0
      %v1258 = vpop.f32.mrb[0].mxu0
      %1259 = vdwg.mxu0
      %v1260 = vadd.f32 %v1105, %v1255
      %s1261 = scalar_lea.vmem %s3, 1
      %v1262 = vld [vmem:[%s1261] sm:$0x1]
      %v1263 = vmul.f32 %v1260, %v1260
      %v1264 = vsel %vm376, %v1263, 0.0
      %1265 = vadd.xlane.f32.xlu0 %v1264
      %v1266 = vpop.xlane.xlu0 %1265
      %v1267 = vmul.f32 %v1266, %v380
      %v1268 = vadd.f32 %v1267, 1e-06
      %v1269 = vrsqrt.pop %v1268
      %v1270 = vmul.f32 %v1260, %v1269
      %v1272 = vlaneseq
      %v1273 = vshrl.u32 %v1272, 7
      %v1274 = vsub.s32 0, %v1273
      %v1275 = vrot.slane %v1262, %v1274
      %v1277 = vmul.f32 %v1270, %v1275
      %s1278 = scalar_lea.vmem %s5, 16
      %v1279 = vld [vmem:[%s1278] sm:$0xf]
      %v1280 = vld [vmem:[%s1278 + $0x4] sm:$0xf]
      %v1281 = vld [vmem:[%s1278 + $0x8] sm:$0xf]
      %v1282 = vld [vmem:[%s1278 + $0xc] sm:$0xf]
      %v1283 = vpack.c.bf16 %v1277, %v1277
      %v1288 = vunpack.c.l.b16 %v1279
      %v1289 = vunpack.c.l.b16 %v1280
      %v1290 = vunpack.c.l.b16 %v1281
      %v1291 = vunpack.c.l.b16 %v1282
      %v1292 = vpack.c.b16 %v1289, %v1288
      %v1293 = vpack.c.b16 %v1291, %v1290
      %v1297 = vsel %vm376, %v1283, 0
      %1299 = vmatprep.subr.bf16.mxu0 0
      %1300 = vmatpush1.bf16.msra.mxu0 %v1292
      %1301 = vmatprep.subr.bf16.mxu0 0
      %1302 = vmatpush1.bf16.msra.mxu0 %v1293
      %1303 = vmatprep.subr.bf16.mxu0 0
      %1304 = vmatpush1.bf16.msra.mxu0 0
      %1305 = vmatprep.subr.bf16.mxu0 0
      %1306 = vmatpush1.bf16.msra.mxu0 0
      %1307 = vmatprep.subr.bf16.mxu0 0
      %1308 = vmatpush1.bf16.msra.mxu0 0
      %1309 = vmatprep.subr.bf16.mxu0 0
      %1310 = vmatpush1.bf16.msra.mxu0 0
      %1311 = vmatprep.subr.bf16.mxu0 0
      %1312 = vmatpush1.bf16.msra.mxu0 0
      %1313 = vmatprep.subr.bf16.mxu0 0
      %1314 = vmatpush1.bf16.msra.mxu0 0
      %1315 = vmatprep.subr.bf16.mxu0 0
      %1316 = vmatpush1.bf16.msra.mxu0 0
      %1317 = vmatprep.subr.bf16.mxu0 0
      %1318 = vmatpush1.bf16.msra.mxu0 0
      %1319 = vmatprep.subr.bf16.mxu0 0
      %1320 = vmatpush1.bf16.msra.mxu0 0
      %1321 = vmatprep.subr.bf16.mxu0 0
      %1322 = vmatpush1.bf16.msra.mxu0 0
      %1323 = vmatprep.subr.bf16.mxu0 0
      %1324 = vmatpush1.bf16.msra.mxu0 0
      %1325 = vmatprep.subr.bf16.mxu0 0
      %1326 = vmatpush1.bf16.msra.mxu0 0
      %1327 = vmatprep.subr.bf16.mxu0 0
      %1328 = vmatpush1.bf16.msra.mxu0 0
      %1329 = vmatprep.subr.bf16.mxu0 0
      %1330 = vmatpush1.bf16.msra.mxu0 0
      %1331 = vmatprep.mubr.bf16.mxu0 0
      %1332 = vmatmul.mubr.bf16.gmra.mrb[0].mxu0 %v1297
      %v1333 = vpop.f32.mrb[0].mxu0
      %v1334 = vadd.f32 0.0, %v1333
      %v1335 = vpop.f32.mrb[0].mxu0
      %v1336 = vpop.f32.mrb[0].mxu0
      %v1337 = vpop.f32.mrb[0].mxu0
      %1338 = vdwg.mxu0
      %s1339 = scalar_lea.vmem %s6, 16
      %v1340 = vld [vmem:[%s1339] sm:$0xf]
      %v1341 = vld [vmem:[%s1339 + $0x4] sm:$0xf]
      %v1342 = vld [vmem:[%s1339 + $0x8] sm:$0xf]
      %v1343 = vld [vmem:[%s1339 + $0xc] sm:$0xf]
      %v1344 = vpack.c.bf16 %v1334, %v1334
      %1346 = vrot.lane.b32.xlu0 %v1344, 96
      %v1347 = vpop.permute.xlu0 %1346
      %v1349 = vsel %vm468, %v1344, 0
      %v1352 = vsel %vm468, %v1347, 0
      %1354 = vmatprep.subr.bf16.mxu0 0
      %1355 = vmatpush1.bf16.xpose.msra.mxu0 %v1352
      %1356 = vmatprep.subr.bf16.mxu0 0
      %1357 = vmatpush1.bf16.xpose.msra.mxu0 0
      %1358 = vmatprep.subr.bf16.mxu0 0
      %1359 = vmatpush1.bf16.xpose.msra.mxu0 0
      %1360 = vmatprep.subr.bf16.mxu0 0
      %1361 = vmatpush1.bf16.xpose.msra.mxu0 0
      %1362 = vmatprep.subr.bf16.mxu0 0
      %1363 = vmatpush1.bf16.xpose.msra.mxu0 0
      %1364 = vmatprep.subr.bf16.mxu0 0
      %1365 = vmatpush1.bf16.xpose.msra.mxu0 0
      %1366 = vmatprep.subr.bf16.mxu0 0
      %1367 = vmatpush1.bf16.xpose.msra.mxu0 0
      %1368 = vmatprep.subr.bf16.mxu0 0
      %1369 = vmatpush1.bf16.xpose.msra.mxu0 0
      %1370 = vmatprep.subr.bf16.mxu0 0
      %1371 = vmatpush1.bf16.xpose.msra.mxu0 0
      %1372 = vmatprep.subr.bf16.mxu0 0
      %1373 = vmatpush1.bf16.xpose.msra.mxu0 0
      %1374 = vmatprep.subr.bf16.mxu0 0
      %1375 = vmatpush1.bf16.xpose.msra.mxu0 0
      %1376 = vmatprep.subr.bf16.mxu0 0
      %1377 = vmatpush1.bf16.xpose.msra.mxu0 0
      %1378 = vmatprep.subr.bf16.mxu0 0
      %1379 = vmatpush1.bf16.xpose.msra.mxu0 0
      %1380 = vmatprep.subr.bf16.mxu0 0
      %1381 = vmatpush1.bf16.xpose.msra.mxu0 0
      %1382 = vmatprep.subr.bf16.mxu0 0
      %1383 = vmatpush1.bf16.xpose.msra.mxu0 0
      %1384 = vmatprep.subr.bf16.mxu0 0
      %1385 = vmatpush1.bf16.xpose.msra.mxu0 0
      %1386 = vmatprep.mubr.bf16.mxu0 0
      %1387 = vmatmul.mubr.bf16.gmra.mrb[0].mxu0 %v1349
      %v1388 = vpop.f32.mrb[0].mxu0
      %v1389 = vadd.f32 %v464, %v1388
      %v1390 = vpop.f32.mrb[0].mxu0
      %v1391 = vpop.f32.mrb[0].mxu0
      %v1392 = vpop.f32.mrb[0].mxu0
      %1393 = vdwg.mxu0
      %v1394 = vsel %vm468, %v1389, -inf
      %1395 = vmax.xlane.f32.xlu0 %v1394
      %v1396 = vpop.xlane.xlu0 %1395
      %v1397 = vsub.f32 %v1389, %v1396
      %v1398 = vmul.f32 %v1397, 1.442695
      %v1399 = vpow.pop %v1398
      %v1400 = vsel %vm468, %v1399, 0.0
      %1401 = vadd.xlane.f32.xlu0 %v1400
      %v1402 = vpop.xlane.xlu0 %1401
      %v1403 = vrcp.pop %v1402
      %v1404 = vmul.f32 %v1399, %v1403
      %v1405 = vpack.c.bf16 %v1404, %v1404
      %1406 = vrot.lane.b32.xlu0 %v1344, 64
      %v1407 = vpop.permute.xlu0 %1406
      %v1409 = vsel %vm468, %v1405, 0
      %v1412 = vsel %vm532, %v1407, 0
      %1414 = vmatprep.subr.bf16.mxu0 0
      %1415 = vmatpush1.bf16.msra.mxu0 %v1412
      %1416 = vmatprep.subr.bf16.mxu0 0
      %1417 = vmatpush1.bf16.msra.mxu0 0
      %1418 = vmatprep.subr.bf16.mxu0 0
      %1419 = vmatpush1.bf16.msra.mxu0 0
      %1420 = vmatprep.subr.bf16.mxu0 0
      %1421 = vmatpush1.bf16.msra.mxu0 0
      %1422 = vmatprep.subr.bf16.mxu0 0
      %1423 = vmatpush1.bf16.msra.mxu0 0
      %1424 = vmatprep.subr.bf16.mxu0 0
      %1425 = vmatpush1.bf16.msra.mxu0 0
      %1426 = vmatprep.subr.bf16.mxu0 0
      %1427 = vmatpush1.bf16.msra.mxu0 0
      %1428 = vmatprep.subr.bf16.mxu0 0
      %1429 = vmatpush1.bf16.msra.mxu0 0
      %1430 = vmatprep.subr.bf16.mxu0 0
      %1431 = vmatpush1.bf16.msra.mxu0 0
      %1432 = vmatprep.subr.bf16.mxu0 0
      %1433 = vmatpush1.bf16.msra.mxu0 0
      %1434 = vmatprep.subr.bf16.mxu0 0
      %1435 = vmatpush1.bf16.msra.mxu0 0
      %1436 = vmatprep.subr.bf16.mxu0 0
      %1437 = vmatpush1.bf16.msra.mxu0 0
      %1438 = vmatprep.subr.bf16.mxu0 0
      %1439 = vmatpush1.bf16.msra.mxu0 0
      %1440 = vmatprep.subr.bf16.mxu0 0
      %1441 = vmatpush1.bf16.msra.mxu0 0
      %1442 = vmatprep.subr.bf16.mxu0 0
      %1443 = vmatpush1.bf16.msra.mxu0 0
      %1444 = vmatprep.subr.bf16.mxu0 0
      %1445 = vmatpush1.bf16.msra.mxu0 0
      %1446 = vmatprep.mubr.bf16.mxu0 0
      %1447 = vmatmul.mubr.bf16.gmra.mrb[0].mxu0 %v1409
      %v1448 = vpop.f32.mrb[0].mxu0
      %v1449 = vadd.f32 0.0, %v1448
      %v1450 = vpop.f32.mrb[0].mxu0
      %v1451 = vpop.f32.mrb[0].mxu0
      %v1452 = vpop.f32.mrb[0].mxu0
      %1453 = vdwg.mxu0
      %v1454 = vpack.c.bf16 %v1449, %v1449
      %1455 = vrot.lane.b32.xlu0 %v1344, 120
      %v1456 = vpop.permute.xlu0 %1455
      %1457 = vrot.lane.b32.xlu0 %v1344, 88
      %v1458 = vpop.permute.xlu0 %1457
      %v1460 = vsel %vm468, %v1456, 0
      %v1463 = vsel %vm468, %v1458, 0
      %1465 = vmatprep.subr.bf16.mxu0 0
      %1466 = vmatpush1.bf16.xpose.msra.mxu0 %v1463
      %1467 = vmatprep.subr.bf16.mxu0 0
      %1468 = vmatpush1.bf16.xpose.msra.mxu0 0
      %1469 = vmatprep.subr.bf16.mxu0 0
      %1470 = vmatpush1.bf16.xpose.msra.mxu0 0
      %1471 = vmatprep.subr.bf16.mxu0 0
      %1472 = vmatpush1.bf16.xpose.msra.mxu0 0
      %1473 = vmatprep.subr.bf16.mxu0 0
      %1474 = vmatpush1.bf16.xpose.msra.mxu0 0
      %1475 = vmatprep.subr.bf16.mxu0 0
      %1476 = vmatpush1.bf16.xpose.msra.mxu0 0
      %1477 = vmatprep.subr.bf16.mxu0 0
      %1478 = vmatpush1.bf16.xpose.msra.mxu0 0
      %1479 = vmatprep.subr.bf16.mxu0 0
      %1480 = vmatpush1.bf16.xpose.msra.mxu0 0
      %1481 = vmatprep.subr.bf16.mxu0 0
      %1482 = vmatpush1.bf16.xpose.msra.mxu0 0
      %1483 = vmatprep.subr.bf16.mxu0 0
      %1484 = vmatpush1.bf16.xpose.msra.mxu0 0
      %1485 = vmatprep.subr.bf16.mxu0 0
      %1486 = vmatpush1.bf16.xpose.msra.mxu0 0
      %1487 = vmatprep.subr.bf16.mxu0 0
      %1488 = vmatpush1.bf16.xpose.msra.mxu0 0
      %1489 = vmatprep.subr.bf16.mxu0 0
      %1490 = vmatpush1.bf16.xpose.msra.mxu0 0
      %1491 = vmatprep.subr.bf16.mxu0 0
      %1492 = vmatpush1.bf16.xpose.msra.mxu0 0
      %1493 = vmatprep.subr.bf16.mxu0 0
      %1494 = vmatpush1.bf16.xpose.msra.mxu0 0
      %1495 = vmatprep.subr.bf16.mxu0 0
      %1496 = vmatpush1.bf16.xpose.msra.mxu0 0
      %1497 = vmatprep.mubr.bf16.mxu0 0
      %1498 = vmatmul.mubr.bf16.gmra.mrb[0].mxu0 %v1460
      %v1499 = vpop.f32.mrb[0].mxu0
      %v1500 = vadd.f32 %v579, %v1499
      %v1501 = vpop.f32.mrb[0].mxu0
      %v1502 = vpop.f32.mrb[0].mxu0
      %v1503 = vpop.f32.mrb[0].mxu0
      %1504 = vdwg.mxu0
      %v1505 = vsel %vm468, %v1500, -inf
      %1506 = vmax.xlane.f32.xlu0 %v1505
      %v1507 = vpop.xlane.xlu0 %1506
      %v1508 = vsub.f32 %v1500, %v1507
      %v1509 = vmul.f32 %v1508, 1.442695
      %v1510 = vpow.pop %v1509
      %v1511 = vsel %vm468, %v1510, 0.0
      %1512 = vadd.xlane.f32.xlu0 %v1511
      %v1513 = vpop.xlane.xlu0 %1512
      %v1514 = vrcp.pop %v1513
      %v1515 = vmul.f32 %v1510, %v1514
      %v1516 = vpack.c.bf16 %v1515, %v1515
      %1517 = vrot.lane.b32.xlu0 %v1344, 56
      %v1518 = vpop.permute.xlu0 %1517
      %v1520 = vsel %vm468, %v1516, 0
      %v1523 = vsel %vm532, %v1518, 0
      %1525 = vmatprep.subr.bf16.mxu0 0
      %1526 = vmatpush1.bf16.msra.mxu0 %v1523
      %1527 = vmatprep.subr.bf16.mxu0 0
      %1528 = vmatpush1.bf16.msra.mxu0 0
      %1529 = vmatprep.subr.bf16.mxu0 0
      %1530 = vmatpush1.bf16.msra.mxu0 0
      %1531 = vmatprep.subr.bf16.mxu0 0
      %1532 = vmatpush1.bf16.msra.mxu0 0
      %1533 = vmatprep.subr.bf16.mxu0 0
      %1534 = vmatpush1.bf16.msra.mxu0 0
      %1535 = vmatprep.subr.bf16.mxu0 0
      %1536 = vmatpush1.bf16.msra.mxu0 0
      %1537 = vmatprep.subr.bf16.mxu0 0
      %1538 = vmatpush1.bf16.msra.mxu0 0
      %1539 = vmatprep.subr.bf16.mxu0 0
      %1540 = vmatpush1.bf16.msra.mxu0 0
      %1541 = vmatprep.subr.bf16.mxu0 0
      %1542 = vmatpush1.bf16.msra.mxu0 0
      %1543 = vmatprep.subr.bf16.mxu0 0
      %1544 = vmatpush1.bf16.msra.mxu0 0
      %1545 = vmatprep.subr.bf16.mxu0 0
      %1546 = vmatpush1.bf16.msra.mxu0 0
      %1547 = vmatprep.subr.bf16.mxu0 0
      %1548 = vmatpush1.bf16.msra.mxu0 0
      %1549 = vmatprep.subr.bf16.mxu0 0
      %1550 = vmatpush1.bf16.msra.mxu0 0
      %1551 = vmatprep.subr.bf16.mxu0 0
      %1552 = vmatpush1.bf16.msra.mxu0 0
      %1553 = vmatprep.subr.bf16.mxu0 0
      %1554 = vmatpush1.bf16.msra.mxu0 0
      %1555 = vmatprep.subr.bf16.mxu0 0
      %1556 = vmatpush1.bf16.msra.mxu0 0
      %1557 = vmatprep.mubr.bf16.mxu0 0
      %1558 = vmatmul.mubr.bf16.gmra.mrb[0].mxu0 %v1520
      %v1559 = vpop.f32.mrb[0].mxu0
      %v1560 = vadd.f32 0.0, %v1559
      %v1561 = vpop.f32.mrb[0].mxu0
      %v1562 = vpop.f32.mrb[0].mxu0
      %v1563 = vpop.f32.mrb[0].mxu0
      %1564 = vdwg.mxu0
      %v1565 = vpack.c.bf16 %v1560, %v1560
      %v1567 = vsel %vm468, %v1565, 0
      %v1570 = vsel %vm532, %v1341, 0
      %1572 = vmatprep.subr.bf16.mxu0 0
      %1573 = vmatpush1.bf16.msra.mxu0 %v1570
      %1574 = vmatprep.subr.bf16.mxu0 0
      %1575 = vmatpush1.bf16.msra.mxu0 0
      %1576 = vmatprep.subr.bf16.mxu0 0
      %1577 = vmatpush1.bf16.msra.mxu0 0
      %1578 = vmatprep.subr.bf16.mxu0 0
      %1579 = vmatpush1.bf16.msra.mxu0 0
      %1580 = vmatprep.subr.bf16.mxu0 0
      %1581 = vmatpush1.bf16.msra.mxu0 0
      %1582 = vmatprep.subr.bf16.mxu0 0
      %1583 = vmatpush1.bf16.msra.mxu0 0
      %1584 = vmatprep.subr.bf16.mxu0 0
      %1585 = vmatpush1.bf16.msra.mxu0 0
      %1586 = vmatprep.subr.bf16.mxu0 0
      %1587 = vmatpush1.bf16.msra.mxu0 0
      %1588 = vmatprep.subr.bf16.mxu0 0
      %1589 = vmatpush1.bf16.msra.mxu0 0
      %1590 = vmatprep.subr.bf16.mxu0 0
      %1591 = vmatpush1.bf16.msra.mxu0 0
      %1592 = vmatprep.subr.bf16.mxu0 0
      %1593 = vmatpush1.bf16.msra.mxu0 0
      %1594 = vmatprep.subr.bf16.mxu0 0
      %1595 = vmatpush1.bf16.msra.mxu0 0
      %1596 = vmatprep.subr.bf16.mxu0 0
      %1597 = vmatpush1.bf16.msra.mxu0 0
      %1598 = vmatprep.subr.bf16.mxu0 0
      %1599 = vmatpush1.bf16.msra.mxu0 0
      %1600 = vmatprep.subr.bf16.mxu0 0
      %1601 = vmatpush1.bf16.msra.mxu0 0
      %1602 = vmatprep.subr.bf16.mxu0 0
      %1603 = vmatpush1.bf16.msra.mxu0 0
      %1604 = vmatprep.mubr.bf16.mxu0 0
      %1605 = vmatmul.mubr.bf16.gmra.mrb[0].mxu0 %v1567
      %v1606 = vpop.f32.mrb[0].mxu0
      %v1607 = vadd.f32 0.0, %v1606
      %v1608 = vpop.f32.mrb[0].mxu0
      %v1609 = vpop.f32.mrb[0].mxu0
      %v1610 = vpop.f32.mrb[0].mxu0
      %1611 = vdwg.mxu0
      %v1613 = vsel %vm468, %v1454, 0
      %v1616 = vsel %vm532, %v1340, 0
      %1618 = vmatprep.subr.bf16.mxu0 0
      %1619 = vmatpush1.bf16.msra.mxu0 %v1616
      %1620 = vmatprep.subr.bf16.mxu0 0
      %1621 = vmatpush1.bf16.msra.mxu0 0
      %1622 = vmatprep.subr.bf16.mxu0 0
      %1623 = vmatpush1.bf16.msra.mxu0 0
      %1624 = vmatprep.subr.bf16.mxu0 0
      %1625 = vmatpush1.bf16.msra.mxu0 0
      %1626 = vmatprep.subr.bf16.mxu0 0
      %1627 = vmatpush1.bf16.msra.mxu0 0
      %1628 = vmatprep.subr.bf16.mxu0 0
      %1629 = vmatpush1.bf16.msra.mxu0 0
      %1630 = vmatprep.subr.bf16.mxu0 0
      %1631 = vmatpush1.bf16.msra.mxu0 0
      %1632 = vmatprep.subr.bf16.mxu0 0
      %1633 = vmatpush1.bf16.msra.mxu0 0
      %1634 = vmatprep.subr.bf16.mxu0 0
      %1635 = vmatpush1.bf16.msra.mxu0 0
      %1636 = vmatprep.subr.bf16.mxu0 0
      %1637 = vmatpush1.bf16.msra.mxu0 0
      %1638 = vmatprep.subr.bf16.mxu0 0
      %1639 = vmatpush1.bf16.msra.mxu0 0
      %1640 = vmatprep.subr.bf16.mxu0 0
      %1641 = vmatpush1.bf16.msra.mxu0 0
      %1642 = vmatprep.subr.bf16.mxu0 0
      %1643 = vmatpush1.bf16.msra.mxu0 0
      %1644 = vmatprep.subr.bf16.mxu0 0
      %1645 = vmatpush1.bf16.msra.mxu0 0
      %1646 = vmatprep.subr.bf16.mxu0 0
      %1647 = vmatpush1.bf16.msra.mxu0 0
      %1648 = vmatprep.subr.bf16.mxu0 0
      %1649 = vmatpush1.bf16.msra.mxu0 0
      %1650 = vmatprep.mubr.bf16.mxu0 0
      %1651 = vmatmul.mubr.bf16.gmra.mrb[0].mxu0 %v1613
      %v1652 = vpop.f32.mrb[0].mxu0
      %v1653 = vadd.f32 %v1607, %v1652
      %v1654 = vpop.f32.mrb[0].mxu0
      %v1655 = vpop.f32.mrb[0].mxu0
      %v1656 = vpop.f32.mrb[0].mxu0
      %1657 = vdwg.mxu0
      %1658 = vrot.lane.b32.xlu0 %v1344, 112
      %v1659 = vpop.permute.xlu0 %1658
      %1660 = vrot.lane.b32.xlu0 %v1344, 80
      %v1661 = vpop.permute.xlu0 %1660
      %v1663 = vsel %vm468, %v1659, 0
      %v1666 = vsel %vm468, %v1661, 0
      %1668 = vmatprep.subr.bf16.mxu0 0
      %1669 = vmatpush1.bf16.xpose.msra.mxu0 %v1666
      %1670 = vmatprep.subr.bf16.mxu0 0
      %1671 = vmatpush1.bf16.xpose.msra.mxu0 0
      %1672 = vmatprep.subr.bf16.mxu0 0
      %1673 = vmatpush1.bf16.xpose.msra.mxu0 0
      %1674 = vmatprep.subr.bf16.mxu0 0
      %1675 = vmatpush1.bf16.xpose.msra.mxu0 0
      %1676 = vmatprep.subr.bf16.mxu0 0
      %1677 = vmatpush1.bf16.xpose.msra.mxu0 0
      %1678 = vmatprep.subr.bf16.mxu0 0
      %1679 = vmatpush1.bf16.xpose.msra.mxu0 0
      %1680 = vmatprep.subr.bf16.mxu0 0
      %1681 = vmatpush1.bf16.xpose.msra.mxu0 0
      %1682 = vmatprep.subr.bf16.mxu0 0
      %1683 = vmatpush1.bf16.xpose.msra.mxu0 0
      %1684 = vmatprep.subr.bf16.mxu0 0
      %1685 = vmatpush1.bf16.xpose.msra.mxu0 0
      %1686 = vmatprep.subr.bf16.mxu0 0
      %1687 = vmatpush1.bf16.xpose.msra.mxu0 0
      %1688 = vmatprep.subr.bf16.mxu0 0
      %1689 = vmatpush1.bf16.xpose.msra.mxu0 0
      %1690 = vmatprep.subr.bf16.mxu0 0
      %1691 = vmatpush1.bf16.xpose.msra.mxu0 0
      %1692 = vmatprep.subr.bf16.mxu0 0
      %1693 = vmatpush1.bf16.xpose.msra.mxu0 0
      %1694 = vmatprep.subr.bf16.mxu0 0
      %1695 = vmatpush1.bf16.xpose.msra.mxu0 0
      %1696 = vmatprep.subr.bf16.mxu0 0
      %1697 = vmatpush1.bf16.xpose.msra.mxu0 0
      %1698 = vmatprep.subr.bf16.mxu0 0
      %1699 = vmatpush1.bf16.xpose.msra.mxu0 0
      %1700 = vmatprep.mubr.bf16.mxu0 0
      %1701 = vmatmul.mubr.bf16.gmra.mrb[0].mxu0 %v1663
      %v1702 = vpop.f32.mrb[0].mxu0
      %v1703 = vadd.f32 %v785, %v1702
      %v1704 = vpop.f32.mrb[0].mxu0
      %v1705 = vpop.f32.mrb[0].mxu0
      %v1706 = vpop.f32.mrb[0].mxu0
      %1707 = vdwg.mxu0
      %v1708 = vsel %vm468, %v1703, -inf
      %1709 = vmax.xlane.f32.xlu0 %v1708
      %v1710 = vpop.xlane.xlu0 %1709
      %v1711 = vsub.f32 %v1703, %v1710
      %v1712 = vmul.f32 %v1711, 1.442695
      %v1713 = vpow.pop %v1712
      %v1714 = vsel %vm468, %v1713, 0.0
      %1715 = vadd.xlane.f32.xlu0 %v1714
      %v1716 = vpop.xlane.xlu0 %1715
      %v1717 = vrcp.pop %v1716
      %v1718 = vmul.f32 %v1713, %v1717
      %v1719 = vpack.c.bf16 %v1718, %v1718
      %1720 = vrot.lane.b32.xlu0 %v1344, 48
      %v1721 = vpop.permute.xlu0 %1720
      %v1723 = vsel %vm468, %v1719, 0
      %v1726 = vsel %vm532, %v1721, 0
      %1728 = vmatprep.subr.bf16.mxu0 0
      %1729 = vmatpush1.bf16.msra.mxu0 %v1726
      %1730 = vmatprep.subr.bf16.mxu0 0
      %1731 = vmatpush1.bf16.msra.mxu0 0
      %1732 = vmatprep.subr.bf16.mxu0 0
      %1733 = vmatpush1.bf16.msra.mxu0 0
      %1734 = vmatprep.subr.bf16.mxu0 0
      %1735 = vmatpush1.bf16.msra.mxu0 0
      %1736 = vmatprep.subr.bf16.mxu0 0
      %1737 = vmatpush1.bf16.msra.mxu0 0
      %1738 = vmatprep.subr.bf16.mxu0 0
      %1739 = vmatpush1.bf16.msra.mxu0 0
      %1740 = vmatprep.subr.bf16.mxu0 0
      %1741 = vmatpush1.bf16.msra.mxu0 0
      %1742 = vmatprep.subr.bf16.mxu0 0
      %1743 = vmatpush1.bf16.msra.mxu0 0
      %1744 = vmatprep.subr.bf16.mxu0 0
      %1745 = vmatpush1.bf16.msra.mxu0 0
      %1746 = vmatprep.subr.bf16.mxu0 0
      %1747 = vmatpush1.bf16.msra.mxu0 0
      %1748 = vmatprep.subr.bf16.mxu0 0
      %1749 = vmatpush1.bf16.msra.mxu0 0
      %1750 = vmatprep.subr.bf16.mxu0 0
      %1751 = vmatpush1.bf16.msra.mxu0 0
      %1752 = vmatprep.subr.bf16.mxu0 0
      %1753 = vmatpush1.bf16.msra.mxu0 0
      %1754 = vmatprep.subr.bf16.mxu0 0
      %1755 = vmatpush1.bf16.msra.mxu0 0
      %1756 = vmatprep.subr.bf16.mxu0 0
      %1757 = vmatpush1.bf16.msra.mxu0 0
      %1758 = vmatprep.subr.bf16.mxu0 0
      %1759 = vmatpush1.bf16.msra.mxu0 0
      %1760 = vmatprep.mubr.bf16.mxu0 0
      %1761 = vmatmul.mubr.bf16.gmra.mrb[0].mxu0 %v1723
      %v1762 = vpop.f32.mrb[0].mxu0
      %v1763 = vadd.f32 0.0, %v1762
      %v1764 = vpop.f32.mrb[0].mxu0
      %v1765 = vpop.f32.mrb[0].mxu0
      %v1766 = vpop.f32.mrb[0].mxu0
      %1767 = vdwg.mxu0
      %v1768 = vpack.c.bf16 %v1763, %v1763
      %v1770 = vsel %vm468, %v1768, 0
      %v1773 = vsel %vm532, %v1342, 0
      %1775 = vmatprep.subr.bf16.mxu0 0
      %1776 = vmatpush1.bf16.msra.mxu0 %v1773
      %1777 = vmatprep.subr.bf16.mxu0 0
      %1778 = vmatpush1.bf16.msra.mxu0 0
      %1779 = vmatprep.subr.bf16.mxu0 0
      %1780 = vmatpush1.bf16.msra.mxu0 0
      %1781 = vmatprep.subr.bf16.mxu0 0
      %1782 = vmatpush1.bf16.msra.mxu0 0
      %1783 = vmatprep.subr.bf16.mxu0 0
      %1784 = vmatpush1.bf16.msra.mxu0 0
      %1785 = vmatprep.subr.bf16.mxu0 0
      %1786 = vmatpush1.bf16.msra.mxu0 0
      %1787 = vmatprep.subr.bf16.mxu0 0
      %1788 = vmatpush1.bf16.msra.mxu0 0
      %1789 = vmatprep.subr.bf16.mxu0 0
      %1790 = vmatpush1.bf16.msra.mxu0 0
      %1791 = vmatprep.subr.bf16.mxu0 0
      %1792 = vmatpush1.bf16.msra.mxu0 0
      %1793 = vmatprep.subr.bf16.mxu0 0
      %1794 = vmatpush1.bf16.msra.mxu0 0
      %1795 = vmatprep.subr.bf16.mxu0 0
      %1796 = vmatpush1.bf16.msra.mxu0 0
      %1797 = vmatprep.subr.bf16.mxu0 0
      %1798 = vmatpush1.bf16.msra.mxu0 0
      %1799 = vmatprep.subr.bf16.mxu0 0
      %1800 = vmatpush1.bf16.msra.mxu0 0
      %1801 = vmatprep.subr.bf16.mxu0 0
      %1802 = vmatpush1.bf16.msra.mxu0 0
      %1803 = vmatprep.subr.bf16.mxu0 0
      %1804 = vmatpush1.bf16.msra.mxu0 0
      %1805 = vmatprep.subr.bf16.mxu0 0
      %1806 = vmatpush1.bf16.msra.mxu0 0
      %1807 = vmatprep.mubr.bf16.mxu0 0
      %1808 = vmatmul.mubr.bf16.gmra.mrb[0].mxu0 %v1770
      %v1809 = vpop.f32.mrb[0].mxu0
      %v1810 = vadd.f32 0.0, %v1809
      %v1811 = vpop.f32.mrb[0].mxu0
      %v1812 = vpop.f32.mrb[0].mxu0
      %v1813 = vpop.f32.mrb[0].mxu0
      %1814 = vdwg.mxu0
      %v1815 = vadd.f32 %v1653, %v1810
      %1816 = vrot.lane.b32.xlu0 %v1344, 104
      %v1817 = vpop.permute.xlu0 %1816
      %1818 = vrot.lane.b32.xlu0 %v1344, 72
      %v1819 = vpop.permute.xlu0 %1818
      %v1821 = vsel %vm468, %v1817, 0
      %v1824 = vsel %vm468, %v1819, 0
      %1826 = vmatprep.subr.bf16.mxu0 0
      %1827 = vmatpush1.bf16.xpose.msra.mxu0 %v1824
      %1828 = vmatprep.subr.bf16.mxu0 0
      %1829 = vmatpush1.bf16.xpose.msra.mxu0 0
      %1830 = vmatprep.subr.bf16.mxu0 0
      %1831 = vmatpush1.bf16.xpose.msra.mxu0 0
      %1832 = vmatprep.subr.bf16.mxu0 0
      %1833 = vmatpush1.bf16.xpose.msra.mxu0 0
      %1834 = vmatprep.subr.bf16.mxu0 0
      %1835 = vmatpush1.bf16.xpose.msra.mxu0 0
      %1836 = vmatprep.subr.bf16.mxu0 0
      %1837 = vmatpush1.bf16.xpose.msra.mxu0 0
      %1838 = vmatprep.subr.bf16.mxu0 0
      %1839 = vmatpush1.bf16.xpose.msra.mxu0 0
      %1840 = vmatprep.subr.bf16.mxu0 0
      %1841 = vmatpush1.bf16.xpose.msra.mxu0 0
      %1842 = vmatprep.subr.bf16.mxu0 0
      %1843 = vmatpush1.bf16.xpose.msra.mxu0 0
      %1844 = vmatprep.subr.bf16.mxu0 0
      %1845 = vmatpush1.bf16.xpose.msra.mxu0 0
      %1846 = vmatprep.subr.bf16.mxu0 0
      %1847 = vmatpush1.bf16.xpose.msra.mxu0 0
      %1848 = vmatprep.subr.bf16.mxu0 0
      %1849 = vmatpush1.bf16.xpose.msra.mxu0 0
      %1850 = vmatprep.subr.bf16.mxu0 0
      %1851 = vmatpush1.bf16.xpose.msra.mxu0 0
      %1852 = vmatprep.subr.bf16.mxu0 0
      %1853 = vmatpush1.bf16.xpose.msra.mxu0 0
      %1854 = vmatprep.subr.bf16.mxu0 0
      %1855 = vmatpush1.bf16.xpose.msra.mxu0 0
      %1856 = vmatprep.subr.bf16.mxu0 0
      %1857 = vmatpush1.bf16.xpose.msra.mxu0 0
      %1858 = vmatprep.mubr.bf16.mxu0 0
      %1859 = vmatmul.mubr.bf16.gmra.mrb[0].mxu0 %v1821
      %v1860 = vpop.f32.mrb[0].mxu0
      %v1861 = vadd.f32 %v946, %v1860
      %v1862 = vpop.f32.mrb[0].mxu0
      %v1863 = vpop.f32.mrb[0].mxu0
      %v1864 = vpop.f32.mrb[0].mxu0
      %1865 = vdwg.mxu0
      %v1866 = vsel %vm468, %v1861, -inf
      %1867 = vmax.xlane.f32.xlu0 %v1866
      %v1868 = vpop.xlane.xlu0 %1867
      %v1869 = vsub.f32 %v1861, %v1868
      %v1870 = vmul.f32 %v1869, 1.442695
      %v1871 = vpow.pop %v1870
      %v1872 = vsel %vm468, %v1871, 0.0
      %1873 = vadd.xlane.f32.xlu0 %v1872
      %v1874 = vpop.xlane.xlu0 %1873
      %v1875 = vrcp.pop %v1874
      %v1876 = vmul.f32 %v1871, %v1875
      %v1877 = vpack.c.bf16 %v1876, %v1876
      %1878 = vrot.lane.b32.xlu0 %v1344, 40
      %v1879 = vpop.permute.xlu0 %1878
      %v1881 = vsel %vm468, %v1877, 0
      %v1884 = vsel %vm532, %v1879, 0
      %1886 = vmatprep.subr.bf16.mxu0 0
      %1887 = vmatpush1.bf16.msra.mxu0 %v1884
      %1888 = vmatprep.subr.bf16.mxu0 0
      %1889 = vmatpush1.bf16.msra.mxu0 0
      %1890 = vmatprep.subr.bf16.mxu0 0
      %1891 = vmatpush1.bf16.msra.mxu0 0
      %1892 = vmatprep.subr.bf16.mxu0 0
      %1893 = vmatpush1.bf16.msra.mxu0 0
      %1894 = vmatprep.subr.bf16.mxu0 0
      %1895 = vmatpush1.bf16.msra.mxu0 0
      %1896 = vmatprep.subr.bf16.mxu0 0
      %1897 = vmatpush1.bf16.msra.mxu0 0
      %1898 = vmatprep.subr.bf16.mxu0 0
      %1899 = vmatpush1.bf16.msra.mxu0 0
      %1900 = vmatprep.subr.bf16.mxu0 0
      %1901 = vmatpush1.bf16.msra.mxu0 0
      %1902 = vmatprep.subr.bf16.mxu0 0
      %1903 = vmatpush1.bf16.msra.mxu0 0
      %1904 = vmatprep.subr.bf16.mxu0 0
      %1905 = vmatpush1.bf16.msra.mxu0 0
      %1906 = vmatprep.subr.bf16.mxu0 0
      %1907 = vmatpush1.bf16.msra.mxu0 0
      %1908 = vmatprep.subr.bf16.mxu0 0
      %1909 = vmatpush1.bf16.msra.mxu0 0
      %1910 = vmatprep.subr.bf16.mxu0 0
      %1911 = vmatpush1.bf16.msra.mxu0 0
      %1912 = vmatprep.subr.bf16.mxu0 0
      %1913 = vmatpush1.bf16.msra.mxu0 0
      %1914 = vmatprep.subr.bf16.mxu0 0
      %1915 = vmatpush1.bf16.msra.mxu0 0
      %1916 = vmatprep.subr.bf16.mxu0 0
      %1917 = vmatpush1.bf16.msra.mxu0 0
      %1918 = vmatprep.mubr.bf16.mxu0 0
      %1919 = vmatmul.mubr.bf16.gmra.mrb[0].mxu0 %v1881
      %v1920 = vpop.f32.mrb[0].mxu0
      %v1921 = vadd.f32 0.0, %v1920
      %v1922 = vpop.f32.mrb[0].mxu0
      %v1923 = vpop.f32.mrb[0].mxu0
      %v1924 = vpop.f32.mrb[0].mxu0
      %1925 = vdwg.mxu0
      %v1926 = vpack.c.bf16 %v1921, %v1921
      %v1928 = vsel %vm468, %v1926, 0
      %v1931 = vsel %vm532, %v1343, 0
      %1933 = vmatprep.subr.bf16.mxu0 0
      %1934 = vmatpush1.bf16.msra.mxu0 %v1931
      %1935 = vmatprep.subr.bf16.mxu0 0
      %1936 = vmatpush1.bf16.msra.mxu0 0
      %1937 = vmatprep.subr.bf16.mxu0 0
      %1938 = vmatpush1.bf16.msra.mxu0 0
      %1939 = vmatprep.subr.bf16.mxu0 0
      %1940 = vmatpush1.bf16.msra.mxu0 0
      %1941 = vmatprep.subr.bf16.mxu0 0
      %1942 = vmatpush1.bf16.msra.mxu0 0
      %1943 = vmatprep.subr.bf16.mxu0 0
      %1944 = vmatpush1.bf16.msra.mxu0 0
      %1945 = vmatprep.subr.bf16.mxu0 0
      %1946 = vmatpush1.bf16.msra.mxu0 0
      %1947 = vmatprep.subr.bf16.mxu0 0
      %1948 = vmatpush1.bf16.msra.mxu0 0
      %1949 = vmatprep.subr.bf16.mxu0 0
      %1950 = vmatpush1.bf16.msra.mxu0 0
      %1951 = vmatprep.subr.bf16.mxu0 0
      %1952 = vmatpush1.bf16.msra.mxu0 0
      %1953 = vmatprep.subr.bf16.mxu0 0
      %1954 = vmatpush1.bf16.msra.mxu0 0
      %1955 = vmatprep.subr.bf16.mxu0 0
      %1956 = vmatpush1.bf16.msra.mxu0 0
      %1957 = vmatprep.subr.bf16.mxu0 0
      %1958 = vmatpush1.bf16.msra.mxu0 0
      %1959 = vmatprep.subr.bf16.mxu0 0
      %1960 = vmatpush1.bf16.msra.mxu0 0
      %1961 = vmatprep.subr.bf16.mxu0 0
      %1962 = vmatpush1.bf16.msra.mxu0 0
      %1963 = vmatprep.subr.bf16.mxu0 0
      %1964 = vmatpush1.bf16.msra.mxu0 0
      %1965 = vmatprep.mubr.bf16.mxu0 0
      %1966 = vmatmul.mubr.bf16.gmra.mrb[0].mxu0 %v1928
      %v1967 = vpop.f32.mrb[0].mxu0
      %v1968 = vadd.f32 0.0, %v1967
      %v1969 = vpop.f32.mrb[0].mxu0
      %v1970 = vpop.f32.mrb[0].mxu0
      %v1971 = vpop.f32.mrb[0].mxu0
      %1972 = vdwg.mxu0
      %v1973 = vadd.f32 %v1815, %v1968
      %v1974 = vadd.f32 %v1260, %v1973
      %s1975 = scalar_lea.vmem %s4, 1
      %v1976 = vld [vmem:[%s1975] sm:$0x1]
      %v1977 = vmul.f32 %v1974, %v1974
      %v1978 = vsel %vm376, %v1977, 0.0
      %1979 = vadd.xlane.f32.xlu0 %v1978
      %v1980 = vpop.xlane.xlu0 %1979
      %v1981 = vmul.f32 %v1980, %v380
      %v1982 = vadd.f32 %v1981, 1e-06
      %v1983 = vrsqrt.pop %v1982
      %v1984 = vmul.f32 %v1974, %v1983
      %v1986 = vlaneseq
      %v1987 = vshrl.u32 %v1986, 7
      %v1988 = vsub.s32 0, %v1987
      %v1989 = vrot.slane %v1976, %v1988
      %v1991 = vmul.f32 %v1984, %v1989
      %s1992 = scalar_lea.vmem %s7, 16
      %v1993 = vld [vmem:[%s1992] sm:$0xf]
      %v1994 = vld [vmem:[%s1992 + $0x4] sm:$0xf]
      %v1995 = vld [vmem:[%s1992 + $0x8] sm:$0xf]
      %v1996 = vld [vmem:[%s1992 + $0xc] sm:$0xf]
      %v1997 = vpack.c.bf16 %v1991, %v1991
      %v2002 = vunpack.c.l.b16 %v1993
      %v2003 = vunpack.c.l.b16 %v1994
      %v2004 = vunpack.c.l.b16 %v1995
      %v2005 = vunpack.c.l.b16 %v1996
      %v2006 = vpack.c.b16 %v2003, %v2002
      %v2007 = vpack.c.b16 %v2005, %v2004
      %v2011 = vsel %vm376, %v1997, 0
      %2013 = vmatprep.subr.bf16.mxu0 0
      %2014 = vmatpush1.bf16.msra.mxu0 %v2006
      %2015 = vmatprep.subr.bf16.mxu0 0
      %2016 = vmatpush1.bf16.msra.mxu0 %v2007
      %2017 = vmatprep.subr.bf16.mxu0 0
      %2018 = vmatpush1.bf16.msra.mxu0 0
      %2019 = vmatprep.subr.bf16.mxu0 0
      %2020 = vmatpush1.bf16.msra.mxu0 0
      %2021 = vmatprep.subr.bf16.mxu0 0
      %2022 = vmatpush1.bf16.msra.mxu0 0
      %2023 = vmatprep.subr.bf16.mxu0 0
      %2024 = vmatpush1.bf16.msra.mxu0 0
      %2025 = vmatprep.subr.bf16.mxu0 0
      %2026 = vmatpush1.bf16.msra.mxu0 0
      %2027 = vmatprep.subr.bf16.mxu0 0
      %2028 = vmatpush1.bf16.msra.mxu0 0
      %2029 = vmatprep.subr.bf16.mxu0 0
      %2030 = vmatpush1.bf16.msra.mxu0 0
      %2031 = vmatprep.subr.bf16.mxu0 0
      %2032 = vmatpush1.bf16.msra.mxu0 0
      %2033 = vmatprep.subr.bf16.mxu0 0
      %2034 = vmatpush1.bf16.msra.mxu0 0
      %2035 = vmatprep.subr.bf16.mxu0 0
      %2036 = vmatpush1.bf16.msra.mxu0 0
      %2037 = vmatprep.subr.bf16.mxu0 0
      %2038 = vmatpush1.bf16.msra.mxu0 0
      %2039 = vmatprep.subr.bf16.mxu0 0
      %2040 = vmatpush1.bf16.msra.mxu0 0
      %2041 = vmatprep.subr.bf16.mxu0 0
      %2042 = vmatpush1.bf16.msra.mxu0 0
      %2043 = vmatprep.subr.bf16.mxu0 0
      %2044 = vmatpush1.bf16.msra.mxu0 0
      %2045 = vmatprep.mubr.bf16.mxu0 0
      %2046 = vmatmul.mubr.bf16.gmra.mrb[0].mxu0 %v2011
      %v2047 = vpop.f32.mrb[0].mxu0
      %v2048 = vadd.f32 0.0, %v2047
      %v2049 = vpop.f32.mrb[0].mxu0
      %v2050 = vpop.f32.mrb[0].mxu0
      %v2051 = vpop.f32.mrb[0].mxu0
      %2052 = vdwg.mxu0
      %v2053 = vmax.f32 %v2048, 0.0
      %s2054 = scalar_lea.vmem %s8, 32
      %v2055 = vld [vmem:[%s2054] sm:$0xf]
      %v2056 = vld [vmem:[%s2054 + $0x4] sm:$0xf]
      %v2057 = vld [vmem:[%s2054 + $0x8] sm:$0xf]
      %v2058 = vld [vmem:[%s2054 + $0xc] sm:$0xf]
      %v2059 = vld [vmem:[%s2054 + $0x10] sm:$0xf]
      %v2060 = vld [vmem:[%s2054 + $0x14] sm:$0xf]
      %v2061 = vld [vmem:[%s2054 + $0x18] sm:$0xf]
      %v2062 = vld [vmem:[%s2054 + $0x1c] sm:$0xf]
      %v2063 = vpack.c.bf16 %v2053, %v2053
      %v2072 = vunpack.c.l.b16 %v2055
      %v2073 = vunpack.c.l.b16 %v2056
      %v2074 = vunpack.c.l.b16 %v2057
      %v2075 = vunpack.c.l.b16 %v2058
      %v2076 = vunpack.c.l.b16 %v2059
      %v2077 = vunpack.c.l.b16 %v2060
      %v2078 = vunpack.c.l.b16 %v2061
      %v2079 = vunpack.c.l.b16 %v2062
      %v2080 = vpack.c.b16 %v2073, %v2072
      %v2081 = vpack.c.b16 %v2075, %v2074
      %v2082 = vpack.c.b16 %v2077, %v2076
      %v2083 = vpack.c.b16 %v2079, %v2078
      %v2089 = vsel %vm1216, %v2063, 0
      %2091 = vmatprep.subr.bf16.mxu0 0
      %2092 = vmatpush1.bf16.msra.mxu0 %v2080
      %2093 = vmatprep.subr.bf16.mxu0 0
      %2094 = vmatpush1.bf16.msra.mxu0 %v2081
      %2095 = vmatprep.subr.bf16.mxu0 0
      %2096 = vmatpush1.bf16.msra.mxu0 %v2082
      %2097 = vmatprep.subr.bf16.mxu0 0
      %2098 = vmatpush1.bf16.msra.mxu0 %v2083
      %2099 = vmatprep.subr.bf16.mxu0 0
      %2100 = vmatpush1.bf16.msra.mxu0 0
      %2101 = vmatprep.subr.bf16.mxu0 0
      %2102 = vmatpush1.bf16.msra.mxu0 0
      %2103 = vmatprep.subr.bf16.mxu0 0
      %2104 = vmatpush1.bf16.msra.mxu0 0
      %2105 = vmatprep.subr.bf16.mxu0 0
      %2106 = vmatpush1.bf16.msra.mxu0 0
      %2107 = vmatprep.subr.bf16.mxu0 0
      %2108 = vmatpush1.bf16.msra.mxu0 0
      %2109 = vmatprep.subr.bf16.mxu0 0
      %2110 = vmatpush1.bf16.msra.mxu0 0
      %2111 = vmatprep.subr.bf16.mxu0 0
      %2112 = vmatpush1.bf16.msra.mxu0 0
      %2113 = vmatprep.subr.bf16.mxu0 0
      %2114 = vmatpush1.bf16.msra.mxu0 0
      %2115 = vmatprep.subr.bf16.mxu0 0
      %2116 = vmatpush1.bf16.msra.mxu0 0
      %2117 = vmatprep.subr.bf16.mxu0 0
      %2118 = vmatpush1.bf16.msra.mxu0 0
      %2119 = vmatprep.subr.bf16.mxu0 0
      %2120 = vmatpush1.bf16.msra.mxu0 0
      %2121 = vmatprep.subr.bf16.mxu0 0
      %2122 = vmatpush1.bf16.msra.mxu0 0
      %2123 = vmatprep.mubr.bf16.mxu0 0
      %2124 = vmatmul.mubr.bf16.gmra.mrb[0].mxu0 %v2089
      %v2125 = vpop.f32.mrb[0].mxu0
      %v2126 = vadd.f32 0.0, %v2125
      %v2127 = vpop.f32.mrb[0].mxu0
      %v2128 = vpop.f32.mrb[0].mxu0
      %v2129 = vpop.f32.mrb[0].mxu0
      %2130 = vdwg.mxu0
      %v2131 = vadd.f32 %v1974, %v2126
      %v2132 = vld [vmem:[%s9] sm:$0x1]
      %v2133 = vmul.f32 %v2131, %v2131
      %v2134 = vsel %vm376, %v2133, 0.0
      %2135 = vadd.xlane.f32.xlu0 %v2134
      %v2136 = vpop.xlane.xlu0 %2135
      %v2137 = vmul.f32 %v2136, %v380
      %v2138 = vadd.f32 %v2137, 1e-06
      %v2139 = vrsqrt.pop %v2138
      %v2140 = vmul.f32 %v2131, %v2139
      %v2142 = vlaneseq
      %v2143 = vshrl.u32 %v2142, 7
      %v2144 = vsub.s32 0, %v2143
      %v2145 = vrot.slane %v2132, %v2144
      %v2147 = vmul.f32 %v2140, %v2145
      %2148 = vst.msk [vmem:[%s368] sm:$0xff] %vm376, %v2147
      %p2149 = scmp.lt.s32.totalorder %s21, 1
      %s2150 = scalar_select %p2149, %s21, 1
      %s2151 = smul.addr %s2150, 8
      %s2152 = scalar_lea.vmem %s10, %s2151
      // Predicated region
      $region61: #{seq2seq_t5_score.2} parent=59 // pred_check
        %p2153 = pneg %p259
      $region62: #{seq2seq_t5_score.2} parent=59 // pred_check_branch
        %2155 = sbr.rel (%p2153) target = $region64
      $region63: #{seq2seq_t5_score.2} parent=59 // pred_region
        _
      $region64: #{seq2seq_t5_score.2} parent=59 // pred_fallthru
        _
    $region60: #{seq2seq_t5_score.2} parent=5 // pred_fallthru
      _
    %p2156 = scmp.le.s32.totalorder 2, %s16
    // Predicated region
    $region65: #{seq2seq_t5_score.2} parent=5 // pred_check
      %p2157 = pneg %p2156
    $region66: #{seq2seq_t5_score.2} parent=5 // pred_check_branch
      %2159 = sbr.rel (%p2157) target = $region68
    $region67: #{seq2seq_t5_score.2} parent=5 // pred_region
      %s2160 = ssub.s32 %s16, 2
      // Predicated region
      $region69: #{seq2seq_t5_score.2} parent=67 // pred_check
        %p2161 = pneg %p265
      $region70: #{seq2seq_t5_score.2} parent=67 // pred_check_branch
        %2163 = sbr.rel (%p2161) target = $region72
      $region71: #{seq2seq_t5_score.2} parent=67 // pred_region
        %p2164 = scmp.lt.s32.totalorder %s22, 1
        %s2165 = scalar_select %p2164, %s22, 1
        %s2166 = smul.addr %s2165, 8
        %s2167 = scalar_lea.vmem %s10, %s2166
      $region72: #{seq2seq_t5_score.2} parent=67 // pred_fallthru
        _
    $region68: #{seq2seq_t5_score.2} parent=5 // pred_fallthru
      _
  $region6: #{seq2seq_t5_score.2} parent=0 // loop_footer
    %s20 = sadd.s32 1, %s16
  $region7: #{seq2seq_t5_score.2} parent=0 // loop_footer_branch
    %15 = sbr.rel target = $region3
  $region8: #{seq2seq_t5_score.2} parent=0 // loop_exit
    _

// kernel: seq2seq_t5_score.3
$region0: #{seq2seq_t5_score.3}
  #allocation0 [shape = 'u32[]', space=smem, size = 0x4, offset = 0x4, fixed_abs, tag = 'smem constant byte address 0x4 - core index']
  #allocation1 [shape = 'u32[144,128]{1,0:T(1,128)}', space=vmem, size = 0x12000, scoped, tag = 'internal scratch']
  %s0 = inlined_call_operand.vmem [shape: f32[2,1,32], index: 0, kind: input, shape index: {}]
  %s1 = inlined_call_operand.vmem [shape: f32[2,8,32], index: 1, kind: input, shape index: {}]
  %s2 = inlined_call_operand.vmem [shape: f32[2,1,8], index: 2, kind: input, shape index: {}]
  %s3 = inlined_call_operand.vmem [shape: f32[4,1,1], index: 3, kind: input, shape index: {}]
  %s4 = inlined_call_operand.vmem [shape: f32[2,1,32], index: 4, kind: input, shape index: {}]
  %s5 = inlined_call_operand.vmem [shape: f32[2,1,32], index: 5, kind: input, shape index: {}]
  %s6 = inlined_call_operand.vmem [shape: f32[2,1,32], index: 6, kind: input, shape index: {}]
  %s7 = inlined_call_operand.vmem [shape: bf16[2,32,96], index: 7, kind: input, shape index: {}]
  %s8 = inlined_call_operand.vmem [shape: bf16[2,32,32], index: 8, kind: input, shape index: {}]
  %s9 = inlined_call_operand.vmem [shape: bf16[2,32,32], index: 9, kind: input, shape index: {}]
  %s10 = inlined_call_operand.vmem [shape: bf16[2,32,64], index: 10, kind: input, shape index: {}]
  %s11 = inlined_call_operand.vmem [shape: bf16[2,32,32], index: 11, kind: input, shape index: {}]
  %s12 = inlined_call_operand.vmem [shape: bf16[2,32,64], index: 12, kind: input, shape index: {}]
  %s13 = inlined_call_operand.vmem [shape: bf16[2,64,32], index: 13, kind: input, shape index: {}]
  %s14 = inlined_call_operand.vmem [shape: f32[1,32], index: 14, kind: input, shape index: {}]
  %s15 = inlined_call_operand.vmem [shape: bf16[32,2], index: 15, kind: input, shape index: {}]
  %s16 = inlined_call_operand.vmem [shape: f32[2,1,1], index: 16, kind: output, shape index: {}]
  %s17 = sld [smem:[#allocation0]]
  $region97: #{seq2seq_t5_score.3} parent=0
    _
  %s19 = ssub.s32 1, %s17
  %s20 = scalar_select 0, %s19, %s17
  loop: start=0, step=1, limit=4
  $region2: #{seq2seq_t5_score.3} parent=0 // loop_pre_header
    _
  $region3: #{seq2seq_t5_score.3} parent=0 // loop_header
    %s22 = sphi 0, %s26
    %p23 = scmp.ge.s32.totalorder %s22, 4
    %s32 = sphi 0, %s34
    %s35 = sphi 0, %s32
    %s36 = sphi 0, %s35
    %s52 = sphi 0, %s36
    %s58 = sphi 0, %s60
    %s61 = sphi 0, %s58
    %s62 = sphi 0, %s61
    %s78 = sphi 0, %s62
    %s84 = sphi 0, %s86
    %s87 = sphi 0, %s84
    %s88 = sphi 0, %s87
    %s104 = sphi 0, %s88
    %s108 = sphi 0, %s108
    %s110 = sphi 0, %s108
    %s111 = sphi 0, %s110
    %s125 = sphi 0, %s111
    %s129 = sphi 0, %s129
    %s131 = sphi 0, %s129
    %s132 = sphi 0, %s131
    %s146 = sphi 0, %s132
    %s150 = sphi 0, %s150
    %s152 = sphi 0, %s150
    %s153 = sphi 0, %s152
    %s167 = sphi 0, %s153
    %s171 = sphi 0, %s171
    %s173 = sphi 0, %s171
    %s174 = sphi 0, %s173
    %s188 = sphi 0, %s174
    %s192 = sphi 0, %s192
    %s194 = sphi 0, %s192
    %s195 = sphi 0, %s194
    %s209 = sphi 0, %s195
    %s213 = sphi 0, %s213
    %s215 = sphi 0, %s213
    %s216 = sphi 0, %s215
    %s230 = sphi 0, %s216
    %s234 = sphi 0, %s234
    %s236 = sphi 0, %s234
    %s237 = sphi 0, %s236
    %s251 = sphi 0, %s237
    %s255 = sphi 0, %s255
    %s257 = sphi 0, %s255
    %s258 = sphi 0, %s257
    %s272 = sphi 0, %s258
    %s276 = sphi 0, %s276
    %s278 = sphi 0, %s276
    %s279 = sphi 0, %s278
    %s293 = sphi 0, %s279
    %s297 = sphi 0, %s297
    %s299 = sphi 0, %s297
    %s300 = sphi 0, %s299
    %s314 = sphi 0, %s300
    %s318 = sphi 0, %s318
    %s320 = sphi 0, %s318
    %s321 = sphi 0, %s320
    %s335 = sphi 0, %s321
    %s339 = sphi 0, %s339
    %s341 = sphi 0, %s339
    %s342 = sphi 0, %s341
    %s356 = sphi 0, %s342
    %s360 = sphi 0, %s360
    %s362 = sphi 0, %s360
    %s363 = sphi 0, %s362
    %s377 = sphi 0, %s363
    %s383 = sphi 0, %s385
    %s386 = sphi 0, %s383
    %s387 = sphi 0, %s386
    %s403 = sphi 0, %s387
  $region4: #{seq2seq_t5_score.3} parent=0 // loop_header_branch
    %25 = sbr.rel (%p23) target = $region8
  $region5: #{seq2seq_t5_score.3} parent=0 // loop_body
    %s27 = ssub.s32 %s22, 1
    %s28 = ssub.s32 %s22, 2
    %s29 = sadd.s32 %s22, 1
    %s30 = ssub.s32 %s22, %s29
    %p31 = scmp.eq.s32.totalorder %s30, 0
    %s33 = sadd.s32 %s32, 1
    %s34 = scalar_select %p31, %s32, %s33
    %p37 = pneg %p31
    %p38 = scmp.eq.s32.totalorder %s22, 1
    %p39 = por %p37, %p38
    %p40 = scmp.ne.s32.totalorder %s32, %s35
    %p41 = scmp.eq.s32.totalorder %s22, 0
    %p42 = por %p40, %p41
    %p43 = scmp.ne.s32.totalorder %s32, %s35
    %p44 = scmp.eq.s32.totalorder %s27, 1
    %p45 = por %p43, %p44
    %p46 = scmp.ne.s32.totalorder %s35, %s36
    %p47 = scmp.eq.s32.totalorder %s27, 0
    %p48 = por %p46, %p47
    %p49 = scmp.ne.s32.totalorder %s35, %s36
    %p50 = scmp.eq.s32.totalorder %s28, 1
    %p51 = por %p49, %p50
    %p53 = scmp.ne.s32.totalorder %s36, %s52
    %p54 = scmp.eq.s32.totalorder %s28, 0
    %p55 = por %p53, %p54
    %s56 = ssub.s32 %s22, %s29
    %p57 = scmp.eq.s32.totalorder %s56, 0
    %s59 = sadd.s32 %s58, 1
    %s60 = scalar_select %p57, %s58, %s59
    %p63 = pneg %p57
    %p64 = scmp.eq.s32.totalorder %s22, 1
    %p65 = por %p63, %p64
    %p66 = scmp.ne.s32.totalorder %s58, %s61
    %p67 = scmp.eq.s32.totalorder %s22, 0
    %p68 = por %p66, %p67
    %p69 = scmp.ne.s32.totalorder %s58, %s61
    %p70 = scmp.eq.s32.totalorder %s27, 1
    %p71 = por %p69, %p70
    %p72 = scmp.ne.s32.totalorder %s61, %s62
    %p73 = scmp.eq.s32.totalorder %s27, 0
    %p74 = por %p72, %p73
    %p75 = scmp.ne.s32.totalorder %s61, %s62
    %p76 = scmp.eq.s32.totalorder %s28, 1
    %p77 = por %p75, %p76
    %p79 = scmp.ne.s32.totalorder %s62, %s78
    %p80 = scmp.eq.s32.totalorder %s28, 0
    %p81 = por %p79, %p80
    %s82 = ssub.s32 %s22, %s29
    %p83 = scmp.eq.s32.totalorder %s82, 0
    %s85 = sadd.s32 %s84, 1
    %s86 = scalar_select %p83, %s84, %s85
    %p89 = pneg %p83
    %p90 = scmp.eq.s32.totalorder %s22, 1
    %p91 = por %p89, %p90
    %p92 = scmp.ne.s32.totalorder %s84, %s87
    %p93 = scmp.eq.s32.totalorder %s22, 0
    %p94 = por %p92, %p93
    %p95 = scmp.ne.s32.totalorder %s84, %s87
    %p96 = scmp.eq.s32.totalorder %s27, 1
    %p97 = por %p95, %p96
    %p98 = scmp.ne.s32.totalorder %s87, %s88
    %p99 = scmp.eq.s32.totalorder %s27, 0
    %p100 = por %p98, %p99
    %p101 = scmp.ne.s32.totalorder %s87, %s88
    %p102 = scmp.eq.s32.totalorder %s28, 1
    %p103 = por %p101, %p102
    %p105 = scmp.ne.s32.totalorder %s88, %s104
    %p106 = scmp.eq.s32.totalorder %s28, 0
    %p107 = por %p105, %p106
    %s109 = sadd.s32 %s108, 1
    %p112 = scmp.eq.s32.totalorder %s22, 1
    %p113 = scmp.ne.s32.totalorder %s108, %s110
    %p114 = scmp.eq.s32.totalorder %s22, 0
    %p115 = por %p113, %p114
    %p116 = scmp.ne.s32.totalorder %s108, %s110
    %p117 = scmp.eq.s32.totalorder %s27, 1
    %p118 = por %p116, %p117
    %p119 = scmp.ne.s32.totalorder %s110, %s111
    %p120 = scmp.eq.s32.totalorder %s27, 0
    %p121 = por %p119, %p120
    %p122 = scmp.ne.s32.totalorder %s110, %s111
    %p123 = scmp.eq.s32.totalorder %s28, 1
    %p124 = por %p122, %p123
    %p126 = scmp.ne.s32.totalorder %s111, %s125
    %p127 = scmp.eq.s32.totalorder %s28, 0
    %p128 = por %p126, %p127
    %s130 = sadd.s32 %s129, 1
    %p133 = scmp.eq.s32.totalorder %s22, 1
    %p134 = scmp.ne.s32.totalorder %s129, %s131
    %p135 = scmp.eq.s32.totalorder %s22, 0
    %p136 = por %p134, %p135
    %p137 = scmp.ne.s32.totalorder %s129, %s131
    %p138 = scmp.eq.s32.totalorder %s27, 1
    %p139 = por %p137, %p138
    %p140 = scmp.ne.s32.totalorder %s131, %s132
    %p141 = scmp.eq.s32.totalorder %s27, 0
    %p142 = por %p140, %p141
    %p143 = scmp.ne.s32.totalorder %s131, %s132
    %p144 = scmp.eq.s32.totalorder %s28, 1
    %p145 = por %p143, %p144
    %p147 = scmp.ne.s32.totalorder %s132, %s146
    %p148 = scmp.eq.s32.totalorder %s28, 0
    %p149 = por %p147, %p148
    %s151 = sadd.s32 %s150, 1
    %p154 = scmp.eq.s32.totalorder %s22, 1
    %p155 = scmp.ne.s32.totalorder %s150, %s152
    %p156 = scmp.eq.s32.totalorder %s22, 0
    %p157 = por %p155, %p156
    %p158 = scmp.ne.s32.totalorder %s150, %s152
    %p159 = scmp.eq.s32.totalorder %s27, 1
    %p160 = por %p158, %p159
    %p161 = scmp.ne.s32.totalorder %s152, %s153
    %p162 = scmp.eq.s32.totalorder %s27, 0
    %p163 = por %p161, %p162
    %p164 = scmp.ne.s32.totalorder %s152, %s153
    %p165 = scmp.eq.s32.totalorder %s28, 1
    %p166 = por %p164, %p165
    %p168 = scmp.ne.s32.totalorder %s153, %s167
    %p169 = scmp.eq.s32.totalorder %s28, 0
    %p170 = por %p168, %p169
    %s172 = sadd.s32 %s171, 1
    %p175 = scmp.eq.s32.totalorder %s22, 1
    %p176 = scmp.ne.s32.totalorder %s171, %s173
    %p177 = scmp.eq.s32.totalorder %s22, 0
    %p178 = por %p176, %p177
    %p179 = scmp.ne.s32.totalorder %s171, %s173
    %p180 = scmp.eq.s32.totalorder %s27, 1
    %p181 = por %p179, %p180
    %p182 = scmp.ne.s32.totalorder %s173, %s174
    %p183 = scmp.eq.s32.totalorder %s27, 0
    %p184 = por %p182, %p183
    %p185 = scmp.ne.s32.totalorder %s173, %s174
    %p186 = scmp.eq.s32.totalorder %s28, 1
    %p187 = por %p185, %p186
    %p189 = scmp.ne.s32.totalorder %s174, %s188
    %p190 = scmp.eq.s32.totalorder %s28, 0
    %p191 = por %p189, %p190
    %s193 = sadd.s32 %s192, 1
    %p196 = scmp.eq.s32.totalorder %s22, 1
    %p197 = scmp.ne.s32.totalorder %s192, %s194
    %p198 = scmp.eq.s32.totalorder %s22, 0
    %p199 = por %p197, %p198
    %p200 = scmp.ne.s32.totalorder %s192, %s194
    %p201 = scmp.eq.s32.totalorder %s27, 1
    %p202 = por %p200, %p201
    %p203 = scmp.ne.s32.totalorder %s194, %s195
    %p204 = scmp.eq.s32.totalorder %s27, 0
    %p205 = por %p203, %p204
    %p206 = scmp.ne.s32.totalorder %s194, %s195
    %p207 = scmp.eq.s32.totalorder %s28, 1
    %p208 = por %p206, %p207
    %p210 = scmp.ne.s32.totalorder %s195, %s209
    %p211 = scmp.eq.s32.totalorder %s28, 0
    %p212 = por %p210, %p211
    %s214 = sadd.s32 %s213, 1
    %p217 = scmp.eq.s32.totalorder %s22, 1
    %p218 = scmp.ne.s32.totalorder %s213, %s215
    %p219 = scmp.eq.s32.totalorder %s22, 0
    %p220 = por %p218, %p219
    %p221 = scmp.ne.s32.totalorder %s213, %s215
    %p222 = scmp.eq.s32.totalorder %s27, 1
    %p223 = por %p221, %p222
    %p224 = scmp.ne.s32.totalorder %s215, %s216
    %p225 = scmp.eq.s32.totalorder %s27, 0
    %p226 = por %p224, %p225
    %p227 = scmp.ne.s32.totalorder %s215, %s216
    %p228 = scmp.eq.s32.totalorder %s28, 1
    %p229 = por %p227, %p228
    %p231 = scmp.ne.s32.totalorder %s216, %s230
    %p232 = scmp.eq.s32.totalorder %s28, 0
    %p233 = por %p231, %p232
    %s235 = sadd.s32 %s234, 1
    %p238 = scmp.eq.s32.totalorder %s22, 1
    %p239 = scmp.ne.s32.totalorder %s234, %s236
    %p240 = scmp.eq.s32.totalorder %s22, 0
    %p241 = por %p239, %p240
    %p242 = scmp.ne.s32.totalorder %s234, %s236
    %p243 = scmp.eq.s32.totalorder %s27, 1
    %p244 = por %p242, %p243
    %p245 = scmp.ne.s32.totalorder %s236, %s237
    %p246 = scmp.eq.s32.totalorder %s27, 0
    %p247 = por %p245, %p246
    %p248 = scmp.ne.s32.totalorder %s236, %s237
    %p249 = scmp.eq.s32.totalorder %s28, 1
    %p250 = por %p248, %p249
    %p252 = scmp.ne.s32.totalorder %s237, %s251
    %p253 = scmp.eq.s32.totalorder %s28, 0
    %p254 = por %p252, %p253
    %s256 = sadd.s32 %s255, 1
    %p259 = scmp.eq.s32.totalorder %s22, 1
    %p260 = scmp.ne.s32.totalorder %s255, %s257
    %p261 = scmp.eq.s32.totalorder %s22, 0
    %p262 = por %p260, %p261
    %p263 = scmp.ne.s32.totalorder %s255, %s257
    %p264 = scmp.eq.s32.totalorder %s27, 1
    %p265 = por %p263, %p264
    %p266 = scmp.ne.s32.totalorder %s257, %s258
    %p267 = scmp.eq.s32.totalorder %s27, 0
    %p268 = por %p266, %p267
    %p269 = scmp.ne.s32.totalorder %s257, %s258
    %p270 = scmp.eq.s32.totalorder %s28, 1
    %p271 = por %p269, %p270
    %p273 = scmp.ne.s32.totalorder %s258, %s272
    %p274 = scmp.eq.s32.totalorder %s28, 0
    %p275 = por %p273, %p274
    %s277 = sadd.s32 %s276, 1
    %p280 = scmp.eq.s32.totalorder %s22, 1
    %p281 = scmp.ne.s32.totalorder %s276, %s278
    %p282 = scmp.eq.s32.totalorder %s22, 0
    %p283 = por %p281, %p282
    %p284 = scmp.ne.s32.totalorder %s276, %s278
    %p285 = scmp.eq.s32.totalorder %s27, 1
    %p286 = por %p284, %p285
    %p287 = scmp.ne.s32.totalorder %s278, %s279
    %p288 = scmp.eq.s32.totalorder %s27, 0
    %p289 = por %p287, %p288
    %p290 = scmp.ne.s32.totalorder %s278, %s279
    %p291 = scmp.eq.s32.totalorder %s28, 1
    %p292 = por %p290, %p291
    %p294 = scmp.ne.s32.totalorder %s279, %s293
    %p295 = scmp.eq.s32.totalorder %s28, 0
    %p296 = por %p294, %p295
    %s298 = sadd.s32 %s297, 1
    %p301 = scmp.eq.s32.totalorder %s22, 1
    %p302 = scmp.ne.s32.totalorder %s297, %s299
    %p303 = scmp.eq.s32.totalorder %s22, 0
    %p304 = por %p302, %p303
    %p305 = scmp.ne.s32.totalorder %s297, %s299
    %p306 = scmp.eq.s32.totalorder %s27, 1
    %p307 = por %p305, %p306
    %p308 = scmp.ne.s32.totalorder %s299, %s300
    %p309 = scmp.eq.s32.totalorder %s27, 0
    %p310 = por %p308, %p309
    %p311 = scmp.ne.s32.totalorder %s299, %s300
    %p312 = scmp.eq.s32.totalorder %s28, 1
    %p313 = por %p311, %p312
    %p315 = scmp.ne.s32.totalorder %s300, %s314
    %p316 = scmp.eq.s32.totalorder %s28, 0
    %p317 = por %p315, %p316
    %s319 = sadd.s32 %s318, 1
    %p322 = scmp.eq.s32.totalorder %s22, 1
    %p323 = scmp.ne.s32.totalorder %s318, %s320
    %p324 = scmp.eq.s32.totalorder %s22, 0
    %p325 = por %p323, %p324
    %p326 = scmp.ne.s32.totalorder %s318, %s320
    %p327 = scmp.eq.s32.totalorder %s27, 1
    %p328 = por %p326, %p327
    %p329 = scmp.ne.s32.totalorder %s320, %s321
    %p330 = scmp.eq.s32.totalorder %s27, 0
    %p331 = por %p329, %p330
    %p332 = scmp.ne.s32.totalorder %s320, %s321
    %p333 = scmp.eq.s32.totalorder %s28, 1
    %p334 = por %p332, %p333
    %p336 = scmp.ne.s32.totalorder %s321, %s335
    %p337 = scmp.eq.s32.totalorder %s28, 0
    %p338 = por %p336, %p337
    %s340 = sadd.s32 %s339, 1
    %p343 = scmp.eq.s32.totalorder %s22, 1
    %p344 = scmp.ne.s32.totalorder %s339, %s341
    %p345 = scmp.eq.s32.totalorder %s22, 0
    %p346 = por %p344, %p345
    %p347 = scmp.ne.s32.totalorder %s339, %s341
    %p348 = scmp.eq.s32.totalorder %s27, 1
    %p349 = por %p347, %p348
    %p350 = scmp.ne.s32.totalorder %s341, %s342
    %p351 = scmp.eq.s32.totalorder %s27, 0
    %p352 = por %p350, %p351
    %p353 = scmp.ne.s32.totalorder %s341, %s342
    %p354 = scmp.eq.s32.totalorder %s28, 1
    %p355 = por %p353, %p354
    %p357 = scmp.ne.s32.totalorder %s342, %s356
    %p358 = scmp.eq.s32.totalorder %s28, 0
    %p359 = por %p357, %p358
    %s361 = sadd.s32 %s360, 1
    %p364 = scmp.eq.s32.totalorder %s22, 1
    %p365 = scmp.ne.s32.totalorder %s360, %s362
    %p366 = scmp.eq.s32.totalorder %s22, 0
    %p367 = por %p365, %p366
    %p368 = scmp.ne.s32.totalorder %s360, %s362
    %p369 = scmp.eq.s32.totalorder %s27, 1
    %p370 = por %p368, %p369
    %p371 = scmp.ne.s32.totalorder %s362, %s363
    %p372 = scmp.eq.s32.totalorder %s27, 0
    %p373 = por %p371, %p372
    %p374 = scmp.ne.s32.totalorder %s362, %s363
    %p375 = scmp.eq.s32.totalorder %s28, 1
    %p376 = por %p374, %p375
    %p378 = scmp.ne.s32.totalorder %s363, %s377
    %p379 = scmp.eq.s32.totalorder %s28, 0
    %p380 = por %p378, %p379
    %s381 = ssub.s32 %s22, %s29
    %p382 = scmp.eq.s32.totalorder %s381, 0
    %s384 = sadd.s32 %s383, 1
    %s385 = scalar_select %p382, %s383, %s384
    %p388 = pneg %p382
    %p389 = scmp.eq.s32.totalorder %s22, 1
    %p390 = por %p388, %p389
    %p391 = scmp.ne.s32.totalorder %s383, %s386
    %p392 = scmp.eq.s32.totalorder %s22, 0
    %p393 = por %p391, %p392
    %p394 = scmp.ne.s32.totalorder %s383, %s386
    %p395 = scmp.eq.s32.totalorder %s27, 1
    %p396 = por %p394, %p395
    %p397 = scmp.ne.s32.totalorder %s386, %s387
    %p398 = scmp.eq.s32.totalorder %s27, 0
    %p399 = por %p397, %p398
    %p400 = scmp.ne.s32.totalorder %s386, %s387
    %p401 = scmp.eq.s32.totalorder %s28, 1
    %p402 = por %p400, %p401
    %p404 = scmp.ne.s32.totalorder %s387, %s403
    %p405 = scmp.eq.s32.totalorder %s28, 0
    %p406 = por %p404, %p405
    %p407 = scmp.le.s32.totalorder 1, %s22
    %p408 = scmp.lt.s32.totalorder %s22, 3
    %p409 = pnand %p407, %p408
    %p410 = pneg %p409
    // Predicated region
    $region9: #{seq2seq_t5_score.3} parent=5 // pred_check
      _
    $region10: #{seq2seq_t5_score.3} parent=5 // pred_check_branch
      %412 = sbr.rel (%p409) target = $region12
    $region11: #{seq2seq_t5_score.3} parent=5 // pred_region
      %s413 = ssub.s32 %s22, 1
      // Predicated region
      $region13: #{seq2seq_t5_score.3} parent=11 // pred_check
        %p414 = pneg %p121
      $region14: #{seq2seq_t5_score.3} parent=11 // pred_check_branch
        %416 = sbr.rel (%p414) target = $region16
      $region15: #{seq2seq_t5_score.3} parent=11 // pred_region
        _
      $region16: #{seq2seq_t5_score.3} parent=11 // pred_fallthru
        _
      // Predicated region
      $region17: #{seq2seq_t5_score.3} parent=11 // pred_check
        %p417 = pneg %p142
      $region18: #{seq2seq_t5_score.3} parent=11 // pred_check_branch
        %419 = sbr.rel (%p417) target = $region20
      $region19: #{seq2seq_t5_score.3} parent=11 // pred_region
        _
      $region20: #{seq2seq_t5_score.3} parent=11 // pred_fallthru
        _
      // Predicated region
      $region21: #{seq2seq_t5_score.3} parent=11 // pred_check
        %p420 = pneg %p163
      $region22: #{seq2seq_t5_score.3} parent=11 // pred_check_branch
        %422 = sbr.rel (%p420) target = $region24
      $region23: #{seq2seq_t5_score.3} parent=11 // pred_region
        _
      $region24: #{seq2seq_t5_score.3} parent=11 // pred_fallthru
        _
      // Predicated region
      $region25: #{seq2seq_t5_score.3} parent=11 // pred_check
        %p423 = pneg %p184
      $region26: #{seq2seq_t5_score.3} parent=11 // pred_check_branch
        %425 = sbr.rel (%p423) target = $region28
      $region27: #{seq2seq_t5_score.3} parent=11 // pred_region
        _
      $region28: #{seq2seq_t5_score.3} parent=11 // pred_fallthru
        _
      // Predicated region
      $region29: #{seq2seq_t5_score.3} parent=11 // pred_check
        %p426 = pneg %p205
      $region30: #{seq2seq_t5_score.3} parent=11 // pred_check_branch
        %428 = sbr.rel (%p426) target = $region32
      $region31: #{seq2seq_t5_score.3} parent=11 // pred_region
        _
      $region32: #{seq2seq_t5_score.3} parent=11 // pred_fallthru
        _
      // Predicated region
      $region33: #{seq2seq_t5_score.3} parent=11 // pred_check
        %p429 = pneg %p226
      $region34: #{seq2seq_t5_score.3} parent=11 // pred_check_branch
        %431 = sbr.rel (%p429) target = $region36
      $region35: #{seq2seq_t5_score.3} parent=11 // pred_region
        _
      $region36: #{seq2seq_t5_score.3} parent=11 // pred_fallthru
        _
      // Predicated region
      $region37: #{seq2seq_t5_score.3} parent=11 // pred_check
        %p432 = pneg %p247
      $region38: #{seq2seq_t5_score.3} parent=11 // pred_check_branch
        %434 = sbr.rel (%p432) target = $region40
      $region39: #{seq2seq_t5_score.3} parent=11 // pred_region
        _
      $region40: #{seq2seq_t5_score.3} parent=11 // pred_fallthru
        _
      // Predicated region
      $region41: #{seq2seq_t5_score.3} parent=11 // pred_check
        %p435 = pneg %p268
      $region42: #{seq2seq_t5_score.3} parent=11 // pred_check_branch
        %437 = sbr.rel (%p435) target = $region44
      $region43: #{seq2seq_t5_score.3} parent=11 // pred_region
        _
      $region44: #{seq2seq_t5_score.3} parent=11 // pred_fallthru
        _
      // Predicated region
      $region45: #{seq2seq_t5_score.3} parent=11 // pred_check
        %p438 = pneg %p289
      $region46: #{seq2seq_t5_score.3} parent=11 // pred_check_branch
        %440 = sbr.rel (%p438) target = $region48
      $region47: #{seq2seq_t5_score.3} parent=11 // pred_region
        _
      $region48: #{seq2seq_t5_score.3} parent=11 // pred_fallthru
        _
      // Predicated region
      $region49: #{seq2seq_t5_score.3} parent=11 // pred_check
        %p441 = pneg %p310
      $region50: #{seq2seq_t5_score.3} parent=11 // pred_check_branch
        %443 = sbr.rel (%p441) target = $region52
      $region51: #{seq2seq_t5_score.3} parent=11 // pred_region
        _
      $region52: #{seq2seq_t5_score.3} parent=11 // pred_fallthru
        _
      // Predicated region
      $region53: #{seq2seq_t5_score.3} parent=11 // pred_check
        %p444 = pneg %p331
      $region54: #{seq2seq_t5_score.3} parent=11 // pred_check_branch
        %446 = sbr.rel (%p444) target = $region56
      $region55: #{seq2seq_t5_score.3} parent=11 // pred_region
        _
      $region56: #{seq2seq_t5_score.3} parent=11 // pred_fallthru
        _
      // Predicated region
      $region57: #{seq2seq_t5_score.3} parent=11 // pred_check
        %p447 = pneg %p352
      $region58: #{seq2seq_t5_score.3} parent=11 // pred_check_branch
        %449 = sbr.rel (%p447) target = $region60
      $region59: #{seq2seq_t5_score.3} parent=11 // pred_region
        _
      $region60: #{seq2seq_t5_score.3} parent=11 // pred_fallthru
        _
      // Predicated region
      $region61: #{seq2seq_t5_score.3} parent=11 // pred_check
        %p450 = pneg %p373
      $region62: #{seq2seq_t5_score.3} parent=11 // pred_check_branch
        %452 = sbr.rel (%p450) target = $region64
      $region63: #{seq2seq_t5_score.3} parent=11 // pred_region
        _
      $region64: #{seq2seq_t5_score.3} parent=11 // pred_fallthru
        _
    $region12: #{seq2seq_t5_score.3} parent=5 // pred_fallthru
      _
    %p453 = scmp.lt.s32.totalorder %s22, 2
    // Predicated region
    $region65: #{seq2seq_t5_score.3} parent=5 // pred_check
      %p454 = pneg %p453
    $region66: #{seq2seq_t5_score.3} parent=5 // pred_check_branch
      %456 = sbr.rel (%p454) target = $region68
    $region67: #{seq2seq_t5_score.3} parent=5 // pred_region
      // Predicated region
      $region69: #{seq2seq_t5_score.3} parent=67 // pred_check
        %p457 = pneg %p42
      $region70: #{seq2seq_t5_score.3} parent=67 // pred_check_branch
        %459 = sbr.rel (%p457) target = $region72
      $region71: #{seq2seq_t5_score.3} parent=67 // pred_region
        %p460 = scmp.lt.s32.totalorder %s22, 1
        %s461 = scalar_select %p460, %s22, 1
        %s462 = scalar_lea.vmem %s0, %s461
      $region72: #{seq2seq_t5_score.3} parent=67 // pred_fallthru
        _
      // Predicated region
      $region73: #{seq2seq_t5_score.3} parent=67 // pred_check
        %p463 = pneg %p68
      $region74: #{seq2seq_t5_score.3} parent=67 // pred_check_branch
        %465 = sbr.rel (%p463) target = $region76
      $region75: #{seq2seq_t5_score.3} parent=67 // pred_region
        %p466 = scmp.lt.s32.totalorder %s22, 1
        %s467 = scalar_select %p466, %s22, 1
        %s468 = smul.addr %s467, 8
        %s469 = scalar_lea.vmem %s1, %s468
      $region76: #{seq2seq_t5_score.3} parent=67 // pred_fallthru
        _
      // Predicated region
      $region77: #{seq2seq_t5_score.3} parent=67 // pred_check
        %p470 = pneg %p94
      $region78: #{seq2seq_t5_score.3} parent=67 // pred_check_branch
        %472 = sbr.rel (%p470) target = $region80
      $region79: #{seq2seq_t5_score.3} parent=67 // pred_region
        %p473 = scmp.lt.s32.totalorder %s22, 1
        %s474 = scalar_select %p473, %s22, 1
        %s475 = scalar_lea.vmem %s2, %s474
      $region80: #{seq2seq_t5_score.3} parent=67 // pred_fallthru
        _
    $region68: #{seq2seq_t5_score.3} parent=5 // pred_fallthru
      _
    %p476 = scmp.le.s32.totalorder 1, %s22
    %p477 = scmp.lt.s32.totalorder %s22, 3
    %p478 = pnand %p476, %p477
    %p479 = pneg %p478
    // Predicated region
    $region81: #{seq2seq_t5_score.3} parent=5 // pred_check
      _
    $region82: #{seq2seq_t5_score.3} parent=5 // pred_check_branch
      %481 = sbr.rel (%p478) target = $region84
    $region83: #{seq2seq_t5_score.3} parent=5 // pred_region
      %s482 = ssub.s32 %s22, 1
      %p483 = scmp.lt.s32.totalorder %s27, 1
      %s484 = scalar_select %p483, %s27, 1
      %s485 = scalar_lea.vmem %s0, %s484
      %p486 = pneg %p48
      %p487 = pneg %p45
      %p488 = scmp.lt.s32.totalorder %s27, 1
      %s489 = scalar_select %p488, %s27, 1
      %s490 = smul.addr %s489, 8
      %s491 = scalar_lea.vmem %s1, %s490
      %p492 = pneg %p74
      %p493 = pneg %p71
      %p494 = scmp.lt.s32.totalorder %s27, 1
      %s495 = scalar_select %p494, %s27, 1
      %s496 = scalar_lea.vmem %s2, %s495
      %p497 = pneg %p100
      %p498 = pneg %p97
      %p499 = pneg %p121
      %p500 = pneg %p118
      %p501 = pneg %p142
      %p502 = pneg %p139
      %p503 = pneg %p163
      %p504 = pneg %p160
      %p505 = pneg %p184
      %p506 = pneg %p181
      %p507 = pneg %p205
      %p508 = pneg %p202
      %p509 = pneg %p226
      %p510 = pneg %p223
      %p511 = pneg %p247
      %p512 = pneg %p244
      %p513 = pneg %p268
      %p514 = pneg %p265
      %p515 = pneg %p289
      %p516 = pneg %p286
      %p517 = pneg %p310
      %p518 = pneg %p307
      %p519 = pneg %p331
      %p520 = pneg %p328
      %p521 = pneg %p352
      %p522 = pneg %p349
      %p523 = pneg %p373
      %p524 = pneg %p370
      %p525 = pneg %p399
      %p526 = pneg %p396
      %p527 = scmp.lt.s32.totalorder %s27, 1
      %s528 = scalar_select %p527, %s27, 1
      %s529 = scalar_lea.vmem %s16, %s528
      %p530 = scmp.lt.s32.totalorder %s27, 1
      %s531 = scalar_select %p530, %s27, 1
      %s532 = scalar_lea.vmem %s0, %s531
      %p533 = scmp.lt.s32.totalorder %s27, 1
      %s534 = scalar_select %p533, %s27, 1
      %s535 = smul.addr %s534, 8
      %s536 = scalar_lea.vmem %s1, %s535
      %p537 = scmp.lt.s32.totalorder %s27, 1
      %s538 = scalar_select %p537, %s27, 1
      %s539 = scalar_lea.vmem %s2, %s538
      %p540 = scmp.lt.s32.totalorder %s27, 1
      %s541 = scalar_select %p540, %s27, 1
      %s542 = scalar_lea.vmem %s16, %s541
      %v544 = vld [vmem:[%s532] sm:$0x1]
      %v545 = vld [vmem:[%s536] sm:$0xff]
      %v546 = vld [vmem:[%s539] sm:$0x1]
      %v547 = vsub.f32 1.0, %v546
      %v548 = vmul.f32 %v547, -1e+09
      %v549 = vld [vmem:[%s4] sm:$0x1]
      %v550 = vmul.f32 %v544, %v544
      %vm551 = vcmask 253952
      %v552 = vsel %vm551, %v550, 0.0
      %553 = vadd.xlane.f32.xlu0 %v552
      %v554 = vpop.xlane.xlu0 %553
      %v555 = vrcp.pop 32.0
      %v556 = vmul.f32 %v554, %v555
      %v557 = vadd.f32 %v556, 1e-06
      %v558 = vrsqrt.pop %v557
      %v559 = vmul.f32 %v544, %v558
      %v560 = vmul.f32 %v559, %v549
      %v561 = vld [vmem:[%s7] sm:$0xf]
      %v562 = vld [vmem:[%s7 + $0x4] sm:$0xf]
      %v563 = vld [vmem:[%s7 + $0x8] sm:$0xf]
      %v564 = vld [vmem:[%s7 + $0xc] sm:$0xf]
      %v565 = vpack.c.bf16 %v560, %v560
      %v570 = vunpack.c.l.b16 %v561
      %v571 = vunpack.c.l.b16 %v562
      %v572 = vunpack.c.l.b16 %v563
      %v573 = vunpack.c.l.b16 %v564
      %v574 = vpack.c.b16 %v571, %v570
      %v575 = vpack.c.b16 %v573, %v572
      %vm578 = vcmask 261120
      %v580 = vsel %vm578, %v565, 0
      %582 = vmatprep.subr.bf16.mxu0 0
      %583 = vmatpush1.bf16.msra.mxu0 %v574
      %584 = vmatprep.subr.bf16.mxu0 0
      %585 = vmatpush1.bf16.msra.mxu0 %v575
      %586 = vmatprep.subr.bf16.mxu0 0
      %587 = vmatpush1.bf16.msra.mxu0 0
      %588 = vmatprep.subr.bf16.mxu0 0
      %589 = vmatpush1.bf16.msra.mxu0 0
      %590 = vmatprep.subr.bf16.mxu0 0
      %591 = vmatpush1.bf16.msra.mxu0 0
      %592 = vmatprep.subr.bf16.mxu0 0
      %593 = vmatpush1.bf16.msra.mxu0 0
      %594 = vmatprep.subr.bf16.mxu0 0
      %595 = vmatpush1.bf16.msra.mxu0 0
      %596 = vmatprep.subr.bf16.mxu0 0
      %597 = vmatpush1.bf16.msra.mxu0 0
      %598 = vmatprep.subr.bf16.mxu0 0
      %599 = vmatpush1.bf16.msra.mxu0 0
      %600 = vmatprep.subr.bf16.mxu0 0
      %601 = vmatpush1.bf16.msra.mxu0 0
      %602 = vmatprep.subr.bf16.mxu0 0
      %603 = vmatpush1.bf16.msra.mxu0 0
      %604 = vmatprep.subr.bf16.mxu0 0
      %605 = vmatpush1.bf16.msra.mxu0 0
      %606 = vmatprep.subr.bf16.mxu0 0
      %607 = vmatpush1.bf16.msra.mxu0 0
      %608 = vmatprep.subr.bf16.mxu0 0
      %609 = vmatpush1.bf16.msra.mxu0 0
      %610 = vmatprep.subr.bf16.mxu0 0
      %611 = vmatpush1.bf16.msra.mxu0 0
      %612 = vmatprep.subr.bf16.mxu0 0
      %613 = vmatpush1.bf16.msra.mxu0 0
      %614 = vmatprep.mubr.bf16.mxu0 0
      %615 = vmatmul.mubr.bf16.gmra.mrb[0].mxu0 %v580
      %v616 = vpop.f32.mrb[0].mxu0
      %v617 = vadd.f32 0.0, %v616
      %v618 = vpop.f32.mrb[0].mxu0
      %v619 = vpop.f32.mrb[0].mxu0
      %v620 = vpop.f32.mrb[0].mxu0
      %621 = vdwg.mxu0
      %v622 = vld [vmem:[%s8] sm:$0xf]
      %v623 = vld [vmem:[%s8 + $0x4] sm:$0xf]
      %v624 = vld [vmem:[%s8 + $0x8] sm:$0xf]
      %v625 = vld [vmem:[%s8 + $0xc] sm:$0xf]
      %v626 = vpack.c.bf16 %v617, %v617
      %v627 = vunpack.c.l.bf16 %v626
      %629 = vrot.lane.b32.xlu0 %v627, 96
      %v630 = vpop.permute.xlu0 %629
      %v632 = vmul.f32 %v627, %v630
      %vm633 = vcmask 57344
      %v634 = vsel %vm633, %v632, 0.0
      %635 = vadd.xlane.f32.xlu0 %v634
      %v636 = vpop.xlane.xlu0 %635
      %v637 = vld [vmem:[%s3] sm:$0x1]
      %v638 = vadd.f32 %v636, %v637
      %v639 = vsub.f32 %v638, %v638
      %v640 = vmul.f32 %v639, 1.442695
      %v641 = vpow.pop %v640
      %v642 = vadd.f32 %v641, 0.0
      %v643 = vrcp.pop %v642
      %v644 = vmul.f32 %v641, %v643
      %v645 = vpack.c.bf16 %v644, %v644
      %647 = vrot.lane.b32.xlu0 %v626, 64
      %v648 = vpop.permute.xlu0 %647
      %vm649 = vcmask 7168
      %v651 = vsel %vm649, %v645, 0
      %vm653 = vcmask 1040384
      %v654 = vsel 0, 4294967295, 65535
      %v655 = vsel %vm653, %v654, 0
      %v657 = vand.u32 %v648, %v655
      %659 = vmatprep.subr.bf16.mxu0 0
      %660 = vmatpush1.bf16.msra.mxu0 %v657
      %661 = vmatprep.subr.bf16.mxu0 0
      %662 = vmatpush1.bf16.msra.mxu0 0
      %663 = vmatprep.subr.bf16.mxu0 0
      %664 = vmatpush1.bf16.msra.mxu0 0
      %665 = vmatprep.subr.bf16.mxu0 0
      %666 = vmatpush1.bf16.msra.mxu0 0
      %667 = vmatprep.subr.bf16.mxu0 0
      %668 = vmatpush1.bf16.msra.mxu0 0
      %669 = vmatprep.subr.bf16.mxu0 0
      %670 = vmatpush1.bf16.msra.mxu0 0
      %671 = vmatprep.subr.bf16.mxu0 0
      %672 = vmatpush1.bf16.msra.mxu0 0
      %673 = vmatprep.subr.bf16.mxu0 0
      %674 = vmatpush1.bf16.msra.mxu0 0
      %675 = vmatprep.subr.bf16.mxu0 0
      %676 = vmatpush1.bf16.msra.mxu0 0
      %677 = vmatprep.subr.bf16.mxu0 0
      %678 = vmatpush1.bf16.msra.mxu0 0
      %679 = vmatprep.subr.bf16.mxu0 0
      %680 = vmatpush1.bf16.msra.mxu0 0
      %681 = vmatprep.subr.bf16.mxu0 0
      %682 = vmatpush1.bf16.msra.mxu0 0
      %683 = vmatprep.subr.bf16.mxu0 0
      %684 = vmatpush1.bf16.msra.mxu0 0
      %685 = vmatprep.subr.bf16.mxu0 0
      %686 = vmatpush1.bf16.msra.mxu0 0
      %687 = vmatprep.subr.bf16.mxu0 0
      %688 = vmatpush1.bf16.msra.mxu0 0
      %689 = vmatprep.subr.bf16.mxu0 0
      %690 = vmatpush1.bf16.msra.mxu0 0
      %691 = vmatprep.mubr.bf16.mxu0 0
      %692 = vmatmul.mubr.bf16.gmra.mrb[0].mxu0 %v651
      %v693 = vpop.f32.mrb[0].mxu0
      %v694 = vadd.f32 0.0, %v693
      %v695 = vpop.f32.mrb[0].mxu0
      %v696 = vpop.f32.mrb[0].mxu0
      %v697 = vpop.f32.mrb[0].mxu0
      %698 = vdwg.mxu0
      %v699 = vpack.c.bf16 %v694, %v694
      %701 = vrot.lane.b32.xlu0 %v632, 120
      %v702 = vpop.permute.xlu0 %701
      %v704 = vsel %vm633, %v702, 0.0
      %705 = vadd.xlane.f32.xlu0 %v704
      %v706 = vpop.xlane.xlu0 %705
      %s707 = scalar_lea.vmem %s3, 1
      %v708 = vld [vmem:[%s707] sm:$0x1]
      %v709 = vadd.f32 %v706, %v708
      %v710 = vsub.f32 %v709, %v709
      %v711 = vmul.f32 %v710, 1.442695
      %v712 = vpow.pop %v711
      %v713 = vadd.f32 %v712, 0.0
      %v714 = vrcp.pop %v713
      %v715 = vmul.f32 %v712, %v714
      %v716 = vpack.c.bf16 %v715, %v715
      %717 = vrot.lane.b32.xlu0 %v626, 56
      %v718 = vpop.permute.xlu0 %717
      %v720 = vsel %vm649, %v716, 0
      %v723 = vand.u32 %v718, %v655
      %725 = vmatprep.subr.bf16.mxu0 0
      %726 = vmatpush1.bf16.msra.mxu0 %v723
      %727 = vmatprep.subr.bf16.mxu0 0
      %728 = vmatpush1.bf16.msra.mxu0 0
      %729 = vmatprep.subr.bf16.mxu0 0
      %730 = vmatpush1.bf16.msra.mxu0 0
      %731 = vmatprep.subr.bf16.mxu0 0
      %732 = vmatpush1.bf16.msra.mxu0 0
      %733 = vmatprep.subr.bf16.mxu0 0
      %734 = vmatpush1.bf16.msra.mxu0 0
      %735 = vmatprep.subr.bf16.mxu0 0
      %736 = vmatpush1.bf16.msra.mxu0 0
      %737 = vmatprep.subr.bf16.mxu0 0
      %738 = vmatpush1.bf16.msra.mxu0 0
      %739 = vmatprep.subr.bf16.mxu0 0
      %740 = vmatpush1.bf16.msra.mxu0 0
      %741 = vmatprep.subr.bf16.mxu0 0
      %742 = vmatpush1.bf16.msra.mxu0 0
      %743 = vmatprep.subr.bf16.mxu0 0
      %744 = vmatpush1.bf16.msra.mxu0 0
      %745 = vmatprep.subr.bf16.mxu0 0
      %746 = vmatpush1.bf16.msra.mxu0 0
      %747 = vmatprep.subr.bf16.mxu0 0
      %748 = vmatpush1.bf16.msra.mxu0 0
      %749 = vmatprep.subr.bf16.mxu0 0
      %750 = vmatpush1.bf16.msra.mxu0 0
      %751 = vmatprep.subr.bf16.mxu0 0
      %752 = vmatpush1.bf16.msra.mxu0 0
      %753 = vmatprep.subr.bf16.mxu0 0
      %754 = vmatpush1.bf16.msra.mxu0 0
      %755 = vmatprep.subr.bf16.mxu0 0
      %756 = vmatpush1.bf16.msra.mxu0 0
      %757 = vmatprep.mubr.bf16.mxu0 0
      %758 = vmatmul.mubr.bf16.gmra.mrb[0].mxu0 %v720
      %v759 = vpop.f32.mrb[0].mxu0
      %v760 = vadd.f32 0.0, %v759
      %v761 = vpop.f32.mrb[0].mxu0
      %v762 = vpop.f32.mrb[0].mxu0
      %v763 = vpop.f32.mrb[0].mxu0
      %764 = vdwg.mxu0
      %v765 = vpack.c.bf16 %v760, %v760
      %vm766 = vcmask 64512
      %v768 = vsel %vm766, %v765, 0
      %vm770 = vcmask 1043456
      %v772 = vsel %vm770, %v623, 0
      %774 = vmatprep.subr.bf16.mxu0 0
      %775 = vmatpush1.bf16.msra.mxu0 %v772
      %776 = vmatprep.subr.bf16.mxu0 0
      %777 = vmatpush1.bf16.msra.mxu0 0
      %778 = vmatprep.subr.bf16.mxu0 0
      %779 = vmatpush1.bf16.msra.mxu0 0
      %780 = vmatprep.subr.bf16.mxu0 0
      %781 = vmatpush1.bf16.msra.mxu0 0
      %782 = vmatprep.subr.bf16.mxu0 0
      %783 = vmatpush1.bf16.msra.mxu0 0
      %784 = vmatprep.subr.bf16.mxu0 0
      %785 = vmatpush1.bf16.msra.mxu0 0
      %786 = vmatprep.subr.bf16.mxu0 0
      %787 = vmatpush1.bf16.msra.mxu0 0
      %788 = vmatprep.subr.bf16.mxu0 0
      %789 = vmatpush1.bf16.msra.mxu0 0
      %790 = vmatprep.subr.bf16.mxu0 0
      %791 = vmatpush1.bf16.msra.mxu0 0
      %792 = vmatprep.subr.bf16.mxu0 0
      %793 = vmatpush1.bf16.msra.mxu0 0
      %794 = vmatprep.subr.bf16.mxu0 0
      %795 = vmatpush1.bf16.msra.mxu0 0
      %796 = vmatprep.subr.bf16.mxu0 0
      %797 = vmatpush1.bf16.msra.mxu0 0
      %798 = vmatprep.subr.bf16.mxu0 0
      %799 = vmatpush1.bf16.msra.mxu0 0
      %800 = vmatprep.subr.bf16.mxu0 0
      %801 = vmatpush1.bf16.msra.mxu0 0
      %802 = vmatprep.subr.bf16.mxu0 0
      %803 = vmatpush1.bf16.msra.mxu0 0
      %804 = vmatprep.subr.bf16.mxu0 0
      %805 = vmatpush1.bf16.msra.mxu0 0
      %806 = vmatprep.mubr.bf16.mxu0 0
      %807 = vmatmul.mubr.bf16.gmra.mrb[0].mxu0 %v768
      %v808 = vpop.f32.mrb[0].mxu0
      %v809 = vadd.f32 0.0, %v808
      %v810 = vpop.f32.mrb[0].mxu0
      %v811 = vpop.f32.mrb[0].mxu0
      %v812 = vpop.f32.mrb[0].mxu0
      %813 = vdwg.mxu0
      %v815 = vsel %vm766, %v699, 0
      %v818 = vsel %vm770, %v622, 0
      %820 = vmatprep.subr.bf16.mxu0 0
      %821 = vmatpush1.bf16.msra.mxu0 %v818
      %822 = vmatprep.subr.bf16.mxu0 0
      %823 = vmatpush1.bf16.msra.mxu0 0
      %824 = vmatprep.subr.bf16.mxu0 0
      %825 = vmatpush1.bf16.msra.mxu0 0
      %826 = vmatprep.subr.bf16.mxu0 0
      %827 = vmatpush1.bf16.msra.mxu0 0
      %828 = vmatprep.subr.bf16.mxu0 0
      %829 = vmatpush1.bf16.msra.mxu0 0
      %830 = vmatprep.subr.bf16.mxu0 0
      %831 = vmatpush1.bf16.msra.mxu0 0
      %832 = vmatprep.subr.bf16.mxu0 0
      %833 = vmatpush1.bf16.msra.mxu0 0
      %834 = vmatprep.subr.bf16.mxu0 0
      %835 = vmatpush1.bf16.msra.mxu0 0
      %836 = vmatprep.subr.bf16.mxu0 0
      %837 = vmatpush1.bf16.msra.mxu0 0
      %838 = vmatprep.subr.bf16.mxu0 0
      %839 = vmatpush1.bf16.msra.mxu0 0
      %840 = vmatprep.subr.bf16.mxu0 0
      %841 = vmatpush1.bf16.msra.mxu0 0
      %842 = vmatprep.subr.bf16.mxu0 0
      %843 = vmatpush1.bf16.msra.mxu0 0
      %844 = vmatprep.subr.bf16.mxu0 0
      %845 = vmatpush1.bf16.msra.mxu0 0
      %846 = vmatprep.subr.bf16.mxu0 0
      %847 = vmatpush1.bf16.msra.mxu0 0
      %848 = vmatprep.subr.bf16.mxu0 0
      %849 = vmatpush1.bf16.msra.mxu0 0
      %850 = vmatprep.subr.bf16.mxu0 0
      %851 = vmatpush1.bf16.msra.mxu0 0
      %852 = vmatprep.mubr.bf16.mxu0 0
      %853 = vmatmul.mubr.bf16.gmra.mrb[0].mxu0 %v815
      %v854 = vpop.f32.mrb[0].mxu0
      %v855 = vadd.f32 %v809, %v854
      %v856 = vpop.f32.mrb[0].mxu0
      %v857 = vpop.f32.mrb[0].mxu0
      %v858 = vpop.f32.mrb[0].mxu0
      %859 = vdwg.mxu0
      %860 = vrot.lane.b32.xlu0 %v632, 112
      %v861 = vpop.permute.xlu0 %860
      %v863 = vsel %vm633, %v861, 0.0
      %864 = vadd.xlane.f32.xlu0 %v863
      %v865 = vpop.xlane.xlu0 %864
      %s866 = scalar_lea.vmem %s3, 2
      %v867 = vld [vmem:[%s866] sm:$0x1]
      %v868 = vadd.f32 %v865, %v867
      %v869 = vsub.f32 %v868, %v868
      %v870 = vmul.f32 %v869, 1.442695
      %v871 = vpow.pop %v870
      %v872 = vadd.f32 %v871, 0.0
      %v873 = vrcp.pop %v872
      %v874 = vmul.f32 %v871, %v873
      %v875 = vpack.c.bf16 %v874, %v874
      %876 = vrot.lane.b32.xlu0 %v626, 48
      %v877 = vpop.permute.xlu0 %876
      %v879 = vsel %vm649, %v875, 0
      %v882 = vand.u32 %v877, %v655
      %884 = vmatprep.subr.bf16.mxu0 0
      %885 = vmatpush1.bf16.msra.mxu0 %v882
      %886 = vmatprep.subr.bf16.mxu0 0
      %887 = vmatpush1.bf16.msra.mxu0 0
      %888 = vmatprep.subr.bf16.mxu0 0
      %889 = vmatpush1.bf16.msra.mxu0 0
      %890 = vmatprep.subr.bf16.mxu0 0
      %891 = vmatpush1.bf16.msra.mxu0 0
      %892 = vmatprep.subr.bf16.mxu0 0
      %893 = vmatpush1.bf16.msra.mxu0 0
      %894 = vmatprep.subr.bf16.mxu0 0
      %895 = vmatpush1.bf16.msra.mxu0 0
      %896 = vmatprep.subr.bf16.mxu0 0
      %897 = vmatpush1.bf16.msra.mxu0 0
      %898 = vmatprep.subr.bf16.mxu0 0
      %899 = vmatpush1.bf16.msra.mxu0 0
      %900 = vmatprep.subr.bf16.mxu0 0
      %901 = vmatpush1.bf16.msra.mxu0 0
      %902 = vmatprep.subr.bf16.mxu0 0
      %903 = vmatpush1.bf16.msra.mxu0 0
      %904 = vmatprep.subr.bf16.mxu0 0
      %905 = vmatpush1.bf16.msra.mxu0 0
      %906 = vmatprep.subr.bf16.mxu0 0
      %907 = vmatpush1.bf16.msra.mxu0 0
      %908 = vmatprep.subr.bf16.mxu0 0
      %909 = vmatpush1.bf16.msra.mxu0 0
      %910 = vmatprep.subr.bf16.mxu0 0
      %911 = vmatpush1.bf16.msra.mxu0 0
      %912 = vmatprep.subr.bf16.mxu0 0
      %913 = vmatpush1.bf16.msra.mxu0 0
      %914 = vmatprep.subr.bf16.mxu0 0
      %915 = vmatpush1.bf16.msra.mxu0 0
      %916 = vmatprep.mubr.bf16.mxu0 0
      %917 = vmatmul.mubr.bf16.gmra.mrb[0].mxu0 %v879
      %v918 = vpop.f32.mrb[0].mxu0
      %v919 = vadd.f32 0.0, %v918
      %v920 = vpop.f32.mrb[0].mxu0
      %v921 = vpop.f32.mrb[0].mxu0
      %v922 = vpop.f32.mrb[0].mxu0
      %923 = vdwg.mxu0
      %v924 = vpack.c.bf16 %v919, %v919
      %v926 = vsel %vm766, %v924, 0
      %v929 = vsel %vm770, %v624, 0
      %931 = vmatprep.subr.bf16.mxu0 0
      %932 = vmatpush1.bf16.msra.mxu0 %v929
      %933 = vmatprep.subr.bf16.mxu0 0
      %934 = vmatpush1.bf16.msra.mxu0 0
      %935 = vmatprep.subr.bf16.mxu0 0
      %936 = vmatpush1.bf16.msra.mxu0 0
      %937 = vmatprep.subr.bf16.mxu0 0
      %938 = vmatpush1.bf16.msra.mxu0 0
      %939 = vmatprep.subr.bf16.mxu0 0
      %940 = vmatpush1.bf16.msra.mxu0 0
      %941 = vmatprep.subr.bf16.mxu0 0
      %942 = vmatpush1.bf16.msra.mxu0 0
      %943 = vmatprep.subr.bf16.mxu0 0
      %944 = vmatpush1.bf16.msra.mxu0 0
      %945 = vmatprep.subr.bf16.mxu0 0
      %946 = vmatpush1.bf16.msra.mxu0 0
      %947 = vmatprep.subr.bf16.mxu0 0
      %948 = vmatpush1.bf16.msra.mxu0 0
      %949 = vmatprep.subr.bf16.mxu0 0
      %950 = vmatpush1.bf16.msra.mxu0 0
      %951 = vmatprep.subr.bf16.mxu0 0
      %952 = vmatpush1.bf16.msra.mxu0 0
      %953 = vmatprep.subr.bf16.mxu0 0
      %954 = vmatpush1.bf16.msra.mxu0 0
      %955 = vmatprep.subr.bf16.mxu0 0
      %956 = vmatpush1.bf16.msra.mxu0 0
      %957 = vmatprep.subr.bf16.mxu0 0
      %958 = vmatpush1.bf16.msra.mxu0 0
      %959 = vmatprep.subr.bf16.mxu0 0
      %960 = vmatpush1.bf16.msra.mxu0 0
      %961 = vmatprep.subr.bf16.mxu0 0
      %962 = vmatpush1.bf16.msra.mxu0 0
      %963 = vmatprep.mubr.bf16.mxu0 0
      %964 = vmatmul.mubr.bf16.gmra.mrb[0].mxu0 %v926
      %v965 = vpop.f32.mrb[0].mxu0
      %v966 = vadd.f32 0.0, %v965
      %v967 = vpop.f32.mrb[0].mxu0
      %v968 = vpop.f32.mrb[0].mxu0
      %v969 = vpop.f32.mrb[0].mxu0
      %970 = vdwg.mxu0
      %v971 = vadd.f32 %v855, %v966
      %972 = vrot.lane.b32.xlu0 %v632, 104
      %v973 = vpop.permute.xlu0 %972
      %v975 = vsel %vm633, %v973, 0.0
      %976 = vadd.xlane.f32.xlu0 %v975
      %v977 = vpop.xlane.xlu0 %976
      %s978 = scalar_lea.vmem %s3, 3
      %v979 = vld [vmem:[%s978] sm:$0x1]
      %v980 = vadd.f32 %v977, %v979
      %v981 = vsub.f32 %v980, %v980
      %v982 = vmul.f32 %v981, 1.442695
      %v983 = vpow.pop %v982
      %v984 = vadd.f32 %v983, 0.0
      %v985 = vrcp.pop %v984
      %v986 = vmul.f32 %v983, %v985
      %v987 = vpack.c.bf16 %v986, %v986
      %988 = vrot.lane.b32.xlu0 %v626, 40
      %v989 = vpop.permute.xlu0 %988
      %v991 = vsel %vm649, %v987, 0
      %v994 = vand.u32 %v989, %v655
      %996 = vmatprep.subr.bf16.mxu0 0
      %997 = vmatpush1.bf16.msra.mxu0 %v994
      %998 = vmatprep.subr.bf16.mxu0 0
      %999 = vmatpush1.bf16.msra.mxu0 0
      %1000 = vmatprep.subr.bf16.mxu0 0
      %1001 = vmatpush1.bf16.msra.mxu0 0
      %1002 = vmatprep.subr.bf16.mxu0 0
      %1003 = vmatpush1.bf16.msra.mxu0 0
      %1004 = vmatprep.subr.bf16.mxu0 0
      %1005 = vmatpush1.bf16.msra.mxu0 0
      %1006 = vmatprep.subr.bf16.mxu0 0
      %1007 = vmatpush1.bf16.msra.mxu0 0
      %1008 = vmatprep.subr.bf16.mxu0 0
      %1009 = vmatpush1.bf16.msra.mxu0 0
      %1010 = vmatprep.subr.bf16.mxu0 0
      %1011 = vmatpush1.bf16.msra.mxu0 0
      %1012 = vmatprep.subr.bf16.mxu0 0
      %1013 = vmatpush1.bf16.msra.mxu0 0
      %1014 = vmatprep.subr.bf16.mxu0 0
      %1015 = vmatpush1.bf16.msra.mxu0 0
      %1016 = vmatprep.subr.bf16.mxu0 0
      %1017 = vmatpush1.bf16.msra.mxu0 0
      %1018 = vmatprep.subr.bf16.mxu0 0
      %1019 = vmatpush1.bf16.msra.mxu0 0
      %1020 = vmatprep.subr.bf16.mxu0 0
      %1021 = vmatpush1.bf16.msra.mxu0 0
      %1022 = vmatprep.subr.bf16.mxu0 0
      %1023 = vmatpush1.bf16.msra.mxu0 0
      %1024 = vmatprep.subr.bf16.mxu0 0
      %1025 = vmatpush1.bf16.msra.mxu0 0
      %1026 = vmatprep.subr.bf16.mxu0 0
      %1027 = vmatpush1.bf16.msra.mxu0 0
      %1028 = vmatprep.mubr.bf16.mxu0 0
      %1029 = vmatmul.mubr.bf16.gmra.mrb[0].mxu0 %v991
      %v1030 = vpop.f32.mrb[0].mxu0
      %v1031 = vadd.f32 0.0, %v1030
      %v1032 = vpop.f32.mrb[0].mxu0
      %v1033 = vpop.f32.mrb[0].mxu0
      %v1034 = vpop.f32.mrb[0].mxu0
      %1035 = vdwg.mxu0
      %v1036 = vpack.c.bf16 %v1031, %v1031
      %v1038 = vsel %vm766, %v1036, 0
      %v1041 = vsel %vm770, %v625, 0
      %1043 = vmatprep.subr.bf16.mxu0 0
      %1044 = vmatpush1.bf16.msra.mxu0 %v1041
      %1045 = vmatprep.subr.bf16.mxu0 0
      %1046 = vmatpush1.bf16.msra.mxu0 0
      %1047 = vmatprep.subr.bf16.mxu0 0
      %1048 = vmatpush1.bf16.msra.mxu0 0
      %1049 = vmatprep.subr.bf16.mxu0 0
      %1050 = vmatpush1.bf16.msra.mxu0 0
      %1051 = vmatprep.subr.bf16.mxu0 0
      %1052 = vmatpush1.bf16.msra.mxu0 0
      %1053 = vmatprep.subr.bf16.mxu0 0
      %1054 = vmatpush1.bf16.msra.mxu0 0
      %1055 = vmatprep.subr.bf16.mxu0 0
      %1056 = vmatpush1.bf16.msra.mxu0 0
      %1057 = vmatprep.subr.bf16.mxu0 0
      %1058 = vmatpush1.bf16.msra.mxu0 0
      %1059 = vmatprep.subr.bf16.mxu0 0
      %1060 = vmatpush1.bf16.msra.mxu0 0
      %1061 = vmatprep.subr.bf16.mxu0 0
      %1062 = vmatpush1.bf16.msra.mxu0 0
      %1063 = vmatprep.subr.bf16.mxu0 0
      %1064 = vmatpush1.bf16.msra.mxu0 0
      %1065 = vmatprep.subr.bf16.mxu0 0
      %1066 = vmatpush1.bf16.msra.mxu0 0
      %1067 = vmatprep.subr.bf16.mxu0 0
      %1068 = vmatpush1.bf16.msra.mxu0 0
      %1069 = vmatprep.subr.bf16.mxu0 0
      %1070 = vmatpush1.bf16.msra.mxu0 0
      %1071 = vmatprep.subr.bf16.mxu0 0
      %1072 = vmatpush1.bf16.msra.mxu0 0
      %1073 = vmatprep.subr.bf16.mxu0 0
      %1074 = vmatpush1.bf16.msra.mxu0 0
      %1075 = vmatprep.mubr.bf16.mxu0 0
      %1076 = vmatmul.mubr.bf16.gmra.mrb[0].mxu0 %v1038
      %v1077 = vpop.f32.mrb[0].mxu0
      %v1078 = vadd.f32 0.0, %v1077
      %v1079 = vpop.f32.mrb[0].mxu0
      %v1080 = vpop.f32.mrb[0].mxu0
      %v1081 = vpop.f32.mrb[0].mxu0
      %1082 = vdwg.mxu0
      %v1083 = vadd.f32 %v971, %v1078
      %v1084 = vadd.f32 %v544, %v1083
      %v1085 = vld [vmem:[%s5] sm:$0x1]
      %v1086 = vmul.f32 %v1084, %v1084
      %v1087 = vsel %vm551, %v1086, 0.0
      %1088 = vadd.xlane.f32.xlu0 %v1087
      %v1089 = vpop.xlane.xlu0 %1088
      %v1090 = vmul.f32 %v1089, %v555
      %v1091 = vadd.f32 %v1090, 1e-06
      %v1092 = vrsqrt.pop %v1091
      %v1093 = vmul.f32 %v1084, %v1092
      %v1094 = vmul.f32 %v1093, %v1085
      %v1095 = vld [vmem:[%s9] sm:$0xf]
      %v1096 = vld [vmem:[%s9 + $0x4] sm:$0xf]
      %v1097 = vld [vmem:[%s9 + $0x8] sm:$0xf]
      %v1098 = vld [vmem:[%s9 + $0xc] sm:$0xf]
      %v1099 = vpack.c.bf16 %v1094, %v1094
      %v1104 = vunpack.c.l.b16 %v1095
      %v1105 = vunpack.c.l.b16 %v1096
      %v1106 = vunpack.c.l.b16 %v1097
      %v1107 = vunpack.c.l.b16 %v1098
      %v1108 = vpack.c.b16 %v1105, %v1104
      %v1109 = vpack.c.b16 %v1107, %v1106
      %v1113 = vsel %vm578, %v1099, 0
      %1115 = vmatprep.subr.bf16.mxu0 0
      %1116 = vmatpush1.bf16.msra.mxu0 %v1108
      %1117 = vmatprep.subr.bf16.mxu0 0
      %1118 = vmatpush1.bf16.msra.mxu0 %v1109
      %1119 = vmatprep.subr.bf16.mxu0 0
      %1120 = vmatpush1.bf16.msra.mxu0 0
      %1121 = vmatprep.subr.bf16.mxu0 0
      %1122 = vmatpush1.bf16.msra.mxu0 0
      %1123 = vmatprep.subr.bf16.mxu0 0
      %1124 = vmatpush1.bf16.msra.mxu0 0
      %1125 = vmatprep.subr.bf16.mxu0 0
      %1126 = vmatpush1.bf16.msra.mxu0 0
      %1127 = vmatprep.subr.bf16.mxu0 0
      %1128 = vmatpush1.bf16.msra.mxu0 0
      %1129 = vmatprep.subr.bf16.mxu0 0
      %1130 = vmatpush1.bf16.msra.mxu0 0
      %1131 = vmatprep.subr.bf16.mxu0 0
      %1132 = vmatpush1.bf16.msra.mxu0 0
      %1133 = vmatprep.subr.bf16.mxu0 0
      %1134 = vmatpush1.bf16.msra.mxu0 0
      %1135 = vmatprep.subr.bf16.mxu0 0
      %1136 = vmatpush1.bf16.msra.mxu0 0
      %1137 = vmatprep.subr.bf16.mxu0 0
      %1138 = vmatpush1.bf16.msra.mxu0 0
      %1139 = vmatprep.subr.bf16.mxu0 0
      %1140 = vmatpush1.bf16.msra.mxu0 0
      %1141 = vmatprep.subr.bf16.mxu0 0
      %1142 = vmatpush1.bf16.msra.mxu0 0
      %1143 = vmatprep.subr.bf16.mxu0 0
      %1144 = vmatpush1.bf16.msra.mxu0 0
      %1145 = vmatprep.subr.bf16.mxu0 0
      %1146 = vmatpush1.bf16.msra.mxu0 0
      %1147 = vmatprep.mubr.bf16.mxu0 0
      %1148 = vmatmul.mubr.bf16.gmra.mrb[0].mxu0 %v1113
      %v1149 = vpop.f32.mrb[0].mxu0
      %v1150 = vadd.f32 0.0, %v1149
      %v1151 = vpop.f32.mrb[0].mxu0
      %v1152 = vpop.f32.mrb[0].mxu0
      %v1153 = vpop.f32.mrb[0].mxu0
      %1154 = vdwg.mxu0
      %v1155 = vld [vmem:[%s10] sm:$0xf]
      %v1156 = vld [vmem:[%s10 + $0x4] sm:$0xf]
      %v1157 = vld [vmem:[%s10 + $0x8] sm:$0xf]
      %v1158 = vld [vmem:[%s10 + $0xc] sm:$0xf]
      %v1159 = vpack.c.bf16 %v545, %v545
      %v1164 = vunpack.c.l.b16 %v1155
      %v1165 = vunpack.c.l.b16 %v1156
      %v1166 = vunpack.c.l.b16 %v1157
      %v1167 = vunpack.c.l.b16 %v1158
      %v1168 = vpack.c.b16 %v1165, %v1164
      %v1169 = vpack.c.b16 %v1167, %v1166
      %v1173 = vsel %vm578, %v1159, 0
      %1175 = vmatprep.subr.bf16.mxu0 0
      %1176 = vmatpush1.bf16.msra.mxu0 %v1168
      %1177 = vmatprep.subr.bf16.mxu0 0
      %1178 = vmatpush1.bf16.msra.mxu0 %v1169
      %1179 = vmatprep.subr.bf16.mxu0 0
      %1180 = vmatpush1.bf16.msra.mxu0 0
      %1181 = vmatprep.subr.bf16.mxu0 0
      %1182 = vmatpush1.bf16.msra.mxu0 0
      %1183 = vmatprep.subr.bf16.mxu0 0
      %1184 = vmatpush1.bf16.msra.mxu0 0
      %1185 = vmatprep.subr.bf16.mxu0 0
      %1186 = vmatpush1.bf16.msra.mxu0 0
      %1187 = vmatprep.subr.bf16.mxu0 0
      %1188 = vmatpush1.bf16.msra.mxu0 0
      %1189 = vmatprep.subr.bf16.mxu0 0
      %1190 = vmatpush1.bf16.msra.mxu0 0
      %1191 = vmatprep.subr.bf16.mxu0 0
      %1192 = vmatpush1.bf16.msra.mxu0 0
      %1193 = vmatprep.subr.bf16.mxu0 0
      %1194 = vmatpush1.bf16.msra.mxu0 0
      %1195 = vmatprep.subr.bf16.mxu0 0
      %1196 = vmatpush1.bf16.msra.mxu0 0
      %1197 = vmatprep.subr.bf16.mxu0 0
      %1198 = vmatpush1.bf16.msra.mxu0 0
      %1199 = vmatprep.subr.bf16.mxu0 0
      %1200 = vmatpush1.bf16.msra.mxu0 0
      %1201 = vmatprep.subr.bf16.mxu0 0
      %1202 = vmatpush1.bf16.msra.mxu0 0
      %1203 = vmatprep.subr.bf16.mxu0 0
      %1204 = vmatpush1.bf16.msra.mxu0 0
      %1205 = vmatprep.subr.bf16.mxu0 0
      %1206 = vmatpush1.bf16.msra.mxu0 0
      %1207 = vmatprep.mubr.bf16.mxu0 0
      %1208 = vmatmul.mubr.bf16.gmra.mrb[0].mxu0 %v1173
      %v1209 = vpop.f32.mrb[0].mxu0
      %v1210 = vadd.f32 0.0, %v1209
      %v1211 = vpop.f32.mrb[0].mxu0
      %v1212 = vpop.f32.mrb[0].mxu0
      %v1213 = vpop.f32.mrb[0].mxu0
      %1214 = vdwg.mxu0
      %v1215 = vld [vmem:[%s11] sm:$0xf]
      %v1216 = vld [vmem:[%s11 + $0x4] sm:$0xf]
      %v1217 = vld [vmem:[%s11 + $0x8] sm:$0xf]
      %v1218 = vld [vmem:[%s11 + $0xc] sm:$0xf]
      %v1219 = vpack.c.bf16 %v1150, %v1150
      %v1220 = vpack.c.bf16 %v1210, %v1210
      %v1222 = vsel %vm766, %v1219, 0
      %v1225 = vsel %vm766, %v1220, 0
      %1227 = vmatprep.subr.bf16.mxu0 0
      %1228 = vmatpush1.bf16.xpose.msra.mxu0 %v1225
      %1229 = vmatprep.subr.bf16.mxu0 0
      %1230 = vmatpush1.bf16.xpose.msra.mxu0 0
      %1231 = vmatprep.subr.bf16.mxu0 0
      %1232 = vmatpush1.bf16.xpose.msra.mxu0 0
      %1233 = vmatprep.subr.bf16.mxu0 0
      %1234 = vmatpush1.bf16.xpose.msra.mxu0 0
      %1235 = vmatprep.subr.bf16.mxu0 0
      %1236 = vmatpush1.bf16.xpose.msra.mxu0 0
      %1237 = vmatprep.subr.bf16.mxu0 0
      %1238 = vmatpush1.bf16.xpose.msra.mxu0 0
      %1239 = vmatprep.subr.bf16.mxu0 0
      %1240 = vmatpush1.bf16.xpose.msra.mxu0 0
      %1241 = vmatprep.subr.bf16.mxu0 0
      %1242 = vmatpush1.bf16.xpose.msra.mxu0 0
      %1243 = vmatprep.subr.bf16.mxu0 0
      %1244 = vmatpush1.bf16.xpose.msra.mxu0 0
      %1245 = vmatprep.subr.bf16.mxu0 0
      %1246 = vmatpush1.bf16.xpose.msra.mxu0 0
      %1247 = vmatprep.subr.bf16.mxu0 0
      %1248 = vmatpush1.bf16.xpose.msra.mxu0 0
      %1249 = vmatprep.subr.bf16.mxu0 0
      %1250 = vmatpush1.bf16.xpose.msra.mxu0 0
      %1251 = vmatprep.subr.bf16.mxu0 0
      %1252 = vmatpush1.bf16.xpose.msra.mxu0 0
      %1253 = vmatprep.subr.bf16.mxu0 0
      %1254 = vmatpush1.bf16.xpose.msra.mxu0 0
      %1255 = vmatprep.subr.bf16.mxu0 0
      %1256 = vmatpush1.bf16.xpose.msra.mxu0 0
      %1257 = vmatprep.subr.bf16.mxu0 0
      %1258 = vmatpush1.bf16.xpose.msra.mxu0 0
      %1259 = vmatprep.mubr.bf16.mxu0 0
      %1260 = vmatmul.mubr.bf16.gmra.mrb[0].mxu0 %v1222
      %v1261 = vpop.f32.mrb[0].mxu0
      %v1262 = vadd.f32 %v548, %v1261
      %v1263 = vpop.f32.mrb[0].mxu0
      %v1264 = vpop.f32.mrb[0].mxu0
      %v1265 = vpop.f32.mrb[0].mxu0
      %1266 = vdwg.mxu0
      %v1267 = vsel %vm633, %v1262, -inf
      %1268 = vmax.xlane.f32.xlu0 %v1267
      %v1269 = vpop.xlane.xlu0 %1268
      %v1270 = vsub.f32 %v1262, %v1269
      %v1271 = vmul.f32 %v1270, 1.442695
      %v1272 = vpow.pop %v1271
      %v1273 = vsel %vm633, %v1272, 0.0
      %1274 = vadd.xlane.f32.xlu0 %v1273
      %v1275 = vpop.xlane.xlu0 %1274
      %v1276 = vrcp.pop %v1275
      %v1277 = vmul.f32 %v1272, %v1276
      %v1278 = vpack.c.bf16 %v1277, %v1277
      %1280 = vrot.lane.b32.xlu0 %v1220, 96
      %v1281 = vpop.permute.xlu0 %1280
      %v1283 = vsel %vm766, %v1278, 0
      %v1286 = vsel %vm770, %v1281, 0
      %1288 = vmatprep.subr.bf16.mxu0 0
      %1289 = vmatpush1.bf16.msra.mxu0 %v1286
      %1290 = vmatprep.subr.bf16.mxu0 0
      %1291 = vmatpush1.bf16.msra.mxu0 0
      %1292 = vmatprep.subr.bf16.mxu0 0
      %1293 = vmatpush1.bf16.msra.mxu0 0
      %1294 = vmatprep.subr.bf16.mxu0 0
      %1295 = vmatpush1.bf16.msra.mxu0 0
      %1296 = vmatprep.subr.bf16.mxu0 0
      %1297 = vmatpush1.bf16.msra.mxu0 0
      %1298 = vmatprep.subr.bf16.mxu0 0
      %1299 = vmatpush1.bf16.msra.mxu0 0
      %1300 = vmatprep.subr.bf16.mxu0 0
      %1301 = vmatpush1.bf16.msra.mxu0 0
      %1302 = vmatprep.subr.bf16.mxu0 0
      %1303 = vmatpush1.bf16.msra.mxu0 0
      %1304 = vmatprep.subr.bf16.mxu0 0
      %1305 = vmatpush1.bf16.msra.mxu0 0
      %1306 = vmatprep.subr.bf16.mxu0 0
      %1307 = vmatpush1.bf16.msra.mxu0 0
      %1308 = vmatprep.subr.bf16.mxu0 0
      %1309 = vmatpush1.bf16.msra.mxu0 0
      %1310 = vmatprep.subr.bf16.mxu0 0
      %1311 = vmatpush1.bf16.msra.mxu0 0
      %1312 = vmatprep.subr.bf16.mxu0 0
      %1313 = vmatpush1.bf16.msra.mxu0 0
      %1314 = vmatprep.subr.bf16.mxu0 0
      %1315 = vmatpush1.bf16.msra.mxu0 0
      %1316 = vmatprep.subr.bf16.mxu0 0
      %1317 = vmatpush1.bf16.msra.mxu0 0
      %1318 = vmatprep.subr.bf16.mxu0 0
      %1319 = vmatpush1.bf16.msra.mxu0 0
      %1320 = vmatprep.mubr.bf16.mxu0 0
      %1321 = vmatmul.mubr.bf16.gmra.mrb[0].mxu0 %v1283
      %v1322 = vpop.f32.mrb[0].mxu0
      %v1323 = vadd.f32 0.0, %v1322
      %v1324 = vpop.f32.mrb[0].mxu0
      %v1325 = vpop.f32.mrb[0].mxu0
      %v1326 = vpop.f32.mrb[0].mxu0
      %1327 = vdwg.mxu0
      %v1328 = vpack.c.bf16 %v1323, %v1323
      %1330 = vrot.lane.b32.xlu0 %v1219, 120
      %v1331 = vpop.permute.xlu0 %1330
      %1332 = vrot.lane.b32.xlu0 %v1220, 120
      %v1333 = vpop.permute.xlu0 %1332
      %v1335 = vsel %vm766, %v1331, 0
      %v1338 = vsel %vm766, %v1333, 0
      %1340 = vmatprep.subr.bf16.mxu0 0
      %1341 = vmatpush1.bf16.xpose.msra.mxu0 %v1338
      %1342 = vmatprep.subr.bf16.mxu0 0
      %1343 = vmatpush1.bf16.xpose.msra.mxu0 0
      %1344 = vmatprep.subr.bf16.mxu0 0
      %1345 = vmatpush1.bf16.xpose.msra.mxu0 0
      %1346 = vmatprep.subr.bf16.mxu0 0
      %1347 = vmatpush1.bf16.xpose.msra.mxu0 0
      %1348 = vmatprep.subr.bf16.mxu0 0
      %1349 = vmatpush1.bf16.xpose.msra.mxu0 0
      %1350 = vmatprep.subr.bf16.mxu0 0
      %1351 = vmatpush1.bf16.xpose.msra.mxu0 0
      %1352 = vmatprep.subr.bf16.mxu0 0
      %1353 = vmatpush1.bf16.xpose.msra.mxu0 0
      %1354 = vmatprep.subr.bf16.mxu0 0
      %1355 = vmatpush1.bf16.xpose.msra.mxu0 0
      %1356 = vmatprep.subr.bf16.mxu0 0
      %1357 = vmatpush1.bf16.xpose.msra.mxu0 0
      %1358 = vmatprep.subr.bf16.mxu0 0
      %1359 = vmatpush1.bf16.xpose.msra.mxu0 0
      %1360 = vmatprep.subr.bf16.mxu0 0
      %1361 = vmatpush1.bf16.xpose.msra.mxu0 0
      %1362 = vmatprep.subr.bf16.mxu0 0
      %1363 = vmatpush1.bf16.xpose.msra.mxu0 0
      %1364 = vmatprep.subr.bf16.mxu0 0
      %1365 = vmatpush1.bf16.xpose.msra.mxu0 0
      %1366 = vmatprep.subr.bf16.mxu0 0
      %1367 = vmatpush1.bf16.xpose.msra.mxu0 0
      %1368 = vmatprep.subr.bf16.mxu0 0
      %1369 = vmatpush1.bf16.xpose.msra.mxu0 0
      %1370 = vmatprep.subr.bf16.mxu0 0
      %1371 = vmatpush1.bf16.xpose.msra.mxu0 0
      %1372 = vmatprep.mubr.bf16.mxu0 0
      %1373 = vmatmul.mubr.bf16.gmra.mrb[0].mxu0 %v1335
      %v1374 = vpop.f32.mrb[0].mxu0
      %v1375 = vadd.f32 %v548, %v1374
      %v1376 = vpop.f32.mrb[0].mxu0
      %v1377 = vpop.f32.mrb[0].mxu0
      %v1378 = vpop.f32.mrb[0].mxu0
      %1379 = vdwg.mxu0
      %v1380 = vsel %vm633, %v1375, -inf
      %1381 = vmax.xlane.f32.xlu0 %v1380
      %v1382 = vpop.xlane.xlu0 %1381
      %v1383 = vsub.f32 %v1375, %v1382
      %v1384 = vmul.f32 %v1383, 1.442695
      %v1385 = vpow.pop %v1384
      %v1386 = vsel %vm633, %v1385, 0.0
      %1387 = vadd.xlane.f32.xlu0 %v1386
      %v1388 = vpop.xlane.xlu0 %1387
      %v1389 = vrcp.pop %v1388
      %v1390 = vmul.f32 %v1385, %v1389
      %v1391 = vpack.c.bf16 %v1390, %v1390
      %1392 = vrot.lane.b32.xlu0 %v1220, 88
      %v1393 = vpop.permute.xlu0 %1392
      %v1395 = vsel %vm766, %v1391, 0
      %v1398 = vsel %vm770, %v1393, 0
      %1400 = vmatprep.subr.bf16.mxu0 0
      %1401 = vmatpush1.bf16.msra.mxu0 %v1398
      %1402 = vmatprep.subr.bf16.mxu0 0
      %1403 = vmatpush1.bf16.msra.mxu0 0
      %1404 = vmatprep.subr.bf16.mxu0 0
      %1405 = vmatpush1.bf16.msra.mxu0 0
      %1406 = vmatprep.subr.bf16.mxu0 0
      %1407 = vmatpush1.bf16.msra.mxu0 0
      %1408 = vmatprep.subr.bf16.mxu0 0
      %1409 = vmatpush1.bf16.msra.mxu0 0
      %1410 = vmatprep.subr.bf16.mxu0 0
      %1411 = vmatpush1.bf16.msra.mxu0 0
      %1412 = vmatprep.subr.bf16.mxu0 0
      %1413 = vmatpush1.bf16.msra.mxu0 0
      %1414 = vmatprep.subr.bf16.mxu0 0
      %1415 = vmatpush1.bf16.msra.mxu0 0
      %1416 = vmatprep.subr.bf16.mxu0 0
      %1417 = vmatpush1.bf16.msra.mxu0 0
      %1418 = vmatprep.subr.bf16.mxu0 0
      %1419 = vmatpush1.bf16.msra.mxu0 0
      %1420 = vmatprep.subr.bf16.mxu0 0
      %1421 = vmatpush1.bf16.msra.mxu0 0
      %1422 = vmatprep.subr.bf16.mxu0 0
      %1423 = vmatpush1.bf16.msra.mxu0 0
      %1424 = vmatprep.subr.bf16.mxu0 0
      %1425 = vmatpush1.bf16.msra.mxu0 0
      %1426 = vmatprep.subr.bf16.mxu0 0
      %1427 = vmatpush1.bf16.msra.mxu0 0
      %1428 = vmatprep.subr.bf16.mxu0 0
      %1429 = vmatpush1.bf16.msra.mxu0 0
      %1430 = vmatprep.subr.bf16.mxu0 0
      %1431 = vmatpush1.bf16.msra.mxu0 0
      %1432 = vmatprep.mubr.bf16.mxu0 0
      %1433 = vmatmul.mubr.bf16.gmra.mrb[0].mxu0 %v1395
      %v1434 = vpop.f32.mrb[0].mxu0
      %v1435 = vadd.f32 0.0, %v1434
      %v1436 = vpop.f32.mrb[0].mxu0
      %v1437 = vpop.f32.mrb[0].mxu0
      %v1438 = vpop.f32.mrb[0].mxu0
      %1439 = vdwg.mxu0
      %v1440 = vpack.c.bf16 %v1435, %v1435
      %v1442 = vsel %vm766, %v1440, 0
      %v1445 = vsel %vm770, %v1216, 0
      %1447 = vmatprep.subr.bf16.mxu0 0
      %1448 = vmatpush1.bf16.msra.mxu0 %v1445
      %1449 = vmatprep.subr.bf16.mxu0 0
      %1450 = vmatpush1.bf16.msra.mxu0 0
      %1451 = vmatprep.subr.bf16.mxu0 0
      %1452 = vmatpush1.bf16.msra.mxu0 0
      %1453 = vmatprep.subr.bf16.mxu0 0
      %1454 = vmatpush1.bf16.msra.mxu0 0
      %1455 = vmatprep.subr.bf16.mxu0 0
      %1456 = vmatpush1.bf16.msra.mxu0 0
      %1457 = vmatprep.subr.bf16.mxu0 0
      %1458 = vmatpush1.bf16.msra.mxu0 0
      %1459 = vmatprep.subr.bf16.mxu0 0
      %1460 = vmatpush1.bf16.msra.mxu0 0
      %1461 = vmatprep.subr.bf16.mxu0 0
      %1462 = vmatpush1.bf16.msra.mxu0 0
      %1463 = vmatprep.subr.bf16.mxu0 0
      %1464 = vmatpush1.bf16.msra.mxu0 0
      %1465 = vmatprep.subr.bf16.mxu0 0
      %1466 = vmatpush1.bf16.msra.mxu0 0
      %1467 = vmatprep.subr.bf16.mxu0 0
      %1468 = vmatpush1.bf16.msra.mxu0 0
      %1469 = vmatprep.subr.bf16.mxu0 0
      %1470 = vmatpush1.bf16.msra.mxu0 0
      %1471 = vmatprep.subr.bf16.mxu0 0
      %1472 = vmatpush1.bf16.msra.mxu0 0
      %1473 = vmatprep.subr.bf16.mxu0 0
      %1474 = vmatpush1.bf16.msra.mxu0 0
      %1475 = vmatprep.subr.bf16.mxu0 0
      %1476 = vmatpush1.bf16.msra.mxu0 0
      %1477 = vmatprep.subr.bf16.mxu0 0
      %1478 = vmatpush1.bf16.msra.mxu0 0
      %1479 = vmatprep.mubr.bf16.mxu0 0
      %1480 = vmatmul.mubr.bf16.gmra.mrb[0].mxu0 %v1442
      %v1481 = vpop.f32.mrb[0].mxu0
      %v1482 = vadd.f32 0.0, %v1481
      %v1483 = vpop.f32.mrb[0].mxu0
      %v1484 = vpop.f32.mrb[0].mxu0
      %v1485 = vpop.f32.mrb[0].mxu0
      %1486 = vdwg.mxu0
      %v1488 = vsel %vm766, %v1328, 0
      %v1491 = vsel %vm770, %v1215, 0
      %1493 = vmatprep.subr.bf16.mxu0 0
      %1494 = vmatpush1.bf16.msra.mxu0 %v1491
      %1495 = vmatprep.subr.bf16.mxu0 0
      %1496 = vmatpush1.bf16.msra.mxu0 0
      %1497 = vmatprep.subr.bf16.mxu0 0
      %1498 = vmatpush1.bf16.msra.mxu0 0
      %1499 = vmatprep.subr.bf16.mxu0 0
      %1500 = vmatpush1.bf16.msra.mxu0 0
      %1501 = vmatprep.subr.bf16.mxu0 0
      %1502 = vmatpush1.bf16.msra.mxu0 0
      %1503 = vmatprep.subr.bf16.mxu0 0
      %1504 = vmatpush1.bf16.msra.mxu0 0
      %1505 = vmatprep.subr.bf16.mxu0 0
      %1506 = vmatpush1.bf16.msra.mxu0 0
      %1507 = vmatprep.subr.bf16.mxu0 0
      %1508 = vmatpush1.bf16.msra.mxu0 0
      %1509 = vmatprep.subr.bf16.mxu0 0
      %1510 = vmatpush1.bf16.msra.mxu0 0
      %1511 = vmatprep.subr.bf16.mxu0 0
      %1512 = vmatpush1.bf16.msra.mxu0 0
      %1513 = vmatprep.subr.bf16.mxu0 0
      %1514 = vmatpush1.bf16.msra.mxu0 0
      %1515 = vmatprep.subr.bf16.mxu0 0
      %1516 = vmatpush1.bf16.msra.mxu0 0
      %1517 = vmatprep.subr.bf16.mxu0 0
      %1518 = vmatpush1.bf16.msra.mxu0 0
      %1519 = vmatprep.subr.bf16.mxu0 0
      %1520 = vmatpush1.bf16.msra.mxu0 0
      %1521 = vmatprep.subr.bf16.mxu0 0
      %1522 = vmatpush1.bf16.msra.mxu0 0
      %1523 = vmatprep.subr.bf16.mxu0 0
      %1524 = vmatpush1.bf16.msra.mxu0 0
      %1525 = vmatprep.mubr.bf16.mxu0 0
      %1526 = vmatmul.mubr.bf16.gmra.mrb[0].mxu0 %v1488
      %v1527 = vpop.f32.mrb[0].mxu0
      %v1528 = vadd.f32 %v1482, %v1527
      %v1529 = vpop.f32.mrb[0].mxu0
      %v1530 = vpop.f32.mrb[0].mxu0
      %v1531 = vpop.f32.mrb[0].mxu0
      %1532 = vdwg.mxu0
      %1533 = vrot.lane.b32.xlu0 %v1219, 112
      %v1534 = vpop.permute.xlu0 %1533
      %1535 = vrot.lane.b32.xlu0 %v1220, 112
      %v1536 = vpop.permute.xlu0 %1535
      %v1538 = vsel %vm766, %v1534, 0
      %v1541 = vsel %vm766, %v1536, 0
      %1543 = vmatprep.subr.bf16.mxu0 0
      %1544 = vmatpush1.bf16.xpose.msra.mxu0 %v1541
      %1545 = vmatprep.subr.bf16.mxu0 0
      %1546 = vmatpush1.bf16.xpose.msra.mxu0 0
      %1547 = vmatprep.subr.bf16.mxu0 0
      %1548 = vmatpush1.bf16.xpose.msra.mxu0 0
      %1549 = vmatprep.subr.bf16.mxu0 0
      %1550 = vmatpush1.bf16.xpose.msra.mxu0 0
      %1551 = vmatprep.subr.bf16.mxu0 0
      %1552 = vmatpush1.bf16.xpose.msra.mxu0 0
      %1553 = vmatprep.subr.bf16.mxu0 0
      %1554 = vmatpush1.bf16.xpose.msra.mxu0 0
      %1555 = vmatprep.subr.bf16.mxu0 0
      %1556 = vmatpush1.bf16.xpose.msra.mxu0 0
      %1557 = vmatprep.subr.bf16.mxu0 0
      %1558 = vmatpush1.bf16.xpose.msra.mxu0 0
      %1559 = vmatprep.subr.bf16.mxu0 0
      %1560 = vmatpush1.bf16.xpose.msra.mxu0 0
      %1561 = vmatprep.subr.bf16.mxu0 0
      %1562 = vmatpush1.bf16.xpose.msra.mxu0 0
      %1563 = vmatprep.subr.bf16.mxu0 0
      %1564 = vmatpush1.bf16.xpose.msra.mxu0 0
      %1565 = vmatprep.subr.bf16.mxu0 0
      %1566 = vmatpush1.bf16.xpose.msra.mxu0 0
      %1567 = vmatprep.subr.bf16.mxu0 0
      %1568 = vmatpush1.bf16.xpose.msra.mxu0 0
      %1569 = vmatprep.subr.bf16.mxu0 0
      %1570 = vmatpush1.bf16.xpose.msra.mxu0 0
      %1571 = vmatprep.subr.bf16.mxu0 0
      %1572 = vmatpush1.bf16.xpose.msra.mxu0 0
      %1573 = vmatprep.subr.bf16.mxu0 0
      %1574 = vmatpush1.bf16.xpose.msra.mxu0 0
      %1575 = vmatprep.mubr.bf16.mxu0 0
      %1576 = vmatmul.mubr.bf16.gmra.mrb[0].mxu0 %v1538
      %v1577 = vpop.f32.mrb[0].mxu0
      %v1578 = vadd.f32 %v548, %v1577
      %v1579 = vpop.f32.mrb[0].mxu0
      %v1580 = vpop.f32.mrb[0].mxu0
      %v1581 = vpop.f32.mrb[0].mxu0
      %1582 = vdwg.mxu0
      %v1583 = vsel %vm633, %v1578, -inf
      %1584 = vmax.xlane.f32.xlu0 %v1583
      %v1585 = vpop.xlane.xlu0 %1584
      %v1586 = vsub.f32 %v1578, %v1585
      %v1587 = vmul.f32 %v1586, 1.442695
      %v1588 = vpow.pop %v1587
      %v1589 = vsel %vm633, %v1588, 0.0
      %1590 = vadd.xlane.f32.xlu0 %v1589
      %v1591 = vpop.xlane.xlu0 %1590
      %v1592 = vrcp.pop %v1591
      %v1593 = vmul.f32 %v1588, %v1592
      %v1594 = vpack.c.bf16 %v1593, %v1593
      %1595 = vrot.lane.b32.xlu0 %v1220, 80
      %v1596 = vpop.permute.xlu0 %1595
      %v1598 = vsel %vm766, %v1594, 0
      %v1601 = vsel %vm770, %v1596, 0
      %1603 = vmatprep.subr.bf16.mxu0 0
      %1604 = vmatpush1.bf16.msra.mxu0 %v1601
      %1605 = vmatprep.subr.bf16.mxu0 0
      %1606 = vmatpush1.bf16.msra.mxu0 0
      %1607 = vmatprep.subr.bf16.mxu0 0
      %1608 = vmatpush1.bf16.msra.mxu0 0
      %1609 = vmatprep.subr.bf16.mxu0 0
      %1610 = vmatpush1.bf16.msra.mxu0 0
      %1611 = vmatprep.subr.bf16.mxu0 0
      %1612 = vmatpush1.bf16.msra.mxu0 0
      %1613 = vmatprep.subr.bf16.mxu0 0
      %1614 = vmatpush1.bf16.msra.mxu0 0
      %1615 = vmatprep.subr.bf16.mxu0 0
      %1616 = vmatpush1.bf16.msra.mxu0 0
      %1617 = vmatprep.subr.bf16.mxu0 0
      %1618 = vmatpush1.bf16.msra.mxu0 0
      %1619 = vmatprep.subr.bf16.mxu0 0
      %1620 = vmatpush1.bf16.msra.mxu0 0
      %1621 = vmatprep.subr.bf16.mxu0 0
      %1622 = vmatpush1.bf16.msra.mxu0 0
      %1623 = vmatprep.subr.bf16.mxu0 0
      %1624 = vmatpush1.bf16.msra.mxu0 0
      %1625 = vmatprep.subr.bf16.mxu0 0
      %1626 = vmatpush1.bf16.msra.mxu0 0
      %1627 = vmatprep.subr.bf16.mxu0 0
      %1628 = vmatpush1.bf16.msra.mxu0 0
      %1629 = vmatprep.subr.bf16.mxu0 0
      %1630 = vmatpush1.bf16.msra.mxu0 0
      %1631 = vmatprep.subr.bf16.mxu0 0
      %1632 = vmatpush1.bf16.msra.mxu0 0
      %1633 = vmatprep.subr.bf16.mxu0 0
      %1634 = vmatpush1.bf16.msra.mxu0 0
      %1635 = vmatprep.mubr.bf16.mxu0 0
      %1636 = vmatmul.mubr.bf16.gmra.mrb[0].mxu0 %v1598
      %v1637 = vpop.f32.mrb[0].mxu0
      %v1638 = vadd.f32 0.0, %v1637
      %v1639 = vpop.f32.mrb[0].mxu0
      %v1640 = vpop.f32.mrb[0].mxu0
      %v1641 = vpop.f32.mrb[0].mxu0
      %1642 = vdwg.mxu0
      %v1643 = vpack.c.bf16 %v1638, %v1638
      %v1645 = vsel %vm766, %v1643, 0
      %v1648 = vsel %vm770, %v1217, 0
      %1650 = vmatprep.subr.bf16.mxu0 0
      %1651 = vmatpush1.bf16.msra.mxu0 %v1648
      %1652 = vmatprep.subr.bf16.mxu0 0
      %1653 = vmatpush1.bf16.msra.mxu0 0
      %1654 = vmatprep.subr.bf16.mxu0 0
      %1655 = vmatpush1.bf16.msra.mxu0 0
      %1656 = vmatprep.subr.bf16.mxu0 0
      %1657 = vmatpush1.bf16.msra.mxu0 0
      %1658 = vmatprep.subr.bf16.mxu0 0
      %1659 = vmatpush1.bf16.msra.mxu0 0
      %1660 = vmatprep.subr.bf16.mxu0 0
      %1661 = vmatpush1.bf16.msra.mxu0 0
      %1662 = vmatprep.subr.bf16.mxu0 0
      %1663 = vmatpush1.bf16.msra.mxu0 0
      %1664 = vmatprep.subr.bf16.mxu0 0
      %1665 = vmatpush1.bf16.msra.mxu0 0
      %1666 = vmatprep.subr.bf16.mxu0 0
      %1667 = vmatpush1.bf16.msra.mxu0 0
      %1668 = vmatprep.subr.bf16.mxu0 0
      %1669 = vmatpush1.bf16.msra.mxu0 0
      %1670 = vmatprep.subr.bf16.mxu0 0
      %1671 = vmatpush1.bf16.msra.mxu0 0
      %1672 = vmatprep.subr.bf16.mxu0 0
      %1673 = vmatpush1.bf16.msra.mxu0 0
      %1674 = vmatprep.subr.bf16.mxu0 0
      %1675 = vmatpush1.bf16.msra.mxu0 0
      %1676 = vmatprep.subr.bf16.mxu0 0
      %1677 = vmatpush1.bf16.msra.mxu0 0
      %1678 = vmatprep.subr.bf16.mxu0 0
      %1679 = vmatpush1.bf16.msra.mxu0 0
      %1680 = vmatprep.subr.bf16.mxu0 0
      %1681 = vmatpush1.bf16.msra.mxu0 0
      %1682 = vmatprep.mubr.bf16.mxu0 0
      %1683 = vmatmul.mubr.bf16.gmra.mrb[0].mxu0 %v1645
      %v1684 = vpop.f32.mrb[0].mxu0
      %v1685 = vadd.f32 0.0, %v1684
      %v1686 = vpop.f32.mrb[0].mxu0
      %v1687 = vpop.f32.mrb[0].mxu0
      %v1688 = vpop.f32.mrb[0].mxu0
      %1689 = vdwg.mxu0
      %v1690 = vadd.f32 %v1528, %v1685
      %1691 = vrot.lane.b32.xlu0 %v1219, 104
      %v1692 = vpop.permute.xlu0 %1691
      %1693 = vrot.lane.b32.xlu0 %v1220, 104
      %v1694 = vpop.permute.xlu0 %1693
      %v1696 = vsel %vm766, %v1692, 0
      %v1699 = vsel %vm766, %v1694, 0
      %1701 = vmatprep.subr.bf16.mxu0 0
      %1702 = vmatpush1.bf16.xpose.msra.mxu0 %v1699
      %1703 = vmatprep.subr.bf16.mxu0 0
      %1704 = vmatpush1.bf16.xpose.msra.mxu0 0
      %1705 = vmatprep.subr.bf16.mxu0 0
      %1706 = vmatpush1.bf16.xpose.msra.mxu0 0
      %1707 = vmatprep.subr.bf16.mxu0 0
      %1708 = vmatpush1.bf16.xpose.msra.mxu0 0
      %1709 = vmatprep.subr.bf16.mxu0 0
      %1710 = vmatpush1.bf16.xpose.msra.mxu0 0
      %1711 = vmatprep.subr.bf16.mxu0 0
      %1712 = vmatpush1.bf16.xpose.msra.mxu0 0
      %1713 = vmatprep.subr.bf16.mxu0 0
      %1714 = vmatpush1.bf16.xpose.msra.mxu0 0
      %1715 = vmatprep.subr.bf16.mxu0 0
      %1716 = vmatpush1.bf16.xpose.msra.mxu0 0
      %1717 = vmatprep.subr.bf16.mxu0 0
      %1718 = vmatpush1.bf16.xpose.msra.mxu0 0
      %1719 = vmatprep.subr.bf16.mxu0 0
      %1720 = vmatpush1.bf16.xpose.msra.mxu0 0
      %1721 = vmatprep.subr.bf16.mxu0 0
      %1722 = vmatpush1.bf16.xpose.msra.mxu0 0
      %1723 = vmatprep.subr.bf16.mxu0 0
      %1724 = vmatpush1.bf16.xpose.msra.mxu0 0
      %1725 = vmatprep.subr.bf16.mxu0 0
      %1726 = vmatpush1.bf16.xpose.msra.mxu0 0
      %1727 = vmatprep.subr.bf16.mxu0 0
      %1728 = vmatpush1.bf16.xpose.msra.mxu0 0
      %1729 = vmatprep.subr.bf16.mxu0 0
      %1730 = vmatpush1.bf16.xpose.msra.mxu0 0
      %1731 = vmatprep.subr.bf16.mxu0 0
      %1732 = vmatpush1.bf16.xpose.msra.mxu0 0
      %1733 = vmatprep.mubr.bf16.mxu0 0
      %1734 = vmatmul.mubr.bf16.gmra.mrb[0].mxu0 %v1696
      %v1735 = vpop.f32.mrb[0].mxu0
      %v1736 = vadd.f32 %v548, %v1735
      %v1737 = vpop.f32.mrb[0].mxu0
      %v1738 = vpop.f32.mrb[0].mxu0
      %v1739 = vpop.f32.mrb[0].mxu0
      %1740 = vdwg.mxu0
      %v1741 = vsel %vm633, %v1736, -inf
      %1742 = vmax.xlane.f32.xlu0 %v1741
      %v1743 = vpop.xlane.xlu0 %1742
      %v1744 = vsub.f32 %v1736, %v1743
      %v1745 = vmul.f32 %v1744, 1.442695
      %v1746 = vpow.pop %v1745
      %v1747 = vsel %vm633, %v1746, 0.0
      %1748 = vadd.xlane.f32.xlu0 %v1747
      %v1749 = vpop.xlane.xlu0 %1748
      %v1750 = vrcp.pop %v1749
      %v1751 = vmul.f32 %v1746, %v1750
      %v1752 = vpack.c.bf16 %v1751, %v1751
      %1753 = vrot.lane.b32.xlu0 %v1220, 72
      %v1754 = vpop.permute.xlu0 %1753
      %v1756 = vsel %vm766, %v1752, 0
      %v1759 = vsel %vm770, %v1754, 0
      %1761 = vmatprep.subr.bf16.mxu0 0
      %1762 = vmatpush1.bf16.msra.mxu0 %v1759
      %1763 = vmatprep.subr.bf16.mxu0 0
      %1764 = vmatpush1.bf16.msra.mxu0 0
      %1765 = vmatprep.subr.bf16.mxu0 0
      %1766 = vmatpush1.bf16.msra.mxu0 0
      %1767 = vmatprep.subr.bf16.mxu0 0
      %1768 = vmatpush1.bf16.msra.mxu0 0
      %1769 = vmatprep.subr.bf16.mxu0 0
      %1770 = vmatpush1.bf16.msra.mxu0 0
      %1771 = vmatprep.subr.bf16.mxu0 0
      %1772 = vmatpush1.bf16.msra.mxu0 0
      %1773 = vmatprep.subr.bf16.mxu0 0
      %1774 = vmatpush1.bf16.msra.mxu0 0
      %1775 = vmatprep.subr.bf16.mxu0 0
      %1776 = vmatpush1.bf16.msra.mxu0 0
      %1777 = vmatprep.subr.bf16.mxu0 0
      %1778 = vmatpush1.bf16.msra.mxu0 0
      %1779 = vmatprep.subr.bf16.mxu0 0
      %1780 = vmatpush1.bf16.msra.mxu0 0
      %1781 = vmatprep.subr.bf16.mxu0 0
      %1782 = vmatpush1.bf16.msra.mxu0 0
      %1783 = vmatprep.subr.bf16.mxu0 0
      %1784 = vmatpush1.bf16.msra.mxu0 0
      %1785 = vmatprep.subr.bf16.mxu0 0
      %1786 = vmatpush1.bf16.msra.mxu0 0
      %1787 = vmatprep.subr.bf16.mxu0 0
      %1788 = vmatpush1.bf16.msra.mxu0 0
      %1789 = vmatprep.subr.bf16.mxu0 0
      %1790 = vmatpush1.bf16.msra.mxu0 0
      %1791 = vmatprep.subr.bf16.mxu0 0
      %1792 = vmatpush1.bf16.msra.mxu0 0
      %1793 = vmatprep.mubr.bf16.mxu0 0
      %1794 = vmatmul.mubr.bf16.gmra.mrb[0].mxu0 %v1756
      %v1795 = vpop.f32.mrb[0].mxu0
      %v1796 = vadd.f32 0.0, %v1795
      %v1797 = vpop.f32.mrb[0].mxu0
      %v1798 = vpop.f32.mrb[0].mxu0
      %v1799 = vpop.f32.mrb[0].mxu0
      %1800 = vdwg.mxu0
      %v1801 = vpack.c.bf16 %v1796, %v1796
      %v1803 = vsel %vm766, %v1801, 0
      %v1806 = vsel %vm770, %v1218, 0
      %1808 = vmatprep.subr.bf16.mxu0 0
      %1809 = vmatpush1.bf16.msra.mxu0 %v1806
      %1810 = vmatprep.subr.bf16.mxu0 0
      %1811 = vmatpush1.bf16.msra.mxu0 0
      %1812 = vmatprep.subr.bf16.mxu0 0
      %1813 = vmatpush1.bf16.msra.mxu0 0
      %1814 = vmatprep.subr.bf16.mxu0 0
      %1815 = vmatpush1.bf16.msra.mxu0 0
      %1816 = vmatprep.subr.bf16.mxu0 0
      %1817 = vmatpush1.bf16.msra.mxu0 0
      %1818 = vmatprep.subr.bf16.mxu0 0
      %1819 = vmatpush1.bf16.msra.mxu0 0
      %1820 = vmatprep.subr.bf16.mxu0 0
      %1821 = vmatpush1.bf16.msra.mxu0 0
      %1822 = vmatprep.subr.bf16.mxu0 0
      %1823 = vmatpush1.bf16.msra.mxu0 0
      %1824 = vmatprep.subr.bf16.mxu0 0
      %1825 = vmatpush1.bf16.msra.mxu0 0
      %1826 = vmatprep.subr.bf16.mxu0 0
      %1827 = vmatpush1.bf16.msra.mxu0 0
      %1828 = vmatprep.subr.bf16.mxu0 0
      %1829 = vmatpush1.bf16.msra.mxu0 0
      %1830 = vmatprep.subr.bf16.mxu0 0
      %1831 = vmatpush1.bf16.msra.mxu0 0
      %1832 = vmatprep.subr.bf16.mxu0 0
      %1833 = vmatpush1.bf16.msra.mxu0 0
      %1834 = vmatprep.subr.bf16.mxu0 0
      %1835 = vmatpush1.bf16.msra.mxu0 0
      %1836 = vmatprep.subr.bf16.mxu0 0
      %1837 = vmatpush1.bf16.msra.mxu0 0
      %1838 = vmatprep.subr.bf16.mxu0 0
      %1839 = vmatpush1.bf16.msra.mxu0 0
      %1840 = vmatprep.mubr.bf16.mxu0 0
      %1841 = vmatmul.mubr.bf16.gmra.mrb[0].mxu0 %v1803
      %v1842 = vpop.f32.mrb[0].mxu0
      %v1843 = vadd.f32 0.0, %v1842
      %v1844 = vpop.f32.mrb[0].mxu0
      %v1845 = vpop.f32.mrb[0].mxu0
      %v1846 = vpop.f32.mrb[0].mxu0
      %1847 = vdwg.mxu0
      %v1848 = vadd.f32 %v1690, %v1843
      %v1849 = vadd.f32 %v1084, %v1848
      %v1850 = vld [vmem:[%s6] sm:$0x1]
      %v1851 = vmul.f32 %v1849, %v1849
      %v1852 = vsel %vm551, %v1851, 0.0
      %1853 = vadd.xlane.f32.xlu0 %v1852
      %v1854 = vpop.xlane.xlu0 %1853
      %v1855 = vmul.f32 %v1854, %v555
      %v1856 = vadd.f32 %v1855, 1e-06
      %v1857 = vrsqrt.pop %v1856
      %v1858 = vmul.f32 %v1849, %v1857
      %v1859 = vmul.f32 %v1858, %v1850
      %v1860 = vld [vmem:[%s12] sm:$0xf]
      %v1861 = vld [vmem:[%s12 + $0x4] sm:$0xf]
      %v1862 = vld [vmem:[%s12 + $0x8] sm:$0xf]
      %v1863 = vld [vmem:[%s12 + $0xc] sm:$0xf]
      %v1864 = vpack.c.bf16 %v1859, %v1859
      %v1869 = vunpack.c.l.b16 %v1860
      %v1870 = vunpack.c.l.b16 %v1861
      %v1871 = vunpack.c.l.b16 %v1862
      %v1872 = vunpack.c.l.b16 %v1863
      %v1873 = vpack.c.b16 %v1870, %v1869
      %v1874 = vpack.c.b16 %v1872, %v1871
      %v1878 = vsel %vm578, %v1864, 0
      %1880 = vmatprep.subr.bf16.mxu0 0
      %1881 = vmatpush1.bf16.msra.mxu0 %v1873
      %1882 = vmatprep.subr.bf16.mxu0 0
      %1883 = vmatpush1.bf16.msra.mxu0 %v1874
      %1884 = vmatprep.subr.bf16.mxu0 0
      %1885 = vmatpush1.bf16.msra.mxu0 0
      %1886 = vmatprep.subr.bf16.mxu0 0
      %1887 = vmatpush1.bf16.msra.mxu0 0
      %1888 = vmatprep.subr.bf16.mxu0 0
      %1889 = vmatpush1.bf16.msra.mxu0 0
      %1890 = vmatprep.subr.bf16.mxu0 0
      %1891 = vmatpush1.bf16.msra.mxu0 0
      %1892 = vmatprep.subr.bf16.mxu0 0
      %1893 = vmatpush1.bf16.msra.mxu0 0
      %1894 = vmatprep.subr.bf16.mxu0 0
      %1895 = vmatpush1.bf16.msra.mxu0 0
      %1896 = vmatprep.subr.bf16.mxu0 0
      %1897 = vmatpush1.bf16.msra.mxu0 0
      %1898 = vmatprep.subr.bf16.mxu0 0
      %1899 = vmatpush1.bf16.msra.mxu0 0
      %1900 = vmatprep.subr.bf16.mxu0 0
      %1901 = vmatpush1.bf16.msra.mxu0 0
      %1902 = vmatprep.subr.bf16.mxu0 0
      %1903 = vmatpush1.bf16.msra.mxu0 0
      %1904 = vmatprep.subr.bf16.mxu0 0
      %1905 = vmatpush1.bf16.msra.mxu0 0
      %1906 = vmatprep.subr.bf16.mxu0 0
      %1907 = vmatpush1.bf16.msra.mxu0 0
      %1908 = vmatprep.subr.bf16.mxu0 0
      %1909 = vmatpush1.bf16.msra.mxu0 0
      %1910 = vmatprep.subr.bf16.mxu0 0
      %1911 = vmatpush1.bf16.msra.mxu0 0
      %1912 = vmatprep.mubr.bf16.mxu0 0
      %1913 = vmatmul.mubr.bf16.gmra.mrb[0].mxu0 %v1878
      %v1914 = vpop.f32.mrb[0].mxu0
      %v1915 = vadd.f32 0.0, %v1914
      %v1916 = vpop.f32.mrb[0].mxu0
      %v1917 = vpop.f32.mrb[0].mxu0
      %v1918 = vpop.f32.mrb[0].mxu0
      %1919 = vdwg.mxu0
      %v1920 = vmax.f32 %v1915, 0.0
      %v1921 = vld [vmem:[%s13] sm:$0xf]
      %v1922 = vld [vmem:[%s13 + $0x4] sm:$0xf]
      %v1923 = vld [vmem:[%s13 + $0x8] sm:$0xf]
      %v1924 = vld [vmem:[%s13 + $0xc] sm:$0xf]
      %v1925 = vld [vmem:[%s13 + $0x10] sm:$0xf]
      %v1926 = vld [vmem:[%s13 + $0x14] sm:$0xf]
      %v1927 = vld [vmem:[%s13 + $0x18] sm:$0xf]
      %v1928 = vld [vmem:[%s13 + $0x1c] sm:$0xf]
      %v1929 = vpack.c.bf16 %v1920, %v1920
      %v1938 = vunpack.c.l.b16 %v1921
      %v1939 = vunpack.c.l.b16 %v1922
      %v1940 = vunpack.c.l.b16 %v1923
      %v1941 = vunpack.c.l.b16 %v1924
      %v1942 = vunpack.c.l.b16 %v1925
      %v1943 = vunpack.c.l.b16 %v1926
      %v1944 = vunpack.c.l.b16 %v1927
      %v1945 = vunpack.c.l.b16 %v1928
      %v1946 = vpack.c.b16 %v1939, %v1938
      %v1947 = vpack.c.b16 %v1941, %v1940
      %v1948 = vpack.c.b16 %v1943, %v1942
      %v1949 = vpack.c.b16 %v1945, %v1944
      %vm1954 = vcmask 523264
      %v1956 = vsel %vm1954, %v1929, 0
      %1958 = vmatprep.subr.bf16.mxu0 0
      %1959 = vmatpush1.bf16.msra.mxu0 %v1946
      %1960 = vmatprep.subr.bf16.mxu0 0
      %1961 = vmatpush1.bf16.msra.mxu0 %v1947
      %1962 = vmatprep.subr.bf16.mxu0 0
      %1963 = vmatpush1.bf16.msra.mxu0 %v1948
      %1964 = vmatprep.subr.bf16.mxu0 0
      %1965 = vmatpush1.bf16.msra.mxu0 %v1949
      %1966 = vmatprep.subr.bf16.mxu0 0
      %1967 = vmatpush1.bf16.msra.mxu0 0
      %1968 = vmatprep.subr.bf16.mxu0 0
      %1969 = vmatpush1.bf16.msra.mxu0 0
      %1970 = vmatprep.subr.bf16.mxu0 0
      %1971 = vmatpush1.bf16.msra.mxu0 0
      %1972 = vmatprep.subr.bf16.mxu0 0
      %1973 = vmatpush1.bf16.msra.mxu0 0
      %1974 = vmatprep.subr.bf16.mxu0 0
      %1975 = vmatpush1.bf16.msra.mxu0 0
      %1976 = vmatprep.subr.bf16.mxu0 0
      %1977 = vmatpush1.bf16.msra.mxu0 0
      %1978 = vmatprep.subr.bf16.mxu0 0
      %1979 = vmatpush1.bf16.msra.mxu0 0
      %1980 = vmatprep.subr.bf16.mxu0 0
      %1981 = vmatpush1.bf16.msra.mxu0 0
      %1982 = vmatprep.subr.bf16.mxu0 0
      %1983 = vmatpush1.bf16.msra.mxu0 0
      %1984 = vmatprep.subr.bf16.mxu0 0
      %1985 = vmatpush1.bf16.msra.mxu0 0
      %1986 = vmatprep.subr.bf16.mxu0 0
      %1987 = vmatpush1.bf16.msra.mxu0 0
      %1988 = vmatprep.subr.bf16.mxu0 0
      %1989 = vmatpush1.bf16.msra.mxu0 0
      %1990 = vmatprep.mubr.bf16.mxu0 0
      %1991 = vmatmul.mubr.bf16.gmra.mrb[0].mxu0 %v1956
      %v1992 = vpop.f32.mrb[0].mxu0
      %v1993 = vadd.f32 0.0, %v1992
      %v1994 = vpop.f32.mrb[0].mxu0
      %v1995 = vpop.f32.mrb[0].mxu0
      %v1996 = vpop.f32.mrb[0].mxu0
      %1997 = vdwg.mxu0
      %v1998 = vadd.f32 %v1849, %v1993
      %s1999 = scalar_lea.vmem %s4, 1
      %v2000 = vld [vmem:[%s1999] sm:$0x1]
      %v2001 = vmul.f32 %v1998, %v1998
      %v2002 = vsel %vm551, %v2001, 0.0
      %2003 = vadd.xlane.f32.xlu0 %v2002
      %v2004 = vpop.xlane.xlu0 %2003
      %v2005 = vmul.f32 %v2004, %v555
      %v2006 = vadd.f32 %v2005, 1e-06
      %v2007 = vrsqrt.pop %v2006
      %v2008 = vmul.f32 %v1998, %v2007
      %v2009 = vmul.f32 %v2008, %v2000
      %s2010 = scalar_lea.vmem %s7, 16
      %v2011 = vld [vmem:[%s2010] sm:$0xf]
      %v2012 = vld [vmem:[%s2010 + $0x4] sm:$0xf]
      %v2013 = vld [vmem:[%s2010 + $0x8] sm:$0xf]
      %v2014 = vld [vmem:[%s2010 + $0xc] sm:$0xf]
      %v2015 = vpack.c.bf16 %v2009, %v2009
      %v2020 = vunpack.c.l.b16 %v2011
      %v2021 = vunpack.c.l.b16 %v2012
      %v2022 = vunpack.c.l.b16 %v2013
      %v2023 = vunpack.c.l.b16 %v2014
      %v2024 = vpack.c.b16 %v2021, %v2020
      %v2025 = vpack.c.b16 %v2023, %v2022
      %v2029 = vsel %vm578, %v2015, 0
      %2031 = vmatprep.subr.bf16.mxu0 0
      %2032 = vmatpush1.bf16.msra.mxu0 %v2024
      %2033 = vmatprep.subr.bf16.mxu0 0
      %2034 = vmatpush1.bf16.msra.mxu0 %v2025
      %2035 = vmatprep.subr.bf16.mxu0 0
      %2036 = vmatpush1.bf16.msra.mxu0 0
      %2037 = vmatprep.subr.bf16.mxu0 0
      %2038 = vmatpush1.bf16.msra.mxu0 0
      %2039 = vmatprep.subr.bf16.mxu0 0
      %2040 = vmatpush1.bf16.msra.mxu0 0
      %2041 = vmatprep.subr.bf16.mxu0 0
      %2042 = vmatpush1.bf16.msra.mxu0 0
      %2043 = vmatprep.subr.bf16.mxu0 0
      %2044 = vmatpush1.bf16.msra.mxu0 0
      %2045 = vmatprep.subr.bf16.mxu0 0
      %2046 = vmatpush1.bf16.msra.mxu0 0
      %2047 = vmatprep.subr.bf16.mxu0 0
      %2048 = vmatpush1.bf16.msra.mxu0 0
      %2049 = vmatprep.subr.bf16.mxu0 0
      %2050 = vmatpush1.bf16.msra.mxu0 0
      %2051 = vmatprep.subr.bf16.mxu0 0
      %2052 = vmatpush1.bf16.msra.mxu0 0
      %2053 = vmatprep.subr.bf16.mxu0 0
      %2054 = vmatpush1.bf16.msra.mxu0 0
      %2055 = vmatprep.subr.bf16.mxu0 0
      %2056 = vmatpush1.bf16.msra.mxu0 0
      %2057 = vmatprep.subr.bf16.mxu0 0
      %2058 = vmatpush1.bf16.msra.mxu0 0
      %2059 = vmatprep.subr.bf16.mxu0 0
      %2060 = vmatpush1.bf16.msra.mxu0 0
      %2061 = vmatprep.subr.bf16.mxu0 0
      %2062 = vmatpush1.bf16.msra.mxu0 0
      %2063 = vmatprep.mubr.bf16.mxu0 0
      %2064 = vmatmul.mubr.bf16.gmra.mrb[0].mxu0 %v2029
      %v2065 = vpop.f32.mrb[0].mxu0
      %v2066 = vadd.f32 0.0, %v2065
      %v2067 = vpop.f32.mrb[0].mxu0
      %v2068 = vpop.f32.mrb[0].mxu0
      %v2069 = vpop.f32.mrb[0].mxu0
      %2070 = vdwg.mxu0
      %s2071 = scalar_lea.vmem %s8, 16
      %v2072 = vld [vmem:[%s2071] sm:$0xf]
      %v2073 = vld [vmem:[%s2071 + $0x4] sm:$0xf]
      %v2074 = vld [vmem:[%s2071 + $0x8] sm:$0xf]
      %v2075 = vld [vmem:[%s2071 + $0xc] sm:$0xf]
      %v2076 = vpack.c.bf16 %v2066, %v2066
      %v2077 = vunpack.c.l.bf16 %v2076
      %2079 = vrot.lane.b32.xlu0 %v2077, 96
      %v2080 = vpop.permute.xlu0 %2079
      %v2082 = vmul.f32 %v2077, %v2080
      %v2083 = vsel %vm633, %v2082, 0.0
      %2084 = vadd.xlane.f32.xlu0 %v2083
      %v2085 = vpop.xlane.xlu0 %2084
      %v2086 = vadd.f32 %v2085, %v637
      %v2087 = vsub.f32 %v2086, %v2086
      %v2088 = vmul.f32 %v2087, 1.442695
      %v2089 = vpow.pop %v2088
      %v2090 = vadd.f32 %v2089, 0.0
      %v2091 = vrcp.pop %v2090
      %v2092 = vmul.f32 %v2089, %v2091
      %v2093 = vpack.c.bf16 %v2092, %v2092
      %2095 = vrot.lane.b32.xlu0 %v2076, 64
      %v2096 = vpop.permute.xlu0 %2095
      %v2098 = vsel %vm649, %v2093, 0
      %v2101 = vand.u32 %v2096, %v655
      %2103 = vmatprep.subr.bf16.mxu0 0
      %2104 = vmatpush1.bf16.msra.mxu0 %v2101
      %2105 = vmatprep.subr.bf16.mxu0 0
      %2106 = vmatpush1.bf16.msra.mxu0 0
      %2107 = vmatprep.subr.bf16.mxu0 0
      %2108 = vmatpush1.bf16.msra.mxu0 0
      %2109 = vmatprep.subr.bf16.mxu0 0
      %2110 = vmatpush1.bf16.msra.mxu0 0
      %2111 = vmatprep.subr.bf16.mxu0 0
      %2112 = vmatpush1.bf16.msra.mxu0 0
      %2113 = vmatprep.subr.bf16.mxu0 0
      %2114 = vmatpush1.bf16.msra.mxu0 0
      %2115 = vmatprep.subr.bf16.mxu0 0
      %2116 = vmatpush1.bf16.msra.mxu0 0
      %2117 = vmatprep.subr.bf16.mxu0 0
      %2118 = vmatpush1.bf16.msra.mxu0 0
      %2119 = vmatprep.subr.bf16.mxu0 0
      %2120 = vmatpush1.bf16.msra.mxu0 0
      %2121 = vmatprep.subr.bf16.mxu0 0
      %2122 = vmatpush1.bf16.msra.mxu0 0
      %2123 = vmatprep.subr.bf16.mxu0 0
      %2124 = vmatpush1.bf16.msra.mxu0 0
      %2125 = vmatprep.subr.bf16.mxu0 0
      %2126 = vmatpush1.bf16.msra.mxu0 0
      %2127 = vmatprep.subr.bf16.mxu0 0
      %2128 = vmatpush1.bf16.msra.mxu0 0
      %2129 = vmatprep.subr.bf16.mxu0 0
      %2130 = vmatpush1.bf16.msra.mxu0 0
      %2131 = vmatprep.subr.bf16.mxu0 0
      %2132 = vmatpush1.bf16.msra.mxu0 0
      %2133 = vmatprep.subr.bf16.mxu0 0
      %2134 = vmatpush1.bf16.msra.mxu0 0
      %2135 = vmatprep.mubr.bf16.mxu0 0
      %2136 = vmatmul.mubr.bf16.gmra.mrb[0].mxu0 %v2098
      %v2137 = vpop.f32.mrb[0].mxu0
      %v2138 = vadd.f32 0.0, %v2137
      %v2139 = vpop.f32.mrb[0].mxu0
      %v2140 = vpop.f32.mrb[0].mxu0
      %v2141 = vpop.f32.mrb[0].mxu0
      %2142 = vdwg.mxu0
      %v2143 = vpack.c.bf16 %v2138, %v2138
      %2145 = vrot.lane.b32.xlu0 %v2082, 120
      %v2146 = vpop.permute.xlu0 %2145
      %v2148 = vsel %vm633, %v2146, 0.0
      %2149 = vadd.xlane.f32.xlu0 %v2148
      %v2150 = vpop.xlane.xlu0 %2149
      %v2151 = vadd.f32 %v2150, %v708
      %v2152 = vsub.f32 %v2151, %v2151
      %v2153 = vmul.f32 %v2152, 1.442695
      %v2154 = vpow.pop %v2153
      %v2155 = vadd.f32 %v2154, 0.0
      %v2156 = vrcp.pop %v2155
      %v2157 = vmul.f32 %v2154, %v2156
      %v2158 = vpack.c.bf16 %v2157, %v2157
      %2159 = vrot.lane.b32.xlu0 %v2076, 56
      %v2160 = vpop.permute.xlu0 %2159
      %v2162 = vsel %vm649, %v2158, 0
      %v2165 = vand.u32 %v2160, %v655
      %2167 = vmatprep.subr.bf16.mxu0 0
      %2168 = vmatpush1.bf16.msra.mxu0 %v2165
      %2169 = vmatprep.subr.bf16.mxu0 0
      %2170 = vmatpush1.bf16.msra.mxu0 0
      %2171 = vmatprep.subr.bf16.mxu0 0
      %2172 = vmatpush1.bf16.msra.mxu0 0
      %2173 = vmatprep.subr.bf16.mxu0 0
      %2174 = vmatpush1.bf16.msra.mxu0 0
      %2175 = vmatprep.subr.bf16.mxu0 0
      %2176 = vmatpush1.bf16.msra.mxu0 0
      %2177 = vmatprep.subr.bf16.mxu0 0
      %2178 = vmatpush1.bf16.msra.mxu0 0
      %2179 = vmatprep.subr.bf16.mxu0 0
      %2180 = vmatpush1.bf16.msra.mxu0 0
      %2181 = vmatprep.subr.bf16.mxu0 0
      %2182 = vmatpush1.bf16.msra.mxu0 0
      %2183 = vmatprep.subr.bf16.mxu0 0
      %2184 = vmatpush1.bf16.msra.mxu0 0
      %2185 = vmatprep.subr.bf16.mxu0 0
      %2186 = vmatpush1.bf16.msra.mxu0 0
      %2187 = vmatprep.subr.bf16.mxu0 0
      %2188 = vmatpush1.bf16.msra.mxu0 0
      %2189 = vmatprep.subr.bf16.mxu0 0
      %2190 = vmatpush1.bf16.msra.mxu0 0
      %2191 = vmatprep.subr.bf16.mxu0 0
      %2192 = vmatpush1.bf16.msra.mxu0 0
      %2193 = vmatprep.subr.bf16.mxu0 0
      %2194 = vmatpush1.bf16.msra.mxu0 0
      %2195 = vmatprep.subr.bf16.mxu0 0
      %2196 = vmatpush1.bf16.msra.mxu0 0
      %2197 = vmatprep.subr.bf16.mxu0 0
      %2198 = vmatpush1.bf16.msra.mxu0 0
      %2199 = vmatprep.mubr.bf16.mxu0 0
      %2200 = vmatmul.mubr.bf16.gmra.mrb[0].mxu0 %v2162
      %v2201 = vpop.f32.mrb[0].mxu0
      %v2202 = vadd.f32 0.0, %v2201
      %v2203 = vpop.f32.mrb[0].mxu0
      %v2204 = vpop.f32.mrb[0].mxu0
      %v2205 = vpop.f32.mrb[0].mxu0
      %2206 = vdwg.mxu0
      %v2207 = vpack.c.bf16 %v2202, %v2202
      %v2209 = vsel %vm766, %v2207, 0
      %v2212 = vsel %vm770, %v2073, 0
      %2214 = vmatprep.subr.bf16.mxu0 0
      %2215 = vmatpush1.bf16.msra.mxu0 %v2212
      %2216 = vmatprep.subr.bf16.mxu0 0
      %2217 = vmatpush1.bf16.msra.mxu0 0
      %2218 = vmatprep.subr.bf16.mxu0 0
      %2219 = vmatpush1.bf16.msra.mxu0 0
      %2220 = vmatprep.subr.bf16.mxu0 0
      %2221 = vmatpush1.bf16.msra.mxu0 0
      %2222 = vmatprep.subr.bf16.mxu0 0
      %2223 = vmatpush1.bf16.msra.mxu0 0
      %2224 = vmatprep.subr.bf16.mxu0 0
      %2225 = vmatpush1.bf16.msra.mxu0 0
      %2226 = vmatprep.subr.bf16.mxu0 0
      %2227 = vmatpush1.bf16.msra.mxu0 0
      %2228 = vmatprep.subr.bf16.mxu0 0
      %2229 = vmatpush1.bf16.msra.mxu0 0
      %2230 = vmatprep.subr.bf16.mxu0 0
      %2231 = vmatpush1.bf16.msra.mxu0 0
      %2232 = vmatprep.subr.bf16.mxu0 0
      %2233 = vmatpush1.bf16.msra.mxu0 0
      %2234 = vmatprep.subr.bf16.mxu0 0
      %2235 = vmatpush1.bf16.msra.mxu0 0
      %2236 = vmatprep.subr.bf16.mxu0 0
      %2237 = vmatpush1.bf16.msra.mxu0 0
      %2238 = vmatprep.subr.bf16.mxu0 0
      %2239 = vmatpush1.bf16.msra.mxu0 0
      %2240 = vmatprep.subr.bf16.mxu0 0
      %2241 = vmatpush1.bf16.msra.mxu0 0
      %2242 = vmatprep.subr.bf16.mxu0 0
      %2243 = vmatpush1.bf16.msra.mxu0 0
      %2244 = vmatprep.subr.bf16.mxu0 0
      %2245 = vmatpush1.bf16.msra.mxu0 0
      %2246 = vmatprep.mubr.bf16.mxu0 0
      %2247 = vmatmul.mubr.bf16.gmra.mrb[0].mxu0 %v2209
      %v2248 = vpop.f32.mrb[0].mxu0
      %v2249 = vadd.f32 0.0, %v2248
      %v2250 = vpop.f32.mrb[0].mxu0
      %v2251 = vpop.f32.mrb[0].mxu0
      %v2252 = vpop.f32.mrb[0].mxu0
      %2253 = vdwg.mxu0
      %v2255 = vsel %vm766, %v2143, 0
      %v2258 = vsel %vm770, %v2072, 0
      %2260 = vmatprep.subr.bf16.mxu0 0
      %2261 = vmatpush1.bf16.msra.mxu0 %v2258
      %2262 = vmatprep.subr.bf16.mxu0 0
      %2263 = vmatpush1.bf16.msra.mxu0 0
      %2264 = vmatprep.subr.bf16.mxu0 0
      %2265 = vmatpush1.bf16.msra.mxu0 0
      %2266 = vmatprep.subr.bf16.mxu0 0
      %2267 = vmatpush1.bf16.msra.mxu0 0
      %2268 = vmatprep.subr.bf16.mxu0 0
      %2269 = vmatpush1.bf16.msra.mxu0 0
      %2270 = vmatprep.subr.bf16.mxu0 0
      %2271 = vmatpush1.bf16.msra.mxu0 0
      %2272 = vmatprep.subr.bf16.mxu0 0
      %2273 = vmatpush1.bf16.msra.mxu0 0
      %2274 = vmatprep.subr.bf16.mxu0 0
      %2275 = vmatpush1.bf16.msra.mxu0 0
      %2276 = vmatprep.subr.bf16.mxu0 0
      %2277 = vmatpush1.bf16.msra.mxu0 0
      %2278 = vmatprep.subr.bf16.mxu0 0
      %2279 = vmatpush1.bf16.msra.mxu0 0
      %2280 = vmatprep.subr.bf16.mxu0 0
      %2281 = vmatpush1.bf16.msra.mxu0 0
      %2282 = vmatprep.subr.bf16.mxu0 0
      %2283 = vmatpush1.bf16.msra.mxu0 0
      %2284 = vmatprep.subr.bf16.mxu0 0
      %2285 = vmatpush1.bf16.msra.mxu0 0
      %2286 = vmatprep.subr.bf16.mxu0 0
      %2287 = vmatpush1.bf16.msra.mxu0 0
      %2288 = vmatprep.subr.bf16.mxu0 0
      %2289 = vmatpush1.bf16.msra.mxu0 0
      %2290 = vmatprep.subr.bf16.mxu0 0
      %2291 = vmatpush1.bf16.msra.mxu0 0
      %2292 = vmatprep.mubr.bf16.mxu0 0
      %2293 = vmatmul.mubr.bf16.gmra.mrb[0].mxu0 %v2255
      %v2294 = vpop.f32.mrb[0].mxu0
      %v2295 = vadd.f32 %v2249, %v2294
      %v2296 = vpop.f32.mrb[0].mxu0
      %v2297 = vpop.f32.mrb[0].mxu0
      %v2298 = vpop.f32.mrb[0].mxu0
      %2299 = vdwg.mxu0
      %2300 = vrot.lane.b32.xlu0 %v2082, 112
      %v2301 = vpop.permute.xlu0 %2300
      %v2303 = vsel %vm633, %v2301, 0.0
      %2304 = vadd.xlane.f32.xlu0 %v2303
      %v2305 = vpop.xlane.xlu0 %2304
      %v2306 = vadd.f32 %v2305, %v867
      %v2307 = vsub.f32 %v2306, %v2306
      %v2308 = vmul.f32 %v2307, 1.442695
      %v2309 = vpow.pop %v2308
      %v2310 = vadd.f32 %v2309, 0.0
      %v2311 = vrcp.pop %v2310
      %v2312 = vmul.f32 %v2309, %v2311
      %v2313 = vpack.c.bf16 %v2312, %v2312
      %2314 = vrot.lane.b32.xlu0 %v2076, 48
      %v2315 = vpop.permute.xlu0 %2314
      %v2317 = vsel %vm649, %v2313, 0
      %v2320 = vand.u32 %v2315, %v655
      %2322 = vmatprep.subr.bf16.mxu0 0
      %2323 = vmatpush1.bf16.msra.mxu0 %v2320
      %2324 = vmatprep.subr.bf16.mxu0 0
      %2325 = vmatpush1.bf16.msra.mxu0 0
      %2326 = vmatprep.subr.bf16.mxu0 0
      %2327 = vmatpush1.bf16.msra.mxu0 0
      %2328 = vmatprep.subr.bf16.mxu0 0
      %2329 = vmatpush1.bf16.msra.mxu0 0
      %2330 = vmatprep.subr.bf16.mxu0 0
      %2331 = vmatpush1.bf16.msra.mxu0 0
      %2332 = vmatprep.subr.bf16.mxu0 0
      %2333 = vmatpush1.bf16.msra.mxu0 0
      %2334 = vmatprep.subr.bf16.mxu0 0
      %2335 = vmatpush1.bf16.msra.mxu0 0
      %2336 = vmatprep.subr.bf16.mxu0 0
      %2337 = vmatpush1.bf16.msra.mxu0 0
      %2338 = vmatprep.subr.bf16.mxu0 0
      %2339 = vmatpush1.bf16.msra.mxu0 0
      %2340 = vmatprep.subr.bf16.mxu0 0
      %2341 = vmatpush1.bf16.msra.mxu0 0
      %2342 = vmatprep.subr.bf16.mxu0 0
      %2343 = vmatpush1.bf16.msra.mxu0 0
      %2344 = vmatprep.subr.bf16.mxu0 0
      %2345 = vmatpush1.bf16.msra.mxu0 0
      %2346 = vmatprep.subr.bf16.mxu0 0
      %2347 = vmatpush1.bf16.msra.mxu0 0
      %2348 = vmatprep.subr.bf16.mxu0 0
      %2349 = vmatpush1.bf16.msra.mxu0 0
      %2350 = vmatprep.subr.bf16.mxu0 0
      %2351 = vmatpush1.bf16.msra.mxu0 0
      %2352 = vmatprep.subr.bf16.mxu0 0
      %2353 = vmatpush1.bf16.msra.mxu0 0
      %2354 = vmatprep.mubr.bf16.mxu0 0
      %2355 = vmatmul.mubr.bf16.gmra.mrb[0].mxu0 %v2317
      %v2356 = vpop.f32.mrb[0].mxu0
      %v2357 = vadd.f32 0.0, %v2356
      %v2358 = vpop.f32.mrb[0].mxu0
      %v2359 = vpop.f32.mrb[0].mxu0
      %v2360 = vpop.f32.mrb[0].mxu0
      %2361 = vdwg.mxu0
      %v2362 = vpack.c.bf16 %v2357, %v2357
      %v2364 = vsel %vm766, %v2362, 0
      %v2367 = vsel %vm770, %v2074, 0
      %2369 = vmatprep.subr.bf16.mxu0 0
      %2370 = vmatpush1.bf16.msra.mxu0 %v2367
      %2371 = vmatprep.subr.bf16.mxu0 0
      %2372 = vmatpush1.bf16.msra.mxu0 0
      %2373 = vmatprep.subr.bf16.mxu0 0
      %2374 = vmatpush1.bf16.msra.mxu0 0
      %2375 = vmatprep.subr.bf16.mxu0 0
      %2376 = vmatpush1.bf16.msra.mxu0 0
      %2377 = vmatprep.subr.bf16.mxu0 0
      %2378 = vmatpush1.bf16.msra.mxu0 0
      %2379 = vmatprep.subr.bf16.mxu0 0
      %2380 = vmatpush1.bf16.msra.mxu0 0
      %2381 = vmatprep.subr.bf16.mxu0 0
      %2382 = vmatpush1.bf16.msra.mxu0 0
      %2383 = vmatprep.subr.bf16.mxu0 0
      %2384 = vmatpush1.bf16.msra.mxu0 0
      %2385 = vmatprep.subr.bf16.mxu0 0
      %2386 = vmatpush1.bf16.msra.mxu0 0
      %2387 = vmatprep.subr.bf16.mxu0 0
      %2388 = vmatpush1.bf16.msra.mxu0 0
      %2389 = vmatprep.subr.bf16.mxu0 0
      %2390 = vmatpush1.bf16.msra.mxu0 0
      %2391 = vmatprep.subr.bf16.mxu0 0
      %2392 = vmatpush1.bf16.msra.mxu0 0
      %2393 = vmatprep.subr.bf16.mxu0 0
      %2394 = vmatpush1.bf16.msra.mxu0 0
      %2395 = vmatprep.subr.bf16.mxu0 0
      %2396 = vmatpush1.bf16.msra.mxu0 0
      %2397 = vmatprep.subr.bf16.mxu0 0
      %2398 = vmatpush1.bf16.msra.mxu0 0
      %2399 = vmatprep.subr.bf16.mxu0 0
      %2400 = vmatpush1.bf16.msra.mxu0 0
      %2401 = vmatprep.mubr.bf16.mxu0 0
      %2402 = vmatmul.mubr.bf16.gmra.mrb[0].mxu0 %v2364
      %v2403 = vpop.f32.mrb[0].mxu0
      %v2404 = vadd.f32 0.0, %v2403
      %v2405 = vpop.f32.mrb[0].mxu0
      %v2406 = vpop.f32.mrb[0].mxu0
      %v2407 = vpop.f32.mrb[0].mxu0
      %2408 = vdwg.mxu0
      %v2409 = vadd.f32 %v2295, %v2404
      %2410 = vrot.lane.b32.xlu0 %v2082, 104
      %v2411 = vpop.permute.xlu0 %2410
      %v2413 = vsel %vm633, %v2411, 0.0
      %2414 = vadd.xlane.f32.xlu0 %v2413
      %v2415 = vpop.xlane.xlu0 %2414
      %v2416 = vadd.f32 %v2415, %v979
      %v2417 = vsub.f32 %v2416, %v2416
      %v2418 = vmul.f32 %v2417, 1.442695
      %v2419 = vpow.pop %v2418
      %v2420 = vadd.f32 %v2419, 0.0
      %v2421 = vrcp.pop %v2420
      %v2422 = vmul.f32 %v2419, %v2421
      %v2423 = vpack.c.bf16 %v2422, %v2422
      %2424 = vrot.lane.b32.xlu0 %v2076, 40
      %v2425 = vpop.permute.xlu0 %2424
      %v2427 = vsel %vm649, %v2423, 0
      %v2430 = vand.u32 %v2425, %v655
      %2432 = vmatprep.subr.bf16.mxu0 0
      %2433 = vmatpush1.bf16.msra.mxu0 %v2430
      %2434 = vmatprep.subr.bf16.mxu0 0
      %2435 = vmatpush1.bf16.msra.mxu0 0
      %2436 = vmatprep.subr.bf16.mxu0 0
      %2437 = vmatpush1.bf16.msra.mxu0 0
      %2438 = vmatprep.subr.bf16.mxu0 0
      %2439 = vmatpush1.bf16.msra.mxu0 0
      %2440 = vmatprep.subr.bf16.mxu0 0
      %2441 = vmatpush1.bf16.msra.mxu0 0
      %2442 = vmatprep.subr.bf16.mxu0 0
      %2443 = vmatpush1.bf16.msra.mxu0 0
      %2444 = vmatprep.subr.bf16.mxu0 0
      %2445 = vmatpush1.bf16.msra.mxu0 0
      %2446 = vmatprep.subr.bf16.mxu0 0
      %2447 = vmatpush1.bf16.msra.mxu0 0
      %2448 = vmatprep.subr.bf16.mxu0 0
      %2449 = vmatpush1.bf16.msra.mxu0 0
      %2450 = vmatprep.subr.bf16.mxu0 0
      %2451 = vmatpush1.bf16.msra.mxu0 0
      %2452 = vmatprep.subr.bf16.mxu0 0
      %2453 = vmatpush1.bf16.msra.mxu0 0
      %2454 = vmatprep.subr.bf16.mxu0 0
      %2455 = vmatpush1.bf16.msra.mxu0 0
      %2456 = vmatprep.subr.bf16.mxu0 0
      %2457 = vmatpush1.bf16.msra.mxu0 0
      %2458 = vmatprep.subr.bf16.mxu0 0
      %2459 = vmatpush1.bf16.msra.mxu0 0
      %2460 = vmatprep.subr.bf16.mxu0 0
      %2461 = vmatpush1.bf16.msra.mxu0 0
      %2462 = vmatprep.subr.bf16.mxu0 0
      %2463 = vmatpush1.bf16.msra.mxu0 0
      %2464 = vmatprep.mubr.bf16.mxu0 0
      %2465 = vmatmul.mubr.bf16.gmra.mrb[0].mxu0 %v2427
      %v2466 = vpop.f32.mrb[0].mxu0
      %v2467 = vadd.f32 0.0, %v2466
      %v2468 = vpop.f32.mrb[0].mxu0
      %v2469 = vpop.f32.mrb[0].mxu0
      %v2470 = vpop.f32.mrb[0].mxu0
      %2471 = vdwg.mxu0
      %v2472 = vpack.c.bf16 %v2467, %v2467
      %v2474 = vsel %vm766, %v2472, 0
      %v2477 = vsel %vm770, %v2075, 0
      %2479 = vmatprep.subr.bf16.mxu0 0
      %2480 = vmatpush1.bf16.msra.mxu0 %v2477
      %2481 = vmatprep.subr.bf16.mxu0 0
      %2482 = vmatpush1.bf16.msra.mxu0 0
      %2483 = vmatprep.subr.bf16.mxu0 0
      %2484 = vmatpush1.bf16.msra.mxu0 0
      %2485 = vmatprep.subr.bf16.mxu0 0
      %2486 = vmatpush1.bf16.msra.mxu0 0
      %2487 = vmatprep.subr.bf16.mxu0 0
      %2488 = vmatpush1.bf16.msra.mxu0 0
      %2489 = vmatprep.subr.bf16.mxu0 0
      %2490 = vmatpush1.bf16.msra.mxu0 0
      %2491 = vmatprep.subr.bf16.mxu0 0
      %2492 = vmatpush1.bf16.msra.mxu0 0
      %2493 = vmatprep.subr.bf16.mxu0 0
      %2494 = vmatpush1.bf16.msra.mxu0 0
      %2495 = vmatprep.subr.bf16.mxu0 0
      %2496 = vmatpush1.bf16.msra.mxu0 0
      %2497 = vmatprep.subr.bf16.mxu0 0
      %2498 = vmatpush1.bf16.msra.mxu0 0
      %2499 = vmatprep.subr.bf16.mxu0 0
      %2500 = vmatpush1.bf16.msra.mxu0 0
      %2501 = vmatprep.subr.bf16.mxu0 0
      %2502 = vmatpush1.bf16.msra.mxu0 0
      %2503 = vmatprep.subr.bf16.mxu0 0
      %2504 = vmatpush1.bf16.msra.mxu0 0
      %2505 = vmatprep.subr.bf16.mxu0 0
      %2506 = vmatpush1.bf16.msra.mxu0 0
      %2507 = vmatprep.subr.bf16.mxu0 0
      %2508 = vmatpush1.bf16.msra.mxu0 0
      %2509 = vmatprep.subr.bf16.mxu0 0
      %2510 = vmatpush1.bf16.msra.mxu0 0
      %2511 = vmatprep.mubr.bf16.mxu0 0
      %2512 = vmatmul.mubr.bf16.gmra.mrb[0].mxu0 %v2474
      %v2513 = vpop.f32.mrb[0].mxu0
      %v2514 = vadd.f32 0.0, %v2513
      %v2515 = vpop.f32.mrb[0].mxu0
      %v2516 = vpop.f32.mrb[0].mxu0
      %v2517 = vpop.f32.mrb[0].mxu0
      %2518 = vdwg.mxu0
      %v2519 = vadd.f32 %v2409, %v2514
      %v2520 = vadd.f32 %v1998, %v2519
      %s2521 = scalar_lea.vmem %s5, 1
      %v2522 = vld [vmem:[%s2521] sm:$0x1]
      %v2523 = vmul.f32 %v2520, %v2520
      %v2524 = vsel %vm551, %v2523, 0.0
      %2525 = vadd.xlane.f32.xlu0 %v2524
      %v2526 = vpop.xlane.xlu0 %2525
      %v2527 = vmul.f32 %v2526, %v555
      %v2528 = vadd.f32 %v2527, 1e-06
      %v2529 = vrsqrt.pop %v2528
      %v2530 = vmul.f32 %v2520, %v2529
      %v2531 = vmul.f32 %v2530, %v2522
      %s2532 = scalar_lea.vmem %s9, 16
      %v2533 = vld [vmem:[%s2532] sm:$0xf]
      %v2534 = vld [vmem:[%s2532 + $0x4] sm:$0xf]
      %v2535 = vld [vmem:[%s2532 + $0x8] sm:$0xf]
      %v2536 = vld [vmem:[%s2532 + $0xc] sm:$0xf]
      %v2537 = vpack.c.bf16 %v2531, %v2531
      %v2542 = vunpack.c.l.b16 %v2533
      %v2543 = vunpack.c.l.b16 %v2534
      %v2544 = vunpack.c.l.b16 %v2535
      %v2545 = vunpack.c.l.b16 %v2536
      %v2546 = vpack.c.b16 %v2543, %v2542
      %v2547 = vpack.c.b16 %v2545, %v2544
      %v2551 = vsel %vm578, %v2537, 0
      %2553 = vmatprep.subr.bf16.mxu0 0
      %2554 = vmatpush1.bf16.msra.mxu0 %v2546
      %2555 = vmatprep.subr.bf16.mxu0 0
      %2556 = vmatpush1.bf16.msra.mxu0 %v2547
      %2557 = vmatprep.subr.bf16.mxu0 0
      %2558 = vmatpush1.bf16.msra.mxu0 0
      %2559 = vmatprep.subr.bf16.mxu0 0
      %2560 = vmatpush1.bf16.msra.mxu0 0
      %2561 = vmatprep.subr.bf16.mxu0 0
      %2562 = vmatpush1.bf16.msra.mxu0 0
      %2563 = vmatprep.subr.bf16.mxu0 0
      %2564 = vmatpush1.bf16.msra.mxu0 0
      %2565 = vmatprep.subr.bf16.mxu0 0
      %2566 = vmatpush1.bf16.msra.mxu0 0
      %2567 = vmatprep.subr.bf16.mxu0 0
      %2568 = vmatpush1.bf16.msra.mxu0 0
      %2569 = vmatprep.subr.bf16.mxu0 0
      %2570 = vmatpush1.bf16.msra.mxu0 0
      %2571 = vmatprep.subr.bf16.mxu0 0
      %2572 = vmatpush1.bf16.msra.mxu0 0
      %2573 = vmatprep.subr.bf16.mxu0 0
      %2574 = vmatpush1.bf16.msra.mxu0 0
      %2575 = vmatprep.subr.bf16.mxu0 0
      %2576 = vmatpush1.bf16.msra.mxu0 0
      %2577 = vmatprep.subr.bf16.mxu0 0
      %2578 = vmatpush1.bf16.msra.mxu0 0
      %2579 = vmatprep.subr.bf16.mxu0 0
      %2580 = vmatpush1.bf16.msra.mxu0 0
      %2581 = vmatprep.subr.bf16.mxu0 0
      %2582 = vmatpush1.bf16.msra.mxu0 0
      %2583 = vmatprep.subr.bf16.mxu0 0
      %2584 = vmatpush1.bf16.msra.mxu0 0
      %2585 = vmatprep.mubr.bf16.mxu0 0
      %2586 = vmatmul.mubr.bf16.gmra.mrb[0].mxu0 %v2551
      %v2587 = vpop.f32.mrb[0].mxu0
      %v2588 = vadd.f32 0.0, %v2587
      %v2589 = vpop.f32.mrb[0].mxu0
      %v2590 = vpop.f32.mrb[0].mxu0
      %v2591 = vpop.f32.mrb[0].mxu0
      %2592 = vdwg.mxu0
      %s2593 = scalar_lea.vmem %s10, 16
      %v2594 = vld [vmem:[%s2593] sm:$0xf]
      %v2595 = vld [vmem:[%s2593 + $0x4] sm:$0xf]
      %v2596 = vld [vmem:[%s2593 + $0x8] sm:$0xf]
      %v2597 = vld [vmem:[%s2593 + $0xc] sm:$0xf]
      %v2602 = vunpack.c.l.b16 %v2594
      %v2603 = vunpack.c.l.b16 %v2595
      %v2604 = vunpack.c.l.b16 %v2596
      %v2605 = vunpack.c.l.b16 %v2597
      %v2606 = vpack.c.b16 %v2603, %v2602
      %v2607 = vpack.c.b16 %v2605, %v2604
      %2610 = vmatprep.subr.bf16.mxu0 0
      %2611 = vmatpush1.bf16.msra.mxu0 %v2606
      %2612 = vmatprep.subr.bf16.mxu0 0
      %2613 = vmatpush1.bf16.msra.mxu0 %v2607
      %2614 = vmatprep.subr.bf16.mxu0 0
      %2615 = vmatpush1.bf16.msra.mxu0 0
      %2616 = vmatprep.subr.bf16.mxu0 0
      %2617 = vmatpush1.bf16.msra.mxu0 0
      %2618 = vmatprep.subr.bf16.mxu0 0
      %2619 = vmatpush1.bf16.msra.mxu0 0
      %2620 = vmatprep.subr.bf16.mxu0 0
      %2621 = vmatpush1.bf16.msra.mxu0 0
      %2622 = vmatprep.subr.bf16.mxu0 0
      %2623 = vmatpush1.bf16.msra.mxu0 0
      %2624 = vmatprep.subr.bf16.mxu0 0
      %2625 = vmatpush1.bf16.msra.mxu0 0
      %2626 = vmatprep.subr.bf16.mxu0 0
      %2627 = vmatpush1.bf16.msra.mxu0 0
      %2628 = vmatprep.subr.bf16.mxu0 0
      %2629 = vmatpush1.bf16.msra.mxu0 0
      %2630 = vmatprep.subr.bf16.mxu0 0
      %2631 = vmatpush1.bf16.msra.mxu0 0
      %2632 = vmatprep.subr.bf16.mxu0 0
      %2633 = vmatpush1.bf16.msra.mxu0 0
      %2634 = vmatprep.subr.bf16.mxu0 0
      %2635 = vmatpush1.bf16.msra.mxu0 0
      %2636 = vmatprep.subr.bf16.mxu0 0
      %2637 = vmatpush1.bf16.msra.mxu0 0
      %2638 = vmatprep.subr.bf16.mxu0 0
      %2639 = vmatpush1.bf16.msra.mxu0 0
      %2640 = vmatprep.subr.bf16.mxu0 0
      %2641 = vmatpush1.bf16.msra.mxu0 0
      %2642 = vmatprep.mubr.bf16.mxu0 0
      %2643 = vmatmul.mubr.bf16.gmra.mrb[0].mxu0 %v1173
      %v2644 = vpop.f32.mrb[0].mxu0
      %v2645 = vadd.f32 0.0, %v2644
      %v2646 = vpop.f32.mrb[0].mxu0
      %v2647 = vpop.f32.mrb[0].mxu0
      %v2648 = vpop.f32.mrb[0].mxu0
      %2649 = vdwg.mxu0
      %s2650 = scalar_lea.vmem %s11, 16
      %v2651 = vld [vmem:[%s2650] sm:$0xf]
      %v2652 = vld [vmem:[%s2650 + $0x4] sm:$0xf]
      %v2653 = vld [vmem:[%s2650 + $0x8] sm:$0xf]
      %v2654 = vld [vmem:[%s2650 + $0xc] sm:$0xf]
      %v2655 = vpack.c.bf16 %v2588, %v2588
      %v2656 = vpack.c.bf16 %v2645, %v2645
      %v2658 = vsel %vm766, %v2655, 0
      %v2661 = vsel %vm766, %v2656, 0
      %2663 = vmatprep.subr.bf16.mxu0 0
      %2664 = vmatpush1.bf16.xpose.msra.mxu0 %v2661
      %2665 = vmatprep.subr.bf16.mxu0 0
      %2666 = vmatpush1.bf16.xpose.msra.mxu0 0
      %2667 = vmatprep.subr.bf16.mxu0 0
      %2668 = vmatpush1.bf16.xpose.msra.mxu0 0
      %2669 = vmatprep.subr.bf16.mxu0 0
      %2670 = vmatpush1.bf16.xpose.msra.mxu0 0
      %2671 = vmatprep.subr.bf16.mxu0 0
      %2672 = vmatpush1.bf16.xpose.msra.mxu0 0
      %2673 = vmatprep.subr.bf16.mxu0 0
      %2674 = vmatpush1.bf16.xpose.msra.mxu0 0
      %2675 = vmatprep.subr.bf16.mxu0 0
      %2676 = vmatpush1.bf16.xpose.msra.mxu0 0
      %2677 = vmatprep.subr.bf16.mxu0 0
      %2678 = vmatpush1.bf16.xpose.msra.mxu0 0
      %2679 = vmatprep.subr.bf16.mxu0 0
      %2680 = vmatpush1.bf16.xpose.msra.mxu0 0
      %2681 = vmatprep.subr.bf16.mxu0 0
      %2682 = vmatpush1.bf16.xpose.msra.mxu0 0
      %2683 = vmatprep.subr.bf16.mxu0 0
      %2684 = vmatpush1.bf16.xpose.msra.mxu0 0
      %2685 = vmatprep.subr.bf16.mxu0 0
      %2686 = vmatpush1.bf16.xpose.msra.mxu0 0
      %2687 = vmatprep.subr.bf16.mxu0 0
      %2688 = vmatpush1.bf16.xpose.msra.mxu0 0
      %2689 = vmatprep.subr.bf16.mxu0 0
      %2690 = vmatpush1.bf16.xpose.msra.mxu0 0
      %2691 = vmatprep.subr.bf16.mxu0 0
      %2692 = vmatpush1.bf16.xpose.msra.mxu0 0
      %2693 = vmatprep.subr.bf16.mxu0 0
      %2694 = vmatpush1.bf16.xpose.msra.mxu0 0
      %2695 = vmatprep.mubr.bf16.mxu0 0
      %2696 = vmatmul.mubr.bf16.gmra.mrb[0].mxu0 %v2658
      %v2697 = vpop.f32.mrb[0].mxu0
      %v2698 = vadd.f32 %v548, %v2697
      %v2699 = vpop.f32.mrb[0].mxu0
      %v2700 = vpop.f32.mrb[0].mxu0
      %v2701 = vpop.f32.mrb[0].mxu0
      %2702 = vdwg.mxu0
      %v2703 = vsel %vm633, %v2698, -inf
      %2704 = vmax.xlane.f32.xlu0 %v2703
      %v2705 = vpop.xlane.xlu0 %2704
      %v2706 = vsub.f32 %v2698, %v2705
      %v2707 = vmul.f32 %v2706, 1.442695
      %v2708 = vpow.pop %v2707
      %v2709 = vsel %vm633, %v2708, 0.0
      %2710 = vadd.xlane.f32.xlu0 %v2709
      %v2711 = vpop.xlane.xlu0 %2710
      %v2712 = vrcp.pop %v2711
      %v2713 = vmul.f32 %v2708, %v2712
      %v2714 = vpack.c.bf16 %v2713, %v2713
      %2716 = vrot.lane.b32.xlu0 %v2656, 96
      %v2717 = vpop.permute.xlu0 %2716
      %v2719 = vsel %vm766, %v2714, 0
      %v2722 = vsel %vm770, %v2717, 0
      %2724 = vmatprep.subr.bf16.mxu0 0
      %2725 = vmatpush1.bf16.msra.mxu0 %v2722
      %2726 = vmatprep.subr.bf16.mxu0 0
      %2727 = vmatpush1.bf16.msra.mxu0 0
      %2728 = vmatprep.subr.bf16.mxu0 0
      %2729 = vmatpush1.bf16.msra.mxu0 0
      %2730 = vmatprep.subr.bf16.mxu0 0
      %2731 = vmatpush1.bf16.msra.mxu0 0
      %2732 = vmatprep.subr.bf16.mxu0 0
      %2733 = vmatpush1.bf16.msra.mxu0 0
      %2734 = vmatprep.subr.bf16.mxu0 0
      %2735 = vmatpush1.bf16.msra.mxu0 0
      %2736 = vmatprep.subr.bf16.mxu0 0
      %2737 = vmatpush1.bf16.msra.mxu0 0
      %2738 = vmatprep.subr.bf16.mxu0 0
      %2739 = vmatpush1.bf16.msra.mxu0 0
      %2740 = vmatprep.subr.bf16.mxu0 0
      %2741 = vmatpush1.bf16.msra.mxu0 0
      %2742 = vmatprep.subr.bf16.mxu0 0
      %2743 = vmatpush1.bf16.msra.mxu0 0
      %2744 = vmatprep.subr.bf16.mxu0 0
      %2745 = vmatpush1.bf16.msra.mxu0 0
      %2746 = vmatprep.subr.bf16.mxu0 0
      %2747 = vmatpush1.bf16.msra.mxu0 0
      %2748 = vmatprep.subr.bf16.mxu0 0
      %2749 = vmatpush1.bf16.msra.mxu0 0
      %2750 = vmatprep.subr.bf16.mxu0 0
      %2751 = vmatpush1.bf16.msra.mxu0 0
      %2752 = vmatprep.subr.bf16.mxu0 0
      %2753 = vmatpush1.bf16.msra.mxu0 0
      %2754 = vmatprep.subr.bf16.mxu0 0
      %2755 = vmatpush1.bf16.msra.mxu0 0
      %2756 = vmatprep.mubr.bf16.mxu0 0
      %2757 = vmatmul.mubr.bf16.gmra.mrb[0].mxu0 %v2719
      %v2758 = vpop.f32.mrb[0].mxu0
      %v2759 = vadd.f32 0.0, %v2758
      %v2760 = vpop.f32.mrb[0].mxu0
      %v2761 = vpop.f32.mrb[0].mxu0
      %v2762 = vpop.f32.mrb[0].mxu0
      %2763 = vdwg.mxu0
      %v2764 = vpack.c.bf16 %v2759, %v2759
      %2766 = vrot.lane.b32.xlu0 %v2655, 120
      %v2767 = vpop.permute.xlu0 %2766
      %2768 = vrot.lane.b32.xlu0 %v2656, 120
      %v2769 = vpop.permute.xlu0 %2768
      %v2771 = vsel %vm766, %v2767, 0
      %v2774 = vsel %vm766, %v2769, 0
      %2776 = vmatprep.subr.bf16.mxu0 0
      %2777 = vmatpush1.bf16.xpose.msra.mxu0 %v2774
      %2778 = vmatprep.subr.bf16.mxu0 0
      %2779 = vmatpush1.bf16.xpose.msra.mxu0 0
      %2780 = vmatprep.subr.bf16.mxu0 0
      %2781 = vmatpush1.bf16.xpose.msra.mxu0 0
      %2782 = vmatprep.subr.bf16.mxu0 0
      %2783 = vmatpush1.bf16.xpose.msra.mxu0 0
      %2784 = vmatprep.subr.bf16.mxu0 0
      %2785 = vmatpush1.bf16.xpose.msra.mxu0 0
      %2786 = vmatprep.subr.bf16.mxu0 0
      %2787 = vmatpush1.bf16.xpose.msra.mxu0 0
      %2788 = vmatprep.subr.bf16.mxu0 0
      %2789 = vmatpush1.bf16.xpose.msra.mxu0 0
      %2790 = vmatprep.subr.bf16.mxu0 0
      %2791 = vmatpush1.bf16.xpose.msra.mxu0 0
      %2792 = vmatprep.subr.bf16.mxu0 0
      %2793 = vmatpush1.bf16.xpose.msra.mxu0 0
      %2794 = vmatprep.subr.bf16.mxu0 0
      %2795 = vmatpush1.bf16.xpose.msra.mxu0 0
      %2796 = vmatprep.subr.bf16.mxu0 0
      %2797 = vmatpush1.bf16.xpose.msra.mxu0 0
      %2798 = vmatprep.subr.bf16.mxu0 0
      %2799 = vmatpush1.bf16.xpose.msra.mxu0 0
      %2800 = vmatprep.subr.bf16.mxu0 0
      %2801 = vmatpush1.bf16.xpose.msra.mxu0 0
      %2802 = vmatprep.subr.bf16.mxu0 0
      %2803 = vmatpush1.bf16.xpose.msra.mxu0 0
      %2804 = vmatprep.subr.bf16.mxu0 0
      %2805 = vmatpush1.bf16.xpose.msra.mxu0 0
      %2806 = vmatprep.subr.bf16.mxu0 0
      %2807 = vmatpush1.bf16.xpose.msra.mxu0 0
      %2808 = vmatprep.mubr.bf16.mxu0 0
      %2809 = vmatmul.mubr.bf16.gmra.mrb[0].mxu0 %v2771
      %v2810 = vpop.f32.mrb[0].mxu0
      %v2811 = vadd.f32 %v548, %v2810
      %v2812 = vpop.f32.mrb[0].mxu0
      %v2813 = vpop.f32.mrb[0].mxu0
      %v2814 = vpop.f32.mrb[0].mxu0
      %2815 = vdwg.mxu0
      %v2816 = vsel %vm633, %v2811, -inf
      %2817 = vmax.xlane.f32.xlu0 %v2816
      %v2818 = vpop.xlane.xlu0 %2817
      %v2819 = vsub.f32 %v2811, %v2818
      %v2820 = vmul.f32 %v2819, 1.442695
      %v2821 = vpow.pop %v2820
      %v2822 = vsel %vm633, %v2821, 0.0
      %2823 = vadd.xlane.f32.xlu0 %v2822
      %v2824 = vpop.xlane.xlu0 %2823
      %v2825 = vrcp.pop %v2824
      %v2826 = vmul.f32 %v2821, %v2825
      %v2827 = vpack.c.bf16 %v2826, %v2826
      %2828 = vrot.lane.b32.xlu0 %v2656, 88
      %v2829 = vpop.permute.xlu0 %2828
      %v2831 = vsel %vm766, %v2827, 0
      %v2834 = vsel %vm770, %v2829, 0
      %2836 = vmatprep.subr.bf16.mxu0 0
      %2837 = vmatpush1.bf16.msra.mxu0 %v2834
      %2838 = vmatprep.subr.bf16.mxu0 0
      %2839 = vmatpush1.bf16.msra.mxu0 0
      %2840 = vmatprep.subr.bf16.mxu0 0
      %2841 = vmatpush1.bf16.msra.mxu0 0
      %2842 = vmatprep.subr.bf16.mxu0 0
      %2843 = vmatpush1.bf16.msra.mxu0 0
      %2844 = vmatprep.subr.bf16.mxu0 0
      %2845 = vmatpush1.bf16.msra.mxu0 0
      %2846 = vmatprep.subr.bf16.mxu0 0
      %2847 = vmatpush1.bf16.msra.mxu0 0
      %2848 = vmatprep.subr.bf16.mxu0 0
      %2849 = vmatpush1.bf16.msra.mxu0 0
      %2850 = vmatprep.subr.bf16.mxu0 0
      %2851 = vmatpush1.bf16.msra.mxu0 0
      %2852 = vmatprep.subr.bf16.mxu0 0
      %2853 = vmatpush1.bf16.msra.mxu0 0
      %2854 = vmatprep.subr.bf16.mxu0 0
      %2855 = vmatpush1.bf16.msra.mxu0 0
      %2856 = vmatprep.subr.bf16.mxu0 0
      %2857 = vmatpush1.bf16.msra.mxu0 0
      %2858 = vmatprep.subr.bf16.mxu0 0
      %2859 = vmatpush1.bf16.msra.mxu0 0
      %2860 = vmatprep.subr.bf16.mxu0 0
      %2861 = vmatpush1.bf16.msra.mxu0 0
      %2862 = vmatprep.subr.bf16.mxu0 0
      %2863 = vmatpush1.bf16.msra.mxu0 0
      %2864 = vmatprep.subr.bf16.mxu0 0
      %2865 = vmatpush1.bf16.msra.mxu0 0
      %2866 = vmatprep.subr.bf16.mxu0 0
      %2867 = vmatpush1.bf16.msra.mxu0 0
      %2868 = vmatprep.mubr.bf16.mxu0 0
      %2869 = vmatmul.mubr.bf16.gmra.mrb[0].mxu0 %v2831
      %v2870 = vpop.f32.mrb[0].mxu0
      %v2871 = vadd.f32 0.0, %v2870
      %v2872 = vpop.f32.mrb[0].mxu0
      %v2873 = vpop.f32.mrb[0].mxu0
      %v2874 = vpop.f32.mrb[0].mxu0
      %2875 = vdwg.mxu0
      %v2876 = vpack.c.bf16 %v2871, %v2871
      %v2878 = vsel %vm766, %v2876, 0
      %v2881 = vsel %vm770, %v2652, 0
      %2883 = vmatprep.subr.bf16.mxu0 0
      %2884 = vmatpush1.bf16.msra.mxu0 %v2881
      %2885 = vmatprep.subr.bf16.mxu0 0
      %2886 = vmatpush1.bf16.msra.mxu0 0
      %2887 = vmatprep.subr.bf16.mxu0 0
      %2888 = vmatpush1.bf16.msra.mxu0 0
      %2889 = vmatprep.subr.bf16.mxu0 0
      %2890 = vmatpush1.bf16.msra.mxu0 0
      %2891 = vmatprep.subr.bf16.mxu0 0
      %2892 = vmatpush1.bf16.msra.mxu0 0
      %2893 = vmatprep.subr.bf16.mxu0 0
      %2894 = vmatpush1.bf16.msra.mxu0 0
      %2895 = vmatprep.subr.bf16.mxu0 0
      %2896 = vmatpush1.bf16.msra.mxu0 0
      %2897 = vmatprep.subr.bf16.mxu0 0
      %2898 = vmatpush1.bf16.msra.mxu0 0
      %2899 = vmatprep.subr.bf16.mxu0 0
      %2900 = vmatpush1.bf16.msra.mxu0 0
      %2901 = vmatprep.subr.bf16.mxu0 0
      %2902 = vmatpush1.bf16.msra.mxu0 0
      %2903 = vmatprep.subr.bf16.mxu0 0
      %2904 = vmatpush1.bf16.msra.mxu0 0
      %2905 = vmatprep.subr.bf16.mxu0 0
      %2906 = vmatpush1.bf16.msra.mxu0 0
      %2907 = vmatprep.subr.bf16.mxu0 0
      %2908 = vmatpush1.bf16.msra.mxu0 0
      %2909 = vmatprep.subr.bf16.mxu0 0
      %2910 = vmatpush1.bf16.msra.mxu0 0
      %2911 = vmatprep.subr.bf16.mxu0 0
      %2912 = vmatpush1.bf16.msra.mxu0 0
      %2913 = vmatprep.subr.bf16.mxu0 0
      %2914 = vmatpush1.bf16.msra.mxu0 0
      %2915 = vmatprep.mubr.bf16.mxu0 0
      %2916 = vmatmul.mubr.bf16.gmra.mrb[0].mxu0 %v2878
      %v2917 = vpop.f32.mrb[0].mxu0
      %v2918 = vadd.f32 0.0, %v2917
      %v2919 = vpop.f32.mrb[0].mxu0
      %v2920 = vpop.f32.mrb[0].mxu0
      %v2921 = vpop.f32.mrb[0].mxu0
      %2922 = vdwg.mxu0
      %v2924 = vsel %vm766, %v2764, 0
      %v2927 = vsel %vm770, %v2651, 0
      %2929 = vmatprep.subr.bf16.mxu0 0
      %2930 = vmatpush1.bf16.msra.mxu0 %v2927
      %2931 = vmatprep.subr.bf16.mxu0 0
      %2932 = vmatpush1.bf16.msra.mxu0 0
      %2933 = vmatprep.subr.bf16.mxu0 0
      %2934 = vmatpush1.bf16.msra.mxu0 0
      %2935 = vmatprep.subr.bf16.mxu0 0
      %2936 = vmatpush1.bf16.msra.mxu0 0
      %2937 = vmatprep.subr.bf16.mxu0 0
      %2938 = vmatpush1.bf16.msra.mxu0 0
      %2939 = vmatprep.subr.bf16.mxu0 0
      %2940 = vmatpush1.bf16.msra.mxu0 0
      %2941 = vmatprep.subr.bf16.mxu0 0
      %2942 = vmatpush1.bf16.msra.mxu0 0
      %2943 = vmatprep.subr.bf16.mxu0 0
      %2944 = vmatpush1.bf16.msra.mxu0 0
      %2945 = vmatprep.subr.bf16.mxu0 0
      %2946 = vmatpush1.bf16.msra.mxu0 0
      %2947 = vmatprep.subr.bf16.mxu0 0
      %2948 = vmatpush1.bf16.msra.mxu0 0
      %2949 = vmatprep.subr.bf16.mxu0 0
      %2950 = vmatpush1.bf16.msra.mxu0 0
      %2951 = vmatprep.subr.bf16.mxu0 0
      %2952 = vmatpush1.bf16.msra.mxu0 0
      %2953 = vmatprep.subr.bf16.mxu0 0
      %2954 = vmatpush1.bf16.msra.mxu0 0
      %2955 = vmatprep.subr.bf16.mxu0 0
      %2956 = vmatpush1.bf16.msra.mxu0 0
      %2957 = vmatprep.subr.bf16.mxu0 0
      %2958 = vmatpush1.bf16.msra.mxu0 0
      %2959 = vmatprep.subr.bf16.mxu0 0
      %2960 = vmatpush1.bf16.msra.mxu0 0
      %2961 = vmatprep.mubr.bf16.mxu0 0
      %2962 = vmatmul.mubr.bf16.gmra.mrb[0].mxu0 %v2924
      %v2963 = vpop.f32.mrb[0].mxu0
      %v2964 = vadd.f32 %v2918, %v2963
      %v2965 = vpop.f32.mrb[0].mxu0
      %v2966 = vpop.f32.mrb[0].mxu0
      %v2967 = vpop.f32.mrb[0].mxu0
      %2968 = vdwg.mxu0
      %2969 = vrot.lane.b32.xlu0 %v2655, 112
      %v2970 = vpop.permute.xlu0 %2969
      %2971 = vrot.lane.b32.xlu0 %v2656, 112
      %v2972 = vpop.permute.xlu0 %2971
      %v2974 = vsel %vm766, %v2970, 0
      %v2977 = vsel %vm766, %v2972, 0
      %2979 = vmatprep.subr.bf16.mxu0 0
      %2980 = vmatpush1.bf16.xpose.msra.mxu0 %v2977
      %2981 = vmatprep.subr.bf16.mxu0 0
      %2982 = vmatpush1.bf16.xpose.msra.mxu0 0
      %2983 = vmatprep.subr.bf16.mxu0 0
      %2984 = vmatpush1.bf16.xpose.msra.mxu0 0
      %2985 = vmatprep.subr.bf16.mxu0 0
      %2986 = vmatpush1.bf16.xpose.msra.mxu0 0
      %2987 = vmatprep.subr.bf16.mxu0 0
      %2988 = vmatpush1.bf16.xpose.msra.mxu0 0
      %2989 = vmatprep.subr.bf16.mxu0 0
      %2990 = vmatpush1.bf16.xpose.msra.mxu0 0
      %2991 = vmatprep.subr.bf16.mxu0 0
      %2992 = vmatpush1.bf16.xpose.msra.mxu0 0
      %2993 = vmatprep.subr.bf16.mxu0 0
      %2994 = vmatpush1.bf16.xpose.msra.mxu0 0
      %2995 = vmatprep.subr.bf16.mxu0 0
      %2996 = vmatpush1.bf16.xpose.msra.mxu0 0
      %2997 = vmatprep.subr.bf16.mxu0 0
      %2998 = vmatpush1.bf16.xpose.msra.mxu0 0
      %2999 = vmatprep.subr.bf16.mxu0 0
      %3000 = vmatpush1.bf16.xpose.msra.mxu0 0
      %3001 = vmatprep.subr.bf16.mxu0 0
      %3002 = vmatpush1.bf16.xpose.msra.mxu0 0
      %3003 = vmatprep.subr.bf16.mxu0 0
      %3004 = vmatpush1.bf16.xpose.msra.mxu0 0
      %3005 = vmatprep.subr.bf16.mxu0 0
      %3006 = vmatpush1.bf16.xpose.msra.mxu0 0
      %3007 = vmatprep.subr.bf16.mxu0 0
      %3008 = vmatpush1.bf16.xpose.msra.mxu0 0
      %3009 = vmatprep.subr.bf16.mxu0 0
      %3010 = vmatpush1.bf16.xpose.msra.mxu0 0
      %3011 = vmatprep.mubr.bf16.mxu0 0
      %3012 = vmatmul.mubr.bf16.gmra.mrb[0].mxu0 %v2974
      %v3013 = vpop.f32.mrb[0].mxu0
      %v3014 = vadd.f32 %v548, %v3013
      %v3015 = vpop.f32.mrb[0].mxu0
      %v3016 = vpop.f32.mrb[0].mxu0
      %v3017 = vpop.f32.mrb[0].mxu0
      %3018 = vdwg.mxu0
      %v3019 = vsel %vm633, %v3014, -inf
      %3020 = vmax.xlane.f32.xlu0 %v3019
      %v3021 = vpop.xlane.xlu0 %3020
      %v3022 = vsub.f32 %v3014, %v3021
      %v3023 = vmul.f32 %v3022, 1.442695
      %v3024 = vpow.pop %v3023
      %v3025 = vsel %vm633, %v3024, 0.0
      %3026 = vadd.xlane.f32.xlu0 %v3025
      %v3027 = vpop.xlane.xlu0 %3026
      %v3028 = vrcp.pop %v3027
      %v3029 = vmul.f32 %v3024, %v3028
      %v3030 = vpack.c.bf16 %v3029, %v3029
      %3031 = vrot.lane.b32.xlu0 %v2656, 80
      %v3032 = vpop.permute.xlu0 %3031
      %v3034 = vsel %vm766, %v3030, 0
      %v3037 = vsel %vm770, %v3032, 0
      %3039 = vmatprep.subr.bf16.mxu0 0
      %3040 = vmatpush1.bf16.msra.mxu0 %v3037
      %3041 = vmatprep.subr.bf16.mxu0 0
      %3042 = vmatpush1.bf16.msra.mxu0 0
      %3043 = vmatprep.subr.bf16.mxu0 0
      %3044 = vmatpush1.bf16.msra.mxu0 0
      %3045 = vmatprep.subr.bf16.mxu0 0
      %3046 = vmatpush1.bf16.msra.mxu0 0
      %3047 = vmatprep.subr.bf16.mxu0 0
      %3048 = vmatpush1.bf16.msra.mxu0 0
      %3049 = vmatprep.subr.bf16.mxu0 0
      %3050 = vmatpush1.bf16.msra.mxu0 0
      %3051 = vmatprep.subr.bf16.mxu0 0
      %3052 = vmatpush1.bf16.msra.mxu0 0
      %3053 = vmatprep.subr.bf16.mxu0 0
      %3054 = vmatpush1.bf16.msra.mxu0 0
      %3055 = vmatprep.subr.bf16.mxu0 0
      %3056 = vmatpush1.bf16.msra.mxu0 0
      %3057 = vmatprep.subr.bf16.mxu0 0
      %3058 = vmatpush1.bf16.msra.mxu0 0
      %3059 = vmatprep.subr.bf16.mxu0 0
      %3060 = vmatpush1.bf16.msra.mxu0 0
      %3061 = vmatprep.subr.bf16.mxu0 0
      %3062 = vmatpush1.bf16.msra.mxu0 0
      %3063 = vmatprep.subr.bf16.mxu0 0
      %3064 = vmatpush1.bf16.msra.mxu0 0
      %3065 = vmatprep.subr.bf16.mxu0 0
      %3066 = vmatpush1.bf16.msra.mxu0 0
      %3067 = vmatprep.subr.bf16.mxu0 0
      %3068 = vmatpush1.bf16.msra.mxu0 0
      %3069 = vmatprep.subr.bf16.mxu0 0
      %3070 = vmatpush1.bf16.msra.mxu0 0
      %3071 = vmatprep.mubr.bf16.mxu0 0
      %3072 = vmatmul.mubr.bf16.gmra.mrb[0].mxu0 %v3034
      %v3073 = vpop.f32.mrb[0].mxu0
      %v3074 = vadd.f32 0.0, %v3073
      %v3075 = vpop.f32.mrb[0].mxu0
      %v3076 = vpop.f32.mrb[0].mxu0
      %v3077 = vpop.f32.mrb[0].mxu0
      %3078 = vdwg.mxu0
      %v3079 = vpack.c.bf16 %v3074, %v3074
      %v3081 = vsel %vm766, %v3079, 0
      %v3084 = vsel %vm770, %v2653, 0
      %3086 = vmatprep.subr.bf16.mxu0 0
      %3087 = vmatpush1.bf16.msra.mxu0 %v3084
      %3088 = vmatprep.subr.bf16.mxu0 0
      %3089 = vmatpush1.bf16.msra.mxu0 0
      %3090 = vmatprep.subr.bf16.mxu0 0
      %3091 = vmatpush1.bf16.msra.mxu0 0
      %3092 = vmatprep.subr.bf16.mxu0 0
      %3093 = vmatpush1.bf16.msra.mxu0 0
      %3094 = vmatprep.subr.bf16.mxu0 0
      %3095 = vmatpush1.bf16.msra.mxu0 0
      %3096 = vmatprep.subr.bf16.mxu0 0
      %3097 = vmatpush1.bf16.msra.mxu0 0
      %3098 = vmatprep.subr.bf16.mxu0 0
      %3099 = vmatpush1.bf16.msra.mxu0 0
      %3100 = vmatprep.subr.bf16.mxu0 0
      %3101 = vmatpush1.bf16.msra.mxu0 0
      %3102 = vmatprep.subr.bf16.mxu0 0
      %3103 = vmatpush1.bf16.msra.mxu0 0
      %3104 = vmatprep.subr.bf16.mxu0 0
      %3105 = vmatpush1.bf16.msra.mxu0 0
      %3106 = vmatprep.subr.bf16.mxu0 0
      %3107 = vmatpush1.bf16.msra.mxu0 0
      %3108 = vmatprep.subr.bf16.mxu0 0
      %3109 = vmatpush1.bf16.msra.mxu0 0
      %3110 = vmatprep.subr.bf16.mxu0 0
      %3111 = vmatpush1.bf16.msra.mxu0 0
      %3112 = vmatprep.subr.bf16.mxu0 0
      %3113 = vmatpush1.bf16.msra.mxu0 0
      %3114 = vmatprep.subr.bf16.mxu0 0
      %3115 = vmatpush1.bf16.msra.mxu0 0
      %3116 = vmatprep.subr.bf16.mxu0 0
      %3117 = vmatpush1.bf16.msra.mxu0 0
      %3118 = vmatprep.mubr.bf16.mxu0 0
      %3119 = vmatmul.mubr.bf16.gmra.mrb[0].mxu0 %v3081
      %v3120 = vpop.f32.mrb[0].mxu0
      %v3121 = vadd.f32 0.0, %v3120
      %v3122 = vpop.f32.mrb[0].mxu0
      %v3123 = vpop.f32.mrb[0].mxu0
      %v3124 = vpop.f32.mrb[0].mxu0
      %3125 = vdwg.mxu0
      %v3126 = vadd.f32 %v2964, %v3121
      %3127 = vrot.lane.b32.xlu0 %v2655, 104
      %v3128 = vpop.permute.xlu0 %3127
      %3129 = vrot.lane.b32.xlu0 %v2656, 104
      %v3130 = vpop.permute.xlu0 %3129
      %v3132 = vsel %vm766, %v3128, 0
      %v3135 = vsel %vm766, %v3130, 0
      %3137 = vmatprep.subr.bf16.mxu0 0
      %3138 = vmatpush1.bf16.xpose.msra.mxu0 %v3135
      %3139 = vmatprep.subr.bf16.mxu0 0
      %3140 = vmatpush1.bf16.xpose.msra.mxu0 0
      %3141 = vmatprep.subr.bf16.mxu0 0
      %3142 = vmatpush1.bf16.xpose.msra.mxu0 0
      %3143 = vmatprep.subr.bf16.mxu0 0
      %3144 = vmatpush1.bf16.xpose.msra.mxu0 0
      %3145 = vmatprep.subr.bf16.mxu0 0
      %3146 = vmatpush1.bf16.xpose.msra.mxu0 0
      %3147 = vmatprep.subr.bf16.mxu0 0
      %3148 = vmatpush1.bf16.xpose.msra.mxu0 0
      %3149 = vmatprep.subr.bf16.mxu0 0
      %3150 = vmatpush1.bf16.xpose.msra.mxu0 0
      %3151 = vmatprep.subr.bf16.mxu0 0
      %3152 = vmatpush1.bf16.xpose.msra.mxu0 0
      %3153 = vmatprep.subr.bf16.mxu0 0
      %3154 = vmatpush1.bf16.xpose.msra.mxu0 0
      %3155 = vmatprep.subr.bf16.mxu0 0
      %3156 = vmatpush1.bf16.xpose.msra.mxu0 0
      %3157 = vmatprep.subr.bf16.mxu0 0
      %3158 = vmatpush1.bf16.xpose.msra.mxu0 0
      %3159 = vmatprep.subr.bf16.mxu0 0
      %3160 = vmatpush1.bf16.xpose.msra.mxu0 0
      %3161 = vmatprep.subr.bf16.mxu0 0
      %3162 = vmatpush1.bf16.xpose.msra.mxu0 0
      %3163 = vmatprep.subr.bf16.mxu0 0
      %3164 = vmatpush1.bf16.xpose.msra.mxu0 0
      %3165 = vmatprep.subr.bf16.mxu0 0
      %3166 = vmatpush1.bf16.xpose.msra.mxu0 0
      %3167 = vmatprep.subr.bf16.mxu0 0
      %3168 = vmatpush1.bf16.xpose.msra.mxu0 0
      %3169 = vmatprep.mubr.bf16.mxu0 0
      %3170 = vmatmul.mubr.bf16.gmra.mrb[0].mxu0 %v3132
      %v3171 = vpop.f32.mrb[0].mxu0
      %v3172 = vadd.f32 %v548, %v3171
      %v3173 = vpop.f32.mrb[0].mxu0
      %v3174 = vpop.f32.mrb[0].mxu0
      %v3175 = vpop.f32.mrb[0].mxu0
      %3176 = vdwg.mxu0
      %v3177 = vsel %vm633, %v3172, -inf
      %3178 = vmax.xlane.f32.xlu0 %v3177
      %v3179 = vpop.xlane.xlu0 %3178
      %v3180 = vsub.f32 %v3172, %v3179
      %v3181 = vmul.f32 %v3180, 1.442695
      %v3182 = vpow.pop %v3181
      %v3183 = vsel %vm633, %v3182, 0.0
      %3184 = vadd.xlane.f32.xlu0 %v3183
      %v3185 = vpop.xlane.xlu0 %3184
      %v3186 = vrcp.pop %v3185
      %v3187 = vmul.f32 %v3182, %v3186
      %v3188 = vpack.c.bf16 %v3187, %v3187
      %3189 = vrot.lane.b32.xlu0 %v2656, 72
      %v3190 = vpop.permute.xlu0 %3189
      %v3192 = vsel %vm766, %v3188, 0
      %v3195 = vsel %vm770, %v3190, 0
      %3197 = vmatprep.subr.bf16.mxu0 0
      %3198 = vmatpush1.bf16.msra.mxu0 %v3195
      %3199 = vmatprep.subr.bf16.mxu0 0
      %3200 = vmatpush1.bf16.msra.mxu0 0
      %3201 = vmatprep.subr.bf16.mxu0 0
      %3202 = vmatpush1.bf16.msra.mxu0 0
      %3203 = vmatprep.subr.bf16.mxu0 0
      %3204 = vmatpush1.bf16.msra.mxu0 0
      %3205 = vmatprep.subr.bf16.mxu0 0
      %3206 = vmatpush1.bf16.msra.mxu0 0
      %3207 = vmatprep.subr.bf16.mxu0 0
      %3208 = vmatpush1.bf16.msra.mxu0 0
      %3209 = vmatprep.subr.bf16.mxu0 0
      %3210 = vmatpush1.bf16.msra.mxu0 0
      %3211 = vmatprep.subr.bf16.mxu0 0
      %3212 = vmatpush1.bf16.msra.mxu0 0
      %3213 = vmatprep.subr.bf16.mxu0 0
      %3214 = vmatpush1.bf16.msra.mxu0 0
      %3215 = vmatprep.subr.bf16.mxu0 0
      %3216 = vmatpush1.bf16.msra.mxu0 0
      %3217 = vmatprep.subr.bf16.mxu0 0
      %3218 = vmatpush1.bf16.msra.mxu0 0
      %3219 = vmatprep.subr.bf16.mxu0 0
      %3220 = vmatpush1.bf16.msra.mxu0 0
      %3221 = vmatprep.subr.bf16.mxu0 0
      %3222 = vmatpush1.bf16.msra.mxu0 0
      %3223 = vmatprep.subr.bf16.mxu0 0
      %3224 = vmatpush1.bf16.msra.mxu0 0
      %3225 = vmatprep.subr.bf16.mxu0 0
      %3226 = vmatpush1.bf16.msra.mxu0 0
      %3227 = vmatprep.subr.bf16.mxu0 0
      %3228 = vmatpush1.bf16.msra.mxu0 0
      %3229 = vmatprep.mubr.bf16.mxu0 0
      %3230 = vmatmul.mubr.bf16.gmra.mrb[0].mxu0 %v3192
      %v3231 = vpop.f32.mrb[0].mxu0
      %v3232 = vadd.f32 0.0, %v3231
      %v3233 = vpop.f32.mrb[0].mxu0
      %v3234 = vpop.f32.mrb[0].mxu0
      %v3235 = vpop.f32.mrb[0].mxu0
      %3236 = vdwg.mxu0
      %v3237 = vpack.c.bf16 %v3232, %v3232
      %v3239 = vsel %vm766, %v3237, 0
      %v3242 = vsel %vm770, %v2654, 0
      %3244 = vmatprep.subr.bf16.mxu0 0
      %3245 = vmatpush1.bf16.msra.mxu0 %v3242
      %3246 = vmatprep.subr.bf16.mxu0 0
      %3247 = vmatpush1.bf16.msra.mxu0 0
      %3248 = vmatprep.subr.bf16.mxu0 0
      %3249 = vmatpush1.bf16.msra.mxu0 0
      %3250 = vmatprep.subr.bf16.mxu0 0
      %3251 = vmatpush1.bf16.msra.mxu0 0
      %3252 = vmatprep.subr.bf16.mxu0 0
      %3253 = vmatpush1.bf16.msra.mxu0 0
      %3254 = vmatprep.subr.bf16.mxu0 0
      %3255 = vmatpush1.bf16.msra.mxu0 0
      %3256 = vmatprep.subr.bf16.mxu0 0
      %3257 = vmatpush1.bf16.msra.mxu0 0
      %3258 = vmatprep.subr.bf16.mxu0 0
      %3259 = vmatpush1.bf16.msra.mxu0 0
      %3260 = vmatprep.subr.bf16.mxu0 0
      %3261 = vmatpush1.bf16.msra.mxu0 0
      %3262 = vmatprep.subr.bf16.mxu0 0
      %3263 = vmatpush1.bf16.msra.mxu0 0
      %3264 = vmatprep.subr.bf16.mxu0 0
      %3265 = vmatpush1.bf16.msra.mxu0 0
      %3266 = vmatprep.subr.bf16.mxu0 0
      %3267 = vmatpush1.bf16.msra.mxu0 0
      %3268 = vmatprep.subr.bf16.mxu0 0
      %3269 = vmatpush1.bf16.msra.mxu0 0
      %3270 = vmatprep.subr.bf16.mxu0 0
      %3271 = vmatpush1.bf16.msra.mxu0 0
      %3272 = vmatprep.subr.bf16.mxu0 0
      %3273 = vmatpush1.bf16.msra.mxu0 0
      %3274 = vmatprep.subr.bf16.mxu0 0
      %3275 = vmatpush1.bf16.msra.mxu0 0
      %3276 = vmatprep.mubr.bf16.mxu0 0
      %3277 = vmatmul.mubr.bf16.gmra.mrb[0].mxu0 %v3239
      %v3278 = vpop.f32.mrb[0].mxu0
      %v3279 = vadd.f32 0.0, %v3278
      %v3280 = vpop.f32.mrb[0].mxu0
      %v3281 = vpop.f32.mrb[0].mxu0
      %v3282 = vpop.f32.mrb[0].mxu0
      %3283 = vdwg.mxu0
      %v3284 = vadd.f32 %v3126, %v3279
      %v3285 = vadd.f32 %v2520, %v3284
      %s3286 = scalar_lea.vmem %s6, 1
      %v3287 = vld [vmem:[%s3286] sm:$0x1]
      %v3288 = vmul.f32 %v3285, %v3285
      %v3289 = vsel %vm551, %v3288, 0.0
      %3290 = vadd.xlane.f32.xlu0 %v3289
      %v3291 = vpop.xlane.xlu0 %3290
      %v3292 = vmul.f32 %v3291, %v555
      %v3293 = vadd.f32 %v3292, 1e-06
      %v3294 = vrsqrt.pop %v3293
      %v3295 = vmul.f32 %v3285, %v3294
      %v3296 = vmul.f32 %v3295, %v3287
      %s3297 = scalar_lea.vmem %s12, 16
      %v3298 = vld [vmem:[%s3297] sm:$0xf]
      %v3299 = vld [vmem:[%s3297 + $0x4] sm:$0xf]
      %v3300 = vld [vmem:[%s3297 + $0x8] sm:$0xf]
      %v3301 = vld [vmem:[%s3297 + $0xc] sm:$0xf]
      %v3302 = vpack.c.bf16 %v3296, %v3296
      %v3307 = vunpack.c.l.b16 %v3298
      %v3308 = vunpack.c.l.b16 %v3299
      %v3309 = vunpack.c.l.b16 %v3300
      %v3310 = vunpack.c.l.b16 %v3301
      %v3311 = vpack.c.b16 %v3308, %v3307
      %v3312 = vpack.c.b16 %v3310, %v3309
      %v3316 = vsel %vm578, %v3302, 0
      %3318 = vmatprep.subr.bf16.mxu0 0
      %3319 = vmatpush1.bf16.msra.mxu0 %v3311
      %3320 = vmatprep.subr.bf16.mxu0 0
      %3321 = vmatpush1.bf16.msra.mxu0 %v3312
      %3322 = vmatprep.subr.bf16.mxu0 0
      %3323 = vmatpush1.bf16.msra.mxu0 0
      %3324 = vmatprep.subr.bf16.mxu0 0
      %3325 = vmatpush1.bf16.msra.mxu0 0
      %3326 = vmatprep.subr.bf16.mxu0 0
      %3327 = vmatpush1.bf16.msra.mxu0 0
      %3328 = vmatprep.subr.bf16.mxu0 0
      %3329 = vmatpush1.bf16.msra.mxu0 0
      %3330 = vmatprep.subr.bf16.mxu0 0
      %3331 = vmatpush1.bf16.msra.mxu0 0
      %3332 = vmatprep.subr.bf16.mxu0 0
      %3333 = vmatpush1.bf16.msra.mxu0 0
      %3334 = vmatprep.subr.bf16.mxu0 0
      %3335 = vmatpush1.bf16.msra.mxu0 0
      %3336 = vmatprep.subr.bf16.mxu0 0
      %3337 = vmatpush1.bf16.msra.mxu0 0
      %3338 = vmatprep.subr.bf16.mxu0 0
      %3339 = vmatpush1.bf16.msra.mxu0 0
      %3340 = vmatprep.subr.bf16.mxu0 0
      %3341 = vmatpush1.bf16.msra.mxu0 0
      %3342 = vmatprep.subr.bf16.mxu0 0
      %3343 = vmatpush1.bf16.msra.mxu0 0
      %3344 = vmatprep.subr.bf16.mxu0 0
      %3345 = vmatpush1.bf16.msra.mxu0 0
      %3346 = vmatprep.subr.bf16.mxu0 0
      %3347 = vmatpush1.bf16.msra.mxu0 0
      %3348 = vmatprep.subr.bf16.mxu0 0
      %3349 = vmatpush1.bf16.msra.mxu0 0
      %3350 = vmatprep.mubr.bf16.mxu0 0
      %3351 = vmatmul.mubr.bf16.gmra.mrb[0].mxu0 %v3316
      %v3352 = vpop.f32.mrb[0].mxu0
      %v3353 = vadd.f32 0.0, %v3352
      %v3354 = vpop.f32.mrb[0].mxu0
      %v3355 = vpop.f32.mrb[0].mxu0
      %v3356 = vpop.f32.mrb[0].mxu0
      %3357 = vdwg.mxu0
      %v3358 = vmax.f32 %v3353, 0.0
      %s3359 = scalar_lea.vmem %s13, 32
      %v3360 = vld [vmem:[%s3359] sm:$0xf]
      %v3361 = vld [vmem:[%s3359 + $0x4] sm:$0xf]
      %v3362 = vld [vmem:[%s3359 + $0x8] sm:$0xf]
      %v3363 = vld [vmem:[%s3359 + $0xc] sm:$0xf]
      %v3364 = vld [vmem:[%s3359 + $0x10] sm:$0xf]
      %v3365 = vld [vmem:[%s3359 + $0x14] sm:$0xf]
      %v3366 = vld [vmem:[%s3359 + $0x18] sm:$0xf]
      %v3367 = vld [vmem:[%s3359 + $0x1c] sm:$0xf]
      %v3368 = vpack.c.bf16 %v3358, %v3358
      %v3377 = vunpack.c.l.b16 %v3360
      %v3378 = vunpack.c.l.b16 %v3361
      %v3379 = vunpack.c.l.b16 %v3362
      %v3380 = vunpack.c.l.b16 %v3363
      %v3381 = vunpack.c.l.b16 %v3364
      %v3382 = vunpack.c.l.b16 %v3365
      %v3383 = vunpack.c.l.b16 %v3366
      %v3384 = vunpack.c.l.b16 %v3367
      %v3385 = vpack.c.b16 %v3378, %v3377
      %v3386 = vpack.c.b16 %v3380, %v3379
      %v3387 = vpack.c.b16 %v3382, %v3381
      %v3388 = vpack.c.b16 %v3384, %v3383
      %v3394 = vsel %vm1954, %v3368, 0
      %3396 = vmatprep.subr.bf16.mxu0 0
      %3397 = vmatpush1.bf16.msra.mxu0 %v3385
      %3398 = vmatprep.subr.bf16.mxu0 0
      %3399 = vmatpush1.bf16.msra.mxu0 %v3386
      %3400 = vmatprep.subr.bf16.mxu0 0
      %3401 = vmatpush1.bf16.msra.mxu0 %v3387
      %3402 = vmatprep.subr.bf16.mxu0 0
      %3403 = vmatpush1.bf16.msra.mxu0 %v3388
      %3404 = vmatprep.subr.bf16.mxu0 0
      %3405 = vmatpush1.bf16.msra.mxu0 0
      %3406 = vmatprep.subr.bf16.mxu0 0
      %3407 = vmatpush1.bf16.msra.mxu0 0
      %3408 = vmatprep.subr.bf16.mxu0 0
      %3409 = vmatpush1.bf16.msra.mxu0 0
      %3410 = vmatprep.subr.bf16.mxu0 0
      %3411 = vmatpush1.bf16.msra.mxu0 0
      %3412 = vmatprep.subr.bf16.mxu0 0
      %3413 = vmatpush1.bf16.msra.mxu0 0
      %3414 = vmatprep.subr.bf16.mxu0 0
      %3415 = vmatpush1.bf16.msra.mxu0 0
      %3416 = vmatprep.subr.bf16.mxu0 0
      %3417 = vmatpush1.bf16.msra.mxu0 0
      %3418 = vmatprep.subr.bf16.mxu0 0
      %3419 = vmatpush1.bf16.msra.mxu0 0
      %3420 = vmatprep.subr.bf16.mxu0 0
      %3421 = vmatpush1.bf16.msra.mxu0 0
      %3422 = vmatprep.subr.bf16.mxu0 0
      %3423 = vmatpush1.bf16.msra.mxu0 0
      %3424 = vmatprep.subr.bf16.mxu0 0
      %3425 = vmatpush1.bf16.msra.mxu0 0
      %3426 = vmatprep.subr.bf16.mxu0 0
      %3427 = vmatpush1.bf16.msra.mxu0 0
      %3428 = vmatprep.mubr.bf16.mxu0 0
      %3429 = vmatmul.mubr.bf16.gmra.mrb[0].mxu0 %v3394
      %v3430 = vpop.f32.mrb[0].mxu0
      %v3431 = vadd.f32 0.0, %v3430
      %v3432 = vpop.f32.mrb[0].mxu0
      %v3433 = vpop.f32.mrb[0].mxu0
      %v3434 = vpop.f32.mrb[0].mxu0
      %3435 = vdwg.mxu0
      %v3436 = vadd.f32 %v3285, %v3431
      %v3437 = vld [vmem:[%s14] sm:$0x1]
      %v3438 = vmul.f32 %v3436, %v3436
      %v3439 = vsel %vm551, %v3438, 0.0
      %3440 = vadd.xlane.f32.xlu0 %v3439
      %v3441 = vpop.xlane.xlu0 %3440
      %v3442 = vmul.f32 %v3441, %v555
      %v3443 = vadd.f32 %v3442, 1e-06
      %v3444 = vrsqrt.pop %v3443
      %v3445 = vmul.f32 %v3436, %v3444
      %v3446 = vmul.f32 %v3445, %v3437
      %v3447 = vld [vmem:[%s15] sm:$0xf]
      %v3448 = vld [vmem:[%s15 + $0x4] sm:$0xf]
      %v3449 = vld [vmem:[%s15 + $0x8] sm:$0xf]
      %v3450 = vld [vmem:[%s15 + $0xc] sm:$0xf]
      %v3451 = vpack.c.bf16 %v3446, %v3446
      %v3456 = vunpack.c.l.b16 %v3447
      %v3457 = vunpack.c.l.b16 %v3448
      %v3458 = vunpack.c.l.b16 %v3449
      %v3459 = vunpack.c.l.b16 %v3450
      %v3460 = vpack.c.b16 %v3457, %v3456
      %v3461 = vpack.c.b16 %v3459, %v3458
      %v3465 = vsel %vm578, %v3451, 0
      %3467 = vmatprep.subr.bf16.mxu0 0
      %3468 = vmatpush1.bf16.msra.mxu0 %v3460
      %3469 = vmatprep.subr.bf16.mxu0 0
      %3470 = vmatpush1.bf16.msra.mxu0 %v3461
      %3471 = vmatprep.subr.bf16.mxu0 0
      %3472 = vmatpush1.bf16.msra.mxu0 0
      %3473 = vmatprep.subr.bf16.mxu0 0
      %3474 = vmatpush1.bf16.msra.mxu0 0
      %3475 = vmatprep.subr.bf16.mxu0 0
      %3476 = vmatpush1.bf16.msra.mxu0 0
      %3477 = vmatprep.subr.bf16.mxu0 0
      %3478 = vmatpush1.bf16.msra.mxu0 0
      %3479 = vmatprep.subr.bf16.mxu0 0
      %3480 = vmatpush1.bf16.msra.mxu0 0
      %3481 = vmatprep.subr.bf16.mxu0 0
      %3482 = vmatpush1.bf16.msra.mxu0 0
      %3483 = vmatprep.subr.bf16.mxu0 0
      %3484 = vmatpush1.bf16.msra.mxu0 0
      %3485 = vmatprep.subr.bf16.mxu0 0
      %3486 = vmatpush1.bf16.msra.mxu0 0
      %3487 = vmatprep.subr.bf16.mxu0 0
      %3488 = vmatpush1.bf16.msra.mxu0 0
      %3489 = vmatprep.subr.bf16.mxu0 0
      %3490 = vmatpush1.bf16.msra.mxu0 0
      %3491 = vmatprep.subr.bf16.mxu0 0
      %3492 = vmatpush1.bf16.msra.mxu0 0
      %3493 = vmatprep.subr.bf16.mxu0 0
      %3494 = vmatpush1.bf16.msra.mxu0 0
      %3495 = vmatprep.subr.bf16.mxu0 0
      %3496 = vmatpush1.bf16.msra.mxu0 0
      %3497 = vmatprep.subr.bf16.mxu0 0
      %3498 = vmatpush1.bf16.msra.mxu0 0
      %3499 = vmatprep.mubr.bf16.mxu0 0
      %3500 = vmatmul.mubr.bf16.gmra.mrb[0].mxu0 %v3465
      %v3501 = vpop.f32.mrb[0].mxu0
      %v3502 = vadd.f32 0.0, %v3501
      %v3503 = vpop.f32.mrb[0].mxu0
      %v3504 = vpop.f32.mrb[0].mxu0
      %v3505 = vpop.f32.mrb[0].mxu0
      %3506 = vdwg.mxu0
      %3508 = vrot.lane.b32.xlu0 %v3502, 127
      %v3509 = vpop.permute.xlu0 %3508
      %v3511 = vmax.f32 %v3502, %v3509
      %v3512 = vsub.f32 %v3502, %v3511
      %v3513 = vmul.f32 %v3512, 1.442695
      %v3514 = vpow.pop %v3513
      %3516 = vrot.lane.b32.xlu0 %v3511, 1
      %v3517 = vpop.permute.xlu0 %3516
      %v3519 = vsub.f32 %v3502, %v3517
      %v3520 = vmul.f32 %v3519, 1.442695
      %v3521 = vpow.pop %v3520
      %3523 = vrot.lane.b32.xlu0 %v3521, 127
      %v3524 = vpop.permute.xlu0 %3523
      %v3526 = vadd.f32 %v3514, %v3524
      %v3527 = vlog2.pop %v3526
      %v3528 = vmul.f32 %v3527, 0.6931472
      %v3529 = vadd.f32 %v3511, %v3528
      %v3530 = vsub.f32 %v3502, %v3529
      %vm3531 = vcmask 0
      %3532 = vst.msk [vmem:[%s542] sm:$0x1] %vm3531, %v3530
      %p3533 = scmp.lt.s32.totalorder %s27, 1
      %s3534 = scalar_select %p3533, %s27, 1
      %s3535 = scalar_lea.vmem %s16, %s3534
      // Predicated region
      $region85: #{seq2seq_t5_score.3} parent=83 // pred_check
        %p3536 = pneg %p396
      $region86: #{seq2seq_t5_score.3} parent=83 // pred_check_branch
        %3538 = sbr.rel (%p3536) target = $region88
      $region87: #{seq2seq_t5_score.3} parent=83 // pred_region
        _
      $region88: #{seq2seq_t5_score.3} parent=83 // pred_fallthru
        _
    $region84: #{seq2seq_t5_score.3} parent=5 // pred_fallthru
      _
    %p3539 = scmp.le.s32.totalorder 2, %s22
    // Predicated region
    $region89: #{seq2seq_t5_score.3} parent=5 // pred_check
      %p3540 = pneg %p3539
    $region90: #{seq2seq_t5_score.3} parent=5 // pred_check_branch
      %3542 = sbr.rel (%p3540) target = $region92
    $region91: #{seq2seq_t5_score.3} parent=5 // pred_region
      %s3543 = ssub.s32 %s22, 2
      // Predicated region
      $region93: #{seq2seq_t5_score.3} parent=91 // pred_check
        %p3544 = pneg %p402
      $region94: #{seq2seq_t5_score.3} parent=91 // pred_check_branch
        %3546 = sbr.rel (%p3544) target = $region96
      $region95: #{seq2seq_t5_score.3} parent=91 // pred_region
        %p3547 = scmp.lt.s32.totalorder %s28, 1
        %s3548 = scalar_select %p3547, %s28, 1
        %s3549 = scalar_lea.vmem %s16, %s3548
      $region96: #{seq2seq_t5_score.3} parent=91 // pred_fallthru
        _
    $region92: #{seq2seq_t5_score.3} parent=5 // pred_fallthru
      _
  $region6: #{seq2seq_t5_score.3} parent=0 // loop_footer
    %s26 = sadd.s32 1, %s22
  $region7: #{seq2seq_t5_score.3} parent=0 // loop_footer_branch
    %21 = sbr.rel target = $region3
  $region8: #{seq2seq_t5_score.3} parent=0 // loop_exit
    _

</llo_original>
